<compile_context>
chip_gen: v6e
topology: v6e:2x2x1
jax: 0.10.0
libtpu: 0.0.40
codegen_flags: <defaults>
</compile_context>

<pallas_src>
import functools
import math

import jax
import jax.numpy as jnp
from jax import lax
from jax.experimental import pallas as pl
from jax.experimental.pallas import tpu as pltpu


def _round_up(x, m):
    return ((x + m - 1) // m) * m


_CHUNK = 64  # sequences per inner fori_loop step (bounds live ranges / register spills)


# ---------------------------------------------------------------------------
# Kernel: for a block of `seq_blk` sequences (processed in chunks of `chunk`):
#   fused QKV' projection -> per-head softmax(QK^T/sqrt(hd)) V' (out-proj pre-folded)
#   -> additive attention over the words -> (chunk, D) text vectors.
# ---------------------------------------------------------------------------
def _text_encoder_kernel(x_ref, wqkv_ref, bqkv_ref, bo_ref, wa_ref, ba_ref, qa_ref,
                         out_ref, *, num_heads, head_dim, chunk):
    seq_blk, L, D = x_ref.shape
    H, hd = num_heads, head_dim
    dm = H * hd                               # model dim (== D)
    Q = wa_ref.shape[1]
    scale = 1.0 / math.sqrt(hd)
    n_chunks = seq_blk // chunk

    wqkv = wqkv_ref[...]                      # (D, 2*dm + H*D)  bf16
    bqkv = bqkv_ref[...]                      # (1, 2*dm + H*D)  f32
    bo = bo_ref[...]                          # (1, D)           f32
    wa = wa_ref[...]                          # (D, Q)           bf16
    ba = ba_ref[...]                          # (1, Q)           f32
    qa = qa_ref[...]                          # (1, Q)           f32

    def body(c, carry):
        r0 = pl.multiple_of(c * chunk, chunk)
        x = x_ref[pl.ds(r0, chunk), :, :]                               # (chunk, L, D) bf16
        xf = x.reshape(chunk * L, D)

        # Fused projection, columns = [q_h0..h3 | k_h0..h3 | (Wv@Wo)_h0..h3]; f32 accumulate.
        qkv = jnp.dot(xf, wqkv, preferred_element_type=jnp.float32) + bqkv

        # Multi-head self-attention.  The output projection is folded into the V columns,
        # so summing head contributions == concat-heads-then-project (no lane concat).
        y = jnp.zeros((chunk, L, D), jnp.float32) + bo
        for h in range(H):
            q = qkv[:, h * hd:(h + 1) * hd].reshape(chunk, L, hd)
            k = qkv[:, dm + h * hd:dm + (h + 1) * hd].reshape(chunk, L, hd)
            vo = qkv[:, 2 * dm + h * D:2 * dm + (h + 1) * D].reshape(chunk, L, D)
            s = jnp.einsum("bld,bmd->blm", q, k,
                           preferred_element_type=jnp.float32) * scale  # (chunk, L, L)
            s = s - jnp.max(s, axis=-1, keepdims=True)
            p = jnp.exp(s)
            p = p * pl.reciprocal(jnp.sum(p, axis=-1, keepdims=True), approx=True)
            y = y + jnp.einsum("blm,bmd->bld", p, vo,
                               preferred_element_type=jnp.float32)      # (chunk, L, D)

        # Additive attention over the words (dropout before it is identity in eval mode).
        t = jnp.tanh(jnp.dot(y.reshape(chunk * L, D).astype(wa.dtype), wa,
                             preferred_element_type=jnp.float32) + ba)  # (chunk*L, Q)
        sc = jnp.sum(t.reshape(chunk, L, Q) * qa, axis=-1)              # (chunk, L)
        sc = sc - jnp.max(sc, axis=-1, keepdims=True)
        w = jnp.exp(sc)
        w = w * pl.reciprocal(jnp.sum(w, axis=-1, keepdims=True), approx=True)
        vec = jnp.sum(w[:, :, None] * y, axis=1)                        # (chunk, D)

        out_ref[pl.ds(r0, chunk), :] = vec
        return carry

    lax.fori_loop(0, n_chunks, body, 0)


def text_encode_pallas(x, p, seq_blk=512):
    """x: (N, L, D) float embedded text  ->  (N, D) text vectors."""
    N, L, D = x.shape
    H, _, HD = p["wq"].shape
    Q = p["wa"].shape[1]
    dm = H * HD

    # Block-size selection: inner compute chunks of _CHUNK sequences, large DMA blocks,
    # and >= 2 grid blocks whenever N allows (v7x megacore shards the parallel axis).
    if N <= _CHUNK:
        chunk = max(8, _round_up(N, 8))
        seq_blk = chunk
    else:
        chunk = _CHUNK
        seq_blk = max(chunk, min(_round_up(seq_blk, chunk),
                                 _round_up(-(-N // 2), chunk)))
    n_pad = _round_up(N, seq_blk)
    if n_pad != N:
        x = jnp.pad(x, ((0, n_pad - N), (0, 0), (0, 0)))

    # Fuse per-head weights into one wide projection; fold the MHA output projection
    # into the V columns:  columns = [q (H*HD) | k (H*HD) | wv_h @ wo_h (H*D)].
    wq_f = jnp.transpose(p["wq"], (1, 0, 2)).reshape(D, dm)
    wk_f = jnp.transpose(p["wk"], (1, 0, 2)).reshape(D, dm)
    wvo = jnp.einsum("hde,hef->hdf", p["wv"], p["wo"])              # (H, D, D)
    wvo_f = jnp.transpose(wvo, (1, 0, 2)).reshape(D, H * D)
    wqkv = jnp.concatenate([wq_f, wk_f, wvo_f], axis=1)             # (D, 2*dm + H*D)

    bq_f = p["bq"].reshape(1, dm)
    bk_f = p["bk"].reshape(1, dm)
    bvo_f = jnp.einsum("hxe,hef->hxf", p["bv"], p["wo"]).reshape(1, H * D)
    bqkv = jnp.concatenate([bq_f, bk_f, bvo_f], axis=1)             # (1, 2*dm + H*D)

    # bf16 matmul inputs (halves HBM/DMA bytes, MXU-native); f32 accumulate + f32 biases.
    x_bf = x.astype(jnp.bfloat16)
    wqkv = wqkv.astype(jnp.bfloat16)
    wa = p["wa"].astype(jnp.bfloat16)
    wtot = wqkv.shape[1]

    kernel = functools.partial(_text_encoder_kernel,
                               num_heads=H, head_dim=HD, chunk=chunk)
    out = pl.pallas_call(
        kernel,
        out_shape=jax.ShapeDtypeStruct((n_pad, D), jnp.float32),
        grid_spec=pltpu.PrefetchScalarGridSpec(
            num_scalar_prefetch=0,
            grid=(n_pad // seq_blk,),
            in_specs=[
                pl.BlockSpec((seq_blk, L, D), lambda i: (i, 0, 0)),     # x
                pl.BlockSpec((D, wtot), lambda i: (0, 0)),              # fused qkv' weight
                pl.BlockSpec((1, wtot), lambda i: (0, 0)),              # fused qkv' bias
                pl.BlockSpec((1, D), lambda i: (0, 0)),                 # out-proj bias
                pl.BlockSpec((D, Q), lambda i: (0, 0)),                 # additive-attn weight
                pl.BlockSpec((1, Q), lambda i: (0, 0)),                 # additive-attn bias
                pl.BlockSpec((1, Q), lambda i: (0, 0)),                 # additive-attn query
            ],
            out_specs=pl.BlockSpec((seq_blk, D), lambda i: (i, 0)),
        ),
        compiler_params=pltpu.CompilerParams(dimension_semantics=("parallel",)),
    )(x_bf, wqkv, bqkv, p["bo"], wa, p["ba"], p["qa"])
    return out[:N]


# ---------------------------------------------------------------------------
# TextEncoder forward (glue: embedding gather in plain JAX, then one pallas_call).
# ---------------------------------------------------------------------------
def text_encoder_forward(text, params, *, seq_blk=512):
    """TextEncoder.forward in eval mode (dropout = identity): tokens (..., L) -> (..., D)."""
    D = params["emb"].shape[1]
    L = text.shape[-1]
    # TODO(synk): fuse the embedding gather into the kernel (scalar-prefetched token ids +
    # manual DMA row gather) to drop the extra HBM round trip of the (N, L, D) activations.
    x = jnp.take(params["emb"], text.reshape(-1, L), axis=0)       # (N, L, D) f32
    vecs = text_encode_pallas(x, params, seq_blk=seq_blk)          # (N, D)
    return vecs.reshape(text.shape[:-1] + (D,))


# -------------------------- pure-JAX f32 reference -------------------------
def _reference(text, p):
    L = text.shape[-1]
    x = jnp.take(p["emb"], text.reshape(-1, L), axis=0)
    H, _, hd = p["wq"].shape
    y = jnp.zeros_like(x) + p["bo"]
    for h in range(H):
        q = x @ p["wq"][h] + p["bq"][h]
        k = x @ p["wk"][h] + p["bk"][h]
        v = x @ p["wv"][h] + p["bv"][h]
        s = jnp.einsum("nld,nmd->nlm", q, k) / math.sqrt(hd)
        a = jax.nn.softmax(s, axis=-1)
        y = y + jnp.einsum("nlm,nmd->nld", a, v) @ p["wo"][h]
    t = jnp.tanh(y @ p["wa"] + p["ba"])
    w = jax.nn.softmax(jnp.sum(t * p["qa"], axis=-1), axis=-1)
    out = jnp.einsum("nl,nld->nd", w, y)
    return out.reshape(text.shape[:-1] + (out.shape[-1],))


def init_params(key, vocab=50, D=32, H=4, Q=16):
    HD = D // H
    ks = jax.random.split(key, 12)
    r = lambda k, shape, s=0.1: jax.random.normal(k, shape, jnp.float32) * s
    emb = r(ks[0], (vocab, D)).at[0].set(0.0)      # padding_idx=0 row
    return dict(
        emb=emb,
        wq=r(ks[1], (H, D, HD)), wk=r(ks[2], (H, D, HD)), wv=r(ks[3], (H, D, HD)),
        bq=r(ks[4], (H, 1, HD)), bk=r(ks[5], (H, 1, HD)), bv=r(ks[6], (H, 1, HD)),
        wo=r(ks[7], (H, HD, D)), bo=r(ks[8], (1, D)),
        wa=r(ks[9], (D, Q)), ba=r(ks[10], (1, Q)), qa=r(ks[11], (1, Q)),
    )


if __name__ == "__main__":
    key = jax.random.PRNGKey(0)
    pkey, tkey = jax.random.split(key)

    VOCAB, D, H, Q = 50, 32, 4, 16
    BATCH, NUM_WORDS = 16, 8

    params = init_params(pkey, vocab=VOCAB, D=D, H=H, Q=Q)
    text = jax.random.randint(tkey, (BATCH, NUM_WORDS), 0, VOCAB, dtype=jnp.int32)

    out = jax.jit(text_encoder_forward)(text, params)
    out = jax.block_until_ready(out)
    assert out.shape == (BATCH, D), out.shape

    ref = _reference(text, params)
    err = float(jnp.max(jnp.abs(out - ref)))
    # bf16 matmul inputs + approx-reciprocal softmax denominators -> looser-than-f32 tolerance
    assert jnp.allclose(out, ref, rtol=2e-2, atol=2e-2), err

    print("KERNEL_OK")
</pallas_src>

<mosaic_0001>
module attributes {stable_mosaic.version = 11 : i64} {
  func.func @_text_encoder_kernel(%arg0: i32, %arg1: memref<16x8x32xbf16, #tpu.memory_space<vmem>>, %arg2: memref<32x192xbf16, #tpu.memory_space<vmem>>, %arg3: memref<1x192xf32, #tpu.memory_space<vmem>>, %arg4: memref<1x32xf32, #tpu.memory_space<vmem>>, %arg5: memref<32x16xbf16, #tpu.memory_space<vmem>>, %arg6: memref<1x16xf32, #tpu.memory_space<vmem>>, %arg7: memref<1x16xf32, #tpu.memory_space<vmem>>, %arg8: memref<16x32xf32, #tpu.memory_space<vmem>>) attributes {dimension_semantics = [#tpu.dimension_semantics<parallel>], iteration_bounds = array<i64: 1>, scalar_prefetch = 0 : i64, scratch_operands = 0 : i64, tpu.core_type = #tpu.core_type<tc>, window_params = [{transform_indices = @transform_0, window_bounds = array<i64: 16, 8, 32>}, {pipeline_mode = #tpu.pipeline_mode<synchronous>, transform_indices = @transform_1, window_bounds = array<i64: 32, 192>}, {pipeline_mode = #tpu.pipeline_mode<synchronous>, transform_indices = @transform_2, window_bounds = array<i64: 1, 192>}, {pipeline_mode = #tpu.pipeline_mode<synchronous>, transform_indices = @transform_3, window_bounds = array<i64: 1, 32>}, {pipeline_mode = #tpu.pipeline_mode<synchronous>, transform_indices = @transform_4, window_bounds = array<i64: 32, 16>}, {pipeline_mode = #tpu.pipeline_mode<synchronous>, transform_indices = @transform_5, window_bounds = array<i64: 1, 16>}, {pipeline_mode = #tpu.pipeline_mode<synchronous>, transform_indices = @transform_6, window_bounds = array<i64: 1, 16>}, {transform_indices = @transform_7, window_bounds = array<i64: 16, 32>}]} {
    %c0 = arith.constant 0 : index
    %c0_0 = arith.constant 0 : index
    %0 = vector.load %arg2[%c0, %c0_0] : memref<32x192xbf16, #tpu.memory_space<vmem>>, vector<32x192xbf16>
    %c0_1 = arith.constant 0 : index
    %c0_2 = arith.constant 0 : index
    %1 = vector.load %arg3[%c0_1, %c0_2] : memref<1x192xf32, #tpu.memory_space<vmem>>, vector<1x192xf32>
    %c0_3 = arith.constant 0 : index
    %c0_4 = arith.constant 0 : index
    %2 = vector.load %arg4[%c0_3, %c0_4] : memref<1x32xf32, #tpu.memory_space<vmem>>, vector<1x32xf32>
    %c0_5 = arith.constant 0 : index
    %c0_6 = arith.constant 0 : index
    %3 = vector.load %arg5[%c0_5, %c0_6] : memref<32x16xbf16, #tpu.memory_space<vmem>>, vector<32x16xbf16>
    %c0_7 = arith.constant 0 : index
    %c0_8 = arith.constant 0 : index
    %4 = vector.load %arg6[%c0_7, %c0_8] : memref<1x16xf32, #tpu.memory_space<vmem>>, vector<1x16xf32>
    %c0_9 = arith.constant 0 : index
    %c0_10 = arith.constant 0 : index
    %5 = vector.load %arg7[%c0_9, %c0_10] : memref<1x16xf32, #tpu.memory_space<vmem>>, vector<1x16xf32>
    %c0_i32 = arith.constant 0 : i32
    %c16_i32 = arith.constant 16 : i32
    %6 = arith.muli %c0_i32, %c16_i32 : i32
    %7 = tpu.assume_multiple %6, 16 : i32
    %8 = arith.index_cast %7 : i32 to index
    %c0_11 = arith.constant 0 : index
    %c0_12 = arith.constant 0 : index
    %9 = vector.load %arg1[%8, %c0_11, %c0_12] : memref<16x8x32xbf16, #tpu.memory_space<vmem>>, vector<16x8x32xbf16>
    %10 = vector.shape_cast %9 : vector<16x8x32xbf16> to vector<128x32xbf16>
    %cst = arith.constant dense<0.000000e+00> : vector<128x192xf32>
    %11 = tpu.matmul %10, %0, %cst {dimension_numbers = #tpu.dot_dimension_numbers<[1], [0], [0], [1], [0, 0, 1, 1], [], []>} : vector<128x32xbf16>, vector<32x192xbf16>, vector<128x192xf32> -> vector<128x192xf32>
    %12 = vector.broadcast %1 : vector<1x192xf32> to vector<128x192xf32>
    %13 = arith.addf %11, %12 : vector<128x192xf32>
    %cst_13 = arith.constant 0.000000e+00 : f32
    %14 = vector.broadcast %cst_13 : f32 to vector<16x8x32xf32>
    %15 = vector.shape_cast %2 : vector<1x32xf32> to vector<1x1x32xf32>
    %16 = vector.broadcast %15 : vector<1x1x32xf32> to vector<16x8x32xf32>
    %17 = arith.addf %14, %16 : vector<16x8x32xf32>
    %18 = vector.extract_strided_slice %13 {offsets = [0, 0], sizes = [128, 8], strides = [1, 1]} : vector<128x192xf32> to vector<128x8xf32>
    %19 = vector.shape_cast %18 : vector<128x8xf32> to vector<16x8x8xf32>
    %20 = vector.extract_strided_slice %13 {offsets = [0, 32], sizes = [128, 8], strides = [1, 1]} : vector<128x192xf32> to vector<128x8xf32>
    %21 = vector.shape_cast %20 : vector<128x8xf32> to vector<16x8x8xf32>
    %22 = vector.extract_strided_slice %13 {offsets = [0, 64], sizes = [128, 32], strides = [1, 1]} : vector<128x192xf32> to vector<128x32xf32>
    %23 = vector.shape_cast %22 : vector<128x32xf32> to vector<16x8x32xf32>
    "tpu.trace_start"() <{level = 10 : i32, message = "bld,bmd->blm"}> : () -> ()
    %cst_14 = arith.constant dense<0.000000e+00> : vector<16x8x8xf32>
    %24 = tpu.matmul %19, %21, %cst_14 {dimension_numbers = #tpu.dot_dimension_numbers<[2], [2], [1], [1], [0, 0, 0, 1, 1, 1], [0], [0]>} : vector<16x8x8xf32>, vector<16x8x8xf32>, vector<16x8x8xf32> -> vector<16x8x8xf32>
    "tpu.trace_stop"() : () -> ()
    %cst_15 = arith.constant 0.353553385 : f32
    %25 = vector.broadcast %cst_15 : f32 to vector<16x8x8xf32>
    %26 = arith.mulf %24, %25 : vector<16x8x8xf32>
    %cst_16 = arith.constant dense<0xFF800000> : vector<16x8xf32>
    %27 = vector.multi_reduction <maximumf>, %26, %cst_16 [2] : vector<16x8x8xf32> to vector<16x8xf32>
    %28 = vector.shape_cast %27 : vector<16x8xf32> to vector<16x8x1xf32>
    %29 = vector.broadcast %28 : vector<16x8x1xf32> to vector<16x8x8xf32>
    %30 = arith.subf %26, %29 : vector<16x8x8xf32>
    %31 = math.exp %30 : vector<16x8x8xf32>
    %cst_17 = arith.constant dense<0.000000e+00> : vector<16x8xf32>
    %32 = vector.multi_reduction <add>, %31, %cst_17 [2] : vector<16x8x8xf32> to vector<16x8xf32>
    %33 = vector.shape_cast %32 : vector<16x8xf32> to vector<16x8x1xf32>
    %34 = tpu.reciprocal %33 {approx = true} : vector<16x8x1xf32> -> vector<16x8x1xf32>
    %35 = vector.broadcast %34 : vector<16x8x1xf32> to vector<16x8x8xf32>
    %36 = arith.mulf %31, %35 : vector<16x8x8xf32>
    "tpu.trace_start"() <{level = 10 : i32, message = "blm,bmd->bld"}> : () -> ()
    %cst_18 = arith.constant dense<0.000000e+00> : vector<16x8x32xf32>
    %37 = tpu.matmul %36, %23, %cst_18 {dimension_numbers = #tpu.dot_dimension_numbers<[2], [1], [1], [2], [0, 0, 0, 1, 1, 2], [0], [0]>} : vector<16x8x8xf32>, vector<16x8x32xf32>, vector<16x8x32xf32> -> vector<16x8x32xf32>
    "tpu.trace_stop"() : () -> ()
    %38 = arith.addf %17, %37 : vector<16x8x32xf32>
    %39 = vector.extract_strided_slice %13 {offsets = [0, 8], sizes = [128, 8], strides = [1, 1]} : vector<128x192xf32> to vector<128x8xf32>
    %40 = vector.shape_cast %39 : vector<128x8xf32> to vector<16x8x8xf32>
    %41 = vector.extract_strided_slice %13 {offsets = [0, 40], sizes = [128, 8], strides = [1, 1]} : vector<128x192xf32> to vector<128x8xf32>
    %42 = vector.shape_cast %41 : vector<128x8xf32> to vector<16x8x8xf32>
    %43 = vector.extract_strided_slice %13 {offsets = [0, 96], sizes = [128, 32], strides = [1, 1]} : vector<128x192xf32> to vector<128x32xf32>
    %44 = vector.shape_cast %43 : vector<128x32xf32> to vector<16x8x32xf32>
    "tpu.trace_start"() <{level = 10 : i32, message = "bld,bmd->blm"}> : () -> ()
    %cst_19 = arith.constant dense<0.000000e+00> : vector<16x8x8xf32>
    %45 = tpu.matmul %40, %42, %cst_19 {dimension_numbers = #tpu.dot_dimension_numbers<[2], [2], [1], [1], [0, 0, 0, 1, 1, 1], [0], [0]>} : vector<16x8x8xf32>, vector<16x8x8xf32>, vector<16x8x8xf32> -> vector<16x8x8xf32>
    "tpu.trace_stop"() : () -> ()
    %cst_20 = arith.constant 0.353553385 : f32
    %46 = vector.broadcast %cst_20 : f32 to vector<16x8x8xf32>
    %47 = arith.mulf %45, %46 : vector<16x8x8xf32>
    %cst_21 = arith.constant dense<0xFF800000> : vector<16x8xf32>
    %48 = vector.multi_reduction <maximumf>, %47, %cst_21 [2] : vector<16x8x8xf32> to vector<16x8xf32>
    %49 = vector.shape_cast %48 : vector<16x8xf32> to vector<16x8x1xf32>
    %50 = vector.broadcast %49 : vector<16x8x1xf32> to vector<16x8x8xf32>
    %51 = arith.subf %47, %50 : vector<16x8x8xf32>
    %52 = math.exp %51 : vector<16x8x8xf32>
    %cst_22 = arith.constant dense<0.000000e+00> : vector<16x8xf32>
    %53 = vector.multi_reduction <add>, %52, %cst_22 [2] : vector<16x8x8xf32> to vector<16x8xf32>
    %54 = vector.shape_cast %53 : vector<16x8xf32> to vector<16x8x1xf32>
    %55 = tpu.reciprocal %54 {approx = true} : vector<16x8x1xf32> -> vector<16x8x1xf32>
    %56 = vector.broadcast %55 : vector<16x8x1xf32> to vector<16x8x8xf32>
    %57 = arith.mulf %52, %56 : vector<16x8x8xf32>
    "tpu.trace_start"() <{level = 10 : i32, message = "blm,bmd->bld"}> : () -> ()
    %cst_23 = arith.constant dense<0.000000e+00> : vector<16x8x32xf32>
    %58 = tpu.matmul %57, %44, %cst_23 {dimension_numbers = #tpu.dot_dimension_numbers<[2], [1], [1], [2], [0, 0, 0, 1, 1, 2], [0], [0]>} : vector<16x8x8xf32>, vector<16x8x32xf32>, vector<16x8x32xf32> -> vector<16x8x32xf32>
    "tpu.trace_stop"() : () -> ()
    %59 = arith.addf %38, %58 : vector<16x8x32xf32>
    %60 = vector.extract_strided_slice %13 {offsets = [0, 16], sizes = [128, 8], strides = [1, 1]} : vector<128x192xf32> to vector<128x8xf32>
    %61 = vector.shape_cast %60 : vector<128x8xf32> to vector<16x8x8xf32>
    %62 = vector.extract_strided_slice %13 {offsets = [0, 48], sizes = [128, 8], strides = [1, 1]} : vector<128x192xf32> to vector<128x8xf32>
    %63 = vector.shape_cast %62 : vector<128x8xf32> to vector<16x8x8xf32>
    %64 = vector.extract_strided_slice %13 {offsets = [0, 128], sizes = [128, 32], strides = [1, 1]} : vector<128x192xf32> to vector<128x32xf32>
    %65 = vector.shape_cast %64 : vector<128x32xf32> to vector<16x8x32xf32>
    "tpu.trace_start"() <{level = 10 : i32, message = "bld,bmd->blm"}> : () -> ()
    %cst_24 = arith.constant dense<0.000000e+00> : vector<16x8x8xf32>
    %66 = tpu.matmul %61, %63, %cst_24 {dimension_numbers = #tpu.dot_dimension_numbers<[2], [2], [1], [1], [0, 0, 0, 1, 1, 1], [0], [0]>} : vector<16x8x8xf32>, vector<16x8x8xf32>, vector<16x8x8xf32> -> vector<16x8x8xf32>
    "tpu.trace_stop"() : () -> ()
    %cst_25 = arith.constant 0.353553385 : f32
    %67 = vector.broadcast %cst_25 : f32 to vector<16x8x8xf32>
    %68 = arith.mulf %66, %67 : vector<16x8x8xf32>
    %cst_26 = arith.constant dense<0xFF800000> : vector<16x8xf32>
    %69 = vector.multi_reduction <maximumf>, %68, %cst_26 [2] : vector<16x8x8xf32> to vector<16x8xf32>
    %70 = vector.shape_cast %69 : vector<16x8xf32> to vector<16x8x1xf32>
    %71 = vector.broadcast %70 : vector<16x8x1xf32> to vector<16x8x8xf32>
    %72 = arith.subf %68, %71 : vector<16x8x8xf32>
    %73 = math.exp %72 : vector<16x8x8xf32>
    %cst_27 = arith.constant dense<0.000000e+00> : vector<16x8xf32>
    %74 = vector.multi_reduction <add>, %73, %cst_27 [2] : vector<16x8x8xf32> to vector<16x8xf32>
    %75 = vector.shape_cast %74 : vector<16x8xf32> to vector<16x8x1xf32>
    %76 = tpu.reciprocal %75 {approx = true} : vector<16x8x1xf32> -> vector<16x8x1xf32>
    %77 = vector.broadcast %76 : vector<16x8x1xf32> to vector<16x8x8xf32>
    %78 = arith.mulf %73, %77 : vector<16x8x8xf32>
    "tpu.trace_start"() <{level = 10 : i32, message = "blm,bmd->bld"}> : () -> ()
    %cst_28 = arith.constant dense<0.000000e+00> : vector<16x8x32xf32>
    %79 = tpu.matmul %78, %65, %cst_28 {dimension_numbers = #tpu.dot_dimension_numbers<[2], [1], [1], [2], [0, 0, 0, 1, 1, 2], [0], [0]>} : vector<16x8x8xf32>, vector<16x8x32xf32>, vector<16x8x32xf32> -> vector<16x8x32xf32>
    "tpu.trace_stop"() : () -> ()
    %80 = arith.addf %59, %79 : vector<16x8x32xf32>
    %81 = vector.extract_strided_slice %13 {offsets = [0, 24], sizes = [128, 8], strides = [1, 1]} : vector<128x192xf32> to vector<128x8xf32>
    %82 = vector.shape_cast %81 : vector<128x8xf32> to vector<16x8x8xf32>
    %83 = vector.extract_strided_slice %13 {offsets = [0, 56], sizes = [128, 8], strides = [1, 1]} : vector<128x192xf32> to vector<128x8xf32>
    %84 = vector.shape_cast %83 : vector<128x8xf32> to vector<16x8x8xf32>
    %85 = vector.extract_strided_slice %13 {offsets = [0, 160], sizes = [128, 32], strides = [1, 1]} : vector<128x192xf32> to vector<128x32xf32>
    %86 = vector.shape_cast %85 : vector<128x32xf32> to vector<16x8x32xf32>
    "tpu.trace_start"() <{level = 10 : i32, message = "bld,bmd->blm"}> : () -> ()
    %cst_29 = arith.constant dense<0.000000e+00> : vector<16x8x8xf32>
    %87 = tpu.matmul %82, %84, %cst_29 {dimension_numbers = #tpu.dot_dimension_numbers<[2], [2], [1], [1], [0, 0, 0, 1, 1, 1], [0], [0]>} : vector<16x8x8xf32>, vector<16x8x8xf32>, vector<16x8x8xf32> -> vector<16x8x8xf32>
    "tpu.trace_stop"() : () -> ()
    %cst_30 = arith.constant 0.353553385 : f32
    %88 = vector.broadcast %cst_30 : f32 to vector<16x8x8xf32>
    %89 = arith.mulf %87, %88 : vector<16x8x8xf32>
    %cst_31 = arith.constant dense<0xFF800000> : vector<16x8xf32>
    %90 = vector.multi_reduction <maximumf>, %89, %cst_31 [2] : vector<16x8x8xf32> to vector<16x8xf32>
    %91 = vector.shape_cast %90 : vector<16x8xf32> to vector<16x8x1xf32>
    %92 = vector.broadcast %91 : vector<16x8x1xf32> to vector<16x8x8xf32>
    %93 = arith.subf %89, %92 : vector<16x8x8xf32>
    %94 = math.exp %93 : vector<16x8x8xf32>
    %cst_32 = arith.constant dense<0.000000e+00> : vector<16x8xf32>
    %95 = vector.multi_reduction <add>, %94, %cst_32 [2] : vector<16x8x8xf32> to vector<16x8xf32>
    %96 = vector.shape_cast %95 : vector<16x8xf32> to vector<16x8x1xf32>
    %97 = tpu.reciprocal %96 {approx = true} : vector<16x8x1xf32> -> vector<16x8x1xf32>
    %98 = vector.broadcast %97 : vector<16x8x1xf32> to vector<16x8x8xf32>
    %99 = arith.mulf %94, %98 : vector<16x8x8xf32>
    "tpu.trace_start"() <{level = 10 : i32, message = "blm,bmd->bld"}> : () -> ()
    %cst_33 = arith.constant dense<0.000000e+00> : vector<16x8x32xf32>
    %100 = tpu.matmul %99, %86, %cst_33 {dimension_numbers = #tpu.dot_dimension_numbers<[2], [1], [1], [2], [0, 0, 0, 1, 1, 2], [0], [0]>} : vector<16x8x8xf32>, vector<16x8x32xf32>, vector<16x8x32xf32> -> vector<16x8x32xf32>
    "tpu.trace_stop"() : () -> ()
    %101 = arith.addf %80, %100 : vector<16x8x32xf32>
    %102 = vector.shape_cast %101 : vector<16x8x32xf32> to vector<128x32xf32>
    %103 = arith.truncf %102 : vector<128x32xf32> to vector<128x32xbf16>
    %cst_34 = arith.constant dense<0.000000e+00> : vector<128x16xf32>
    %104 = tpu.matmul %103, %3, %cst_34 {dimension_numbers = #tpu.dot_dimension_numbers<[1], [0], [0], [1], [0, 0, 1, 1], [], []>} : vector<128x32xbf16>, vector<32x16xbf16>, vector<128x16xf32> -> vector<128x16xf32>
    %105 = vector.broadcast %4 : vector<1x16xf32> to vector<128x16xf32>
    %106 = arith.addf %104, %105 : vector<128x16xf32>
    %107 = math.tanh %106 : vector<128x16xf32>
    %108 = vector.shape_cast %107 : vector<128x16xf32> to vector<16x8x16xf32>
    %109 = vector.shape_cast %5 : vector<1x16xf32> to vector<1x1x16xf32>
    %110 = vector.broadcast %109 : vector<1x1x16xf32> to vector<16x8x16xf32>
    %111 = arith.mulf %108, %110 : vector<16x8x16xf32>
    %cst_35 = arith.constant dense<0.000000e+00> : vector<16x8xf32>
    %112 = vector.multi_reduction <add>, %111, %cst_35 [2] : vector<16x8x16xf32> to vector<16x8xf32>
    %cst_36 = arith.constant dense<0xFF800000> : vector<16xf32>
    %113 = vector.multi_reduction <maximumf>, %112, %cst_36 [1] : vector<16x8xf32> to vector<16xf32>
    %114 = vector.shape_cast %113 : vector<16xf32> to vector<16x1xf32>
    %115 = vector.broadcast %114 : vector<16x1xf32> to vector<16x8xf32>
    %116 = arith.subf %112, %115 : vector<16x8xf32>
    %117 = math.exp %116 : vector<16x8xf32>
    %cst_37 = arith.constant dense<0.000000e+00> : vector<16xf32>
    %118 = vector.multi_reduction <add>, %117, %cst_37 [1] : vector<16x8xf32> to vector<16xf32>
    %119 = vector.shape_cast %118 : vector<16xf32> to vector<16x1xf32>
    %120 = tpu.reciprocal %119 {approx = true} : vector<16x1xf32> -> vector<16x1xf32>
    %121 = vector.broadcast %120 : vector<16x1xf32> to vector<16x8xf32>
    %122 = arith.mulf %117, %121 : vector<16x8xf32>
    %123 = vector.shape_cast %122 : vector<16x8xf32> to vector<16x8x1xf32>
    %124 = vector.broadcast %123 : vector<16x8x1xf32> to vector<16x8x32xf32>
    %125 = arith.mulf %124, %101 : vector<16x8x32xf32>
    %cst_38 = arith.constant dense<0.000000e+00> : vector<16x32xf32>
    %126 = vector.multi_reduction <add>, %125, %cst_38 [1] : vector<16x8x32xf32> to vector<16x32xf32>
    %127 = arith.index_cast %7 : i32 to index
    %c0_39 = arith.constant 0 : index
    %128 = vector.load %arg8[%127, %c0_39] : memref<16x32xf32, #tpu.memory_space<vmem>>, vector<16x32xf32>
    tpu.vector_store %arg8[%127, %c0_39], %126 {strides = array<i32>} : memref<16x32xf32, #tpu.memory_space<vmem>>, vector<16x32xf32>,
    %c1_i32 = arith.constant 1 : i32
    return
  }
  func.func @transform_0(%arg0: i32) -> (i32, i32, i32) {
    %c0_i32 = arith.constant 0 : i32
    %c0_i32_0 = arith.constant 0 : i32
    %c0_i32_1 = arith.constant 0 : i32
    return %arg0, %c0_i32, %c0_i32_0 : i32, i32, i32
  }
  func.func @transform_1(%arg0: i32) -> (i32, i32) {
    %c0_i32 = arith.constant 0 : i32
    %c0_i32_0 = arith.constant 0 : i32
    %c0_i32_1 = arith.constant 0 : i32
    return %c0_i32, %c0_i32_0 : i32, i32
  }
  func.func @transform_2(%arg0: i32) -> (i32, i32) {
    %c0_i32 = arith.constant 0 : i32
    %c0_i32_0 = arith.constant 0 : i32
    %c0_i32_1 = arith.constant 0 : i32
    return %c0_i32, %c0_i32_0 : i32, i32
  }
  func.func @transform_3(%arg0: i32) -> (i32, i32) {
    %c0_i32 = arith.constant 0 : i32
    %c0_i32_0 = arith.constant 0 : i32
    %c0_i32_1 = arith.constant 0 : i32
    return %c0_i32, %c0_i32_0 : i32, i32
  }
  func.func @transform_4(%arg0: i32) -> (i32, i32) {
    %c0_i32 = arith.constant 0 : i32
    %c0_i32_0 = arith.constant 0 : i32
    %c0_i32_1 = arith.constant 0 : i32
    return %c0_i32, %c0_i32_0 : i32, i32
  }
  func.func @transform_5(%arg0: i32) -> (i32, i32) {
    %c0_i32 = arith.constant 0 : i32
    %c0_i32_0 = arith.constant 0 : i32
    %c0_i32_1 = arith.constant 0 : i32
    return %c0_i32, %c0_i32_0 : i32, i32
  }
  func.func @transform_6(%arg0: i32) -> (i32, i32) {
    %c0_i32 = arith.constant 0 : i32
    %c0_i32_0 = arith.constant 0 : i32
    %c0_i32_1 = arith.constant 0 : i32
    return %c0_i32, %c0_i32_0 : i32, i32
  }
  func.func @transform_7(%arg0: i32) -> (i32, i32) {
    %c0_i32 = arith.constant 0 : i32
    %c0_i32_0 = arith.constant 0 : i32
    return %arg0, %c0_i32 : i32, i32
  }
}

</mosaic_0001>

<llo_original>
// kernel: text_encoder_forward.1
$region0: #{text_encoder_forward.1}
  #allocation0 [shape = 'u32[]', space=smem, size = 0x4, offset = 0x4, fixed_abs, tag = 'smem constant byte address 0x4 - core index']
  #allocation1 [shape = 'u32[144,128]{1,0:T(1,128)}', space=vmem, size = 0x12000, scoped, tag = 'internal scratch']
  %s0 = inlined_call_operand.vmem [shape: bf16[16,8,32], index: 0, kind: input, shape index: {}]
  %s1 = inlined_call_operand.vmem [shape: bf16[32,192], index: 1, kind: input, shape index: {}]
  %s2 = inlined_call_operand.vmem [shape: f32[1,192], index: 2, kind: input, shape index: {}]
  %s3 = inlined_call_operand.vmem [shape: f32[1,32], index: 3, kind: input, shape index: {}]
  %s4 = inlined_call_operand.vmem [shape: bf16[32,16], index: 4, kind: input, shape index: {}]
  %s5 = inlined_call_operand.vmem [shape: f32[1,16], index: 5, kind: input, shape index: {}]
  %s6 = inlined_call_operand.vmem [shape: f32[1,16], index: 6, kind: input, shape index: {}]
  %s7 = inlined_call_operand.hbm [shape: f32[16,32], index: 7, kind: output, shape index: {}]
  %s8 = sld [smem:[#allocation0]]
  $region38: #{text_encoder_forward.1} parent=0
    _
  %s10 = ssub.s32 1, %s8
  %s11 = scalar_select 0, %s10, %s8
  $region1: #{text_encoder_forward.1} parent=0
    #allocation2 [shape = 'u8[8192]{0}', space=vmem, size = 0x2000, scoped, tag = 'output window, operand 0, single buffered']
    #allocation3 [shape = 's32[1]{0}', space=sflag, size = 0x4, scoped, tag = 'scoped memory for text_encoder_forward.1']
    %12 = vsyncpa [#allocation3], 0
    // Predicated region
    $region2: #{text_encoder_forward.1} parent=1 // pred_check
      _
    $region3: #{text_encoder_forward.1} parent=1 // pred_check_branch
      %14 = sbr.rel (0) target = $region5
    $region4: #{text_encoder_forward.1} parent=1 // pred_region
      _
    $region5: #{text_encoder_forward.1} parent=1 // pred_fallthru
      _
    // Predicated region
    $region6: #{text_encoder_forward.1} parent=1 // pred_check
      _
    $region7: #{text_encoder_forward.1} parent=1 // pred_check_branch
      %16 = sbr.rel (0) target = $region9
    $region8: #{text_encoder_forward.1} parent=1 // pred_region
      _
    $region9: #{text_encoder_forward.1} parent=1 // pred_fallthru
      _
    // Predicated region
    $region10: #{text_encoder_forward.1} parent=1 // pred_check
      _
    $region11: #{text_encoder_forward.1} parent=1 // pred_check_branch
      %18 = sbr.rel (0) target = $region13
    $region12: #{text_encoder_forward.1} parent=1 // pred_region
      _
    $region13: #{text_encoder_forward.1} parent=1 // pred_fallthru
      _
    // Predicated region
    $region14: #{text_encoder_forward.1} parent=1 // pred_check
      _
    $region15: #{text_encoder_forward.1} parent=1 // pred_check_branch
      %20 = sbr.rel (0) target = $region17
    $region16: #{text_encoder_forward.1} parent=1 // pred_region
      _
    $region17: #{text_encoder_forward.1} parent=1 // pred_fallthru
      _
    // Predicated region
    $region18: #{text_encoder_forward.1} parent=1 // pred_check
      _
    $region19: #{text_encoder_forward.1} parent=1 // pred_check_branch
      %22 = sbr.rel (0) target = $region21
    $region20: #{text_encoder_forward.1} parent=1 // pred_region
      _
    $region21: #{text_encoder_forward.1} parent=1 // pred_fallthru
      _
    // Predicated region
    $region22: #{text_encoder_forward.1} parent=1 // pred_check
      _
    $region23: #{text_encoder_forward.1} parent=1 // pred_check_branch
      %24 = sbr.rel (0) target = $region25
    $region24: #{text_encoder_forward.1} parent=1 // pred_region
      _
    $region25: #{text_encoder_forward.1} parent=1 // pred_fallthru
      _
    // Predicated region
    $region26: #{text_encoder_forward.1} parent=1 // pred_check
      _
    $region27: #{text_encoder_forward.1} parent=1 // pred_check_branch
      %26 = sbr.rel (0) target = $region29
    $region28: #{text_encoder_forward.1} parent=1 // pred_region
      _
    $region29: #{text_encoder_forward.1} parent=1 // pred_fallthru
      _
    %v28 = vld [vmem:[%s1] sm:$0xff]
    %v29 = vld [vmem:[%s1 + $0x8] sm:$0xff]
    %v30 = vld [vmem:[%s1 + $0x10] sm:$0xff]
    %v31 = vld [vmem:[%s1 + $0x18] sm:$0xff]
    %v32 = vld [vmem:[%s2] sm:$0x3]
    %v33 = vld [vmem:[%s3] sm:$0x1]
    %v34 = vld [vmem:[%s4] sm:$0xf]
    %v35 = vld [vmem:[%s4 + $0x4] sm:$0xf]
    %v36 = vld [vmem:[%s4 + $0x8] sm:$0xf]
    %v37 = vld [vmem:[%s4 + $0xc] sm:$0xf]
    %v38 = vld [vmem:[%s5] sm:$0x1]
    %v39 = vld [vmem:[%s6] sm:$0x1]
    %v40 = vld [vmem:[%s0] sm:$0xf]
    %v41 = vld [vmem:[%s0 + $0x4] sm:$0xf]
    %v42 = vld [vmem:[%s0 + $0x8] sm:$0xf]
    %v43 = vld [vmem:[%s0 + $0xc] sm:$0xf]
    %v44 = vld [vmem:[%s0 + $0x10] sm:$0xf]
    %v45 = vld [vmem:[%s0 + $0x14] sm:$0xf]
    %v46 = vld [vmem:[%s0 + $0x18] sm:$0xf]
    %v47 = vld [vmem:[%s0 + $0x1c] sm:$0xf]
    %v48 = vld [vmem:[%s0 + $0x20] sm:$0xf]
    %v49 = vld [vmem:[%s0 + $0x24] sm:$0xf]
    %v50 = vld [vmem:[%s0 + $0x28] sm:$0xf]
    %v51 = vld [vmem:[%s0 + $0x2c] sm:$0xf]
    %v52 = vld [vmem:[%s0 + $0x30] sm:$0xf]
    %v53 = vld [vmem:[%s0 + $0x34] sm:$0xf]
    %v54 = vld [vmem:[%s0 + $0x38] sm:$0xf]
    %v55 = vld [vmem:[%s0 + $0x3c] sm:$0xf]
    %v57 = vlaneseq
    %v58 = vshrl.u32 %v57, 7
    %v59 = vsub.s32 0, %v58
    %v60 = vrot.slane %v32, %v59
    %v61 = vlaneseq
    %v62 = vshrl.u32 %v61, 7
    %v63 = vsub.s32 1, %v62
    %v64 = vrot.slane %v32, %v63
    %v83 = vunpack.c.l.b16 %v40
    %v84 = vunpack.c.l.b16 %v41
    %v85 = vunpack.c.l.b16 %v42
    %v86 = vunpack.c.l.b16 %v43
    %v87 = vunpack.c.l.b16 %v44
    %v88 = vunpack.c.l.b16 %v45
    %v89 = vunpack.c.l.b16 %v46
    %v90 = vunpack.c.l.b16 %v47
    %v91 = vunpack.c.l.b16 %v48
    %v92 = vunpack.c.l.b16 %v49
    %v93 = vunpack.c.l.b16 %v50
    %v94 = vunpack.c.l.b16 %v51
    %v95 = vunpack.c.l.b16 %v52
    %v96 = vunpack.c.l.b16 %v53
    %v97 = vunpack.c.l.b16 %v54
    %v98 = vunpack.c.l.b16 %v55
    %v99 = vpack.c.b16 %v84, %v83
    %v100 = vpack.c.b16 %v86, %v85
    %v101 = vpack.c.b16 %v88, %v87
    %v102 = vpack.c.b16 %v90, %v89
    %v103 = vpack.c.b16 %v92, %v91
    %v104 = vpack.c.b16 %v94, %v93
    %v105 = vpack.c.b16 %v96, %v95
    %v106 = vpack.c.b16 %v98, %v97
    %v111 = vunpack.c.l.b16 %v28
    %v112 = vunpack.c.h.b16 %v28
    %v113 = vunpack.c.l.b16 %v29
    %v114 = vunpack.c.h.b16 %v29
    %v115 = vunpack.c.l.b16 %v30
    %v116 = vunpack.c.h.b16 %v30
    %v117 = vunpack.c.l.b16 %v31
    %v118 = vunpack.c.h.b16 %v31
    %v119 = vpack.c.b16 %v113, %v111
    %v120 = vpack.c.b16 %v114, %v112
    %v121 = vpack.c.b16 %v117, %v115
    %v122 = vpack.c.b16 %v118, %v116
    %vm127 = vcmask 261120
    %v129 = vsel %vm127, %v99, 0
    %v132 = vsel %vm127, %v100, 0
    %v135 = vsel %vm127, %v101, 0
    %v138 = vsel %vm127, %v102, 0
    %v141 = vsel %vm127, %v103, 0
    %v144 = vsel %vm127, %v104, 0
    %v147 = vsel %vm127, %v105, 0
    %v150 = vsel %vm127, %v106, 0
    %152 = vmatprep.subr.bf16.mxu0 0
    %153 = vmatpush1.bf16.msra.mxu0 0
    %154 = vmatprep.subr.bf16.mxu0 0
    %155 = vmatpush1.bf16.msra.mxu0 0
    %156 = vmatprep.subr.bf16.mxu0 0
    %157 = vmatpush1.bf16.msra.mxu0 0
    %158 = vmatprep.subr.bf16.mxu0 0
    %159 = vmatpush1.bf16.msra.mxu0 0
    %160 = vmatprep.subr.bf16.mxu0 0
    %161 = vmatpush1.bf16.msra.mxu0 0
    %162 = vmatprep.subr.bf16.mxu0 0
    %163 = vmatpush1.bf16.msra.mxu0 0
    %164 = vmatprep.subr.bf16.mxu0 %v122
    %165 = vmatpush1.bf16.msra.mxu0 %v121
    %166 = vmatprep.subr.bf16.mxu0 %v120
    %167 = vmatpush1.bf16.msra.mxu0 %v119
    %168 = vmatprep.subr.bf16.mxu0 0
    %169 = vmatpush2.bf16.msra.mxu0 0
    %170 = vmatprep.subr.bf16.mxu0 0
    %171 = vmatpush2.bf16.msra.mxu0 0
    %172 = vmatprep.subr.bf16.mxu0 0
    %173 = vmatpush2.bf16.msra.mxu0 0
    %174 = vmatprep.subr.bf16.mxu0 0
    %175 = vmatpush2.bf16.msra.mxu0 0
    %176 = vmatprep.subr.bf16.mxu0 0
    %177 = vmatpush2.bf16.msra.mxu0 0
    %178 = vmatprep.subr.bf16.mxu0 0
    %179 = vmatpush2.bf16.msra.mxu0 0
    %180 = vmatprep.subr.bf16.mxu0 0
    %181 = vmatpush2.bf16.msra.mxu0 0
    %182 = vmatprep.subr.bf16.mxu0 0
    %183 = vmatpush2.bf16.msra.mxu0 0
    %184 = vmatprep.mubr.bf16.mxu0 0
    %185 = vmatmul.mubr.bf16.gmra.mxu0 %v129
    %v186 = vpop.f32.mrf.mxu0
    %v187 = vadd.f32 %v60, %v186
    %v188 = vpop.f32.mrf.mxu0
    %v189 = vadd.f32 %v64, %v188
    %v190 = vpop.f32.mrf.mxu0
    %v191 = vadd.f32 %v60, %v190
    %v192 = vpop.f32.mrf.mxu0
    %v193 = vadd.f32 %v64, %v192
    %194 = vmatprep.mubr.bf16.mxu0 0
    %195 = vmatmul.mubr.bf16.gmra.mxu0 %v132
    %v196 = vpop.f32.mrf.mxu0
    %v197 = vadd.f32 %v60, %v196
    %v198 = vpop.f32.mrf.mxu0
    %v199 = vadd.f32 %v64, %v198
    %v200 = vpop.f32.mrf.mxu0
    %v201 = vadd.f32 %v60, %v200
    %v202 = vpop.f32.mrf.mxu0
    %v203 = vadd.f32 %v64, %v202
    %204 = vmatprep.mubr.bf16.mxu0 0
    %205 = vmatmul.mubr.bf16.gmra.mxu0 %v135
    %v206 = vpop.f32.mrf.mxu0
    %v207 = vadd.f32 %v60, %v206
    %v208 = vpop.f32.mrf.mxu0
    %v209 = vadd.f32 %v64, %v208
    %v210 = vpop.f32.mrf.mxu0
    %v211 = vadd.f32 %v60, %v210
    %v212 = vpop.f32.mrf.mxu0
    %v213 = vadd.f32 %v64, %v212
    %214 = vmatprep.mubr.bf16.mxu0 0
    %215 = vmatmul.mubr.bf16.gmra.mxu0 %v138
    %v216 = vpop.f32.mrf.mxu0
    %v217 = vadd.f32 %v60, %v216
    %v218 = vpop.f32.mrf.mxu0
    %v219 = vadd.f32 %v64, %v218
    %v220 = vpop.f32.mrf.mxu0
    %v221 = vadd.f32 %v60, %v220
    %v222 = vpop.f32.mrf.mxu0
    %v223 = vadd.f32 %v64, %v222
    %224 = vmatprep.mubr.bf16.mxu0 0
    %225 = vmatmul.mubr.bf16.gmra.mxu0 %v141
    %v226 = vpop.f32.mrf.mxu0
    %v227 = vadd.f32 %v60, %v226
    %v228 = vpop.f32.mrf.mxu0
    %v229 = vadd.f32 %v64, %v228
    %v230 = vpop.f32.mrf.mxu0
    %v231 = vadd.f32 %v60, %v230
    %v232 = vpop.f32.mrf.mxu0
    %v233 = vadd.f32 %v64, %v232
    %234 = vmatprep.mubr.bf16.mxu0 0
    %235 = vmatmul.mubr.bf16.gmra.mxu0 %v144
    %v236 = vpop.f32.mrf.mxu0
    %v237 = vadd.f32 %v60, %v236
    %v238 = vpop.f32.mrf.mxu0
    %v239 = vadd.f32 %v64, %v238
    %v240 = vpop.f32.mrf.mxu0
    %v241 = vadd.f32 %v60, %v240
    %v242 = vpop.f32.mrf.mxu0
    %v243 = vadd.f32 %v64, %v242
    %244 = vmatprep.mubr.bf16.mxu0 0
    %245 = vmatmul.mubr.bf16.gmra.mxu0 %v147
    %v246 = vpop.f32.mrf.mxu0
    %v247 = vadd.f32 %v60, %v246
    %v248 = vpop.f32.mrf.mxu0
    %v249 = vadd.f32 %v64, %v248
    %v250 = vpop.f32.mrf.mxu0
    %v251 = vadd.f32 %v60, %v250
    %v252 = vpop.f32.mrf.mxu0
    %v253 = vadd.f32 %v64, %v252
    %254 = vmatprep.mubr.bf16.mxu0 0
    %255 = vmatmul.mubr.bf16.gmra.mxu0 %v150
    %v256 = vpop.f32.mrf.mxu0
    %v257 = vadd.f32 %v60, %v256
    %v258 = vpop.f32.mrf.mxu0
    %v259 = vadd.f32 %v64, %v258
    %v260 = vpop.f32.mrf.mxu0
    %v261 = vadd.f32 %v60, %v260
    %v262 = vpop.f32.mrf.mxu0
    %v263 = vadd.f32 %v64, %v262
    %264 = vdwg.mxu0
    %v266 = vlaneseq
    %v267 = vshrl.u32 %v266, 7
    %v268 = vsub.s32 0, %v267
    %v269 = vrot.slane %v33, %v268
    %v271 = vadd.f32 %v269, 0.0
    %273 = vrot.lane.b32.xlu0 %v187, 96
    %v274 = vpop.permute.xlu0 %273
    %vm275 = vcmask 64512
    %v276 = vsel %vm275, %v187, 0
    %v278 = vsel %vm275, %v274, 0
    %280 = vmatprep.subr.mxu0 0.0
    %281 = vmatpush1.xpose.msra.mxu0 0.0
    %282 = vmatprep.subr.mxu0 0.0
    %283 = vmatpush1.xpose.msra.mxu0 0.0
    %284 = vmatprep.subr.mxu0 0.0
    %285 = vmatpush1.xpose.msra.mxu0 0.0
    %286 = vmatprep.subr.mxu0 0.0
    %287 = vmatpush1.xpose.msra.mxu0 0.0
    %288 = vmatprep.subr.mxu0 0.0
    %289 = vmatpush1.xpose.msra.mxu0 0.0
    %290 = vmatprep.subr.mxu0 0.0
    %291 = vmatpush1.xpose.msra.mxu0 0.0
    %292 = vmatprep.subr.mxu0 0.0
    %293 = vmatpush1.xpose.msra.mxu0 0.0
    %294 = vmatprep.subr.mxu0 0.0
    %295 = vmatpush1.xpose.msra.mxu0 0.0
    %296 = vmatprep.subr.mxu0 0.0
    %297 = vmatpush1.xpose.msra.mxu0 0.0
    %298 = vmatprep.subr.mxu0 0.0
    %299 = vmatpush1.xpose.msra.mxu0 0.0
    %300 = vmatprep.subr.mxu0 0.0
    %301 = vmatpush1.xpose.msra.mxu0 0.0
    %302 = vmatprep.subr.mxu0 0.0
    %303 = vmatpush1.xpose.msra.mxu0 0.0
    %304 = vmatprep.subr.mxu0 0.0
    %305 = vmatpush1.xpose.msra.mxu0 0.0
    %306 = vmatprep.subr.mxu0 0.0
    %307 = vmatpush1.xpose.msra.mxu0 0.0
    %308 = vmatprep.subr.mxu0 0.0
    %309 = vmatpush1.xpose.msra.mxu0 0.0
    %310 = vmatprep.subr.mxu0 0.0
    %311 = vmatpush1.xpose.msra.mxu0 %v278
    %312 = vmatprep.subr.mxu0 0.0
    %313 = vmatpush2.xpose.msra.mxu0 0.0
    %314 = vmatprep.subr.mxu0 0.0
    %315 = vmatpush2.xpose.msra.mxu0 0.0
    %316 = vmatprep.subr.mxu0 0.0
    %317 = vmatpush2.xpose.msra.mxu0 0.0
    %318 = vmatprep.subr.mxu0 0.0
    %319 = vmatpush2.xpose.msra.mxu0 0.0
    %320 = vmatprep.subr.mxu0 0.0
    %321 = vmatpush2.xpose.msra.mxu0 0.0
    %322 = vmatprep.subr.mxu0 0.0
    %323 = vmatpush2.xpose.msra.mxu0 0.0
    %324 = vmatprep.subr.mxu0 0.0
    %325 = vmatpush2.xpose.msra.mxu0 0.0
    %326 = vmatprep.subr.mxu0 0.0
    %327 = vmatpush2.xpose.msra.mxu0 0.0
    %328 = vmatprep.subr.mxu0 0.0
    %329 = vmatpush2.xpose.msra.mxu0 0.0
    %330 = vmatprep.subr.mxu0 0.0
    %331 = vmatpush2.xpose.msra.mxu0 0.0
    %332 = vmatprep.subr.mxu0 0.0
    %333 = vmatpush2.xpose.msra.mxu0 0.0
    %334 = vmatprep.subr.mxu0 0.0
    %335 = vmatpush2.xpose.msra.mxu0 0.0
    %336 = vmatprep.subr.mxu0 0.0
    %337 = vmatpush2.xpose.msra.mxu0 0.0
    %338 = vmatprep.subr.mxu0 0.0
    %339 = vmatpush2.xpose.msra.mxu0 0.0
    %340 = vmatprep.subr.mxu0 0.0
    %341 = vmatpush2.xpose.msra.mxu0 0.0
    %342 = vmatprep.subr.mxu0 0.0
    %343 = vmatpush2.xpose.msra.mxu0 0.0
    %344 = vmatprep.mubr.f32.mxu0 0.0
    %345 = vmatmul.mubr.f32.gmra.mxu0 %v276
    %v346 = vpop.f32.mrf.mxu0
    %v347 = vadd.f32 0.0, %v346
    %v348 = vpop.f32.mrf.mxu0
    %349 = vdwg.mxu0
    %351 = vrot.lane.b32.xlu0 %v191, 96
    %v352 = vpop.permute.xlu0 %351
    %v353 = vsel %vm275, %v191, 0
    %v355 = vsel %vm275, %v352, 0
    %357 = vmatprep.subr.mxu0 0.0
    %358 = vmatpush1.xpose.msra.mxu0 0.0
    %359 = vmatprep.subr.mxu0 0.0
    %360 = vmatpush1.xpose.msra.mxu0 0.0
    %361 = vmatprep.subr.mxu0 0.0
    %362 = vmatpush1.xpose.msra.mxu0 0.0
    %363 = vmatprep.subr.mxu0 0.0
    %364 = vmatpush1.xpose.msra.mxu0 0.0
    %365 = vmatprep.subr.mxu0 0.0
    %366 = vmatpush1.xpose.msra.mxu0 0.0
    %367 = vmatprep.subr.mxu0 0.0
    %368 = vmatpush1.xpose.msra.mxu0 0.0
    %369 = vmatprep.subr.mxu0 0.0
    %370 = vmatpush1.xpose.msra.mxu0 0.0
    %371 = vmatprep.subr.mxu0 0.0
    %372 = vmatpush1.xpose.msra.mxu0 0.0
    %373 = vmatprep.subr.mxu0 0.0
    %374 = vmatpush1.xpose.msra.mxu0 0.0
    %375 = vmatprep.subr.mxu0 0.0
    %376 = vmatpush1.xpose.msra.mxu0 0.0
    %377 = vmatprep.subr.mxu0 0.0
    %378 = vmatpush1.xpose.msra.mxu0 0.0
    %379 = vmatprep.subr.mxu0 0.0
    %380 = vmatpush1.xpose.msra.mxu0 0.0
    %381 = vmatprep.subr.mxu0 0.0
    %382 = vmatpush1.xpose.msra.mxu0 0.0
    %383 = vmatprep.subr.mxu0 0.0
    %384 = vmatpush1.xpose.msra.mxu0 0.0
    %385 = vmatprep.subr.mxu0 0.0
    %386 = vmatpush1.xpose.msra.mxu0 0.0
    %387 = vmatprep.subr.mxu0 0.0
    %388 = vmatpush1.xpose.msra.mxu0 %v355
    %389 = vmatprep.subr.mxu0 0.0
    %390 = vmatpush2.xpose.msra.mxu0 0.0
    %391 = vmatprep.subr.mxu0 0.0
    %392 = vmatpush2.xpose.msra.mxu0 0.0
    %393 = vmatprep.subr.mxu0 0.0
    %394 = vmatpush2.xpose.msra.mxu0 0.0
    %395 = vmatprep.subr.mxu0 0.0
    %396 = vmatpush2.xpose.msra.mxu0 0.0
    %397 = vmatprep.subr.mxu0 0.0
    %398 = vmatpush2.xpose.msra.mxu0 0.0
    %399 = vmatprep.subr.mxu0 0.0
    %400 = vmatpush2.xpose.msra.mxu0 0.0
    %401 = vmatprep.subr.mxu0 0.0
    %402 = vmatpush2.xpose.msra.mxu0 0.0
    %403 = vmatprep.subr.mxu0 0.0
    %404 = vmatpush2.xpose.msra.mxu0 0.0
    %405 = vmatprep.subr.mxu0 0.0
    %406 = vmatpush2.xpose.msra.mxu0 0.0
    %407 = vmatprep.subr.mxu0 0.0
    %408 = vmatpush2.xpose.msra.mxu0 0.0
    %409 = vmatprep.subr.mxu0 0.0
    %410 = vmatpush2.xpose.msra.mxu0 0.0
    %411 = vmatprep.subr.mxu0 0.0
    %412 = vmatpush2.xpose.msra.mxu0 0.0
    %413 = vmatprep.subr.mxu0 0.0
    %414 = vmatpush2.xpose.msra.mxu0 0.0
    %415 = vmatprep.subr.mxu0 0.0
    %416 = vmatpush2.xpose.msra.mxu0 0.0
    %417 = vmatprep.subr.mxu0 0.0
    %418 = vmatpush2.xpose.msra.mxu0 0.0
    %419 = vmatprep.subr.mxu0 0.0
    %420 = vmatpush2.xpose.msra.mxu0 0.0
    %421 = vmatprep.mubr.f32.mxu0 0.0
    %422 = vmatmul.mubr.f32.gmra.mxu0 %v353
    %v423 = vpop.f32.mrf.mxu0
    %v424 = vadd.f32 0.0, %v423
    %v425 = vpop.f32.mrf.mxu0
    %426 = vdwg.mxu0
    %428 = vrot.lane.b32.xlu0 %v197, 96
    %v429 = vpop.permute.xlu0 %428
    %v430 = vsel %vm275, %v197, 0
    %v432 = vsel %vm275, %v429, 0
    %434 = vmatprep.subr.mxu0 0.0
    %435 = vmatpush1.xpose.msra.mxu0 0.0
    %436 = vmatprep.subr.mxu0 0.0
    %437 = vmatpush1.xpose.msra.mxu0 0.0
    %438 = vmatprep.subr.mxu0 0.0
    %439 = vmatpush1.xpose.msra.mxu0 0.0
    %440 = vmatprep.subr.mxu0 0.0
    %441 = vmatpush1.xpose.msra.mxu0 0.0
    %442 = vmatprep.subr.mxu0 0.0
    %443 = vmatpush1.xpose.msra.mxu0 0.0
    %444 = vmatprep.subr.mxu0 0.0
    %445 = vmatpush1.xpose.msra.mxu0 0.0
    %446 = vmatprep.subr.mxu0 0.0
    %447 = vmatpush1.xpose.msra.mxu0 0.0
    %448 = vmatprep.subr.mxu0 0.0
    %449 = vmatpush1.xpose.msra.mxu0 0.0
    %450 = vmatprep.subr.mxu0 0.0
    %451 = vmatpush1.xpose.msra.mxu0 0.0
    %452 = vmatprep.subr.mxu0 0.0
    %453 = vmatpush1.xpose.msra.mxu0 0.0
    %454 = vmatprep.subr.mxu0 0.0
    %455 = vmatpush1.xpose.msra.mxu0 0.0
    %456 = vmatprep.subr.mxu0 0.0
    %457 = vmatpush1.xpose.msra.mxu0 0.0
    %458 = vmatprep.subr.mxu0 0.0
    %459 = vmatpush1.xpose.msra.mxu0 0.0
    %460 = vmatprep.subr.mxu0 0.0
    %461 = vmatpush1.xpose.msra.mxu0 0.0
    %462 = vmatprep.subr.mxu0 0.0
    %463 = vmatpush1.xpose.msra.mxu0 0.0
    %464 = vmatprep.subr.mxu0 0.0
    %465 = vmatpush1.xpose.msra.mxu0 %v432
    %466 = vmatprep.subr.mxu0 0.0
    %467 = vmatpush2.xpose.msra.mxu0 0.0
    %468 = vmatprep.subr.mxu0 0.0
    %469 = vmatpush2.xpose.msra.mxu0 0.0
    %470 = vmatprep.subr.mxu0 0.0
    %471 = vmatpush2.xpose.msra.mxu0 0.0
    %472 = vmatprep.subr.mxu0 0.0
    %473 = vmatpush2.xpose.msra.mxu0 0.0
    %474 = vmatprep.subr.mxu0 0.0
    %475 = vmatpush2.xpose.msra.mxu0 0.0
    %476 = vmatprep.subr.mxu0 0.0
    %477 = vmatpush2.xpose.msra.mxu0 0.0
    %478 = vmatprep.subr.mxu0 0.0
    %479 = vmatpush2.xpose.msra.mxu0 0.0
    %480 = vmatprep.subr.mxu0 0.0
    %481 = vmatpush2.xpose.msra.mxu0 0.0
    %482 = vmatprep.subr.mxu0 0.0
    %483 = vmatpush2.xpose.msra.mxu0 0.0
    %484 = vmatprep.subr.mxu0 0.0
    %485 = vmatpush2.xpose.msra.mxu0 0.0
    %486 = vmatprep.subr.mxu0 0.0
    %487 = vmatpush2.xpose.msra.mxu0 0.0
    %488 = vmatprep.subr.mxu0 0.0
    %489 = vmatpush2.xpose.msra.mxu0 0.0
    %490 = vmatprep.subr.mxu0 0.0
    %491 = vmatpush2.xpose.msra.mxu0 0.0
    %492 = vmatprep.subr.mxu0 0.0
    %493 = vmatpush2.xpose.msra.mxu0 0.0
    %494 = vmatprep.subr.mxu0 0.0
    %495 = vmatpush2.xpose.msra.mxu0 0.0
    %496 = vmatprep.subr.mxu0 0.0
    %497 = vmatpush2.xpose.msra.mxu0 0.0
    %498 = vmatprep.mubr.f32.mxu0 0.0
    %499 = vmatmul.mubr.f32.gmra.mxu0 %v430
    %v500 = vpop.f32.mrf.mxu0
    %v501 = vadd.f32 0.0, %v500
    %v502 = vpop.f32.mrf.mxu0
    %503 = vdwg.mxu0
    %505 = vrot.lane.b32.xlu0 %v201, 96
    %v506 = vpop.permute.xlu0 %505
    %v507 = vsel %vm275, %v201, 0
    %v509 = vsel %vm275, %v506, 0
    %511 = vmatprep.subr.mxu0 0.0
    %512 = vmatpush1.xpose.msra.mxu0 0.0
    %513 = vmatprep.subr.mxu0 0.0
    %514 = vmatpush1.xpose.msra.mxu0 0.0
    %515 = vmatprep.subr.mxu0 0.0
    %516 = vmatpush1.xpose.msra.mxu0 0.0
    %517 = vmatprep.subr.mxu0 0.0
    %518 = vmatpush1.xpose.msra.mxu0 0.0
    %519 = vmatprep.subr.mxu0 0.0
    %520 = vmatpush1.xpose.msra.mxu0 0.0
    %521 = vmatprep.subr.mxu0 0.0
    %522 = vmatpush1.xpose.msra.mxu0 0.0
    %523 = vmatprep.subr.mxu0 0.0
    %524 = vmatpush1.xpose.msra.mxu0 0.0
    %525 = vmatprep.subr.mxu0 0.0
    %526 = vmatpush1.xpose.msra.mxu0 0.0
    %527 = vmatprep.subr.mxu0 0.0
    %528 = vmatpush1.xpose.msra.mxu0 0.0
    %529 = vmatprep.subr.mxu0 0.0
    %530 = vmatpush1.xpose.msra.mxu0 0.0
    %531 = vmatprep.subr.mxu0 0.0
    %532 = vmatpush1.xpose.msra.mxu0 0.0
    %533 = vmatprep.subr.mxu0 0.0
    %534 = vmatpush1.xpose.msra.mxu0 0.0
    %535 = vmatprep.subr.mxu0 0.0
    %536 = vmatpush1.xpose.msra.mxu0 0.0
    %537 = vmatprep.subr.mxu0 0.0
    %538 = vmatpush1.xpose.msra.mxu0 0.0
    %539 = vmatprep.subr.mxu0 0.0
    %540 = vmatpush1.xpose.msra.mxu0 0.0
    %541 = vmatprep.subr.mxu0 0.0
    %542 = vmatpush1.xpose.msra.mxu0 %v509
    %543 = vmatprep.subr.mxu0 0.0
    %544 = vmatpush2.xpose.msra.mxu0 0.0
    %545 = vmatprep.subr.mxu0 0.0
    %546 = vmatpush2.xpose.msra.mxu0 0.0
    %547 = vmatprep.subr.mxu0 0.0
    %548 = vmatpush2.xpose.msra.mxu0 0.0
    %549 = vmatprep.subr.mxu0 0.0
    %550 = vmatpush2.xpose.msra.mxu0 0.0
    %551 = vmatprep.subr.mxu0 0.0
    %552 = vmatpush2.xpose.msra.mxu0 0.0
    %553 = vmatprep.subr.mxu0 0.0
    %554 = vmatpush2.xpose.msra.mxu0 0.0
    %555 = vmatprep.subr.mxu0 0.0
    %556 = vmatpush2.xpose.msra.mxu0 0.0
    %557 = vmatprep.subr.mxu0 0.0
    %558 = vmatpush2.xpose.msra.mxu0 0.0
    %559 = vmatprep.subr.mxu0 0.0
    %560 = vmatpush2.xpose.msra.mxu0 0.0
    %561 = vmatprep.subr.mxu0 0.0
    %562 = vmatpush2.xpose.msra.mxu0 0.0
    %563 = vmatprep.subr.mxu0 0.0
    %564 = vmatpush2.xpose.msra.mxu0 0.0
    %565 = vmatprep.subr.mxu0 0.0
    %566 = vmatpush2.xpose.msra.mxu0 0.0
    %567 = vmatprep.subr.mxu0 0.0
    %568 = vmatpush2.xpose.msra.mxu0 0.0
    %569 = vmatprep.subr.mxu0 0.0
    %570 = vmatpush2.xpose.msra.mxu0 0.0
    %571 = vmatprep.subr.mxu0 0.0
    %572 = vmatpush2.xpose.msra.mxu0 0.0
    %573 = vmatprep.subr.mxu0 0.0
    %574 = vmatpush2.xpose.msra.mxu0 0.0
    %575 = vmatprep.mubr.f32.mxu0 0.0
    %576 = vmatmul.mubr.f32.gmra.mxu0 %v507
    %v577 = vpop.f32.mrf.mxu0
    %v578 = vadd.f32 0.0, %v577
    %v579 = vpop.f32.mrf.mxu0
    %580 = vdwg.mxu0
    %582 = vrot.lane.b32.xlu0 %v207, 96
    %v583 = vpop.permute.xlu0 %582
    %v584 = vsel %vm275, %v207, 0
    %v586 = vsel %vm275, %v583, 0
    %588 = vmatprep.subr.mxu0 0.0
    %589 = vmatpush1.xpose.msra.mxu0 0.0
    %590 = vmatprep.subr.mxu0 0.0
    %591 = vmatpush1.xpose.msra.mxu0 0.0
    %592 = vmatprep.subr.mxu0 0.0
    %593 = vmatpush1.xpose.msra.mxu0 0.0
    %594 = vmatprep.subr.mxu0 0.0
    %595 = vmatpush1.xpose.msra.mxu0 0.0
    %596 = vmatprep.subr.mxu0 0.0
    %597 = vmatpush1.xpose.msra.mxu0 0.0
    %598 = vmatprep.subr.mxu0 0.0
    %599 = vmatpush1.xpose.msra.mxu0 0.0
    %600 = vmatprep.subr.mxu0 0.0
    %601 = vmatpush1.xpose.msra.mxu0 0.0
    %602 = vmatprep.subr.mxu0 0.0
    %603 = vmatpush1.xpose.msra.mxu0 0.0
    %604 = vmatprep.subr.mxu0 0.0
    %605 = vmatpush1.xpose.msra.mxu0 0.0
    %606 = vmatprep.subr.mxu0 0.0
    %607 = vmatpush1.xpose.msra.mxu0 0.0
    %608 = vmatprep.subr.mxu0 0.0
    %609 = vmatpush1.xpose.msra.mxu0 0.0
    %610 = vmatprep.subr.mxu0 0.0
    %611 = vmatpush1.xpose.msra.mxu0 0.0
    %612 = vmatprep.subr.mxu0 0.0
    %613 = vmatpush1.xpose.msra.mxu0 0.0
    %614 = vmatprep.subr.mxu0 0.0
    %615 = vmatpush1.xpose.msra.mxu0 0.0
    %616 = vmatprep.subr.mxu0 0.0
    %617 = vmatpush1.xpose.msra.mxu0 0.0
    %618 = vmatprep.subr.mxu0 0.0
    %619 = vmatpush1.xpose.msra.mxu0 %v586
    %620 = vmatprep.subr.mxu0 0.0
    %621 = vmatpush2.xpose.msra.mxu0 0.0
    %622 = vmatprep.subr.mxu0 0.0
    %623 = vmatpush2.xpose.msra.mxu0 0.0
    %624 = vmatprep.subr.mxu0 0.0
    %625 = vmatpush2.xpose.msra.mxu0 0.0
    %626 = vmatprep.subr.mxu0 0.0
    %627 = vmatpush2.xpose.msra.mxu0 0.0
    %628 = vmatprep.subr.mxu0 0.0
    %629 = vmatpush2.xpose.msra.mxu0 0.0
    %630 = vmatprep.subr.mxu0 0.0
    %631 = vmatpush2.xpose.msra.mxu0 0.0
    %632 = vmatprep.subr.mxu0 0.0
    %633 = vmatpush2.xpose.msra.mxu0 0.0
    %634 = vmatprep.subr.mxu0 0.0
    %635 = vmatpush2.xpose.msra.mxu0 0.0
    %636 = vmatprep.subr.mxu0 0.0
    %637 = vmatpush2.xpose.msra.mxu0 0.0
    %638 = vmatprep.subr.mxu0 0.0
    %639 = vmatpush2.xpose.msra.mxu0 0.0
    %640 = vmatprep.subr.mxu0 0.0
    %641 = vmatpush2.xpose.msra.mxu0 0.0
    %642 = vmatprep.subr.mxu0 0.0
    %643 = vmatpush2.xpose.msra.mxu0 0.0
    %644 = vmatprep.subr.mxu0 0.0
    %645 = vmatpush2.xpose.msra.mxu0 0.0
    %646 = vmatprep.subr.mxu0 0.0
    %647 = vmatpush2.xpose.msra.mxu0 0.0
    %648 = vmatprep.subr.mxu0 0.0
    %649 = vmatpush2.xpose.msra.mxu0 0.0
    %650 = vmatprep.subr.mxu0 0.0
    %651 = vmatpush2.xpose.msra.mxu0 0.0
    %652 = vmatprep.mubr.f32.mxu0 0.0
    %653 = vmatmul.mubr.f32.gmra.mxu0 %v584
    %v654 = vpop.f32.mrf.mxu0
    %v655 = vadd.f32 0.0, %v654
    %v656 = vpop.f32.mrf.mxu0
    %657 = vdwg.mxu0
    %659 = vrot.lane.b32.xlu0 %v211, 96
    %v660 = vpop.permute.xlu0 %659
    %v661 = vsel %vm275, %v211, 0
    %v663 = vsel %vm275, %v660, 0
    %665 = vmatprep.subr.mxu0 0.0
    %666 = vmatpush1.xpose.msra.mxu0 0.0
    %667 = vmatprep.subr.mxu0 0.0
    %668 = vmatpush1.xpose.msra.mxu0 0.0
    %669 = vmatprep.subr.mxu0 0.0
    %670 = vmatpush1.xpose.msra.mxu0 0.0
    %671 = vmatprep.subr.mxu0 0.0
    %672 = vmatpush1.xpose.msra.mxu0 0.0
    %673 = vmatprep.subr.mxu0 0.0
    %674 = vmatpush1.xpose.msra.mxu0 0.0
    %675 = vmatprep.subr.mxu0 0.0
    %676 = vmatpush1.xpose.msra.mxu0 0.0
    %677 = vmatprep.subr.mxu0 0.0
    %678 = vmatpush1.xpose.msra.mxu0 0.0
    %679 = vmatprep.subr.mxu0 0.0
    %680 = vmatpush1.xpose.msra.mxu0 0.0
    %681 = vmatprep.subr.mxu0 0.0
    %682 = vmatpush1.xpose.msra.mxu0 0.0
    %683 = vmatprep.subr.mxu0 0.0
    %684 = vmatpush1.xpose.msra.mxu0 0.0
    %685 = vmatprep.subr.mxu0 0.0
    %686 = vmatpush1.xpose.msra.mxu0 0.0
    %687 = vmatprep.subr.mxu0 0.0
    %688 = vmatpush1.xpose.msra.mxu0 0.0
    %689 = vmatprep.subr.mxu0 0.0
    %690 = vmatpush1.xpose.msra.mxu0 0.0
    %691 = vmatprep.subr.mxu0 0.0
    %692 = vmatpush1.xpose.msra.mxu0 0.0
    %693 = vmatprep.subr.mxu0 0.0
    %694 = vmatpush1.xpose.msra.mxu0 0.0
    %695 = vmatprep.subr.mxu0 0.0
    %696 = vmatpush1.xpose.msra.mxu0 %v663
    %697 = vmatprep.subr.mxu0 0.0
    %698 = vmatpush2.xpose.msra.mxu0 0.0
    %699 = vmatprep.subr.mxu0 0.0
    %700 = vmatpush2.xpose.msra.mxu0 0.0
    %701 = vmatprep.subr.mxu0 0.0
    %702 = vmatpush2.xpose.msra.mxu0 0.0
    %703 = vmatprep.subr.mxu0 0.0
    %704 = vmatpush2.xpose.msra.mxu0 0.0
    %705 = vmatprep.subr.mxu0 0.0
    %706 = vmatpush2.xpose.msra.mxu0 0.0
    %707 = vmatprep.subr.mxu0 0.0
    %708 = vmatpush2.xpose.msra.mxu0 0.0
    %709 = vmatprep.subr.mxu0 0.0
    %710 = vmatpush2.xpose.msra.mxu0 0.0
    %711 = vmatprep.subr.mxu0 0.0
    %712 = vmatpush2.xpose.msra.mxu0 0.0
    %713 = vmatprep.subr.mxu0 0.0
    %714 = vmatpush2.xpose.msra.mxu0 0.0
    %715 = vmatprep.subr.mxu0 0.0
    %716 = vmatpush2.xpose.msra.mxu0 0.0
    %717 = vmatprep.subr.mxu0 0.0
    %718 = vmatpush2.xpose.msra.mxu0 0.0
    %719 = vmatprep.subr.mxu0 0.0
    %720 = vmatpush2.xpose.msra.mxu0 0.0
    %721 = vmatprep.subr.mxu0 0.0
    %722 = vmatpush2.xpose.msra.mxu0 0.0
    %723 = vmatprep.subr.mxu0 0.0
    %724 = vmatpush2.xpose.msra.mxu0 0.0
    %725 = vmatprep.subr.mxu0 0.0
    %726 = vmatpush2.xpose.msra.mxu0 0.0
    %727 = vmatprep.subr.mxu0 0.0
    %728 = vmatpush2.xpose.msra.mxu0 0.0
    %729 = vmatprep.mubr.f32.mxu0 0.0
    %730 = vmatmul.mubr.f32.gmra.mxu0 %v661
    %v731 = vpop.f32.mrf.mxu0
    %v732 = vadd.f32 0.0, %v731
    %v733 = vpop.f32.mrf.mxu0
    %734 = vdwg.mxu0
    %736 = vrot.lane.b32.xlu0 %v217, 96
    %v737 = vpop.permute.xlu0 %736
    %v738 = vsel %vm275, %v217, 0
    %v740 = vsel %vm275, %v737, 0
    %742 = vmatprep.subr.mxu0 0.0
    %743 = vmatpush1.xpose.msra.mxu0 0.0
    %744 = vmatprep.subr.mxu0 0.0
    %745 = vmatpush1.xpose.msra.mxu0 0.0
    %746 = vmatprep.subr.mxu0 0.0
    %747 = vmatpush1.xpose.msra.mxu0 0.0
    %748 = vmatprep.subr.mxu0 0.0
    %749 = vmatpush1.xpose.msra.mxu0 0.0
    %750 = vmatprep.subr.mxu0 0.0
    %751 = vmatpush1.xpose.msra.mxu0 0.0
    %752 = vmatprep.subr.mxu0 0.0
    %753 = vmatpush1.xpose.msra.mxu0 0.0
    %754 = vmatprep.subr.mxu0 0.0
    %755 = vmatpush1.xpose.msra.mxu0 0.0
    %756 = vmatprep.subr.mxu0 0.0
    %757 = vmatpush1.xpose.msra.mxu0 0.0
    %758 = vmatprep.subr.mxu0 0.0
    %759 = vmatpush1.xpose.msra.mxu0 0.0
    %760 = vmatprep.subr.mxu0 0.0
    %761 = vmatpush1.xpose.msra.mxu0 0.0
    %762 = vmatprep.subr.mxu0 0.0
    %763 = vmatpush1.xpose.msra.mxu0 0.0
    %764 = vmatprep.subr.mxu0 0.0
    %765 = vmatpush1.xpose.msra.mxu0 0.0
    %766 = vmatprep.subr.mxu0 0.0
    %767 = vmatpush1.xpose.msra.mxu0 0.0
    %768 = vmatprep.subr.mxu0 0.0
    %769 = vmatpush1.xpose.msra.mxu0 0.0
    %770 = vmatprep.subr.mxu0 0.0
    %771 = vmatpush1.xpose.msra.mxu0 0.0
    %772 = vmatprep.subr.mxu0 0.0
    %773 = vmatpush1.xpose.msra.mxu0 %v740
    %774 = vmatprep.subr.mxu0 0.0
    %775 = vmatpush2.xpose.msra.mxu0 0.0
    %776 = vmatprep.subr.mxu0 0.0
    %777 = vmatpush2.xpose.msra.mxu0 0.0
    %778 = vmatprep.subr.mxu0 0.0
    %779 = vmatpush2.xpose.msra.mxu0 0.0
    %780 = vmatprep.subr.mxu0 0.0
    %781 = vmatpush2.xpose.msra.mxu0 0.0
    %782 = vmatprep.subr.mxu0 0.0
    %783 = vmatpush2.xpose.msra.mxu0 0.0
    %784 = vmatprep.subr.mxu0 0.0
    %785 = vmatpush2.xpose.msra.mxu0 0.0
    %786 = vmatprep.subr.mxu0 0.0
    %787 = vmatpush2.xpose.msra.mxu0 0.0
    %788 = vmatprep.subr.mxu0 0.0
    %789 = vmatpush2.xpose.msra.mxu0 0.0
    %790 = vmatprep.subr.mxu0 0.0
    %791 = vmatpush2.xpose.msra.mxu0 0.0
    %792 = vmatprep.subr.mxu0 0.0
    %793 = vmatpush2.xpose.msra.mxu0 0.0
    %794 = vmatprep.subr.mxu0 0.0
    %795 = vmatpush2.xpose.msra.mxu0 0.0
    %796 = vmatprep.subr.mxu0 0.0
    %797 = vmatpush2.xpose.msra.mxu0 0.0
    %798 = vmatprep.subr.mxu0 0.0
    %799 = vmatpush2.xpose.msra.mxu0 0.0
    %800 = vmatprep.subr.mxu0 0.0
    %801 = vmatpush2.xpose.msra.mxu0 0.0
    %802 = vmatprep.subr.mxu0 0.0
    %803 = vmatpush2.xpose.msra.mxu0 0.0
    %804 = vmatprep.subr.mxu0 0.0
    %805 = vmatpush2.xpose.msra.mxu0 0.0
    %806 = vmatprep.mubr.f32.mxu0 0.0
    %807 = vmatmul.mubr.f32.gmra.mxu0 %v738
    %v808 = vpop.f32.mrf.mxu0
    %v809 = vadd.f32 0.0, %v808
    %v810 = vpop.f32.mrf.mxu0
    %811 = vdwg.mxu0
    %813 = vrot.lane.b32.xlu0 %v221, 96
    %v814 = vpop.permute.xlu0 %813
    %v815 = vsel %vm275, %v221, 0
    %v817 = vsel %vm275, %v814, 0
    %819 = vmatprep.subr.mxu0 0.0
    %820 = vmatpush1.xpose.msra.mxu0 0.0
    %821 = vmatprep.subr.mxu0 0.0
    %822 = vmatpush1.xpose.msra.mxu0 0.0
    %823 = vmatprep.subr.mxu0 0.0
    %824 = vmatpush1.xpose.msra.mxu0 0.0
    %825 = vmatprep.subr.mxu0 0.0
    %826 = vmatpush1.xpose.msra.mxu0 0.0
    %827 = vmatprep.subr.mxu0 0.0
    %828 = vmatpush1.xpose.msra.mxu0 0.0
    %829 = vmatprep.subr.mxu0 0.0
    %830 = vmatpush1.xpose.msra.mxu0 0.0
    %831 = vmatprep.subr.mxu0 0.0
    %832 = vmatpush1.xpose.msra.mxu0 0.0
    %833 = vmatprep.subr.mxu0 0.0
    %834 = vmatpush1.xpose.msra.mxu0 0.0
    %835 = vmatprep.subr.mxu0 0.0
    %836 = vmatpush1.xpose.msra.mxu0 0.0
    %837 = vmatprep.subr.mxu0 0.0
    %838 = vmatpush1.xpose.msra.mxu0 0.0
    %839 = vmatprep.subr.mxu0 0.0
    %840 = vmatpush1.xpose.msra.mxu0 0.0
    %841 = vmatprep.subr.mxu0 0.0
    %842 = vmatpush1.xpose.msra.mxu0 0.0
    %843 = vmatprep.subr.mxu0 0.0
    %844 = vmatpush1.xpose.msra.mxu0 0.0
    %845 = vmatprep.subr.mxu0 0.0
    %846 = vmatpush1.xpose.msra.mxu0 0.0
    %847 = vmatprep.subr.mxu0 0.0
    %848 = vmatpush1.xpose.msra.mxu0 0.0
    %849 = vmatprep.subr.mxu0 0.0
    %850 = vmatpush1.xpose.msra.mxu0 %v817
    %851 = vmatprep.subr.mxu0 0.0
    %852 = vmatpush2.xpose.msra.mxu0 0.0
    %853 = vmatprep.subr.mxu0 0.0
    %854 = vmatpush2.xpose.msra.mxu0 0.0
    %855 = vmatprep.subr.mxu0 0.0
    %856 = vmatpush2.xpose.msra.mxu0 0.0
    %857 = vmatprep.subr.mxu0 0.0
    %858 = vmatpush2.xpose.msra.mxu0 0.0
    %859 = vmatprep.subr.mxu0 0.0
    %860 = vmatpush2.xpose.msra.mxu0 0.0
    %861 = vmatprep.subr.mxu0 0.0
    %862 = vmatpush2.xpose.msra.mxu0 0.0
    %863 = vmatprep.subr.mxu0 0.0
    %864 = vmatpush2.xpose.msra.mxu0 0.0
    %865 = vmatprep.subr.mxu0 0.0
    %866 = vmatpush2.xpose.msra.mxu0 0.0
    %867 = vmatprep.subr.mxu0 0.0
    %868 = vmatpush2.xpose.msra.mxu0 0.0
    %869 = vmatprep.subr.mxu0 0.0
    %870 = vmatpush2.xpose.msra.mxu0 0.0
    %871 = vmatprep.subr.mxu0 0.0
    %872 = vmatpush2.xpose.msra.mxu0 0.0
    %873 = vmatprep.subr.mxu0 0.0
    %874 = vmatpush2.xpose.msra.mxu0 0.0
    %875 = vmatprep.subr.mxu0 0.0
    %876 = vmatpush2.xpose.msra.mxu0 0.0
    %877 = vmatprep.subr.mxu0 0.0
    %878 = vmatpush2.xpose.msra.mxu0 0.0
    %879 = vmatprep.subr.mxu0 0.0
    %880 = vmatpush2.xpose.msra.mxu0 0.0
    %881 = vmatprep.subr.mxu0 0.0
    %882 = vmatpush2.xpose.msra.mxu0 0.0
    %883 = vmatprep.mubr.f32.mxu0 0.0
    %884 = vmatmul.mubr.f32.gmra.mxu0 %v815
    %v885 = vpop.f32.mrf.mxu0
    %v886 = vadd.f32 0.0, %v885
    %v887 = vpop.f32.mrf.mxu0
    %888 = vdwg.mxu0
    %890 = vrot.lane.b32.xlu0 %v227, 96
    %v891 = vpop.permute.xlu0 %890
    %v892 = vsel %vm275, %v227, 0
    %v894 = vsel %vm275, %v891, 0
    %896 = vmatprep.subr.mxu0 0.0
    %897 = vmatpush1.xpose.msra.mxu0 0.0
    %898 = vmatprep.subr.mxu0 0.0
    %899 = vmatpush1.xpose.msra.mxu0 0.0
    %900 = vmatprep.subr.mxu0 0.0
    %901 = vmatpush1.xpose.msra.mxu0 0.0
    %902 = vmatprep.subr.mxu0 0.0
    %903 = vmatpush1.xpose.msra.mxu0 0.0
    %904 = vmatprep.subr.mxu0 0.0
    %905 = vmatpush1.xpose.msra.mxu0 0.0
    %906 = vmatprep.subr.mxu0 0.0
    %907 = vmatpush1.xpose.msra.mxu0 0.0
    %908 = vmatprep.subr.mxu0 0.0
    %909 = vmatpush1.xpose.msra.mxu0 0.0
    %910 = vmatprep.subr.mxu0 0.0
    %911 = vmatpush1.xpose.msra.mxu0 0.0
    %912 = vmatprep.subr.mxu0 0.0
    %913 = vmatpush1.xpose.msra.mxu0 0.0
    %914 = vmatprep.subr.mxu0 0.0
    %915 = vmatpush1.xpose.msra.mxu0 0.0
    %916 = vmatprep.subr.mxu0 0.0
    %917 = vmatpush1.xpose.msra.mxu0 0.0
    %918 = vmatprep.subr.mxu0 0.0
    %919 = vmatpush1.xpose.msra.mxu0 0.0
    %920 = vmatprep.subr.mxu0 0.0
    %921 = vmatpush1.xpose.msra.mxu0 0.0
    %922 = vmatprep.subr.mxu0 0.0
    %923 = vmatpush1.xpose.msra.mxu0 0.0
    %924 = vmatprep.subr.mxu0 0.0
    %925 = vmatpush1.xpose.msra.mxu0 0.0
    %926 = vmatprep.subr.mxu0 0.0
    %927 = vmatpush1.xpose.msra.mxu0 %v894
    %928 = vmatprep.subr.mxu0 0.0
    %929 = vmatpush2.xpose.msra.mxu0 0.0
    %930 = vmatprep.subr.mxu0 0.0
    %931 = vmatpush2.xpose.msra.mxu0 0.0
    %932 = vmatprep.subr.mxu0 0.0
    %933 = vmatpush2.xpose.msra.mxu0 0.0
    %934 = vmatprep.subr.mxu0 0.0
    %935 = vmatpush2.xpose.msra.mxu0 0.0
    %936 = vmatprep.subr.mxu0 0.0
    %937 = vmatpush2.xpose.msra.mxu0 0.0
    %938 = vmatprep.subr.mxu0 0.0
    %939 = vmatpush2.xpose.msra.mxu0 0.0
    %940 = vmatprep.subr.mxu0 0.0
    %941 = vmatpush2.xpose.msra.mxu0 0.0
    %942 = vmatprep.subr.mxu0 0.0
    %943 = vmatpush2.xpose.msra.mxu0 0.0
    %944 = vmatprep.subr.mxu0 0.0
    %945 = vmatpush2.xpose.msra.mxu0 0.0
    %946 = vmatprep.subr.mxu0 0.0
    %947 = vmatpush2.xpose.msra.mxu0 0.0
    %948 = vmatprep.subr.mxu0 0.0
    %949 = vmatpush2.xpose.msra.mxu0 0.0
    %950 = vmatprep.subr.mxu0 0.0
    %951 = vmatpush2.xpose.msra.mxu0 0.0
    %952 = vmatprep.subr.mxu0 0.0
    %953 = vmatpush2.xpose.msra.mxu0 0.0
    %954 = vmatprep.subr.mxu0 0.0
    %955 = vmatpush2.xpose.msra.mxu0 0.0
    %956 = vmatprep.subr.mxu0 0.0
    %957 = vmatpush2.xpose.msra.mxu0 0.0
    %958 = vmatprep.subr.mxu0 0.0
    %959 = vmatpush2.xpose.msra.mxu0 0.0
    %960 = vmatprep.mubr.f32.mxu0 0.0
    %961 = vmatmul.mubr.f32.gmra.mxu0 %v892
    %v962 = vpop.f32.mrf.mxu0
    %v963 = vadd.f32 0.0, %v962
    %v964 = vpop.f32.mrf.mxu0
    %965 = vdwg.mxu0
    %967 = vrot.lane.b32.xlu0 %v231, 96
    %v968 = vpop.permute.xlu0 %967
    %v969 = vsel %vm275, %v231, 0
    %v971 = vsel %vm275, %v968, 0
    %973 = vmatprep.subr.mxu0 0.0
    %974 = vmatpush1.xpose.msra.mxu0 0.0
    %975 = vmatprep.subr.mxu0 0.0
    %976 = vmatpush1.xpose.msra.mxu0 0.0
    %977 = vmatprep.subr.mxu0 0.0
    %978 = vmatpush1.xpose.msra.mxu0 0.0
    %979 = vmatprep.subr.mxu0 0.0
    %980 = vmatpush1.xpose.msra.mxu0 0.0
    %981 = vmatprep.subr.mxu0 0.0
    %982 = vmatpush1.xpose.msra.mxu0 0.0
    %983 = vmatprep.subr.mxu0 0.0
    %984 = vmatpush1.xpose.msra.mxu0 0.0
    %985 = vmatprep.subr.mxu0 0.0
    %986 = vmatpush1.xpose.msra.mxu0 0.0
    %987 = vmatprep.subr.mxu0 0.0
    %988 = vmatpush1.xpose.msra.mxu0 0.0
    %989 = vmatprep.subr.mxu0 0.0
    %990 = vmatpush1.xpose.msra.mxu0 0.0
    %991 = vmatprep.subr.mxu0 0.0
    %992 = vmatpush1.xpose.msra.mxu0 0.0
    %993 = vmatprep.subr.mxu0 0.0
    %994 = vmatpush1.xpose.msra.mxu0 0.0
    %995 = vmatprep.subr.mxu0 0.0
    %996 = vmatpush1.xpose.msra.mxu0 0.0
    %997 = vmatprep.subr.mxu0 0.0
    %998 = vmatpush1.xpose.msra.mxu0 0.0
    %999 = vmatprep.subr.mxu0 0.0
    %1000 = vmatpush1.xpose.msra.mxu0 0.0
    %1001 = vmatprep.subr.mxu0 0.0
    %1002 = vmatpush1.xpose.msra.mxu0 0.0
    %1003 = vmatprep.subr.mxu0 0.0
    %1004 = vmatpush1.xpose.msra.mxu0 %v971
    %1005 = vmatprep.subr.mxu0 0.0
    %1006 = vmatpush2.xpose.msra.mxu0 0.0
    %1007 = vmatprep.subr.mxu0 0.0
    %1008 = vmatpush2.xpose.msra.mxu0 0.0
    %1009 = vmatprep.subr.mxu0 0.0
    %1010 = vmatpush2.xpose.msra.mxu0 0.0
    %1011 = vmatprep.subr.mxu0 0.0
    %1012 = vmatpush2.xpose.msra.mxu0 0.0
    %1013 = vmatprep.subr.mxu0 0.0
    %1014 = vmatpush2.xpose.msra.mxu0 0.0
    %1015 = vmatprep.subr.mxu0 0.0
    %1016 = vmatpush2.xpose.msra.mxu0 0.0
    %1017 = vmatprep.subr.mxu0 0.0
    %1018 = vmatpush2.xpose.msra.mxu0 0.0
    %1019 = vmatprep.subr.mxu0 0.0
    %1020 = vmatpush2.xpose.msra.mxu0 0.0
    %1021 = vmatprep.subr.mxu0 0.0
    %1022 = vmatpush2.xpose.msra.mxu0 0.0
    %1023 = vmatprep.subr.mxu0 0.0
    %1024 = vmatpush2.xpose.msra.mxu0 0.0
    %1025 = vmatprep.subr.mxu0 0.0
    %1026 = vmatpush2.xpose.msra.mxu0 0.0
    %1027 = vmatprep.subr.mxu0 0.0
    %1028 = vmatpush2.xpose.msra.mxu0 0.0
    %1029 = vmatprep.subr.mxu0 0.0
    %1030 = vmatpush2.xpose.msra.mxu0 0.0
    %1031 = vmatprep.subr.mxu0 0.0
    %1032 = vmatpush2.xpose.msra.mxu0 0.0
    %1033 = vmatprep.subr.mxu0 0.0
    %1034 = vmatpush2.xpose.msra.mxu0 0.0
    %1035 = vmatprep.subr.mxu0 0.0
    %1036 = vmatpush2.xpose.msra.mxu0 0.0
    %1037 = vmatprep.mubr.f32.mxu0 0.0
    %1038 = vmatmul.mubr.f32.gmra.mxu0 %v969
    %v1039 = vpop.f32.mrf.mxu0
    %v1040 = vadd.f32 0.0, %v1039
    %v1041 = vpop.f32.mrf.mxu0
    %1042 = vdwg.mxu0
    %1044 = vrot.lane.b32.xlu0 %v237, 96
    %v1045 = vpop.permute.xlu0 %1044
    %v1046 = vsel %vm275, %v237, 0
    %v1048 = vsel %vm275, %v1045, 0
    %1050 = vmatprep.subr.mxu0 0.0
    %1051 = vmatpush1.xpose.msra.mxu0 0.0
    %1052 = vmatprep.subr.mxu0 0.0
    %1053 = vmatpush1.xpose.msra.mxu0 0.0
    %1054 = vmatprep.subr.mxu0 0.0
    %1055 = vmatpush1.xpose.msra.mxu0 0.0
    %1056 = vmatprep.subr.mxu0 0.0
    %1057 = vmatpush1.xpose.msra.mxu0 0.0
    %1058 = vmatprep.subr.mxu0 0.0
    %1059 = vmatpush1.xpose.msra.mxu0 0.0
    %1060 = vmatprep.subr.mxu0 0.0
    %1061 = vmatpush1.xpose.msra.mxu0 0.0
    %1062 = vmatprep.subr.mxu0 0.0
    %1063 = vmatpush1.xpose.msra.mxu0 0.0
    %1064 = vmatprep.subr.mxu0 0.0
    %1065 = vmatpush1.xpose.msra.mxu0 0.0
    %1066 = vmatprep.subr.mxu0 0.0
    %1067 = vmatpush1.xpose.msra.mxu0 0.0
    %1068 = vmatprep.subr.mxu0 0.0
    %1069 = vmatpush1.xpose.msra.mxu0 0.0
    %1070 = vmatprep.subr.mxu0 0.0
    %1071 = vmatpush1.xpose.msra.mxu0 0.0
    %1072 = vmatprep.subr.mxu0 0.0
    %1073 = vmatpush1.xpose.msra.mxu0 0.0
    %1074 = vmatprep.subr.mxu0 0.0
    %1075 = vmatpush1.xpose.msra.mxu0 0.0
    %1076 = vmatprep.subr.mxu0 0.0
    %1077 = vmatpush1.xpose.msra.mxu0 0.0
    %1078 = vmatprep.subr.mxu0 0.0
    %1079 = vmatpush1.xpose.msra.mxu0 0.0
    %1080 = vmatprep.subr.mxu0 0.0
    %1081 = vmatpush1.xpose.msra.mxu0 %v1048
    %1082 = vmatprep.subr.mxu0 0.0
    %1083 = vmatpush2.xpose.msra.mxu0 0.0
    %1084 = vmatprep.subr.mxu0 0.0
    %1085 = vmatpush2.xpose.msra.mxu0 0.0
    %1086 = vmatprep.subr.mxu0 0.0
    %1087 = vmatpush2.xpose.msra.mxu0 0.0
    %1088 = vmatprep.subr.mxu0 0.0
    %1089 = vmatpush2.xpose.msra.mxu0 0.0
    %1090 = vmatprep.subr.mxu0 0.0
    %1091 = vmatpush2.xpose.msra.mxu0 0.0
    %1092 = vmatprep.subr.mxu0 0.0
    %1093 = vmatpush2.xpose.msra.mxu0 0.0
    %1094 = vmatprep.subr.mxu0 0.0
    %1095 = vmatpush2.xpose.msra.mxu0 0.0
    %1096 = vmatprep.subr.mxu0 0.0
    %1097 = vmatpush2.xpose.msra.mxu0 0.0
    %1098 = vmatprep.subr.mxu0 0.0
    %1099 = vmatpush2.xpose.msra.mxu0 0.0
    %1100 = vmatprep.subr.mxu0 0.0
    %1101 = vmatpush2.xpose.msra.mxu0 0.0
    %1102 = vmatprep.subr.mxu0 0.0
    %1103 = vmatpush2.xpose.msra.mxu0 0.0
    %1104 = vmatprep.subr.mxu0 0.0
    %1105 = vmatpush2.xpose.msra.mxu0 0.0
    %1106 = vmatprep.subr.mxu0 0.0
    %1107 = vmatpush2.xpose.msra.mxu0 0.0
    %1108 = vmatprep.subr.mxu0 0.0
    %1109 = vmatpush2.xpose.msra.mxu0 0.0
    %1110 = vmatprep.subr.mxu0 0.0
    %1111 = vmatpush2.xpose.msra.mxu0 0.0
    %1112 = vmatprep.subr.mxu0 0.0
    %1113 = vmatpush2.xpose.msra.mxu0 0.0
    %1114 = vmatprep.mubr.f32.mxu0 0.0
    %1115 = vmatmul.mubr.f32.gmra.mxu0 %v1046
    %v1116 = vpop.f32.mrf.mxu0
    %v1117 = vadd.f32 0.0, %v1116
    %v1118 = vpop.f32.mrf.mxu0
    %1119 = vdwg.mxu0
    %1121 = vrot.lane.b32.xlu0 %v241, 96
    %v1122 = vpop.permute.xlu0 %1121
    %v1123 = vsel %vm275, %v241, 0
    %v1125 = vsel %vm275, %v1122, 0
    %1127 = vmatprep.subr.mxu0 0.0
    %1128 = vmatpush1.xpose.msra.mxu0 0.0
    %1129 = vmatprep.subr.mxu0 0.0
    %1130 = vmatpush1.xpose.msra.mxu0 0.0
    %1131 = vmatprep.subr.mxu0 0.0
    %1132 = vmatpush1.xpose.msra.mxu0 0.0
    %1133 = vmatprep.subr.mxu0 0.0
    %1134 = vmatpush1.xpose.msra.mxu0 0.0
    %1135 = vmatprep.subr.mxu0 0.0
    %1136 = vmatpush1.xpose.msra.mxu0 0.0
    %1137 = vmatprep.subr.mxu0 0.0
    %1138 = vmatpush1.xpose.msra.mxu0 0.0
    %1139 = vmatprep.subr.mxu0 0.0
    %1140 = vmatpush1.xpose.msra.mxu0 0.0
    %1141 = vmatprep.subr.mxu0 0.0
    %1142 = vmatpush1.xpose.msra.mxu0 0.0
    %1143 = vmatprep.subr.mxu0 0.0
    %1144 = vmatpush1.xpose.msra.mxu0 0.0
    %1145 = vmatprep.subr.mxu0 0.0
    %1146 = vmatpush1.xpose.msra.mxu0 0.0
    %1147 = vmatprep.subr.mxu0 0.0
    %1148 = vmatpush1.xpose.msra.mxu0 0.0
    %1149 = vmatprep.subr.mxu0 0.0
    %1150 = vmatpush1.xpose.msra.mxu0 0.0
    %1151 = vmatprep.subr.mxu0 0.0
    %1152 = vmatpush1.xpose.msra.mxu0 0.0
    %1153 = vmatprep.subr.mxu0 0.0
    %1154 = vmatpush1.xpose.msra.mxu0 0.0
    %1155 = vmatprep.subr.mxu0 0.0
    %1156 = vmatpush1.xpose.msra.mxu0 0.0
    %1157 = vmatprep.subr.mxu0 0.0
    %1158 = vmatpush1.xpose.msra.mxu0 %v1125
    %1159 = vmatprep.subr.mxu0 0.0
    %1160 = vmatpush2.xpose.msra.mxu0 0.0
    %1161 = vmatprep.subr.mxu0 0.0
    %1162 = vmatpush2.xpose.msra.mxu0 0.0
    %1163 = vmatprep.subr.mxu0 0.0
    %1164 = vmatpush2.xpose.msra.mxu0 0.0
    %1165 = vmatprep.subr.mxu0 0.0
    %1166 = vmatpush2.xpose.msra.mxu0 0.0
    %1167 = vmatprep.subr.mxu0 0.0
    %1168 = vmatpush2.xpose.msra.mxu0 0.0
    %1169 = vmatprep.subr.mxu0 0.0
    %1170 = vmatpush2.xpose.msra.mxu0 0.0
    %1171 = vmatprep.subr.mxu0 0.0
    %1172 = vmatpush2.xpose.msra.mxu0 0.0
    %1173 = vmatprep.subr.mxu0 0.0
    %1174 = vmatpush2.xpose.msra.mxu0 0.0
    %1175 = vmatprep.subr.mxu0 0.0
    %1176 = vmatpush2.xpose.msra.mxu0 0.0
    %1177 = vmatprep.subr.mxu0 0.0
    %1178 = vmatpush2.xpose.msra.mxu0 0.0
    %1179 = vmatprep.subr.mxu0 0.0
    %1180 = vmatpush2.xpose.msra.mxu0 0.0
    %1181 = vmatprep.subr.mxu0 0.0
    %1182 = vmatpush2.xpose.msra.mxu0 0.0
    %1183 = vmatprep.subr.mxu0 0.0
    %1184 = vmatpush2.xpose.msra.mxu0 0.0
    %1185 = vmatprep.subr.mxu0 0.0
    %1186 = vmatpush2.xpose.msra.mxu0 0.0
    %1187 = vmatprep.subr.mxu0 0.0
    %1188 = vmatpush2.xpose.msra.mxu0 0.0
    %1189 = vmatprep.subr.mxu0 0.0
    %1190 = vmatpush2.xpose.msra.mxu0 0.0
    %1191 = vmatprep.mubr.f32.mxu0 0.0
    %1192 = vmatmul.mubr.f32.gmra.mxu0 %v1123
    %v1193 = vpop.f32.mrf.mxu0
    %v1194 = vadd.f32 0.0, %v1193
    %v1195 = vpop.f32.mrf.mxu0
    %1196 = vdwg.mxu0
    %1198 = vrot.lane.b32.xlu0 %v247, 96
    %v1199 = vpop.permute.xlu0 %1198
    %v1200 = vsel %vm275, %v247, 0
    %v1202 = vsel %vm275, %v1199, 0
    %1204 = vmatprep.subr.mxu0 0.0
    %1205 = vmatpush1.xpose.msra.mxu0 0.0
    %1206 = vmatprep.subr.mxu0 0.0
    %1207 = vmatpush1.xpose.msra.mxu0 0.0
    %1208 = vmatprep.subr.mxu0 0.0
    %1209 = vmatpush1.xpose.msra.mxu0 0.0
    %1210 = vmatprep.subr.mxu0 0.0
    %1211 = vmatpush1.xpose.msra.mxu0 0.0
    %1212 = vmatprep.subr.mxu0 0.0
    %1213 = vmatpush1.xpose.msra.mxu0 0.0
    %1214 = vmatprep.subr.mxu0 0.0
    %1215 = vmatpush1.xpose.msra.mxu0 0.0
    %1216 = vmatprep.subr.mxu0 0.0
    %1217 = vmatpush1.xpose.msra.mxu0 0.0
    %1218 = vmatprep.subr.mxu0 0.0
    %1219 = vmatpush1.xpose.msra.mxu0 0.0
    %1220 = vmatprep.subr.mxu0 0.0
    %1221 = vmatpush1.xpose.msra.mxu0 0.0
    %1222 = vmatprep.subr.mxu0 0.0
    %1223 = vmatpush1.xpose.msra.mxu0 0.0
    %1224 = vmatprep.subr.mxu0 0.0
    %1225 = vmatpush1.xpose.msra.mxu0 0.0
    %1226 = vmatprep.subr.mxu0 0.0
    %1227 = vmatpush1.xpose.msra.mxu0 0.0
    %1228 = vmatprep.subr.mxu0 0.0
    %1229 = vmatpush1.xpose.msra.mxu0 0.0
    %1230 = vmatprep.subr.mxu0 0.0
    %1231 = vmatpush1.xpose.msra.mxu0 0.0
    %1232 = vmatprep.subr.mxu0 0.0
    %1233 = vmatpush1.xpose.msra.mxu0 0.0
    %1234 = vmatprep.subr.mxu0 0.0
    %1235 = vmatpush1.xpose.msra.mxu0 %v1202
    %1236 = vmatprep.subr.mxu0 0.0
    %1237 = vmatpush2.xpose.msra.mxu0 0.0
    %1238 = vmatprep.subr.mxu0 0.0
    %1239 = vmatpush2.xpose.msra.mxu0 0.0
    %1240 = vmatprep.subr.mxu0 0.0
    %1241 = vmatpush2.xpose.msra.mxu0 0.0
    %1242 = vmatprep.subr.mxu0 0.0
    %1243 = vmatpush2.xpose.msra.mxu0 0.0
    %1244 = vmatprep.subr.mxu0 0.0
    %1245 = vmatpush2.xpose.msra.mxu0 0.0
    %1246 = vmatprep.subr.mxu0 0.0
    %1247 = vmatpush2.xpose.msra.mxu0 0.0
    %1248 = vmatprep.subr.mxu0 0.0
    %1249 = vmatpush2.xpose.msra.mxu0 0.0
    %1250 = vmatprep.subr.mxu0 0.0
    %1251 = vmatpush2.xpose.msra.mxu0 0.0
    %1252 = vmatprep.subr.mxu0 0.0
    %1253 = vmatpush2.xpose.msra.mxu0 0.0
    %1254 = vmatprep.subr.mxu0 0.0
    %1255 = vmatpush2.xpose.msra.mxu0 0.0
    %1256 = vmatprep.subr.mxu0 0.0
    %1257 = vmatpush2.xpose.msra.mxu0 0.0
    %1258 = vmatprep.subr.mxu0 0.0
    %1259 = vmatpush2.xpose.msra.mxu0 0.0
    %1260 = vmatprep.subr.mxu0 0.0
    %1261 = vmatpush2.xpose.msra.mxu0 0.0
    %1262 = vmatprep.subr.mxu0 0.0
    %1263 = vmatpush2.xpose.msra.mxu0 0.0
    %1264 = vmatprep.subr.mxu0 0.0
    %1265 = vmatpush2.xpose.msra.mxu0 0.0
    %1266 = vmatprep.subr.mxu0 0.0
    %1267 = vmatpush2.xpose.msra.mxu0 0.0
    %1268 = vmatprep.mubr.f32.mxu0 0.0
    %1269 = vmatmul.mubr.f32.gmra.mxu0 %v1200
    %v1270 = vpop.f32.mrf.mxu0
    %v1271 = vadd.f32 0.0, %v1270
    %v1272 = vpop.f32.mrf.mxu0
    %1273 = vdwg.mxu0
    %1275 = vrot.lane.b32.xlu0 %v251, 96
    %v1276 = vpop.permute.xlu0 %1275
    %v1277 = vsel %vm275, %v251, 0
    %v1279 = vsel %vm275, %v1276, 0
    %1281 = vmatprep.subr.mxu0 0.0
    %1282 = vmatpush1.xpose.msra.mxu0 0.0
    %1283 = vmatprep.subr.mxu0 0.0
    %1284 = vmatpush1.xpose.msra.mxu0 0.0
    %1285 = vmatprep.subr.mxu0 0.0
    %1286 = vmatpush1.xpose.msra.mxu0 0.0
    %1287 = vmatprep.subr.mxu0 0.0
    %1288 = vmatpush1.xpose.msra.mxu0 0.0
    %1289 = vmatprep.subr.mxu0 0.0
    %1290 = vmatpush1.xpose.msra.mxu0 0.0
    %1291 = vmatprep.subr.mxu0 0.0
    %1292 = vmatpush1.xpose.msra.mxu0 0.0
    %1293 = vmatprep.subr.mxu0 0.0
    %1294 = vmatpush1.xpose.msra.mxu0 0.0
    %1295 = vmatprep.subr.mxu0 0.0
    %1296 = vmatpush1.xpose.msra.mxu0 0.0
    %1297 = vmatprep.subr.mxu0 0.0
    %1298 = vmatpush1.xpose.msra.mxu0 0.0
    %1299 = vmatprep.subr.mxu0 0.0
    %1300 = vmatpush1.xpose.msra.mxu0 0.0
    %1301 = vmatprep.subr.mxu0 0.0
    %1302 = vmatpush1.xpose.msra.mxu0 0.0
    %1303 = vmatprep.subr.mxu0 0.0
    %1304 = vmatpush1.xpose.msra.mxu0 0.0
    %1305 = vmatprep.subr.mxu0 0.0
    %1306 = vmatpush1.xpose.msra.mxu0 0.0
    %1307 = vmatprep.subr.mxu0 0.0
    %1308 = vmatpush1.xpose.msra.mxu0 0.0
    %1309 = vmatprep.subr.mxu0 0.0
    %1310 = vmatpush1.xpose.msra.mxu0 0.0
    %1311 = vmatprep.subr.mxu0 0.0
    %1312 = vmatpush1.xpose.msra.mxu0 %v1279
    %1313 = vmatprep.subr.mxu0 0.0
    %1314 = vmatpush2.xpose.msra.mxu0 0.0
    %1315 = vmatprep.subr.mxu0 0.0
    %1316 = vmatpush2.xpose.msra.mxu0 0.0
    %1317 = vmatprep.subr.mxu0 0.0
    %1318 = vmatpush2.xpose.msra.mxu0 0.0
    %1319 = vmatprep.subr.mxu0 0.0
    %1320 = vmatpush2.xpose.msra.mxu0 0.0
    %1321 = vmatprep.subr.mxu0 0.0
    %1322 = vmatpush2.xpose.msra.mxu0 0.0
    %1323 = vmatprep.subr.mxu0 0.0
    %1324 = vmatpush2.xpose.msra.mxu0 0.0
    %1325 = vmatprep.subr.mxu0 0.0
    %1326 = vmatpush2.xpose.msra.mxu0 0.0
    %1327 = vmatprep.subr.mxu0 0.0
    %1328 = vmatpush2.xpose.msra.mxu0 0.0
    %1329 = vmatprep.subr.mxu0 0.0
    %1330 = vmatpush2.xpose.msra.mxu0 0.0
    %1331 = vmatprep.subr.mxu0 0.0
    %1332 = vmatpush2.xpose.msra.mxu0 0.0
    %1333 = vmatprep.subr.mxu0 0.0
    %1334 = vmatpush2.xpose.msra.mxu0 0.0
    %1335 = vmatprep.subr.mxu0 0.0
    %1336 = vmatpush2.xpose.msra.mxu0 0.0
    %1337 = vmatprep.subr.mxu0 0.0
    %1338 = vmatpush2.xpose.msra.mxu0 0.0
    %1339 = vmatprep.subr.mxu0 0.0
    %1340 = vmatpush2.xpose.msra.mxu0 0.0
    %1341 = vmatprep.subr.mxu0 0.0
    %1342 = vmatpush2.xpose.msra.mxu0 0.0
    %1343 = vmatprep.subr.mxu0 0.0
    %1344 = vmatpush2.xpose.msra.mxu0 0.0
    %1345 = vmatprep.mubr.f32.mxu0 0.0
    %1346 = vmatmul.mubr.f32.gmra.mxu0 %v1277
    %v1347 = vpop.f32.mrf.mxu0
    %v1348 = vadd.f32 0.0, %v1347
    %v1349 = vpop.f32.mrf.mxu0
    %1350 = vdwg.mxu0
    %1352 = vrot.lane.b32.xlu0 %v257, 96
    %v1353 = vpop.permute.xlu0 %1352
    %v1354 = vsel %vm275, %v257, 0
    %v1356 = vsel %vm275, %v1353, 0
    %1358 = vmatprep.subr.mxu0 0.0
    %1359 = vmatpush1.xpose.msra.mxu0 0.0
    %1360 = vmatprep.subr.mxu0 0.0
    %1361 = vmatpush1.xpose.msra.mxu0 0.0
    %1362 = vmatprep.subr.mxu0 0.0
    %1363 = vmatpush1.xpose.msra.mxu0 0.0
    %1364 = vmatprep.subr.mxu0 0.0
    %1365 = vmatpush1.xpose.msra.mxu0 0.0
    %1366 = vmatprep.subr.mxu0 0.0
    %1367 = vmatpush1.xpose.msra.mxu0 0.0
    %1368 = vmatprep.subr.mxu0 0.0
    %1369 = vmatpush1.xpose.msra.mxu0 0.0
    %1370 = vmatprep.subr.mxu0 0.0
    %1371 = vmatpush1.xpose.msra.mxu0 0.0
    %1372 = vmatprep.subr.mxu0 0.0
    %1373 = vmatpush1.xpose.msra.mxu0 0.0
    %1374 = vmatprep.subr.mxu0 0.0
    %1375 = vmatpush1.xpose.msra.mxu0 0.0
    %1376 = vmatprep.subr.mxu0 0.0
    %1377 = vmatpush1.xpose.msra.mxu0 0.0
    %1378 = vmatprep.subr.mxu0 0.0
    %1379 = vmatpush1.xpose.msra.mxu0 0.0
    %1380 = vmatprep.subr.mxu0 0.0
    %1381 = vmatpush1.xpose.msra.mxu0 0.0
    %1382 = vmatprep.subr.mxu0 0.0
    %1383 = vmatpush1.xpose.msra.mxu0 0.0
    %1384 = vmatprep.subr.mxu0 0.0
    %1385 = vmatpush1.xpose.msra.mxu0 0.0
    %1386 = vmatprep.subr.mxu0 0.0
    %1387 = vmatpush1.xpose.msra.mxu0 0.0
    %1388 = vmatprep.subr.mxu0 0.0
    %1389 = vmatpush1.xpose.msra.mxu0 %v1356
    %1390 = vmatprep.subr.mxu0 0.0
    %1391 = vmatpush2.xpose.msra.mxu0 0.0
    %1392 = vmatprep.subr.mxu0 0.0
    %1393 = vmatpush2.xpose.msra.mxu0 0.0
    %1394 = vmatprep.subr.mxu0 0.0
    %1395 = vmatpush2.xpose.msra.mxu0 0.0
    %1396 = vmatprep.subr.mxu0 0.0
    %1397 = vmatpush2.xpose.msra.mxu0 0.0
    %1398 = vmatprep.subr.mxu0 0.0
    %1399 = vmatpush2.xpose.msra.mxu0 0.0
    %1400 = vmatprep.subr.mxu0 0.0
    %1401 = vmatpush2.xpose.msra.mxu0 0.0
    %1402 = vmatprep.subr.mxu0 0.0
    %1403 = vmatpush2.xpose.msra.mxu0 0.0
    %1404 = vmatprep.subr.mxu0 0.0
    %1405 = vmatpush2.xpose.msra.mxu0 0.0
    %1406 = vmatprep.subr.mxu0 0.0
    %1407 = vmatpush2.xpose.msra.mxu0 0.0
    %1408 = vmatprep.subr.mxu0 0.0
    %1409 = vmatpush2.xpose.msra.mxu0 0.0
    %1410 = vmatprep.subr.mxu0 0.0
    %1411 = vmatpush2.xpose.msra.mxu0 0.0
    %1412 = vmatprep.subr.mxu0 0.0
    %1413 = vmatpush2.xpose.msra.mxu0 0.0
    %1414 = vmatprep.subr.mxu0 0.0
    %1415 = vmatpush2.xpose.msra.mxu0 0.0
    %1416 = vmatprep.subr.mxu0 0.0
    %1417 = vmatpush2.xpose.msra.mxu0 0.0
    %1418 = vmatprep.subr.mxu0 0.0
    %1419 = vmatpush2.xpose.msra.mxu0 0.0
    %1420 = vmatprep.subr.mxu0 0.0
    %1421 = vmatpush2.xpose.msra.mxu0 0.0
    %1422 = vmatprep.mubr.f32.mxu0 0.0
    %1423 = vmatmul.mubr.f32.gmra.mxu0 %v1354
    %v1424 = vpop.f32.mrf.mxu0
    %v1425 = vadd.f32 0.0, %v1424
    %v1426 = vpop.f32.mrf.mxu0
    %1427 = vdwg.mxu0
    %1429 = vrot.lane.b32.xlu0 %v261, 96
    %v1430 = vpop.permute.xlu0 %1429
    %v1431 = vsel %vm275, %v261, 0
    %v1433 = vsel %vm275, %v1430, 0
    %1435 = vmatprep.subr.mxu0 0.0
    %1436 = vmatpush1.xpose.msra.mxu0 0.0
    %1437 = vmatprep.subr.mxu0 0.0
    %1438 = vmatpush1.xpose.msra.mxu0 0.0
    %1439 = vmatprep.subr.mxu0 0.0
    %1440 = vmatpush1.xpose.msra.mxu0 0.0
    %1441 = vmatprep.subr.mxu0 0.0
    %1442 = vmatpush1.xpose.msra.mxu0 0.0
    %1443 = vmatprep.subr.mxu0 0.0
    %1444 = vmatpush1.xpose.msra.mxu0 0.0
    %1445 = vmatprep.subr.mxu0 0.0
    %1446 = vmatpush1.xpose.msra.mxu0 0.0
    %1447 = vmatprep.subr.mxu0 0.0
    %1448 = vmatpush1.xpose.msra.mxu0 0.0
    %1449 = vmatprep.subr.mxu0 0.0
    %1450 = vmatpush1.xpose.msra.mxu0 0.0
    %1451 = vmatprep.subr.mxu0 0.0
    %1452 = vmatpush1.xpose.msra.mxu0 0.0
    %1453 = vmatprep.subr.mxu0 0.0
    %1454 = vmatpush1.xpose.msra.mxu0 0.0
    %1455 = vmatprep.subr.mxu0 0.0
    %1456 = vmatpush1.xpose.msra.mxu0 0.0
    %1457 = vmatprep.subr.mxu0 0.0
    %1458 = vmatpush1.xpose.msra.mxu0 0.0
    %1459 = vmatprep.subr.mxu0 0.0
    %1460 = vmatpush1.xpose.msra.mxu0 0.0
    %1461 = vmatprep.subr.mxu0 0.0
    %1462 = vmatpush1.xpose.msra.mxu0 0.0
    %1463 = vmatprep.subr.mxu0 0.0
    %1464 = vmatpush1.xpose.msra.mxu0 0.0
    %1465 = vmatprep.subr.mxu0 0.0
    %1466 = vmatpush1.xpose.msra.mxu0 %v1433
    %1467 = vmatprep.subr.mxu0 0.0
    %1468 = vmatpush2.xpose.msra.mxu0 0.0
    %1469 = vmatprep.subr.mxu0 0.0
    %1470 = vmatpush2.xpose.msra.mxu0 0.0
    %1471 = vmatprep.subr.mxu0 0.0
    %1472 = vmatpush2.xpose.msra.mxu0 0.0
    %1473 = vmatprep.subr.mxu0 0.0
    %1474 = vmatpush2.xpose.msra.mxu0 0.0
    %1475 = vmatprep.subr.mxu0 0.0
    %1476 = vmatpush2.xpose.msra.mxu0 0.0
    %1477 = vmatprep.subr.mxu0 0.0
    %1478 = vmatpush2.xpose.msra.mxu0 0.0
    %1479 = vmatprep.subr.mxu0 0.0
    %1480 = vmatpush2.xpose.msra.mxu0 0.0
    %1481 = vmatprep.subr.mxu0 0.0
    %1482 = vmatpush2.xpose.msra.mxu0 0.0
    %1483 = vmatprep.subr.mxu0 0.0
    %1484 = vmatpush2.xpose.msra.mxu0 0.0
    %1485 = vmatprep.subr.mxu0 0.0
    %1486 = vmatpush2.xpose.msra.mxu0 0.0
    %1487 = vmatprep.subr.mxu0 0.0
    %1488 = vmatpush2.xpose.msra.mxu0 0.0
    %1489 = vmatprep.subr.mxu0 0.0
    %1490 = vmatpush2.xpose.msra.mxu0 0.0
    %1491 = vmatprep.subr.mxu0 0.0
    %1492 = vmatpush2.xpose.msra.mxu0 0.0
    %1493 = vmatprep.subr.mxu0 0.0
    %1494 = vmatpush2.xpose.msra.mxu0 0.0
    %1495 = vmatprep.subr.mxu0 0.0
    %1496 = vmatpush2.xpose.msra.mxu0 0.0
    %1497 = vmatprep.subr.mxu0 0.0
    %1498 = vmatpush2.xpose.msra.mxu0 0.0
    %1499 = vmatprep.mubr.f32.mxu0 0.0
    %1500 = vmatmul.mubr.f32.gmra.mxu0 %v1431
    %v1501 = vpop.f32.mrf.mxu0
    %v1502 = vadd.f32 0.0, %v1501
    %v1503 = vpop.f32.mrf.mxu0
    %1504 = vdwg.mxu0
    %v1505 = vmul.f32 %v347, 0.35355338
    %v1506 = vmul.f32 %v424, 0.35355338
    %v1507 = vmul.f32 %v501, 0.35355338
    %v1508 = vmul.f32 %v578, 0.35355338
    %v1509 = vmul.f32 %v655, 0.35355338
    %v1510 = vmul.f32 %v732, 0.35355338
    %v1511 = vmul.f32 %v809, 0.35355338
    %v1512 = vmul.f32 %v886, 0.35355338
    %v1513 = vmul.f32 %v963, 0.35355338
    %v1514 = vmul.f32 %v1040, 0.35355338
    %v1515 = vmul.f32 %v1117, 0.35355338
    %v1516 = vmul.f32 %v1194, 0.35355338
    %v1517 = vmul.f32 %v1271, 0.35355338
    %v1518 = vmul.f32 %v1348, 0.35355338
    %v1519 = vmul.f32 %v1425, 0.35355338
    %v1520 = vmul.f32 %v1502, 0.35355338
    %v1521 = vsel %vm275, %v1505, -inf
    %1522 = vmax.xlane.f32.xlu0 %v1521
    %v1523 = vpop.xlane.xlu0 %1522
    %v1524 = vsel %vm275, %v1506, -inf
    %1525 = vmax.xlane.f32.xlu0 %v1524
    %v1526 = vpop.xlane.xlu0 %1525
    %v1527 = vsel %vm275, %v1507, -inf
    %1528 = vmax.xlane.f32.xlu0 %v1527
    %v1529 = vpop.xlane.xlu0 %1528
    %v1530 = vsel %vm275, %v1508, -inf
    %1531 = vmax.xlane.f32.xlu0 %v1530
    %v1532 = vpop.xlane.xlu0 %1531
    %v1533 = vsel %vm275, %v1509, -inf
    %1534 = vmax.xlane.f32.xlu0 %v1533
    %v1535 = vpop.xlane.xlu0 %1534
    %v1536 = vsel %vm275, %v1510, -inf
    %1537 = vmax.xlane.f32.xlu0 %v1536
    %v1538 = vpop.xlane.xlu0 %1537
    %v1539 = vsel %vm275, %v1511, -inf
    %1540 = vmax.xlane.f32.xlu0 %v1539
    %v1541 = vpop.xlane.xlu0 %1540
    %v1542 = vsel %vm275, %v1512, -inf
    %1543 = vmax.xlane.f32.xlu0 %v1542
    %v1544 = vpop.xlane.xlu0 %1543
    %v1545 = vsel %vm275, %v1513, -inf
    %1546 = vmax.xlane.f32.xlu0 %v1545
    %v1547 = vpop.xlane.xlu0 %1546
    %v1548 = vsel %vm275, %v1514, -inf
    %1549 = vmax.xlane.f32.xlu0 %v1548
    %v1550 = vpop.xlane.xlu0 %1549
    %v1551 = vsel %vm275, %v1515, -inf
    %1552 = vmax.xlane.f32.xlu0 %v1551
    %v1553 = vpop.xlane.xlu0 %1552
    %v1554 = vsel %vm275, %v1516, -inf
    %1555 = vmax.xlane.f32.xlu0 %v1554
    %v1556 = vpop.xlane.xlu0 %1555
    %v1557 = vsel %vm275, %v1517, -inf
    %1558 = vmax.xlane.f32.xlu0 %v1557
    %v1559 = vpop.xlane.xlu0 %1558
    %v1560 = vsel %vm275, %v1518, -inf
    %1561 = vmax.xlane.f32.xlu0 %v1560
    %v1562 = vpop.xlane.xlu0 %1561
    %v1563 = vsel %vm275, %v1519, -inf
    %1564 = vmax.xlane.f32.xlu0 %v1563
    %v1565 = vpop.xlane.xlu0 %1564
    %v1566 = vsel %vm275, %v1520, -inf
    %1567 = vmax.xlane.f32.xlu0 %v1566
    %v1568 = vpop.xlane.xlu0 %1567
    %v1569 = vsub.f32 %v1505, %v1523
    %v1570 = vsub.f32 %v1506, %v1526
    %v1571 = vsub.f32 %v1507, %v1529
    %v1572 = vsub.f32 %v1508, %v1532
    %v1573 = vsub.f32 %v1509, %v1535
    %v1574 = vsub.f32 %v1510, %v1538
    %v1575 = vsub.f32 %v1511, %v1541
    %v1576 = vsub.f32 %v1512, %v1544
    %v1577 = vsub.f32 %v1513, %v1547
    %v1578 = vsub.f32 %v1514, %v1550
    %v1579 = vsub.f32 %v1515, %v1553
    %v1580 = vsub.f32 %v1516, %v1556
    %v1581 = vsub.f32 %v1517, %v1559
    %v1582 = vsub.f32 %v1518, %v1562
    %v1583 = vsub.f32 %v1519, %v1565
    %v1584 = vsub.f32 %v1520, %v1568
    %v1585 = vmul.f32 %v1569, 1.442695
    %v1586 = vpow.pop %v1585
    %v1587 = vmul.f32 %v1570, 1.442695
    %v1588 = vpow.pop %v1587
    %v1589 = vmul.f32 %v1571, 1.442695
    %v1590 = vpow.pop %v1589
    %v1591 = vmul.f32 %v1572, 1.442695
    %v1592 = vpow.pop %v1591
    %v1593 = vmul.f32 %v1573, 1.442695
    %v1594 = vpow.pop %v1593
    %v1595 = vmul.f32 %v1574, 1.442695
    %v1596 = vpow.pop %v1595
    %v1597 = vmul.f32 %v1575, 1.442695
    %v1598 = vpow.pop %v1597
    %v1599 = vmul.f32 %v1576, 1.442695
    %v1600 = vpow.pop %v1599
    %v1601 = vmul.f32 %v1577, 1.442695
    %v1602 = vpow.pop %v1601
    %v1603 = vmul.f32 %v1578, 1.442695
    %v1604 = vpow.pop %v1603
    %v1605 = vmul.f32 %v1579, 1.442695
    %v1606 = vpow.pop %v1605
    %v1607 = vmul.f32 %v1580, 1.442695
    %v1608 = vpow.pop %v1607
    %v1609 = vmul.f32 %v1581, 1.442695
    %v1610 = vpow.pop %v1609
    %v1611 = vmul.f32 %v1582, 1.442695
    %v1612 = vpow.pop %v1611
    %v1613 = vmul.f32 %v1583, 1.442695
    %v1614 = vpow.pop %v1613
    %v1615 = vmul.f32 %v1584, 1.442695
    %v1616 = vpow.pop %v1615
    %v1617 = vsel %vm275, %v1586, 0.0
    %1618 = vadd.xlane.f32.xlu0 %v1617
    %v1619 = vpop.xlane.xlu0 %1618
    %v1620 = vsel %vm275, %v1588, 0.0
    %1621 = vadd.xlane.f32.xlu0 %v1620
    %v1622 = vpop.xlane.xlu0 %1621
    %v1623 = vsel %vm275, %v1590, 0.0
    %1624 = vadd.xlane.f32.xlu0 %v1623
    %v1625 = vpop.xlane.xlu0 %1624
    %v1626 = vsel %vm275, %v1592, 0.0
    %1627 = vadd.xlane.f32.xlu0 %v1626
    %v1628 = vpop.xlane.xlu0 %1627
    %v1629 = vsel %vm275, %v1594, 0.0
    %1630 = vadd.xlane.f32.xlu0 %v1629
    %v1631 = vpop.xlane.xlu0 %1630
    %v1632 = vsel %vm275, %v1596, 0.0
    %1633 = vadd.xlane.f32.xlu0 %v1632
    %v1634 = vpop.xlane.xlu0 %1633
    %v1635 = vsel %vm275, %v1598, 0.0
    %1636 = vadd.xlane.f32.xlu0 %v1635
    %v1637 = vpop.xlane.xlu0 %1636
    %v1638 = vsel %vm275, %v1600, 0.0
    %1639 = vadd.xlane.f32.xlu0 %v1638
    %v1640 = vpop.xlane.xlu0 %1639
    %v1641 = vsel %vm275, %v1602, 0.0
    %1642 = vadd.xlane.f32.xlu0 %v1641
    %v1643 = vpop.xlane.xlu0 %1642
    %v1644 = vsel %vm275, %v1604, 0.0
    %1645 = vadd.xlane.f32.xlu0 %v1644
    %v1646 = vpop.xlane.xlu0 %1645
    %v1647 = vsel %vm275, %v1606, 0.0
    %1648 = vadd.xlane.f32.xlu0 %v1647
    %v1649 = vpop.xlane.xlu0 %1648
    %v1650 = vsel %vm275, %v1608, 0.0
    %1651 = vadd.xlane.f32.xlu0 %v1650
    %v1652 = vpop.xlane.xlu0 %1651
    %v1653 = vsel %vm275, %v1610, 0.0
    %1654 = vadd.xlane.f32.xlu0 %v1653
    %v1655 = vpop.xlane.xlu0 %1654
    %v1656 = vsel %vm275, %v1612, 0.0
    %1657 = vadd.xlane.f32.xlu0 %v1656
    %v1658 = vpop.xlane.xlu0 %1657
    %v1659 = vsel %vm275, %v1614, 0.0
    %1660 = vadd.xlane.f32.xlu0 %v1659
    %v1661 = vpop.xlane.xlu0 %1660
    %v1662 = vsel %vm275, %v1616, 0.0
    %1663 = vadd.xlane.f32.xlu0 %v1662
    %v1664 = vpop.xlane.xlu0 %1663
    %v1665 = vrcp.pop %v1619
    %v1666 = vrcp.pop %v1622
    %v1667 = vrcp.pop %v1625
    %v1668 = vrcp.pop %v1628
    %v1669 = vrcp.pop %v1631
    %v1670 = vrcp.pop %v1634
    %v1671 = vrcp.pop %v1637
    %v1672 = vrcp.pop %v1640
    %v1673 = vrcp.pop %v1643
    %v1674 = vrcp.pop %v1646
    %v1675 = vrcp.pop %v1649
    %v1676 = vrcp.pop %v1652
    %v1677 = vrcp.pop %v1655
    %v1678 = vrcp.pop %v1658
    %v1679 = vrcp.pop %v1661
    %v1680 = vrcp.pop %v1664
    %v1681 = vmul.f32 %v1586, %v1665
    %v1682 = vmul.f32 %v1588, %v1666
    %v1683 = vmul.f32 %v1590, %v1667
    %v1684 = vmul.f32 %v1592, %v1668
    %v1685 = vmul.f32 %v1594, %v1669
    %v1686 = vmul.f32 %v1596, %v1670
    %v1687 = vmul.f32 %v1598, %v1671
    %v1688 = vmul.f32 %v1600, %v1672
    %v1689 = vmul.f32 %v1602, %v1673
    %v1690 = vmul.f32 %v1604, %v1674
    %v1691 = vmul.f32 %v1606, %v1675
    %v1692 = vmul.f32 %v1608, %v1676
    %v1693 = vmul.f32 %v1610, %v1677
    %v1694 = vmul.f32 %v1612, %v1678
    %v1695 = vmul.f32 %v1614, %v1679
    %v1696 = vmul.f32 %v1616, %v1680
    %1697 = vrot.lane.b32.xlu0 %v187, 64
    %v1698 = vpop.permute.xlu0 %1697
    %v1701 = vsel %vm275, %v1681, 0
    %1703 = vmatprep.subr.mxu0 0.0
    %1704 = vmatpush1.msra.mxu0 0.0
    %1705 = vmatprep.subr.mxu0 0.0
    %1706 = vmatpush1.msra.mxu0 0.0
    %1707 = vmatprep.subr.mxu0 0.0
    %1708 = vmatpush1.msra.mxu0 0.0
    %1709 = vmatprep.subr.mxu0 0.0
    %1710 = vmatpush1.msra.mxu0 0.0
    %1711 = vmatprep.subr.mxu0 0.0
    %1712 = vmatpush1.msra.mxu0 0.0
    %1713 = vmatprep.subr.mxu0 0.0
    %1714 = vmatpush1.msra.mxu0 0.0
    %1715 = vmatprep.subr.mxu0 0.0
    %1716 = vmatpush1.msra.mxu0 0.0
    %1717 = vmatprep.subr.mxu0 0.0
    %1718 = vmatpush1.msra.mxu0 0.0
    %1719 = vmatprep.subr.mxu0 0.0
    %1720 = vmatpush1.msra.mxu0 0.0
    %1721 = vmatprep.subr.mxu0 0.0
    %1722 = vmatpush1.msra.mxu0 0.0
    %1723 = vmatprep.subr.mxu0 0.0
    %1724 = vmatpush1.msra.mxu0 0.0
    %1725 = vmatprep.subr.mxu0 0.0
    %1726 = vmatpush1.msra.mxu0 0.0
    %1727 = vmatprep.subr.mxu0 0.0
    %1728 = vmatpush1.msra.mxu0 0.0
    %1729 = vmatprep.subr.mxu0 0.0
    %1730 = vmatpush1.msra.mxu0 0.0
    %1731 = vmatprep.subr.mxu0 0.0
    %1732 = vmatpush1.msra.mxu0 0.0
    %1733 = vmatprep.subr.mxu0 0.0
    %1734 = vmatpush1.msra.mxu0 %v1698
    %1735 = vmatprep.subr.mxu0 0.0
    %1736 = vmatpush2.msra.mxu0 0.0
    %1737 = vmatprep.subr.mxu0 0.0
    %1738 = vmatpush2.msra.mxu0 0.0
    %1739 = vmatprep.subr.mxu0 0.0
    %1740 = vmatpush2.msra.mxu0 0.0
    %1741 = vmatprep.subr.mxu0 0.0
    %1742 = vmatpush2.msra.mxu0 0.0
    %1743 = vmatprep.subr.mxu0 0.0
    %1744 = vmatpush2.msra.mxu0 0.0
    %1745 = vmatprep.subr.mxu0 0.0
    %1746 = vmatpush2.msra.mxu0 0.0
    %1747 = vmatprep.subr.mxu0 0.0
    %1748 = vmatpush2.msra.mxu0 0.0
    %1749 = vmatprep.subr.mxu0 0.0
    %1750 = vmatpush2.msra.mxu0 0.0
    %1751 = vmatprep.subr.mxu0 0.0
    %1752 = vmatpush2.msra.mxu0 0.0
    %1753 = vmatprep.subr.mxu0 0.0
    %1754 = vmatpush2.msra.mxu0 0.0
    %1755 = vmatprep.subr.mxu0 0.0
    %1756 = vmatpush2.msra.mxu0 0.0
    %1757 = vmatprep.subr.mxu0 0.0
    %1758 = vmatpush2.msra.mxu0 0.0
    %1759 = vmatprep.subr.mxu0 0.0
    %1760 = vmatpush2.msra.mxu0 0.0
    %1761 = vmatprep.subr.mxu0 0.0
    %1762 = vmatpush2.msra.mxu0 0.0
    %1763 = vmatprep.subr.mxu0 0.0
    %1764 = vmatpush2.msra.mxu0 0.0
    %1765 = vmatprep.subr.mxu0 0.0
    %1766 = vmatpush2.msra.mxu0 0.0
    %1767 = vmatprep.mubr.f32.mxu0 0.0
    %1768 = vmatmul.mubr.f32.gmra.mxu0 %v1701
    %v1769 = vpop.f32.mrf.mxu0
    %v1770 = vadd.f32 0.0, %v1769
    %v1771 = vpop.f32.mrf.mxu0
    %1772 = vdwg.mxu0
    %1773 = vrot.lane.b32.xlu0 %v191, 64
    %v1774 = vpop.permute.xlu0 %1773
    %v1777 = vsel %vm275, %v1682, 0
    %1779 = vmatprep.subr.mxu0 0.0
    %1780 = vmatpush1.msra.mxu0 0.0
    %1781 = vmatprep.subr.mxu0 0.0
    %1782 = vmatpush1.msra.mxu0 0.0
    %1783 = vmatprep.subr.mxu0 0.0
    %1784 = vmatpush1.msra.mxu0 0.0
    %1785 = vmatprep.subr.mxu0 0.0
    %1786 = vmatpush1.msra.mxu0 0.0
    %1787 = vmatprep.subr.mxu0 0.0
    %1788 = vmatpush1.msra.mxu0 0.0
    %1789 = vmatprep.subr.mxu0 0.0
    %1790 = vmatpush1.msra.mxu0 0.0
    %1791 = vmatprep.subr.mxu0 0.0
    %1792 = vmatpush1.msra.mxu0 0.0
    %1793 = vmatprep.subr.mxu0 0.0
    %1794 = vmatpush1.msra.mxu0 0.0
    %1795 = vmatprep.subr.mxu0 0.0
    %1796 = vmatpush1.msra.mxu0 0.0
    %1797 = vmatprep.subr.mxu0 0.0
    %1798 = vmatpush1.msra.mxu0 0.0
    %1799 = vmatprep.subr.mxu0 0.0
    %1800 = vmatpush1.msra.mxu0 0.0
    %1801 = vmatprep.subr.mxu0 0.0
    %1802 = vmatpush1.msra.mxu0 0.0
    %1803 = vmatprep.subr.mxu0 0.0
    %1804 = vmatpush1.msra.mxu0 0.0
    %1805 = vmatprep.subr.mxu0 0.0
    %1806 = vmatpush1.msra.mxu0 0.0
    %1807 = vmatprep.subr.mxu0 0.0
    %1808 = vmatpush1.msra.mxu0 0.0
    %1809 = vmatprep.subr.mxu0 0.0
    %1810 = vmatpush1.msra.mxu0 %v1774
    %1811 = vmatprep.subr.mxu0 0.0
    %1812 = vmatpush2.msra.mxu0 0.0
    %1813 = vmatprep.subr.mxu0 0.0
    %1814 = vmatpush2.msra.mxu0 0.0
    %1815 = vmatprep.subr.mxu0 0.0
    %1816 = vmatpush2.msra.mxu0 0.0
    %1817 = vmatprep.subr.mxu0 0.0
    %1818 = vmatpush2.msra.mxu0 0.0
    %1819 = vmatprep.subr.mxu0 0.0
    %1820 = vmatpush2.msra.mxu0 0.0
    %1821 = vmatprep.subr.mxu0 0.0
    %1822 = vmatpush2.msra.mxu0 0.0
    %1823 = vmatprep.subr.mxu0 0.0
    %1824 = vmatpush2.msra.mxu0 0.0
    %1825 = vmatprep.subr.mxu0 0.0
    %1826 = vmatpush2.msra.mxu0 0.0
    %1827 = vmatprep.subr.mxu0 0.0
    %1828 = vmatpush2.msra.mxu0 0.0
    %1829 = vmatprep.subr.mxu0 0.0
    %1830 = vmatpush2.msra.mxu0 0.0
    %1831 = vmatprep.subr.mxu0 0.0
    %1832 = vmatpush2.msra.mxu0 0.0
    %1833 = vmatprep.subr.mxu0 0.0
    %1834 = vmatpush2.msra.mxu0 0.0
    %1835 = vmatprep.subr.mxu0 0.0
    %1836 = vmatpush2.msra.mxu0 0.0
    %1837 = vmatprep.subr.mxu0 0.0
    %1838 = vmatpush2.msra.mxu0 0.0
    %1839 = vmatprep.subr.mxu0 0.0
    %1840 = vmatpush2.msra.mxu0 0.0
    %1841 = vmatprep.subr.mxu0 0.0
    %1842 = vmatpush2.msra.mxu0 0.0
    %1843 = vmatprep.mubr.f32.mxu0 0.0
    %1844 = vmatmul.mubr.f32.gmra.mxu0 %v1777
    %v1845 = vpop.f32.mrf.mxu0
    %v1846 = vadd.f32 0.0, %v1845
    %v1847 = vpop.f32.mrf.mxu0
    %1848 = vdwg.mxu0
    %1849 = vrot.lane.b32.xlu0 %v197, 64
    %v1850 = vpop.permute.xlu0 %1849
    %v1853 = vsel %vm275, %v1683, 0
    %1855 = vmatprep.subr.mxu0 0.0
    %1856 = vmatpush1.msra.mxu0 0.0
    %1857 = vmatprep.subr.mxu0 0.0
    %1858 = vmatpush1.msra.mxu0 0.0
    %1859 = vmatprep.subr.mxu0 0.0
    %1860 = vmatpush1.msra.mxu0 0.0
    %1861 = vmatprep.subr.mxu0 0.0
    %1862 = vmatpush1.msra.mxu0 0.0
    %1863 = vmatprep.subr.mxu0 0.0
    %1864 = vmatpush1.msra.mxu0 0.0
    %1865 = vmatprep.subr.mxu0 0.0
    %1866 = vmatpush1.msra.mxu0 0.0
    %1867 = vmatprep.subr.mxu0 0.0
    %1868 = vmatpush1.msra.mxu0 0.0
    %1869 = vmatprep.subr.mxu0 0.0
    %1870 = vmatpush1.msra.mxu0 0.0
    %1871 = vmatprep.subr.mxu0 0.0
    %1872 = vmatpush1.msra.mxu0 0.0
    %1873 = vmatprep.subr.mxu0 0.0
    %1874 = vmatpush1.msra.mxu0 0.0
    %1875 = vmatprep.subr.mxu0 0.0
    %1876 = vmatpush1.msra.mxu0 0.0
    %1877 = vmatprep.subr.mxu0 0.0
    %1878 = vmatpush1.msra.mxu0 0.0
    %1879 = vmatprep.subr.mxu0 0.0
    %1880 = vmatpush1.msra.mxu0 0.0
    %1881 = vmatprep.subr.mxu0 0.0
    %1882 = vmatpush1.msra.mxu0 0.0
    %1883 = vmatprep.subr.mxu0 0.0
    %1884 = vmatpush1.msra.mxu0 0.0
    %1885 = vmatprep.subr.mxu0 0.0
    %1886 = vmatpush1.msra.mxu0 %v1850
    %1887 = vmatprep.subr.mxu0 0.0
    %1888 = vmatpush2.msra.mxu0 0.0
    %1889 = vmatprep.subr.mxu0 0.0
    %1890 = vmatpush2.msra.mxu0 0.0
    %1891 = vmatprep.subr.mxu0 0.0
    %1892 = vmatpush2.msra.mxu0 0.0
    %1893 = vmatprep.subr.mxu0 0.0
    %1894 = vmatpush2.msra.mxu0 0.0
    %1895 = vmatprep.subr.mxu0 0.0
    %1896 = vmatpush2.msra.mxu0 0.0
    %1897 = vmatprep.subr.mxu0 0.0
    %1898 = vmatpush2.msra.mxu0 0.0
    %1899 = vmatprep.subr.mxu0 0.0
    %1900 = vmatpush2.msra.mxu0 0.0
    %1901 = vmatprep.subr.mxu0 0.0
    %1902 = vmatpush2.msra.mxu0 0.0
    %1903 = vmatprep.subr.mxu0 0.0
    %1904 = vmatpush2.msra.mxu0 0.0
    %1905 = vmatprep.subr.mxu0 0.0
    %1906 = vmatpush2.msra.mxu0 0.0
    %1907 = vmatprep.subr.mxu0 0.0
    %1908 = vmatpush2.msra.mxu0 0.0
    %1909 = vmatprep.subr.mxu0 0.0
    %1910 = vmatpush2.msra.mxu0 0.0
    %1911 = vmatprep.subr.mxu0 0.0
    %1912 = vmatpush2.msra.mxu0 0.0
    %1913 = vmatprep.subr.mxu0 0.0
    %1914 = vmatpush2.msra.mxu0 0.0
    %1915 = vmatprep.subr.mxu0 0.0
    %1916 = vmatpush2.msra.mxu0 0.0
    %1917 = vmatprep.subr.mxu0 0.0
    %1918 = vmatpush2.msra.mxu0 0.0
    %1919 = vmatprep.mubr.f32.mxu0 0.0
    %1920 = vmatmul.mubr.f32.gmra.mxu0 %v1853
    %v1921 = vpop.f32.mrf.mxu0
    %v1922 = vadd.f32 0.0, %v1921
    %v1923 = vpop.f32.mrf.mxu0
    %1924 = vdwg.mxu0
    %1925 = vrot.lane.b32.xlu0 %v201, 64
    %v1926 = vpop.permute.xlu0 %1925
    %v1929 = vsel %vm275, %v1684, 0
    %1931 = vmatprep.subr.mxu0 0.0
    %1932 = vmatpush1.msra.mxu0 0.0
    %1933 = vmatprep.subr.mxu0 0.0
    %1934 = vmatpush1.msra.mxu0 0.0
    %1935 = vmatprep.subr.mxu0 0.0
    %1936 = vmatpush1.msra.mxu0 0.0
    %1937 = vmatprep.subr.mxu0 0.0
    %1938 = vmatpush1.msra.mxu0 0.0
    %1939 = vmatprep.subr.mxu0 0.0
    %1940 = vmatpush1.msra.mxu0 0.0
    %1941 = vmatprep.subr.mxu0 0.0
    %1942 = vmatpush1.msra.mxu0 0.0
    %1943 = vmatprep.subr.mxu0 0.0
    %1944 = vmatpush1.msra.mxu0 0.0
    %1945 = vmatprep.subr.mxu0 0.0
    %1946 = vmatpush1.msra.mxu0 0.0
    %1947 = vmatprep.subr.mxu0 0.0
    %1948 = vmatpush1.msra.mxu0 0.0
    %1949 = vmatprep.subr.mxu0 0.0
    %1950 = vmatpush1.msra.mxu0 0.0
    %1951 = vmatprep.subr.mxu0 0.0
    %1952 = vmatpush1.msra.mxu0 0.0
    %1953 = vmatprep.subr.mxu0 0.0
    %1954 = vmatpush1.msra.mxu0 0.0
    %1955 = vmatprep.subr.mxu0 0.0
    %1956 = vmatpush1.msra.mxu0 0.0
    %1957 = vmatprep.subr.mxu0 0.0
    %1958 = vmatpush1.msra.mxu0 0.0
    %1959 = vmatprep.subr.mxu0 0.0
    %1960 = vmatpush1.msra.mxu0 0.0
    %1961 = vmatprep.subr.mxu0 0.0
    %1962 = vmatpush1.msra.mxu0 %v1926
    %1963 = vmatprep.subr.mxu0 0.0
    %1964 = vmatpush2.msra.mxu0 0.0
    %1965 = vmatprep.subr.mxu0 0.0
    %1966 = vmatpush2.msra.mxu0 0.0
    %1967 = vmatprep.subr.mxu0 0.0
    %1968 = vmatpush2.msra.mxu0 0.0
    %1969 = vmatprep.subr.mxu0 0.0
    %1970 = vmatpush2.msra.mxu0 0.0
    %1971 = vmatprep.subr.mxu0 0.0
    %1972 = vmatpush2.msra.mxu0 0.0
    %1973 = vmatprep.subr.mxu0 0.0
    %1974 = vmatpush2.msra.mxu0 0.0
    %1975 = vmatprep.subr.mxu0 0.0
    %1976 = vmatpush2.msra.mxu0 0.0
    %1977 = vmatprep.subr.mxu0 0.0
    %1978 = vmatpush2.msra.mxu0 0.0
    %1979 = vmatprep.subr.mxu0 0.0
    %1980 = vmatpush2.msra.mxu0 0.0
    %1981 = vmatprep.subr.mxu0 0.0
    %1982 = vmatpush2.msra.mxu0 0.0
    %1983 = vmatprep.subr.mxu0 0.0
    %1984 = vmatpush2.msra.mxu0 0.0
    %1985 = vmatprep.subr.mxu0 0.0
    %1986 = vmatpush2.msra.mxu0 0.0
    %1987 = vmatprep.subr.mxu0 0.0
    %1988 = vmatpush2.msra.mxu0 0.0
    %1989 = vmatprep.subr.mxu0 0.0
    %1990 = vmatpush2.msra.mxu0 0.0
    %1991 = vmatprep.subr.mxu0 0.0
    %1992 = vmatpush2.msra.mxu0 0.0
    %1993 = vmatprep.subr.mxu0 0.0
    %1994 = vmatpush2.msra.mxu0 0.0
    %1995 = vmatprep.mubr.f32.mxu0 0.0
    %1996 = vmatmul.mubr.f32.gmra.mxu0 %v1929
    %v1997 = vpop.f32.mrf.mxu0
    %v1998 = vadd.f32 0.0, %v1997
    %v1999 = vpop.f32.mrf.mxu0
    %2000 = vdwg.mxu0
    %2001 = vrot.lane.b32.xlu0 %v207, 64
    %v2002 = vpop.permute.xlu0 %2001
    %v2005 = vsel %vm275, %v1685, 0
    %2007 = vmatprep.subr.mxu0 0.0
    %2008 = vmatpush1.msra.mxu0 0.0
    %2009 = vmatprep.subr.mxu0 0.0
    %2010 = vmatpush1.msra.mxu0 0.0
    %2011 = vmatprep.subr.mxu0 0.0
    %2012 = vmatpush1.msra.mxu0 0.0
    %2013 = vmatprep.subr.mxu0 0.0
    %2014 = vmatpush1.msra.mxu0 0.0
    %2015 = vmatprep.subr.mxu0 0.0
    %2016 = vmatpush1.msra.mxu0 0.0
    %2017 = vmatprep.subr.mxu0 0.0
    %2018 = vmatpush1.msra.mxu0 0.0
    %2019 = vmatprep.subr.mxu0 0.0
    %2020 = vmatpush1.msra.mxu0 0.0
    %2021 = vmatprep.subr.mxu0 0.0
    %2022 = vmatpush1.msra.mxu0 0.0
    %2023 = vmatprep.subr.mxu0 0.0
    %2024 = vmatpush1.msra.mxu0 0.0
    %2025 = vmatprep.subr.mxu0 0.0
    %2026 = vmatpush1.msra.mxu0 0.0
    %2027 = vmatprep.subr.mxu0 0.0
    %2028 = vmatpush1.msra.mxu0 0.0
    %2029 = vmatprep.subr.mxu0 0.0
    %2030 = vmatpush1.msra.mxu0 0.0
    %2031 = vmatprep.subr.mxu0 0.0
    %2032 = vmatpush1.msra.mxu0 0.0
    %2033 = vmatprep.subr.mxu0 0.0
    %2034 = vmatpush1.msra.mxu0 0.0
    %2035 = vmatprep.subr.mxu0 0.0
    %2036 = vmatpush1.msra.mxu0 0.0
    %2037 = vmatprep.subr.mxu0 0.0
    %2038 = vmatpush1.msra.mxu0 %v2002
    %2039 = vmatprep.subr.mxu0 0.0
    %2040 = vmatpush2.msra.mxu0 0.0
    %2041 = vmatprep.subr.mxu0 0.0
    %2042 = vmatpush2.msra.mxu0 0.0
    %2043 = vmatprep.subr.mxu0 0.0
    %2044 = vmatpush2.msra.mxu0 0.0
    %2045 = vmatprep.subr.mxu0 0.0
    %2046 = vmatpush2.msra.mxu0 0.0
    %2047 = vmatprep.subr.mxu0 0.0
    %2048 = vmatpush2.msra.mxu0 0.0
    %2049 = vmatprep.subr.mxu0 0.0
    %2050 = vmatpush2.msra.mxu0 0.0
    %2051 = vmatprep.subr.mxu0 0.0
    %2052 = vmatpush2.msra.mxu0 0.0
    %2053 = vmatprep.subr.mxu0 0.0
    %2054 = vmatpush2.msra.mxu0 0.0
    %2055 = vmatprep.subr.mxu0 0.0
    %2056 = vmatpush2.msra.mxu0 0.0
    %2057 = vmatprep.subr.mxu0 0.0
    %2058 = vmatpush2.msra.mxu0 0.0
    %2059 = vmatprep.subr.mxu0 0.0
    %2060 = vmatpush2.msra.mxu0 0.0
    %2061 = vmatprep.subr.mxu0 0.0
    %2062 = vmatpush2.msra.mxu0 0.0
    %2063 = vmatprep.subr.mxu0 0.0
    %2064 = vmatpush2.msra.mxu0 0.0
    %2065 = vmatprep.subr.mxu0 0.0
    %2066 = vmatpush2.msra.mxu0 0.0
    %2067 = vmatprep.subr.mxu0 0.0
    %2068 = vmatpush2.msra.mxu0 0.0
    %2069 = vmatprep.subr.mxu0 0.0
    %2070 = vmatpush2.msra.mxu0 0.0
    %2071 = vmatprep.mubr.f32.mxu0 0.0
    %2072 = vmatmul.mubr.f32.gmra.mxu0 %v2005
    %v2073 = vpop.f32.mrf.mxu0
    %v2074 = vadd.f32 0.0, %v2073
    %v2075 = vpop.f32.mrf.mxu0
    %2076 = vdwg.mxu0
    %2077 = vrot.lane.b32.xlu0 %v211, 64
    %v2078 = vpop.permute.xlu0 %2077
    %v2081 = vsel %vm275, %v1686, 0
    %2083 = vmatprep.subr.mxu0 0.0
    %2084 = vmatpush1.msra.mxu0 0.0
    %2085 = vmatprep.subr.mxu0 0.0
    %2086 = vmatpush1.msra.mxu0 0.0
    %2087 = vmatprep.subr.mxu0 0.0
    %2088 = vmatpush1.msra.mxu0 0.0
    %2089 = vmatprep.subr.mxu0 0.0
    %2090 = vmatpush1.msra.mxu0 0.0
    %2091 = vmatprep.subr.mxu0 0.0
    %2092 = vmatpush1.msra.mxu0 0.0
    %2093 = vmatprep.subr.mxu0 0.0
    %2094 = vmatpush1.msra.mxu0 0.0
    %2095 = vmatprep.subr.mxu0 0.0
    %2096 = vmatpush1.msra.mxu0 0.0
    %2097 = vmatprep.subr.mxu0 0.0
    %2098 = vmatpush1.msra.mxu0 0.0
    %2099 = vmatprep.subr.mxu0 0.0
    %2100 = vmatpush1.msra.mxu0 0.0
    %2101 = vmatprep.subr.mxu0 0.0
    %2102 = vmatpush1.msra.mxu0 0.0
    %2103 = vmatprep.subr.mxu0 0.0
    %2104 = vmatpush1.msra.mxu0 0.0
    %2105 = vmatprep.subr.mxu0 0.0
    %2106 = vmatpush1.msra.mxu0 0.0
    %2107 = vmatprep.subr.mxu0 0.0
    %2108 = vmatpush1.msra.mxu0 0.0
    %2109 = vmatprep.subr.mxu0 0.0
    %2110 = vmatpush1.msra.mxu0 0.0
    %2111 = vmatprep.subr.mxu0 0.0
    %2112 = vmatpush1.msra.mxu0 0.0
    %2113 = vmatprep.subr.mxu0 0.0
    %2114 = vmatpush1.msra.mxu0 %v2078
    %2115 = vmatprep.subr.mxu0 0.0
    %2116 = vmatpush2.msra.mxu0 0.0
    %2117 = vmatprep.subr.mxu0 0.0
    %2118 = vmatpush2.msra.mxu0 0.0
    %2119 = vmatprep.subr.mxu0 0.0
    %2120 = vmatpush2.msra.mxu0 0.0
    %2121 = vmatprep.subr.mxu0 0.0
    %2122 = vmatpush2.msra.mxu0 0.0
    %2123 = vmatprep.subr.mxu0 0.0
    %2124 = vmatpush2.msra.mxu0 0.0
    %2125 = vmatprep.subr.mxu0 0.0
    %2126 = vmatpush2.msra.mxu0 0.0
    %2127 = vmatprep.subr.mxu0 0.0
    %2128 = vmatpush2.msra.mxu0 0.0
    %2129 = vmatprep.subr.mxu0 0.0
    %2130 = vmatpush2.msra.mxu0 0.0
    %2131 = vmatprep.subr.mxu0 0.0
    %2132 = vmatpush2.msra.mxu0 0.0
    %2133 = vmatprep.subr.mxu0 0.0
    %2134 = vmatpush2.msra.mxu0 0.0
    %2135 = vmatprep.subr.mxu0 0.0
    %2136 = vmatpush2.msra.mxu0 0.0
    %2137 = vmatprep.subr.mxu0 0.0
    %2138 = vmatpush2.msra.mxu0 0.0
    %2139 = vmatprep.subr.mxu0 0.0
    %2140 = vmatpush2.msra.mxu0 0.0
    %2141 = vmatprep.subr.mxu0 0.0
    %2142 = vmatpush2.msra.mxu0 0.0
    %2143 = vmatprep.subr.mxu0 0.0
    %2144 = vmatpush2.msra.mxu0 0.0
    %2145 = vmatprep.subr.mxu0 0.0
    %2146 = vmatpush2.msra.mxu0 0.0
    %2147 = vmatprep.mubr.f32.mxu0 0.0
    %2148 = vmatmul.mubr.f32.gmra.mxu0 %v2081
    %v2149 = vpop.f32.mrf.mxu0
    %v2150 = vadd.f32 0.0, %v2149
    %v2151 = vpop.f32.mrf.mxu0
    %2152 = vdwg.mxu0
    %2153 = vrot.lane.b32.xlu0 %v217, 64
    %v2154 = vpop.permute.xlu0 %2153
    %v2157 = vsel %vm275, %v1687, 0
    %2159 = vmatprep.subr.mxu0 0.0
    %2160 = vmatpush1.msra.mxu0 0.0
    %2161 = vmatprep.subr.mxu0 0.0
    %2162 = vmatpush1.msra.mxu0 0.0
    %2163 = vmatprep.subr.mxu0 0.0
    %2164 = vmatpush1.msra.mxu0 0.0
    %2165 = vmatprep.subr.mxu0 0.0
    %2166 = vmatpush1.msra.mxu0 0.0
    %2167 = vmatprep.subr.mxu0 0.0
    %2168 = vmatpush1.msra.mxu0 0.0
    %2169 = vmatprep.subr.mxu0 0.0
    %2170 = vmatpush1.msra.mxu0 0.0
    %2171 = vmatprep.subr.mxu0 0.0
    %2172 = vmatpush1.msra.mxu0 0.0
    %2173 = vmatprep.subr.mxu0 0.0
    %2174 = vmatpush1.msra.mxu0 0.0
    %2175 = vmatprep.subr.mxu0 0.0
    %2176 = vmatpush1.msra.mxu0 0.0
    %2177 = vmatprep.subr.mxu0 0.0
    %2178 = vmatpush1.msra.mxu0 0.0
    %2179 = vmatprep.subr.mxu0 0.0
    %2180 = vmatpush1.msra.mxu0 0.0
    %2181 = vmatprep.subr.mxu0 0.0
    %2182 = vmatpush1.msra.mxu0 0.0
    %2183 = vmatprep.subr.mxu0 0.0
    %2184 = vmatpush1.msra.mxu0 0.0
    %2185 = vmatprep.subr.mxu0 0.0
    %2186 = vmatpush1.msra.mxu0 0.0
    %2187 = vmatprep.subr.mxu0 0.0
    %2188 = vmatpush1.msra.mxu0 0.0
    %2189 = vmatprep.subr.mxu0 0.0
    %2190 = vmatpush1.msra.mxu0 %v2154
    %2191 = vmatprep.subr.mxu0 0.0
    %2192 = vmatpush2.msra.mxu0 0.0
    %2193 = vmatprep.subr.mxu0 0.0
    %2194 = vmatpush2.msra.mxu0 0.0
    %2195 = vmatprep.subr.mxu0 0.0
    %2196 = vmatpush2.msra.mxu0 0.0
    %2197 = vmatprep.subr.mxu0 0.0
    %2198 = vmatpush2.msra.mxu0 0.0
    %2199 = vmatprep.subr.mxu0 0.0
    %2200 = vmatpush2.msra.mxu0 0.0
    %2201 = vmatprep.subr.mxu0 0.0
    %2202 = vmatpush2.msra.mxu0 0.0
    %2203 = vmatprep.subr.mxu0 0.0
    %2204 = vmatpush2.msra.mxu0 0.0
    %2205 = vmatprep.subr.mxu0 0.0
    %2206 = vmatpush2.msra.mxu0 0.0
    %2207 = vmatprep.subr.mxu0 0.0
    %2208 = vmatpush2.msra.mxu0 0.0
    %2209 = vmatprep.subr.mxu0 0.0
    %2210 = vmatpush2.msra.mxu0 0.0
    %2211 = vmatprep.subr.mxu0 0.0
    %2212 = vmatpush2.msra.mxu0 0.0
    %2213 = vmatprep.subr.mxu0 0.0
    %2214 = vmatpush2.msra.mxu0 0.0
    %2215 = vmatprep.subr.mxu0 0.0
    %2216 = vmatpush2.msra.mxu0 0.0
    %2217 = vmatprep.subr.mxu0 0.0
    %2218 = vmatpush2.msra.mxu0 0.0
    %2219 = vmatprep.subr.mxu0 0.0
    %2220 = vmatpush2.msra.mxu0 0.0
    %2221 = vmatprep.subr.mxu0 0.0
    %2222 = vmatpush2.msra.mxu0 0.0
    %2223 = vmatprep.mubr.f32.mxu0 0.0
    %2224 = vmatmul.mubr.f32.gmra.mxu0 %v2157
    %v2225 = vpop.f32.mrf.mxu0
    %v2226 = vadd.f32 0.0, %v2225
    %v2227 = vpop.f32.mrf.mxu0
    %2228 = vdwg.mxu0
    %2229 = vrot.lane.b32.xlu0 %v221, 64
    %v2230 = vpop.permute.xlu0 %2229
    %v2233 = vsel %vm275, %v1688, 0
    %2235 = vmatprep.subr.mxu0 0.0
    %2236 = vmatpush1.msra.mxu0 0.0
    %2237 = vmatprep.subr.mxu0 0.0
    %2238 = vmatpush1.msra.mxu0 0.0
    %2239 = vmatprep.subr.mxu0 0.0
    %2240 = vmatpush1.msra.mxu0 0.0
    %2241 = vmatprep.subr.mxu0 0.0
    %2242 = vmatpush1.msra.mxu0 0.0
    %2243 = vmatprep.subr.mxu0 0.0
    %2244 = vmatpush1.msra.mxu0 0.0
    %2245 = vmatprep.subr.mxu0 0.0
    %2246 = vmatpush1.msra.mxu0 0.0
    %2247 = vmatprep.subr.mxu0 0.0
    %2248 = vmatpush1.msra.mxu0 0.0
    %2249 = vmatprep.subr.mxu0 0.0
    %2250 = vmatpush1.msra.mxu0 0.0
    %2251 = vmatprep.subr.mxu0 0.0
    %2252 = vmatpush1.msra.mxu0 0.0
    %2253 = vmatprep.subr.mxu0 0.0
    %2254 = vmatpush1.msra.mxu0 0.0
    %2255 = vmatprep.subr.mxu0 0.0
    %2256 = vmatpush1.msra.mxu0 0.0
    %2257 = vmatprep.subr.mxu0 0.0
    %2258 = vmatpush1.msra.mxu0 0.0
    %2259 = vmatprep.subr.mxu0 0.0
    %2260 = vmatpush1.msra.mxu0 0.0
    %2261 = vmatprep.subr.mxu0 0.0
    %2262 = vmatpush1.msra.mxu0 0.0
    %2263 = vmatprep.subr.mxu0 0.0
    %2264 = vmatpush1.msra.mxu0 0.0
    %2265 = vmatprep.subr.mxu0 0.0
    %2266 = vmatpush1.msra.mxu0 %v2230
    %2267 = vmatprep.subr.mxu0 0.0
    %2268 = vmatpush2.msra.mxu0 0.0
    %2269 = vmatprep.subr.mxu0 0.0
    %2270 = vmatpush2.msra.mxu0 0.0
    %2271 = vmatprep.subr.mxu0 0.0
    %2272 = vmatpush2.msra.mxu0 0.0
    %2273 = vmatprep.subr.mxu0 0.0
    %2274 = vmatpush2.msra.mxu0 0.0
    %2275 = vmatprep.subr.mxu0 0.0
    %2276 = vmatpush2.msra.mxu0 0.0
    %2277 = vmatprep.subr.mxu0 0.0
    %2278 = vmatpush2.msra.mxu0 0.0
    %2279 = vmatprep.subr.mxu0 0.0
    %2280 = vmatpush2.msra.mxu0 0.0
    %2281 = vmatprep.subr.mxu0 0.0
    %2282 = vmatpush2.msra.mxu0 0.0
    %2283 = vmatprep.subr.mxu0 0.0
    %2284 = vmatpush2.msra.mxu0 0.0
    %2285 = vmatprep.subr.mxu0 0.0
    %2286 = vmatpush2.msra.mxu0 0.0
    %2287 = vmatprep.subr.mxu0 0.0
    %2288 = vmatpush2.msra.mxu0 0.0
    %2289 = vmatprep.subr.mxu0 0.0
    %2290 = vmatpush2.msra.mxu0 0.0
    %2291 = vmatprep.subr.mxu0 0.0
    %2292 = vmatpush2.msra.mxu0 0.0
    %2293 = vmatprep.subr.mxu0 0.0
    %2294 = vmatpush2.msra.mxu0 0.0
    %2295 = vmatprep.subr.mxu0 0.0
    %2296 = vmatpush2.msra.mxu0 0.0
    %2297 = vmatprep.subr.mxu0 0.0
    %2298 = vmatpush2.msra.mxu0 0.0
    %2299 = vmatprep.mubr.f32.mxu0 0.0
    %2300 = vmatmul.mubr.f32.gmra.mxu0 %v2233
    %v2301 = vpop.f32.mrf.mxu0
    %v2302 = vadd.f32 0.0, %v2301
    %v2303 = vpop.f32.mrf.mxu0
    %2304 = vdwg.mxu0
    %2305 = vrot.lane.b32.xlu0 %v227, 64
    %v2306 = vpop.permute.xlu0 %2305
    %v2309 = vsel %vm275, %v1689, 0
    %2311 = vmatprep.subr.mxu0 0.0
    %2312 = vmatpush1.msra.mxu0 0.0
    %2313 = vmatprep.subr.mxu0 0.0
    %2314 = vmatpush1.msra.mxu0 0.0
    %2315 = vmatprep.subr.mxu0 0.0
    %2316 = vmatpush1.msra.mxu0 0.0
    %2317 = vmatprep.subr.mxu0 0.0
    %2318 = vmatpush1.msra.mxu0 0.0
    %2319 = vmatprep.subr.mxu0 0.0
    %2320 = vmatpush1.msra.mxu0 0.0
    %2321 = vmatprep.subr.mxu0 0.0
    %2322 = vmatpush1.msra.mxu0 0.0
    %2323 = vmatprep.subr.mxu0 0.0
    %2324 = vmatpush1.msra.mxu0 0.0
    %2325 = vmatprep.subr.mxu0 0.0
    %2326 = vmatpush1.msra.mxu0 0.0
    %2327 = vmatprep.subr.mxu0 0.0
    %2328 = vmatpush1.msra.mxu0 0.0
    %2329 = vmatprep.subr.mxu0 0.0
    %2330 = vmatpush1.msra.mxu0 0.0
    %2331 = vmatprep.subr.mxu0 0.0
    %2332 = vmatpush1.msra.mxu0 0.0
    %2333 = vmatprep.subr.mxu0 0.0
    %2334 = vmatpush1.msra.mxu0 0.0
    %2335 = vmatprep.subr.mxu0 0.0
    %2336 = vmatpush1.msra.mxu0 0.0
    %2337 = vmatprep.subr.mxu0 0.0
    %2338 = vmatpush1.msra.mxu0 0.0
    %2339 = vmatprep.subr.mxu0 0.0
    %2340 = vmatpush1.msra.mxu0 0.0
    %2341 = vmatprep.subr.mxu0 0.0
    %2342 = vmatpush1.msra.mxu0 %v2306
    %2343 = vmatprep.subr.mxu0 0.0
    %2344 = vmatpush2.msra.mxu0 0.0
    %2345 = vmatprep.subr.mxu0 0.0
    %2346 = vmatpush2.msra.mxu0 0.0
    %2347 = vmatprep.subr.mxu0 0.0
    %2348 = vmatpush2.msra.mxu0 0.0
    %2349 = vmatprep.subr.mxu0 0.0
    %2350 = vmatpush2.msra.mxu0 0.0
    %2351 = vmatprep.subr.mxu0 0.0
    %2352 = vmatpush2.msra.mxu0 0.0
    %2353 = vmatprep.subr.mxu0 0.0
    %2354 = vmatpush2.msra.mxu0 0.0
    %2355 = vmatprep.subr.mxu0 0.0
    %2356 = vmatpush2.msra.mxu0 0.0
    %2357 = vmatprep.subr.mxu0 0.0
    %2358 = vmatpush2.msra.mxu0 0.0
    %2359 = vmatprep.subr.mxu0 0.0
    %2360 = vmatpush2.msra.mxu0 0.0
    %2361 = vmatprep.subr.mxu0 0.0
    %2362 = vmatpush2.msra.mxu0 0.0
    %2363 = vmatprep.subr.mxu0 0.0
    %2364 = vmatpush2.msra.mxu0 0.0
    %2365 = vmatprep.subr.mxu0 0.0
    %2366 = vmatpush2.msra.mxu0 0.0
    %2367 = vmatprep.subr.mxu0 0.0
    %2368 = vmatpush2.msra.mxu0 0.0
    %2369 = vmatprep.subr.mxu0 0.0
    %2370 = vmatpush2.msra.mxu0 0.0
    %2371 = vmatprep.subr.mxu0 0.0
    %2372 = vmatpush2.msra.mxu0 0.0
    %2373 = vmatprep.subr.mxu0 0.0
    %2374 = vmatpush2.msra.mxu0 0.0
    %2375 = vmatprep.mubr.f32.mxu0 0.0
    %2376 = vmatmul.mubr.f32.gmra.mxu0 %v2309
    %v2377 = vpop.f32.mrf.mxu0
    %v2378 = vadd.f32 0.0, %v2377
    %v2379 = vpop.f32.mrf.mxu0
    %2380 = vdwg.mxu0
    %2381 = vrot.lane.b32.xlu0 %v231, 64
    %v2382 = vpop.permute.xlu0 %2381
    %v2385 = vsel %vm275, %v1690, 0
    %2387 = vmatprep.subr.mxu0 0.0
    %2388 = vmatpush1.msra.mxu0 0.0
    %2389 = vmatprep.subr.mxu0 0.0
    %2390 = vmatpush1.msra.mxu0 0.0
    %2391 = vmatprep.subr.mxu0 0.0
    %2392 = vmatpush1.msra.mxu0 0.0
    %2393 = vmatprep.subr.mxu0 0.0
    %2394 = vmatpush1.msra.mxu0 0.0
    %2395 = vmatprep.subr.mxu0 0.0
    %2396 = vmatpush1.msra.mxu0 0.0
    %2397 = vmatprep.subr.mxu0 0.0
    %2398 = vmatpush1.msra.mxu0 0.0
    %2399 = vmatprep.subr.mxu0 0.0
    %2400 = vmatpush1.msra.mxu0 0.0
    %2401 = vmatprep.subr.mxu0 0.0
    %2402 = vmatpush1.msra.mxu0 0.0
    %2403 = vmatprep.subr.mxu0 0.0
    %2404 = vmatpush1.msra.mxu0 0.0
    %2405 = vmatprep.subr.mxu0 0.0
    %2406 = vmatpush1.msra.mxu0 0.0
    %2407 = vmatprep.subr.mxu0 0.0
    %2408 = vmatpush1.msra.mxu0 0.0
    %2409 = vmatprep.subr.mxu0 0.0
    %2410 = vmatpush1.msra.mxu0 0.0
    %2411 = vmatprep.subr.mxu0 0.0
    %2412 = vmatpush1.msra.mxu0 0.0
    %2413 = vmatprep.subr.mxu0 0.0
    %2414 = vmatpush1.msra.mxu0 0.0
    %2415 = vmatprep.subr.mxu0 0.0
    %2416 = vmatpush1.msra.mxu0 0.0
    %2417 = vmatprep.subr.mxu0 0.0
    %2418 = vmatpush1.msra.mxu0 %v2382
    %2419 = vmatprep.subr.mxu0 0.0
    %2420 = vmatpush2.msra.mxu0 0.0
    %2421 = vmatprep.subr.mxu0 0.0
    %2422 = vmatpush2.msra.mxu0 0.0
    %2423 = vmatprep.subr.mxu0 0.0
    %2424 = vmatpush2.msra.mxu0 0.0
    %2425 = vmatprep.subr.mxu0 0.0
    %2426 = vmatpush2.msra.mxu0 0.0
    %2427 = vmatprep.subr.mxu0 0.0
    %2428 = vmatpush2.msra.mxu0 0.0
    %2429 = vmatprep.subr.mxu0 0.0
    %2430 = vmatpush2.msra.mxu0 0.0
    %2431 = vmatprep.subr.mxu0 0.0
    %2432 = vmatpush2.msra.mxu0 0.0
    %2433 = vmatprep.subr.mxu0 0.0
    %2434 = vmatpush2.msra.mxu0 0.0
    %2435 = vmatprep.subr.mxu0 0.0
    %2436 = vmatpush2.msra.mxu0 0.0
    %2437 = vmatprep.subr.mxu0 0.0
    %2438 = vmatpush2.msra.mxu0 0.0
    %2439 = vmatprep.subr.mxu0 0.0
    %2440 = vmatpush2.msra.mxu0 0.0
    %2441 = vmatprep.subr.mxu0 0.0
    %2442 = vmatpush2.msra.mxu0 0.0
    %2443 = vmatprep.subr.mxu0 0.0
    %2444 = vmatpush2.msra.mxu0 0.0
    %2445 = vmatprep.subr.mxu0 0.0
    %2446 = vmatpush2.msra.mxu0 0.0
    %2447 = vmatprep.subr.mxu0 0.0
    %2448 = vmatpush2.msra.mxu0 0.0
    %2449 = vmatprep.subr.mxu0 0.0
    %2450 = vmatpush2.msra.mxu0 0.0
    %2451 = vmatprep.mubr.f32.mxu0 0.0
    %2452 = vmatmul.mubr.f32.gmra.mxu0 %v2385
    %v2453 = vpop.f32.mrf.mxu0
    %v2454 = vadd.f32 0.0, %v2453
    %v2455 = vpop.f32.mrf.mxu0
    %2456 = vdwg.mxu0
    %2457 = vrot.lane.b32.xlu0 %v237, 64
    %v2458 = vpop.permute.xlu0 %2457
    %v2461 = vsel %vm275, %v1691, 0
    %2463 = vmatprep.subr.mxu0 0.0
    %2464 = vmatpush1.msra.mxu0 0.0
    %2465 = vmatprep.subr.mxu0 0.0
    %2466 = vmatpush1.msra.mxu0 0.0
    %2467 = vmatprep.subr.mxu0 0.0
    %2468 = vmatpush1.msra.mxu0 0.0
    %2469 = vmatprep.subr.mxu0 0.0
    %2470 = vmatpush1.msra.mxu0 0.0
    %2471 = vmatprep.subr.mxu0 0.0
    %2472 = vmatpush1.msra.mxu0 0.0
    %2473 = vmatprep.subr.mxu0 0.0
    %2474 = vmatpush1.msra.mxu0 0.0
    %2475 = vmatprep.subr.mxu0 0.0
    %2476 = vmatpush1.msra.mxu0 0.0
    %2477 = vmatprep.subr.mxu0 0.0
    %2478 = vmatpush1.msra.mxu0 0.0
    %2479 = vmatprep.subr.mxu0 0.0
    %2480 = vmatpush1.msra.mxu0 0.0
    %2481 = vmatprep.subr.mxu0 0.0
    %2482 = vmatpush1.msra.mxu0 0.0
    %2483 = vmatprep.subr.mxu0 0.0
    %2484 = vmatpush1.msra.mxu0 0.0
    %2485 = vmatprep.subr.mxu0 0.0
    %2486 = vmatpush1.msra.mxu0 0.0
    %2487 = vmatprep.subr.mxu0 0.0
    %2488 = vmatpush1.msra.mxu0 0.0
    %2489 = vmatprep.subr.mxu0 0.0
    %2490 = vmatpush1.msra.mxu0 0.0
    %2491 = vmatprep.subr.mxu0 0.0
    %2492 = vmatpush1.msra.mxu0 0.0
    %2493 = vmatprep.subr.mxu0 0.0
    %2494 = vmatpush1.msra.mxu0 %v2458
    %2495 = vmatprep.subr.mxu0 0.0
    %2496 = vmatpush2.msra.mxu0 0.0
    %2497 = vmatprep.subr.mxu0 0.0
    %2498 = vmatpush2.msra.mxu0 0.0
    %2499 = vmatprep.subr.mxu0 0.0
    %2500 = vmatpush2.msra.mxu0 0.0
    %2501 = vmatprep.subr.mxu0 0.0
    %2502 = vmatpush2.msra.mxu0 0.0
    %2503 = vmatprep.subr.mxu0 0.0
    %2504 = vmatpush2.msra.mxu0 0.0
    %2505 = vmatprep.subr.mxu0 0.0
    %2506 = vmatpush2.msra.mxu0 0.0
    %2507 = vmatprep.subr.mxu0 0.0
    %2508 = vmatpush2.msra.mxu0 0.0
    %2509 = vmatprep.subr.mxu0 0.0
    %2510 = vmatpush2.msra.mxu0 0.0
    %2511 = vmatprep.subr.mxu0 0.0
    %2512 = vmatpush2.msra.mxu0 0.0
    %2513 = vmatprep.subr.mxu0 0.0
    %2514 = vmatpush2.msra.mxu0 0.0
    %2515 = vmatprep.subr.mxu0 0.0
    %2516 = vmatpush2.msra.mxu0 0.0
    %2517 = vmatprep.subr.mxu0 0.0
    %2518 = vmatpush2.msra.mxu0 0.0
    %2519 = vmatprep.subr.mxu0 0.0
    %2520 = vmatpush2.msra.mxu0 0.0
    %2521 = vmatprep.subr.mxu0 0.0
    %2522 = vmatpush2.msra.mxu0 0.0
    %2523 = vmatprep.subr.mxu0 0.0
    %2524 = vmatpush2.msra.mxu0 0.0
    %2525 = vmatprep.subr.mxu0 0.0
    %2526 = vmatpush2.msra.mxu0 0.0
    %2527 = vmatprep.mubr.f32.mxu0 0.0
    %2528 = vmatmul.mubr.f32.gmra.mxu0 %v2461
    %v2529 = vpop.f32.mrf.mxu0
    %v2530 = vadd.f32 0.0, %v2529
    %v2531 = vpop.f32.mrf.mxu0
    %2532 = vdwg.mxu0
    %2533 = vrot.lane.b32.xlu0 %v241, 64
    %v2534 = vpop.permute.xlu0 %2533
    %v2537 = vsel %vm275, %v1692, 0
    %2539 = vmatprep.subr.mxu0 0.0
    %2540 = vmatpush1.msra.mxu0 0.0
    %2541 = vmatprep.subr.mxu0 0.0
    %2542 = vmatpush1.msra.mxu0 0.0
    %2543 = vmatprep.subr.mxu0 0.0
    %2544 = vmatpush1.msra.mxu0 0.0
    %2545 = vmatprep.subr.mxu0 0.0
    %2546 = vmatpush1.msra.mxu0 0.0
    %2547 = vmatprep.subr.mxu0 0.0
    %2548 = vmatpush1.msra.mxu0 0.0
    %2549 = vmatprep.subr.mxu0 0.0
    %2550 = vmatpush1.msra.mxu0 0.0
    %2551 = vmatprep.subr.mxu0 0.0
    %2552 = vmatpush1.msra.mxu0 0.0
    %2553 = vmatprep.subr.mxu0 0.0
    %2554 = vmatpush1.msra.mxu0 0.0
    %2555 = vmatprep.subr.mxu0 0.0
    %2556 = vmatpush1.msra.mxu0 0.0
    %2557 = vmatprep.subr.mxu0 0.0
    %2558 = vmatpush1.msra.mxu0 0.0
    %2559 = vmatprep.subr.mxu0 0.0
    %2560 = vmatpush1.msra.mxu0 0.0
    %2561 = vmatprep.subr.mxu0 0.0
    %2562 = vmatpush1.msra.mxu0 0.0
    %2563 = vmatprep.subr.mxu0 0.0
    %2564 = vmatpush1.msra.mxu0 0.0
    %2565 = vmatprep.subr.mxu0 0.0
    %2566 = vmatpush1.msra.mxu0 0.0
    %2567 = vmatprep.subr.mxu0 0.0
    %2568 = vmatpush1.msra.mxu0 0.0
    %2569 = vmatprep.subr.mxu0 0.0
    %2570 = vmatpush1.msra.mxu0 %v2534
    %2571 = vmatprep.subr.mxu0 0.0
    %2572 = vmatpush2.msra.mxu0 0.0
    %2573 = vmatprep.subr.mxu0 0.0
    %2574 = vmatpush2.msra.mxu0 0.0
    %2575 = vmatprep.subr.mxu0 0.0
    %2576 = vmatpush2.msra.mxu0 0.0
    %2577 = vmatprep.subr.mxu0 0.0
    %2578 = vmatpush2.msra.mxu0 0.0
    %2579 = vmatprep.subr.mxu0 0.0
    %2580 = vmatpush2.msra.mxu0 0.0
    %2581 = vmatprep.subr.mxu0 0.0
    %2582 = vmatpush2.msra.mxu0 0.0
    %2583 = vmatprep.subr.mxu0 0.0
    %2584 = vmatpush2.msra.mxu0 0.0
    %2585 = vmatprep.subr.mxu0 0.0
    %2586 = vmatpush2.msra.mxu0 0.0
    %2587 = vmatprep.subr.mxu0 0.0
    %2588 = vmatpush2.msra.mxu0 0.0
    %2589 = vmatprep.subr.mxu0 0.0
    %2590 = vmatpush2.msra.mxu0 0.0
    %2591 = vmatprep.subr.mxu0 0.0
    %2592 = vmatpush2.msra.mxu0 0.0
    %2593 = vmatprep.subr.mxu0 0.0
    %2594 = vmatpush2.msra.mxu0 0.0
    %2595 = vmatprep.subr.mxu0 0.0
    %2596 = vmatpush2.msra.mxu0 0.0
    %2597 = vmatprep.subr.mxu0 0.0
    %2598 = vmatpush2.msra.mxu0 0.0
    %2599 = vmatprep.subr.mxu0 0.0
    %2600 = vmatpush2.msra.mxu0 0.0
    %2601 = vmatprep.subr.mxu0 0.0
    %2602 = vmatpush2.msra.mxu0 0.0
    %2603 = vmatprep.mubr.f32.mxu0 0.0
    %2604 = vmatmul.mubr.f32.gmra.mxu0 %v2537
    %v2605 = vpop.f32.mrf.mxu0
    %v2606 = vadd.f32 0.0, %v2605
    %v2607 = vpop.f32.mrf.mxu0
    %2608 = vdwg.mxu0
    %2609 = vrot.lane.b32.xlu0 %v247, 64
    %v2610 = vpop.permute.xlu0 %2609
    %v2613 = vsel %vm275, %v1693, 0
    %2615 = vmatprep.subr.mxu0 0.0
    %2616 = vmatpush1.msra.mxu0 0.0
    %2617 = vmatprep.subr.mxu0 0.0
    %2618 = vmatpush1.msra.mxu0 0.0
    %2619 = vmatprep.subr.mxu0 0.0
    %2620 = vmatpush1.msra.mxu0 0.0
    %2621 = vmatprep.subr.mxu0 0.0
    %2622 = vmatpush1.msra.mxu0 0.0
    %2623 = vmatprep.subr.mxu0 0.0
    %2624 = vmatpush1.msra.mxu0 0.0
    %2625 = vmatprep.subr.mxu0 0.0
    %2626 = vmatpush1.msra.mxu0 0.0
    %2627 = vmatprep.subr.mxu0 0.0
    %2628 = vmatpush1.msra.mxu0 0.0
    %2629 = vmatprep.subr.mxu0 0.0
    %2630 = vmatpush1.msra.mxu0 0.0
    %2631 = vmatprep.subr.mxu0 0.0
    %2632 = vmatpush1.msra.mxu0 0.0
    %2633 = vmatprep.subr.mxu0 0.0
    %2634 = vmatpush1.msra.mxu0 0.0
    %2635 = vmatprep.subr.mxu0 0.0
    %2636 = vmatpush1.msra.mxu0 0.0
    %2637 = vmatprep.subr.mxu0 0.0
    %2638 = vmatpush1.msra.mxu0 0.0
    %2639 = vmatprep.subr.mxu0 0.0
    %2640 = vmatpush1.msra.mxu0 0.0
    %2641 = vmatprep.subr.mxu0 0.0
    %2642 = vmatpush1.msra.mxu0 0.0
    %2643 = vmatprep.subr.mxu0 0.0
    %2644 = vmatpush1.msra.mxu0 0.0
    %2645 = vmatprep.subr.mxu0 0.0
    %2646 = vmatpush1.msra.mxu0 %v2610
    %2647 = vmatprep.subr.mxu0 0.0
    %2648 = vmatpush2.msra.mxu0 0.0
    %2649 = vmatprep.subr.mxu0 0.0
    %2650 = vmatpush2.msra.mxu0 0.0
    %2651 = vmatprep.subr.mxu0 0.0
    %2652 = vmatpush2.msra.mxu0 0.0
    %2653 = vmatprep.subr.mxu0 0.0
    %2654 = vmatpush2.msra.mxu0 0.0
    %2655 = vmatprep.subr.mxu0 0.0
    %2656 = vmatpush2.msra.mxu0 0.0
    %2657 = vmatprep.subr.mxu0 0.0
    %2658 = vmatpush2.msra.mxu0 0.0
    %2659 = vmatprep.subr.mxu0 0.0
    %2660 = vmatpush2.msra.mxu0 0.0
    %2661 = vmatprep.subr.mxu0 0.0
    %2662 = vmatpush2.msra.mxu0 0.0
    %2663 = vmatprep.subr.mxu0 0.0
    %2664 = vmatpush2.msra.mxu0 0.0
    %2665 = vmatprep.subr.mxu0 0.0
    %2666 = vmatpush2.msra.mxu0 0.0
    %2667 = vmatprep.subr.mxu0 0.0
    %2668 = vmatpush2.msra.mxu0 0.0
    %2669 = vmatprep.subr.mxu0 0.0
    %2670 = vmatpush2.msra.mxu0 0.0
    %2671 = vmatprep.subr.mxu0 0.0
    %2672 = vmatpush2.msra.mxu0 0.0
    %2673 = vmatprep.subr.mxu0 0.0
    %2674 = vmatpush2.msra.mxu0 0.0
    %2675 = vmatprep.subr.mxu0 0.0
    %2676 = vmatpush2.msra.mxu0 0.0
    %2677 = vmatprep.subr.mxu0 0.0
    %2678 = vmatpush2.msra.mxu0 0.0
    %2679 = vmatprep.mubr.f32.mxu0 0.0
    %2680 = vmatmul.mubr.f32.gmra.mxu0 %v2613
    %v2681 = vpop.f32.mrf.mxu0
    %v2682 = vadd.f32 0.0, %v2681
    %v2683 = vpop.f32.mrf.mxu0
    %2684 = vdwg.mxu0
    %2685 = vrot.lane.b32.xlu0 %v251, 64
    %v2686 = vpop.permute.xlu0 %2685
    %v2689 = vsel %vm275, %v1694, 0
    %2691 = vmatprep.subr.mxu0 0.0
    %2692 = vmatpush1.msra.mxu0 0.0
    %2693 = vmatprep.subr.mxu0 0.0
    %2694 = vmatpush1.msra.mxu0 0.0
    %2695 = vmatprep.subr.mxu0 0.0
    %2696 = vmatpush1.msra.mxu0 0.0
    %2697 = vmatprep.subr.mxu0 0.0
    %2698 = vmatpush1.msra.mxu0 0.0
    %2699 = vmatprep.subr.mxu0 0.0
    %2700 = vmatpush1.msra.mxu0 0.0
    %2701 = vmatprep.subr.mxu0 0.0
    %2702 = vmatpush1.msra.mxu0 0.0
    %2703 = vmatprep.subr.mxu0 0.0
    %2704 = vmatpush1.msra.mxu0 0.0
    %2705 = vmatprep.subr.mxu0 0.0
    %2706 = vmatpush1.msra.mxu0 0.0
    %2707 = vmatprep.subr.mxu0 0.0
    %2708 = vmatpush1.msra.mxu0 0.0
    %2709 = vmatprep.subr.mxu0 0.0
    %2710 = vmatpush1.msra.mxu0 0.0
    %2711 = vmatprep.subr.mxu0 0.0
    %2712 = vmatpush1.msra.mxu0 0.0
    %2713 = vmatprep.subr.mxu0 0.0
    %2714 = vmatpush1.msra.mxu0 0.0
    %2715 = vmatprep.subr.mxu0 0.0
    %2716 = vmatpush1.msra.mxu0 0.0
    %2717 = vmatprep.subr.mxu0 0.0
    %2718 = vmatpush1.msra.mxu0 0.0
    %2719 = vmatprep.subr.mxu0 0.0
    %2720 = vmatpush1.msra.mxu0 0.0
    %2721 = vmatprep.subr.mxu0 0.0
    %2722 = vmatpush1.msra.mxu0 %v2686
    %2723 = vmatprep.subr.mxu0 0.0
    %2724 = vmatpush2.msra.mxu0 0.0
    %2725 = vmatprep.subr.mxu0 0.0
    %2726 = vmatpush2.msra.mxu0 0.0
    %2727 = vmatprep.subr.mxu0 0.0
    %2728 = vmatpush2.msra.mxu0 0.0
    %2729 = vmatprep.subr.mxu0 0.0
    %2730 = vmatpush2.msra.mxu0 0.0
    %2731 = vmatprep.subr.mxu0 0.0
    %2732 = vmatpush2.msra.mxu0 0.0
    %2733 = vmatprep.subr.mxu0 0.0
    %2734 = vmatpush2.msra.mxu0 0.0
    %2735 = vmatprep.subr.mxu0 0.0
    %2736 = vmatpush2.msra.mxu0 0.0
    %2737 = vmatprep.subr.mxu0 0.0
    %2738 = vmatpush2.msra.mxu0 0.0
    %2739 = vmatprep.subr.mxu0 0.0
    %2740 = vmatpush2.msra.mxu0 0.0
    %2741 = vmatprep.subr.mxu0 0.0
    %2742 = vmatpush2.msra.mxu0 0.0
    %2743 = vmatprep.subr.mxu0 0.0
    %2744 = vmatpush2.msra.mxu0 0.0
    %2745 = vmatprep.subr.mxu0 0.0
    %2746 = vmatpush2.msra.mxu0 0.0
    %2747 = vmatprep.subr.mxu0 0.0
    %2748 = vmatpush2.msra.mxu0 0.0
    %2749 = vmatprep.subr.mxu0 0.0
    %2750 = vmatpush2.msra.mxu0 0.0
    %2751 = vmatprep.subr.mxu0 0.0
    %2752 = vmatpush2.msra.mxu0 0.0
    %2753 = vmatprep.subr.mxu0 0.0
    %2754 = vmatpush2.msra.mxu0 0.0
    %2755 = vmatprep.mubr.f32.mxu0 0.0
    %2756 = vmatmul.mubr.f32.gmra.mxu0 %v2689
    %v2757 = vpop.f32.mrf.mxu0
    %v2758 = vadd.f32 0.0, %v2757
    %v2759 = vpop.f32.mrf.mxu0
    %2760 = vdwg.mxu0
    %2761 = vrot.lane.b32.xlu0 %v257, 64
    %v2762 = vpop.permute.xlu0 %2761
    %v2765 = vsel %vm275, %v1695, 0
    %2767 = vmatprep.subr.mxu0 0.0
    %2768 = vmatpush1.msra.mxu0 0.0
    %2769 = vmatprep.subr.mxu0 0.0
    %2770 = vmatpush1.msra.mxu0 0.0
    %2771 = vmatprep.subr.mxu0 0.0
    %2772 = vmatpush1.msra.mxu0 0.0
    %2773 = vmatprep.subr.mxu0 0.0
    %2774 = vmatpush1.msra.mxu0 0.0
    %2775 = vmatprep.subr.mxu0 0.0
    %2776 = vmatpush1.msra.mxu0 0.0
    %2777 = vmatprep.subr.mxu0 0.0
    %2778 = vmatpush1.msra.mxu0 0.0
    %2779 = vmatprep.subr.mxu0 0.0
    %2780 = vmatpush1.msra.mxu0 0.0
    %2781 = vmatprep.subr.mxu0 0.0
    %2782 = vmatpush1.msra.mxu0 0.0
    %2783 = vmatprep.subr.mxu0 0.0
    %2784 = vmatpush1.msra.mxu0 0.0
    %2785 = vmatprep.subr.mxu0 0.0
    %2786 = vmatpush1.msra.mxu0 0.0
    %2787 = vmatprep.subr.mxu0 0.0
    %2788 = vmatpush1.msra.mxu0 0.0
    %2789 = vmatprep.subr.mxu0 0.0
    %2790 = vmatpush1.msra.mxu0 0.0
    %2791 = vmatprep.subr.mxu0 0.0
    %2792 = vmatpush1.msra.mxu0 0.0
    %2793 = vmatprep.subr.mxu0 0.0
    %2794 = vmatpush1.msra.mxu0 0.0
    %2795 = vmatprep.subr.mxu0 0.0
    %2796 = vmatpush1.msra.mxu0 0.0
    %2797 = vmatprep.subr.mxu0 0.0
    %2798 = vmatpush1.msra.mxu0 %v2762
    %2799 = vmatprep.subr.mxu0 0.0
    %2800 = vmatpush2.msra.mxu0 0.0
    %2801 = vmatprep.subr.mxu0 0.0
    %2802 = vmatpush2.msra.mxu0 0.0
    %2803 = vmatprep.subr.mxu0 0.0
    %2804 = vmatpush2.msra.mxu0 0.0
    %2805 = vmatprep.subr.mxu0 0.0
    %2806 = vmatpush2.msra.mxu0 0.0
    %2807 = vmatprep.subr.mxu0 0.0
    %2808 = vmatpush2.msra.mxu0 0.0
    %2809 = vmatprep.subr.mxu0 0.0
    %2810 = vmatpush2.msra.mxu0 0.0
    %2811 = vmatprep.subr.mxu0 0.0
    %2812 = vmatpush2.msra.mxu0 0.0
    %2813 = vmatprep.subr.mxu0 0.0
    %2814 = vmatpush2.msra.mxu0 0.0
    %2815 = vmatprep.subr.mxu0 0.0
    %2816 = vmatpush2.msra.mxu0 0.0
    %2817 = vmatprep.subr.mxu0 0.0
    %2818 = vmatpush2.msra.mxu0 0.0
    %2819 = vmatprep.subr.mxu0 0.0
    %2820 = vmatpush2.msra.mxu0 0.0
    %2821 = vmatprep.subr.mxu0 0.0
    %2822 = vmatpush2.msra.mxu0 0.0
    %2823 = vmatprep.subr.mxu0 0.0
    %2824 = vmatpush2.msra.mxu0 0.0
    %2825 = vmatprep.subr.mxu0 0.0
    %2826 = vmatpush2.msra.mxu0 0.0
    %2827 = vmatprep.subr.mxu0 0.0
    %2828 = vmatpush2.msra.mxu0 0.0
    %2829 = vmatprep.subr.mxu0 0.0
    %2830 = vmatpush2.msra.mxu0 0.0
    %2831 = vmatprep.mubr.f32.mxu0 0.0
    %2832 = vmatmul.mubr.f32.gmra.mxu0 %v2765
    %v2833 = vpop.f32.mrf.mxu0
    %v2834 = vadd.f32 0.0, %v2833
    %v2835 = vpop.f32.mrf.mxu0
    %2836 = vdwg.mxu0
    %2837 = vrot.lane.b32.xlu0 %v261, 64
    %v2838 = vpop.permute.xlu0 %2837
    %v2841 = vsel %vm275, %v1696, 0
    %2843 = vmatprep.subr.mxu0 0.0
    %2844 = vmatpush1.msra.mxu0 0.0
    %2845 = vmatprep.subr.mxu0 0.0
    %2846 = vmatpush1.msra.mxu0 0.0
    %2847 = vmatprep.subr.mxu0 0.0
    %2848 = vmatpush1.msra.mxu0 0.0
    %2849 = vmatprep.subr.mxu0 0.0
    %2850 = vmatpush1.msra.mxu0 0.0
    %2851 = vmatprep.subr.mxu0 0.0
    %2852 = vmatpush1.msra.mxu0 0.0
    %2853 = vmatprep.subr.mxu0 0.0
    %2854 = vmatpush1.msra.mxu0 0.0
    %2855 = vmatprep.subr.mxu0 0.0
    %2856 = vmatpush1.msra.mxu0 0.0
    %2857 = vmatprep.subr.mxu0 0.0
    %2858 = vmatpush1.msra.mxu0 0.0
    %2859 = vmatprep.subr.mxu0 0.0
    %2860 = vmatpush1.msra.mxu0 0.0
    %2861 = vmatprep.subr.mxu0 0.0
    %2862 = vmatpush1.msra.mxu0 0.0
    %2863 = vmatprep.subr.mxu0 0.0
    %2864 = vmatpush1.msra.mxu0 0.0
    %2865 = vmatprep.subr.mxu0 0.0
    %2866 = vmatpush1.msra.mxu0 0.0
    %2867 = vmatprep.subr.mxu0 0.0
    %2868 = vmatpush1.msra.mxu0 0.0
    %2869 = vmatprep.subr.mxu0 0.0
    %2870 = vmatpush1.msra.mxu0 0.0
    %2871 = vmatprep.subr.mxu0 0.0
    %2872 = vmatpush1.msra.mxu0 0.0
    %2873 = vmatprep.subr.mxu0 0.0
    %2874 = vmatpush1.msra.mxu0 %v2838
    %2875 = vmatprep.subr.mxu0 0.0
    %2876 = vmatpush2.msra.mxu0 0.0
    %2877 = vmatprep.subr.mxu0 0.0
    %2878 = vmatpush2.msra.mxu0 0.0
    %2879 = vmatprep.subr.mxu0 0.0
    %2880 = vmatpush2.msra.mxu0 0.0
    %2881 = vmatprep.subr.mxu0 0.0
    %2882 = vmatpush2.msra.mxu0 0.0
    %2883 = vmatprep.subr.mxu0 0.0
    %2884 = vmatpush2.msra.mxu0 0.0
    %2885 = vmatprep.subr.mxu0 0.0
    %2886 = vmatpush2.msra.mxu0 0.0
    %2887 = vmatprep.subr.mxu0 0.0
    %2888 = vmatpush2.msra.mxu0 0.0
    %2889 = vmatprep.subr.mxu0 0.0
    %2890 = vmatpush2.msra.mxu0 0.0
    %2891 = vmatprep.subr.mxu0 0.0
    %2892 = vmatpush2.msra.mxu0 0.0
    %2893 = vmatprep.subr.mxu0 0.0
    %2894 = vmatpush2.msra.mxu0 0.0
    %2895 = vmatprep.subr.mxu0 0.0
    %2896 = vmatpush2.msra.mxu0 0.0
    %2897 = vmatprep.subr.mxu0 0.0
    %2898 = vmatpush2.msra.mxu0 0.0
    %2899 = vmatprep.subr.mxu0 0.0
    %2900 = vmatpush2.msra.mxu0 0.0
    %2901 = vmatprep.subr.mxu0 0.0
    %2902 = vmatpush2.msra.mxu0 0.0
    %2903 = vmatprep.subr.mxu0 0.0
    %2904 = vmatpush2.msra.mxu0 0.0
    %2905 = vmatprep.subr.mxu0 0.0
    %2906 = vmatpush2.msra.mxu0 0.0
    %2907 = vmatprep.mubr.f32.mxu0 0.0
    %2908 = vmatmul.mubr.f32.gmra.mxu0 %v2841
    %v2909 = vpop.f32.mrf.mxu0
    %v2910 = vadd.f32 0.0, %v2909
    %v2911 = vpop.f32.mrf.mxu0
    %2912 = vdwg.mxu0
    %v2913 = vadd.f32 %v271, %v1770
    %v2914 = vadd.f32 %v271, %v1846
    %v2915 = vadd.f32 %v271, %v1922
    %v2916 = vadd.f32 %v271, %v1998
    %v2917 = vadd.f32 %v271, %v2074
    %v2918 = vadd.f32 %v271, %v2150
    %v2919 = vadd.f32 %v271, %v2226
    %v2920 = vadd.f32 %v271, %v2302
    %v2921 = vadd.f32 %v271, %v2378
    %v2922 = vadd.f32 %v271, %v2454
    %v2923 = vadd.f32 %v271, %v2530
    %v2924 = vadd.f32 %v271, %v2606
    %v2925 = vadd.f32 %v271, %v2682
    %v2926 = vadd.f32 %v271, %v2758
    %v2927 = vadd.f32 %v271, %v2834
    %v2928 = vadd.f32 %v271, %v2910
    %2929 = vrot.lane.b32.xlu0 %v187, 120
    %v2930 = vpop.permute.xlu0 %2929
    %2931 = vrot.lane.b32.xlu0 %v187, 88
    %v2932 = vpop.permute.xlu0 %2931
    %v2933 = vsel %vm275, %v2930, 0
    %v2935 = vsel %vm275, %v2932, 0
    %2937 = vmatprep.subr.mxu0 0.0
    %2938 = vmatpush1.xpose.msra.mxu0 0.0
    %2939 = vmatprep.subr.mxu0 0.0
    %2940 = vmatpush1.xpose.msra.mxu0 0.0
    %2941 = vmatprep.subr.mxu0 0.0
    %2942 = vmatpush1.xpose.msra.mxu0 0.0
    %2943 = vmatprep.subr.mxu0 0.0
    %2944 = vmatpush1.xpose.msra.mxu0 0.0
    %2945 = vmatprep.subr.mxu0 0.0
    %2946 = vmatpush1.xpose.msra.mxu0 0.0
    %2947 = vmatprep.subr.mxu0 0.0
    %2948 = vmatpush1.xpose.msra.mxu0 0.0
    %2949 = vmatprep.subr.mxu0 0.0
    %2950 = vmatpush1.xpose.msra.mxu0 0.0
    %2951 = vmatprep.subr.mxu0 0.0
    %2952 = vmatpush1.xpose.msra.mxu0 0.0
    %2953 = vmatprep.subr.mxu0 0.0
    %2954 = vmatpush1.xpose.msra.mxu0 0.0
    %2955 = vmatprep.subr.mxu0 0.0
    %2956 = vmatpush1.xpose.msra.mxu0 0.0
    %2957 = vmatprep.subr.mxu0 0.0
    %2958 = vmatpush1.xpose.msra.mxu0 0.0
    %2959 = vmatprep.subr.mxu0 0.0
    %2960 = vmatpush1.xpose.msra.mxu0 0.0
    %2961 = vmatprep.subr.mxu0 0.0
    %2962 = vmatpush1.xpose.msra.mxu0 0.0
    %2963 = vmatprep.subr.mxu0 0.0
    %2964 = vmatpush1.xpose.msra.mxu0 0.0
    %2965 = vmatprep.subr.mxu0 0.0
    %2966 = vmatpush1.xpose.msra.mxu0 0.0
    %2967 = vmatprep.subr.mxu0 0.0
    %2968 = vmatpush1.xpose.msra.mxu0 %v2935
    %2969 = vmatprep.subr.mxu0 0.0
    %2970 = vmatpush2.xpose.msra.mxu0 0.0
    %2971 = vmatprep.subr.mxu0 0.0
    %2972 = vmatpush2.xpose.msra.mxu0 0.0
    %2973 = vmatprep.subr.mxu0 0.0
    %2974 = vmatpush2.xpose.msra.mxu0 0.0
    %2975 = vmatprep.subr.mxu0 0.0
    %2976 = vmatpush2.xpose.msra.mxu0 0.0
    %2977 = vmatprep.subr.mxu0 0.0
    %2978 = vmatpush2.xpose.msra.mxu0 0.0
    %2979 = vmatprep.subr.mxu0 0.0
    %2980 = vmatpush2.xpose.msra.mxu0 0.0
    %2981 = vmatprep.subr.mxu0 0.0
    %2982 = vmatpush2.xpose.msra.mxu0 0.0
    %2983 = vmatprep.subr.mxu0 0.0
    %2984 = vmatpush2.xpose.msra.mxu0 0.0
    %2985 = vmatprep.subr.mxu0 0.0
    %2986 = vmatpush2.xpose.msra.mxu0 0.0
    %2987 = vmatprep.subr.mxu0 0.0
    %2988 = vmatpush2.xpose.msra.mxu0 0.0
    %2989 = vmatprep.subr.mxu0 0.0
    %2990 = vmatpush2.xpose.msra.mxu0 0.0
    %2991 = vmatprep.subr.mxu0 0.0
    %2992 = vmatpush2.xpose.msra.mxu0 0.0
    %2993 = vmatprep.subr.mxu0 0.0
    %2994 = vmatpush2.xpose.msra.mxu0 0.0
    %2995 = vmatprep.subr.mxu0 0.0
    %2996 = vmatpush2.xpose.msra.mxu0 0.0
    %2997 = vmatprep.subr.mxu0 0.0
    %2998 = vmatpush2.xpose.msra.mxu0 0.0
    %2999 = vmatprep.subr.mxu0 0.0
    %3000 = vmatpush2.xpose.msra.mxu0 0.0
    %3001 = vmatprep.mubr.f32.mxu0 0.0
    %3002 = vmatmul.mubr.f32.gmra.mxu0 %v2933
    %v3003 = vpop.f32.mrf.mxu0
    %v3004 = vadd.f32 0.0, %v3003
    %v3005 = vpop.f32.mrf.mxu0
    %3006 = vdwg.mxu0
    %3007 = vrot.lane.b32.xlu0 %v191, 120
    %v3008 = vpop.permute.xlu0 %3007
    %3009 = vrot.lane.b32.xlu0 %v191, 88
    %v3010 = vpop.permute.xlu0 %3009
    %v3011 = vsel %vm275, %v3008, 0
    %v3013 = vsel %vm275, %v3010, 0
    %3015 = vmatprep.subr.mxu0 0.0
    %3016 = vmatpush1.xpose.msra.mxu0 0.0
    %3017 = vmatprep.subr.mxu0 0.0
    %3018 = vmatpush1.xpose.msra.mxu0 0.0
    %3019 = vmatprep.subr.mxu0 0.0
    %3020 = vmatpush1.xpose.msra.mxu0 0.0
    %3021 = vmatprep.subr.mxu0 0.0
    %3022 = vmatpush1.xpose.msra.mxu0 0.0
    %3023 = vmatprep.subr.mxu0 0.0
    %3024 = vmatpush1.xpose.msra.mxu0 0.0
    %3025 = vmatprep.subr.mxu0 0.0
    %3026 = vmatpush1.xpose.msra.mxu0 0.0
    %3027 = vmatprep.subr.mxu0 0.0
    %3028 = vmatpush1.xpose.msra.mxu0 0.0
    %3029 = vmatprep.subr.mxu0 0.0
    %3030 = vmatpush1.xpose.msra.mxu0 0.0
    %3031 = vmatprep.subr.mxu0 0.0
    %3032 = vmatpush1.xpose.msra.mxu0 0.0
    %3033 = vmatprep.subr.mxu0 0.0
    %3034 = vmatpush1.xpose.msra.mxu0 0.0
    %3035 = vmatprep.subr.mxu0 0.0
    %3036 = vmatpush1.xpose.msra.mxu0 0.0
    %3037 = vmatprep.subr.mxu0 0.0
    %3038 = vmatpush1.xpose.msra.mxu0 0.0
    %3039 = vmatprep.subr.mxu0 0.0
    %3040 = vmatpush1.xpose.msra.mxu0 0.0
    %3041 = vmatprep.subr.mxu0 0.0
    %3042 = vmatpush1.xpose.msra.mxu0 0.0
    %3043 = vmatprep.subr.mxu0 0.0
    %3044 = vmatpush1.xpose.msra.mxu0 0.0
    %3045 = vmatprep.subr.mxu0 0.0
    %3046 = vmatpush1.xpose.msra.mxu0 %v3013
    %3047 = vmatprep.subr.mxu0 0.0
    %3048 = vmatpush2.xpose.msra.mxu0 0.0
    %3049 = vmatprep.subr.mxu0 0.0
    %3050 = vmatpush2.xpose.msra.mxu0 0.0
    %3051 = vmatprep.subr.mxu0 0.0
    %3052 = vmatpush2.xpose.msra.mxu0 0.0
    %3053 = vmatprep.subr.mxu0 0.0
    %3054 = vmatpush2.xpose.msra.mxu0 0.0
    %3055 = vmatprep.subr.mxu0 0.0
    %3056 = vmatpush2.xpose.msra.mxu0 0.0
    %3057 = vmatprep.subr.mxu0 0.0
    %3058 = vmatpush2.xpose.msra.mxu0 0.0
    %3059 = vmatprep.subr.mxu0 0.0
    %3060 = vmatpush2.xpose.msra.mxu0 0.0
    %3061 = vmatprep.subr.mxu0 0.0
    %3062 = vmatpush2.xpose.msra.mxu0 0.0
    %3063 = vmatprep.subr.mxu0 0.0
    %3064 = vmatpush2.xpose.msra.mxu0 0.0
    %3065 = vmatprep.subr.mxu0 0.0
    %3066 = vmatpush2.xpose.msra.mxu0 0.0
    %3067 = vmatprep.subr.mxu0 0.0
    %3068 = vmatpush2.xpose.msra.mxu0 0.0
    %3069 = vmatprep.subr.mxu0 0.0
    %3070 = vmatpush2.xpose.msra.mxu0 0.0
    %3071 = vmatprep.subr.mxu0 0.0
    %3072 = vmatpush2.xpose.msra.mxu0 0.0
    %3073 = vmatprep.subr.mxu0 0.0
    %3074 = vmatpush2.xpose.msra.mxu0 0.0
    %3075 = vmatprep.subr.mxu0 0.0
    %3076 = vmatpush2.xpose.msra.mxu0 0.0
    %3077 = vmatprep.subr.mxu0 0.0
    %3078 = vmatpush2.xpose.msra.mxu0 0.0
    %3079 = vmatprep.mubr.f32.mxu0 0.0
    %3080 = vmatmul.mubr.f32.gmra.mxu0 %v3011
    %v3081 = vpop.f32.mrf.mxu0
    %v3082 = vadd.f32 0.0, %v3081
    %v3083 = vpop.f32.mrf.mxu0
    %3084 = vdwg.mxu0
    %3085 = vrot.lane.b32.xlu0 %v197, 120
    %v3086 = vpop.permute.xlu0 %3085
    %3087 = vrot.lane.b32.xlu0 %v197, 88
    %v3088 = vpop.permute.xlu0 %3087
    %v3089 = vsel %vm275, %v3086, 0
    %v3091 = vsel %vm275, %v3088, 0
    %3093 = vmatprep.subr.mxu0 0.0
    %3094 = vmatpush1.xpose.msra.mxu0 0.0
    %3095 = vmatprep.subr.mxu0 0.0
    %3096 = vmatpush1.xpose.msra.mxu0 0.0
    %3097 = vmatprep.subr.mxu0 0.0
    %3098 = vmatpush1.xpose.msra.mxu0 0.0
    %3099 = vmatprep.subr.mxu0 0.0
    %3100 = vmatpush1.xpose.msra.mxu0 0.0
    %3101 = vmatprep.subr.mxu0 0.0
    %3102 = vmatpush1.xpose.msra.mxu0 0.0
    %3103 = vmatprep.subr.mxu0 0.0
    %3104 = vmatpush1.xpose.msra.mxu0 0.0
    %3105 = vmatprep.subr.mxu0 0.0
    %3106 = vmatpush1.xpose.msra.mxu0 0.0
    %3107 = vmatprep.subr.mxu0 0.0
    %3108 = vmatpush1.xpose.msra.mxu0 0.0
    %3109 = vmatprep.subr.mxu0 0.0
    %3110 = vmatpush1.xpose.msra.mxu0 0.0
    %3111 = vmatprep.subr.mxu0 0.0
    %3112 = vmatpush1.xpose.msra.mxu0 0.0
    %3113 = vmatprep.subr.mxu0 0.0
    %3114 = vmatpush1.xpose.msra.mxu0 0.0
    %3115 = vmatprep.subr.mxu0 0.0
    %3116 = vmatpush1.xpose.msra.mxu0 0.0
    %3117 = vmatprep.subr.mxu0 0.0
    %3118 = vmatpush1.xpose.msra.mxu0 0.0
    %3119 = vmatprep.subr.mxu0 0.0
    %3120 = vmatpush1.xpose.msra.mxu0 0.0
    %3121 = vmatprep.subr.mxu0 0.0
    %3122 = vmatpush1.xpose.msra.mxu0 0.0
    %3123 = vmatprep.subr.mxu0 0.0
    %3124 = vmatpush1.xpose.msra.mxu0 %v3091
    %3125 = vmatprep.subr.mxu0 0.0
    %3126 = vmatpush2.xpose.msra.mxu0 0.0
    %3127 = vmatprep.subr.mxu0 0.0
    %3128 = vmatpush2.xpose.msra.mxu0 0.0
    %3129 = vmatprep.subr.mxu0 0.0
    %3130 = vmatpush2.xpose.msra.mxu0 0.0
    %3131 = vmatprep.subr.mxu0 0.0
    %3132 = vmatpush2.xpose.msra.mxu0 0.0
    %3133 = vmatprep.subr.mxu0 0.0
    %3134 = vmatpush2.xpose.msra.mxu0 0.0
    %3135 = vmatprep.subr.mxu0 0.0
    %3136 = vmatpush2.xpose.msra.mxu0 0.0
    %3137 = vmatprep.subr.mxu0 0.0
    %3138 = vmatpush2.xpose.msra.mxu0 0.0
    %3139 = vmatprep.subr.mxu0 0.0
    %3140 = vmatpush2.xpose.msra.mxu0 0.0
    %3141 = vmatprep.subr.mxu0 0.0
    %3142 = vmatpush2.xpose.msra.mxu0 0.0
    %3143 = vmatprep.subr.mxu0 0.0
    %3144 = vmatpush2.xpose.msra.mxu0 0.0
    %3145 = vmatprep.subr.mxu0 0.0
    %3146 = vmatpush2.xpose.msra.mxu0 0.0
    %3147 = vmatprep.subr.mxu0 0.0
    %3148 = vmatpush2.xpose.msra.mxu0 0.0
    %3149 = vmatprep.subr.mxu0 0.0
    %3150 = vmatpush2.xpose.msra.mxu0 0.0
    %3151 = vmatprep.subr.mxu0 0.0
    %3152 = vmatpush2.xpose.msra.mxu0 0.0
    %3153 = vmatprep.subr.mxu0 0.0
    %3154 = vmatpush2.xpose.msra.mxu0 0.0
    %3155 = vmatprep.subr.mxu0 0.0
    %3156 = vmatpush2.xpose.msra.mxu0 0.0
    %3157 = vmatprep.mubr.f32.mxu0 0.0
    %3158 = vmatmul.mubr.f32.gmra.mxu0 %v3089
    %v3159 = vpop.f32.mrf.mxu0
    %v3160 = vadd.f32 0.0, %v3159
    %v3161 = vpop.f32.mrf.mxu0
    %3162 = vdwg.mxu0
    %3163 = vrot.lane.b32.xlu0 %v201, 120
    %v3164 = vpop.permute.xlu0 %3163
    %3165 = vrot.lane.b32.xlu0 %v201, 88
    %v3166 = vpop.permute.xlu0 %3165
    %v3167 = vsel %vm275, %v3164, 0
    %v3169 = vsel %vm275, %v3166, 0
    %3171 = vmatprep.subr.mxu0 0.0
    %3172 = vmatpush1.xpose.msra.mxu0 0.0
    %3173 = vmatprep.subr.mxu0 0.0
    %3174 = vmatpush1.xpose.msra.mxu0 0.0
    %3175 = vmatprep.subr.mxu0 0.0
    %3176 = vmatpush1.xpose.msra.mxu0 0.0
    %3177 = vmatprep.subr.mxu0 0.0
    %3178 = vmatpush1.xpose.msra.mxu0 0.0
    %3179 = vmatprep.subr.mxu0 0.0
    %3180 = vmatpush1.xpose.msra.mxu0 0.0
    %3181 = vmatprep.subr.mxu0 0.0
    %3182 = vmatpush1.xpose.msra.mxu0 0.0
    %3183 = vmatprep.subr.mxu0 0.0
    %3184 = vmatpush1.xpose.msra.mxu0 0.0
    %3185 = vmatprep.subr.mxu0 0.0
    %3186 = vmatpush1.xpose.msra.mxu0 0.0
    %3187 = vmatprep.subr.mxu0 0.0
    %3188 = vmatpush1.xpose.msra.mxu0 0.0
    %3189 = vmatprep.subr.mxu0 0.0
    %3190 = vmatpush1.xpose.msra.mxu0 0.0
    %3191 = vmatprep.subr.mxu0 0.0
    %3192 = vmatpush1.xpose.msra.mxu0 0.0
    %3193 = vmatprep.subr.mxu0 0.0
    %3194 = vmatpush1.xpose.msra.mxu0 0.0
    %3195 = vmatprep.subr.mxu0 0.0
    %3196 = vmatpush1.xpose.msra.mxu0 0.0
    %3197 = vmatprep.subr.mxu0 0.0
    %3198 = vmatpush1.xpose.msra.mxu0 0.0
    %3199 = vmatprep.subr.mxu0 0.0
    %3200 = vmatpush1.xpose.msra.mxu0 0.0
    %3201 = vmatprep.subr.mxu0 0.0
    %3202 = vmatpush1.xpose.msra.mxu0 %v3169
    %3203 = vmatprep.subr.mxu0 0.0
    %3204 = vmatpush2.xpose.msra.mxu0 0.0
    %3205 = vmatprep.subr.mxu0 0.0
    %3206 = vmatpush2.xpose.msra.mxu0 0.0
    %3207 = vmatprep.subr.mxu0 0.0
    %3208 = vmatpush2.xpose.msra.mxu0 0.0
    %3209 = vmatprep.subr.mxu0 0.0
    %3210 = vmatpush2.xpose.msra.mxu0 0.0
    %3211 = vmatprep.subr.mxu0 0.0
    %3212 = vmatpush2.xpose.msra.mxu0 0.0
    %3213 = vmatprep.subr.mxu0 0.0
    %3214 = vmatpush2.xpose.msra.mxu0 0.0
    %3215 = vmatprep.subr.mxu0 0.0
    %3216 = vmatpush2.xpose.msra.mxu0 0.0
    %3217 = vmatprep.subr.mxu0 0.0
    %3218 = vmatpush2.xpose.msra.mxu0 0.0
    %3219 = vmatprep.subr.mxu0 0.0
    %3220 = vmatpush2.xpose.msra.mxu0 0.0
    %3221 = vmatprep.subr.mxu0 0.0
    %3222 = vmatpush2.xpose.msra.mxu0 0.0
    %3223 = vmatprep.subr.mxu0 0.0
    %3224 = vmatpush2.xpose.msra.mxu0 0.0
    %3225 = vmatprep.subr.mxu0 0.0
    %3226 = vmatpush2.xpose.msra.mxu0 0.0
    %3227 = vmatprep.subr.mxu0 0.0
    %3228 = vmatpush2.xpose.msra.mxu0 0.0
    %3229 = vmatprep.subr.mxu0 0.0
    %3230 = vmatpush2.xpose.msra.mxu0 0.0
    %3231 = vmatprep.subr.mxu0 0.0
    %3232 = vmatpush2.xpose.msra.mxu0 0.0
    %3233 = vmatprep.subr.mxu0 0.0
    %3234 = vmatpush2.xpose.msra.mxu0 0.0
    %3235 = vmatprep.mubr.f32.mxu0 0.0
    %3236 = vmatmul.mubr.f32.gmra.mxu0 %v3167
    %v3237 = vpop.f32.mrf.mxu0
    %v3238 = vadd.f32 0.0, %v3237
    %v3239 = vpop.f32.mrf.mxu0
    %3240 = vdwg.mxu0
    %3241 = vrot.lane.b32.xlu0 %v207, 120
    %v3242 = vpop.permute.xlu0 %3241
    %3243 = vrot.lane.b32.xlu0 %v207, 88
    %v3244 = vpop.permute.xlu0 %3243
    %v3245 = vsel %vm275, %v3242, 0
    %v3247 = vsel %vm275, %v3244, 0
    %3249 = vmatprep.subr.mxu0 0.0
    %3250 = vmatpush1.xpose.msra.mxu0 0.0
    %3251 = vmatprep.subr.mxu0 0.0
    %3252 = vmatpush1.xpose.msra.mxu0 0.0
    %3253 = vmatprep.subr.mxu0 0.0
    %3254 = vmatpush1.xpose.msra.mxu0 0.0
    %3255 = vmatprep.subr.mxu0 0.0
    %3256 = vmatpush1.xpose.msra.mxu0 0.0
    %3257 = vmatprep.subr.mxu0 0.0
    %3258 = vmatpush1.xpose.msra.mxu0 0.0
    %3259 = vmatprep.subr.mxu0 0.0
    %3260 = vmatpush1.xpose.msra.mxu0 0.0
    %3261 = vmatprep.subr.mxu0 0.0
    %3262 = vmatpush1.xpose.msra.mxu0 0.0
    %3263 = vmatprep.subr.mxu0 0.0
    %3264 = vmatpush1.xpose.msra.mxu0 0.0
    %3265 = vmatprep.subr.mxu0 0.0
    %3266 = vmatpush1.xpose.msra.mxu0 0.0
    %3267 = vmatprep.subr.mxu0 0.0
    %3268 = vmatpush1.xpose.msra.mxu0 0.0
    %3269 = vmatprep.subr.mxu0 0.0
    %3270 = vmatpush1.xpose.msra.mxu0 0.0
    %3271 = vmatprep.subr.mxu0 0.0
    %3272 = vmatpush1.xpose.msra.mxu0 0.0
    %3273 = vmatprep.subr.mxu0 0.0
    %3274 = vmatpush1.xpose.msra.mxu0 0.0
    %3275 = vmatprep.subr.mxu0 0.0
    %3276 = vmatpush1.xpose.msra.mxu0 0.0
    %3277 = vmatprep.subr.mxu0 0.0
    %3278 = vmatpush1.xpose.msra.mxu0 0.0
    %3279 = vmatprep.subr.mxu0 0.0
    %3280 = vmatpush1.xpose.msra.mxu0 %v3247
    %3281 = vmatprep.subr.mxu0 0.0
    %3282 = vmatpush2.xpose.msra.mxu0 0.0
    %3283 = vmatprep.subr.mxu0 0.0
    %3284 = vmatpush2.xpose.msra.mxu0 0.0
    %3285 = vmatprep.subr.mxu0 0.0
    %3286 = vmatpush2.xpose.msra.mxu0 0.0
    %3287 = vmatprep.subr.mxu0 0.0
    %3288 = vmatpush2.xpose.msra.mxu0 0.0
    %3289 = vmatprep.subr.mxu0 0.0
    %3290 = vmatpush2.xpose.msra.mxu0 0.0
    %3291 = vmatprep.subr.mxu0 0.0
    %3292 = vmatpush2.xpose.msra.mxu0 0.0
    %3293 = vmatprep.subr.mxu0 0.0
    %3294 = vmatpush2.xpose.msra.mxu0 0.0
    %3295 = vmatprep.subr.mxu0 0.0
    %3296 = vmatpush2.xpose.msra.mxu0 0.0
    %3297 = vmatprep.subr.mxu0 0.0
    %3298 = vmatpush2.xpose.msra.mxu0 0.0
    %3299 = vmatprep.subr.mxu0 0.0
    %3300 = vmatpush2.xpose.msra.mxu0 0.0
    %3301 = vmatprep.subr.mxu0 0.0
    %3302 = vmatpush2.xpose.msra.mxu0 0.0
    %3303 = vmatprep.subr.mxu0 0.0
    %3304 = vmatpush2.xpose.msra.mxu0 0.0
    %3305 = vmatprep.subr.mxu0 0.0
    %3306 = vmatpush2.xpose.msra.mxu0 0.0
    %3307 = vmatprep.subr.mxu0 0.0
    %3308 = vmatpush2.xpose.msra.mxu0 0.0
    %3309 = vmatprep.subr.mxu0 0.0
    %3310 = vmatpush2.xpose.msra.mxu0 0.0
    %3311 = vmatprep.subr.mxu0 0.0
    %3312 = vmatpush2.xpose.msra.mxu0 0.0
    %3313 = vmatprep.mubr.f32.mxu0 0.0
    %3314 = vmatmul.mubr.f32.gmra.mxu0 %v3245
    %v3315 = vpop.f32.mrf.mxu0
    %v3316 = vadd.f32 0.0, %v3315
    %v3317 = vpop.f32.mrf.mxu0
    %3318 = vdwg.mxu0
    %3319 = vrot.lane.b32.xlu0 %v211, 120
    %v3320 = vpop.permute.xlu0 %3319
    %3321 = vrot.lane.b32.xlu0 %v211, 88
    %v3322 = vpop.permute.xlu0 %3321
    %v3323 = vsel %vm275, %v3320, 0
    %v3325 = vsel %vm275, %v3322, 0
    %3327 = vmatprep.subr.mxu0 0.0
    %3328 = vmatpush1.xpose.msra.mxu0 0.0
    %3329 = vmatprep.subr.mxu0 0.0
    %3330 = vmatpush1.xpose.msra.mxu0 0.0
    %3331 = vmatprep.subr.mxu0 0.0
    %3332 = vmatpush1.xpose.msra.mxu0 0.0
    %3333 = vmatprep.subr.mxu0 0.0
    %3334 = vmatpush1.xpose.msra.mxu0 0.0
    %3335 = vmatprep.subr.mxu0 0.0
    %3336 = vmatpush1.xpose.msra.mxu0 0.0
    %3337 = vmatprep.subr.mxu0 0.0
    %3338 = vmatpush1.xpose.msra.mxu0 0.0
    %3339 = vmatprep.subr.mxu0 0.0
    %3340 = vmatpush1.xpose.msra.mxu0 0.0
    %3341 = vmatprep.subr.mxu0 0.0
    %3342 = vmatpush1.xpose.msra.mxu0 0.0
    %3343 = vmatprep.subr.mxu0 0.0
    %3344 = vmatpush1.xpose.msra.mxu0 0.0
    %3345 = vmatprep.subr.mxu0 0.0
    %3346 = vmatpush1.xpose.msra.mxu0 0.0
    %3347 = vmatprep.subr.mxu0 0.0
    %3348 = vmatpush1.xpose.msra.mxu0 0.0
    %3349 = vmatprep.subr.mxu0 0.0
    %3350 = vmatpush1.xpose.msra.mxu0 0.0
    %3351 = vmatprep.subr.mxu0 0.0
    %3352 = vmatpush1.xpose.msra.mxu0 0.0
    %3353 = vmatprep.subr.mxu0 0.0
    %3354 = vmatpush1.xpose.msra.mxu0 0.0
    %3355 = vmatprep.subr.mxu0 0.0
    %3356 = vmatpush1.xpose.msra.mxu0 0.0
    %3357 = vmatprep.subr.mxu0 0.0
    %3358 = vmatpush1.xpose.msra.mxu0 %v3325
    %3359 = vmatprep.subr.mxu0 0.0
    %3360 = vmatpush2.xpose.msra.mxu0 0.0
    %3361 = vmatprep.subr.mxu0 0.0
    %3362 = vmatpush2.xpose.msra.mxu0 0.0
    %3363 = vmatprep.subr.mxu0 0.0
    %3364 = vmatpush2.xpose.msra.mxu0 0.0
    %3365 = vmatprep.subr.mxu0 0.0
    %3366 = vmatpush2.xpose.msra.mxu0 0.0
    %3367 = vmatprep.subr.mxu0 0.0
    %3368 = vmatpush2.xpose.msra.mxu0 0.0
    %3369 = vmatprep.subr.mxu0 0.0
    %3370 = vmatpush2.xpose.msra.mxu0 0.0
    %3371 = vmatprep.subr.mxu0 0.0
    %3372 = vmatpush2.xpose.msra.mxu0 0.0
    %3373 = vmatprep.subr.mxu0 0.0
    %3374 = vmatpush2.xpose.msra.mxu0 0.0
    %3375 = vmatprep.subr.mxu0 0.0
    %3376 = vmatpush2.xpose.msra.mxu0 0.0
    %3377 = vmatprep.subr.mxu0 0.0
    %3378 = vmatpush2.xpose.msra.mxu0 0.0
    %3379 = vmatprep.subr.mxu0 0.0
    %3380 = vmatpush2.xpose.msra.mxu0 0.0
    %3381 = vmatprep.subr.mxu0 0.0
    %3382 = vmatpush2.xpose.msra.mxu0 0.0
    %3383 = vmatprep.subr.mxu0 0.0
    %3384 = vmatpush2.xpose.msra.mxu0 0.0
    %3385 = vmatprep.subr.mxu0 0.0
    %3386 = vmatpush2.xpose.msra.mxu0 0.0
    %3387 = vmatprep.subr.mxu0 0.0
    %3388 = vmatpush2.xpose.msra.mxu0 0.0
    %3389 = vmatprep.subr.mxu0 0.0
    %3390 = vmatpush2.xpose.msra.mxu0 0.0
    %3391 = vmatprep.mubr.f32.mxu0 0.0
    %3392 = vmatmul.mubr.f32.gmra.mxu0 %v3323
    %v3393 = vpop.f32.mrf.mxu0
    %v3394 = vadd.f32 0.0, %v3393
    %v3395 = vpop.f32.mrf.mxu0
    %3396 = vdwg.mxu0
    %3397 = vrot.lane.b32.xlu0 %v217, 120
    %v3398 = vpop.permute.xlu0 %3397
    %3399 = vrot.lane.b32.xlu0 %v217, 88
    %v3400 = vpop.permute.xlu0 %3399
    %v3401 = vsel %vm275, %v3398, 0
    %v3403 = vsel %vm275, %v3400, 0
    %3405 = vmatprep.subr.mxu0 0.0
    %3406 = vmatpush1.xpose.msra.mxu0 0.0
    %3407 = vmatprep.subr.mxu0 0.0
    %3408 = vmatpush1.xpose.msra.mxu0 0.0
    %3409 = vmatprep.subr.mxu0 0.0
    %3410 = vmatpush1.xpose.msra.mxu0 0.0
    %3411 = vmatprep.subr.mxu0 0.0
    %3412 = vmatpush1.xpose.msra.mxu0 0.0
    %3413 = vmatprep.subr.mxu0 0.0
    %3414 = vmatpush1.xpose.msra.mxu0 0.0
    %3415 = vmatprep.subr.mxu0 0.0
    %3416 = vmatpush1.xpose.msra.mxu0 0.0
    %3417 = vmatprep.subr.mxu0 0.0
    %3418 = vmatpush1.xpose.msra.mxu0 0.0
    %3419 = vmatprep.subr.mxu0 0.0
    %3420 = vmatpush1.xpose.msra.mxu0 0.0
    %3421 = vmatprep.subr.mxu0 0.0
    %3422 = vmatpush1.xpose.msra.mxu0 0.0
    %3423 = vmatprep.subr.mxu0 0.0
    %3424 = vmatpush1.xpose.msra.mxu0 0.0
    %3425 = vmatprep.subr.mxu0 0.0
    %3426 = vmatpush1.xpose.msra.mxu0 0.0
    %3427 = vmatprep.subr.mxu0 0.0
    %3428 = vmatpush1.xpose.msra.mxu0 0.0
    %3429 = vmatprep.subr.mxu0 0.0
    %3430 = vmatpush1.xpose.msra.mxu0 0.0
    %3431 = vmatprep.subr.mxu0 0.0
    %3432 = vmatpush1.xpose.msra.mxu0 0.0
    %3433 = vmatprep.subr.mxu0 0.0
    %3434 = vmatpush1.xpose.msra.mxu0 0.0
    %3435 = vmatprep.subr.mxu0 0.0
    %3436 = vmatpush1.xpose.msra.mxu0 %v3403
    %3437 = vmatprep.subr.mxu0 0.0
    %3438 = vmatpush2.xpose.msra.mxu0 0.0
    %3439 = vmatprep.subr.mxu0 0.0
    %3440 = vmatpush2.xpose.msra.mxu0 0.0
    %3441 = vmatprep.subr.mxu0 0.0
    %3442 = vmatpush2.xpose.msra.mxu0 0.0
    %3443 = vmatprep.subr.mxu0 0.0
    %3444 = vmatpush2.xpose.msra.mxu0 0.0
    %3445 = vmatprep.subr.mxu0 0.0
    %3446 = vmatpush2.xpose.msra.mxu0 0.0
    %3447 = vmatprep.subr.mxu0 0.0
    %3448 = vmatpush2.xpose.msra.mxu0 0.0
    %3449 = vmatprep.subr.mxu0 0.0
    %3450 = vmatpush2.xpose.msra.mxu0 0.0
    %3451 = vmatprep.subr.mxu0 0.0
    %3452 = vmatpush2.xpose.msra.mxu0 0.0
    %3453 = vmatprep.subr.mxu0 0.0
    %3454 = vmatpush2.xpose.msra.mxu0 0.0
    %3455 = vmatprep.subr.mxu0 0.0
    %3456 = vmatpush2.xpose.msra.mxu0 0.0
    %3457 = vmatprep.subr.mxu0 0.0
    %3458 = vmatpush2.xpose.msra.mxu0 0.0
    %3459 = vmatprep.subr.mxu0 0.0
    %3460 = vmatpush2.xpose.msra.mxu0 0.0
    %3461 = vmatprep.subr.mxu0 0.0
    %3462 = vmatpush2.xpose.msra.mxu0 0.0
    %3463 = vmatprep.subr.mxu0 0.0
    %3464 = vmatpush2.xpose.msra.mxu0 0.0
    %3465 = vmatprep.subr.mxu0 0.0
    %3466 = vmatpush2.xpose.msra.mxu0 0.0
    %3467 = vmatprep.subr.mxu0 0.0
    %3468 = vmatpush2.xpose.msra.mxu0 0.0
    %3469 = vmatprep.mubr.f32.mxu0 0.0
    %3470 = vmatmul.mubr.f32.gmra.mxu0 %v3401
    %v3471 = vpop.f32.mrf.mxu0
    %v3472 = vadd.f32 0.0, %v3471
    %v3473 = vpop.f32.mrf.mxu0
    %3474 = vdwg.mxu0
    %3475 = vrot.lane.b32.xlu0 %v221, 120
    %v3476 = vpop.permute.xlu0 %3475
    %3477 = vrot.lane.b32.xlu0 %v221, 88
    %v3478 = vpop.permute.xlu0 %3477
    %v3479 = vsel %vm275, %v3476, 0
    %v3481 = vsel %vm275, %v3478, 0
    %3483 = vmatprep.subr.mxu0 0.0
    %3484 = vmatpush1.xpose.msra.mxu0 0.0
    %3485 = vmatprep.subr.mxu0 0.0
    %3486 = vmatpush1.xpose.msra.mxu0 0.0
    %3487 = vmatprep.subr.mxu0 0.0
    %3488 = vmatpush1.xpose.msra.mxu0 0.0
    %3489 = vmatprep.subr.mxu0 0.0
    %3490 = vmatpush1.xpose.msra.mxu0 0.0
    %3491 = vmatprep.subr.mxu0 0.0
    %3492 = vmatpush1.xpose.msra.mxu0 0.0
    %3493 = vmatprep.subr.mxu0 0.0
    %3494 = vmatpush1.xpose.msra.mxu0 0.0
    %3495 = vmatprep.subr.mxu0 0.0
    %3496 = vmatpush1.xpose.msra.mxu0 0.0
    %3497 = vmatprep.subr.mxu0 0.0
    %3498 = vmatpush1.xpose.msra.mxu0 0.0
    %3499 = vmatprep.subr.mxu0 0.0
    %3500 = vmatpush1.xpose.msra.mxu0 0.0
    %3501 = vmatprep.subr.mxu0 0.0
    %3502 = vmatpush1.xpose.msra.mxu0 0.0
    %3503 = vmatprep.subr.mxu0 0.0
    %3504 = vmatpush1.xpose.msra.mxu0 0.0
    %3505 = vmatprep.subr.mxu0 0.0
    %3506 = vmatpush1.xpose.msra.mxu0 0.0
    %3507 = vmatprep.subr.mxu0 0.0
    %3508 = vmatpush1.xpose.msra.mxu0 0.0
    %3509 = vmatprep.subr.mxu0 0.0
    %3510 = vmatpush1.xpose.msra.mxu0 0.0
    %3511 = vmatprep.subr.mxu0 0.0
    %3512 = vmatpush1.xpose.msra.mxu0 0.0
    %3513 = vmatprep.subr.mxu0 0.0
    %3514 = vmatpush1.xpose.msra.mxu0 %v3481
    %3515 = vmatprep.subr.mxu0 0.0
    %3516 = vmatpush2.xpose.msra.mxu0 0.0
    %3517 = vmatprep.subr.mxu0 0.0
    %3518 = vmatpush2.xpose.msra.mxu0 0.0
    %3519 = vmatprep.subr.mxu0 0.0
    %3520 = vmatpush2.xpose.msra.mxu0 0.0
    %3521 = vmatprep.subr.mxu0 0.0
    %3522 = vmatpush2.xpose.msra.mxu0 0.0
    %3523 = vmatprep.subr.mxu0 0.0
    %3524 = vmatpush2.xpose.msra.mxu0 0.0
    %3525 = vmatprep.subr.mxu0 0.0
    %3526 = vmatpush2.xpose.msra.mxu0 0.0
    %3527 = vmatprep.subr.mxu0 0.0
    %3528 = vmatpush2.xpose.msra.mxu0 0.0
    %3529 = vmatprep.subr.mxu0 0.0
    %3530 = vmatpush2.xpose.msra.mxu0 0.0
    %3531 = vmatprep.subr.mxu0 0.0
    %3532 = vmatpush2.xpose.msra.mxu0 0.0
    %3533 = vmatprep.subr.mxu0 0.0
    %3534 = vmatpush2.xpose.msra.mxu0 0.0
    %3535 = vmatprep.subr.mxu0 0.0
    %3536 = vmatpush2.xpose.msra.mxu0 0.0
    %3537 = vmatprep.subr.mxu0 0.0
    %3538 = vmatpush2.xpose.msra.mxu0 0.0
    %3539 = vmatprep.subr.mxu0 0.0
    %3540 = vmatpush2.xpose.msra.mxu0 0.0
    %3541 = vmatprep.subr.mxu0 0.0
    %3542 = vmatpush2.xpose.msra.mxu0 0.0
    %3543 = vmatprep.subr.mxu0 0.0
    %3544 = vmatpush2.xpose.msra.mxu0 0.0
    %3545 = vmatprep.subr.mxu0 0.0
    %3546 = vmatpush2.xpose.msra.mxu0 0.0
    %3547 = vmatprep.mubr.f32.mxu0 0.0
    %3548 = vmatmul.mubr.f32.gmra.mxu0 %v3479
    %v3549 = vpop.f32.mrf.mxu0
    %v3550 = vadd.f32 0.0, %v3549
    %v3551 = vpop.f32.mrf.mxu0
    %3552 = vdwg.mxu0
    %3553 = vrot.lane.b32.xlu0 %v227, 120
    %v3554 = vpop.permute.xlu0 %3553
    %3555 = vrot.lane.b32.xlu0 %v227, 88
    %v3556 = vpop.permute.xlu0 %3555
    %v3557 = vsel %vm275, %v3554, 0
    %v3559 = vsel %vm275, %v3556, 0
    %3561 = vmatprep.subr.mxu0 0.0
    %3562 = vmatpush1.xpose.msra.mxu0 0.0
    %3563 = vmatprep.subr.mxu0 0.0
    %3564 = vmatpush1.xpose.msra.mxu0 0.0
    %3565 = vmatprep.subr.mxu0 0.0
    %3566 = vmatpush1.xpose.msra.mxu0 0.0
    %3567 = vmatprep.subr.mxu0 0.0
    %3568 = vmatpush1.xpose.msra.mxu0 0.0
    %3569 = vmatprep.subr.mxu0 0.0
    %3570 = vmatpush1.xpose.msra.mxu0 0.0
    %3571 = vmatprep.subr.mxu0 0.0
    %3572 = vmatpush1.xpose.msra.mxu0 0.0
    %3573 = vmatprep.subr.mxu0 0.0
    %3574 = vmatpush1.xpose.msra.mxu0 0.0
    %3575 = vmatprep.subr.mxu0 0.0
    %3576 = vmatpush1.xpose.msra.mxu0 0.0
    %3577 = vmatprep.subr.mxu0 0.0
    %3578 = vmatpush1.xpose.msra.mxu0 0.0
    %3579 = vmatprep.subr.mxu0 0.0
    %3580 = vmatpush1.xpose.msra.mxu0 0.0
    %3581 = vmatprep.subr.mxu0 0.0
    %3582 = vmatpush1.xpose.msra.mxu0 0.0
    %3583 = vmatprep.subr.mxu0 0.0
    %3584 = vmatpush1.xpose.msra.mxu0 0.0
    %3585 = vmatprep.subr.mxu0 0.0
    %3586 = vmatpush1.xpose.msra.mxu0 0.0
    %3587 = vmatprep.subr.mxu0 0.0
    %3588 = vmatpush1.xpose.msra.mxu0 0.0
    %3589 = vmatprep.subr.mxu0 0.0
    %3590 = vmatpush1.xpose.msra.mxu0 0.0
    %3591 = vmatprep.subr.mxu0 0.0
    %3592 = vmatpush1.xpose.msra.mxu0 %v3559
    %3593 = vmatprep.subr.mxu0 0.0
    %3594 = vmatpush2.xpose.msra.mxu0 0.0
    %3595 = vmatprep.subr.mxu0 0.0
    %3596 = vmatpush2.xpose.msra.mxu0 0.0
    %3597 = vmatprep.subr.mxu0 0.0
    %3598 = vmatpush2.xpose.msra.mxu0 0.0
    %3599 = vmatprep.subr.mxu0 0.0
    %3600 = vmatpush2.xpose.msra.mxu0 0.0
    %3601 = vmatprep.subr.mxu0 0.0
    %3602 = vmatpush2.xpose.msra.mxu0 0.0
    %3603 = vmatprep.subr.mxu0 0.0
    %3604 = vmatpush2.xpose.msra.mxu0 0.0
    %3605 = vmatprep.subr.mxu0 0.0
    %3606 = vmatpush2.xpose.msra.mxu0 0.0
    %3607 = vmatprep.subr.mxu0 0.0
    %3608 = vmatpush2.xpose.msra.mxu0 0.0
    %3609 = vmatprep.subr.mxu0 0.0
    %3610 = vmatpush2.xpose.msra.mxu0 0.0
    %3611 = vmatprep.subr.mxu0 0.0
    %3612 = vmatpush2.xpose.msra.mxu0 0.0
    %3613 = vmatprep.subr.mxu0 0.0
    %3614 = vmatpush2.xpose.msra.mxu0 0.0
    %3615 = vmatprep.subr.mxu0 0.0
    %3616 = vmatpush2.xpose.msra.mxu0 0.0
    %3617 = vmatprep.subr.mxu0 0.0
    %3618 = vmatpush2.xpose.msra.mxu0 0.0
    %3619 = vmatprep.subr.mxu0 0.0
    %3620 = vmatpush2.xpose.msra.mxu0 0.0
    %3621 = vmatprep.subr.mxu0 0.0
    %3622 = vmatpush2.xpose.msra.mxu0 0.0
    %3623 = vmatprep.subr.mxu0 0.0
    %3624 = vmatpush2.xpose.msra.mxu0 0.0
    %3625 = vmatprep.mubr.f32.mxu0 0.0
    %3626 = vmatmul.mubr.f32.gmra.mxu0 %v3557
    %v3627 = vpop.f32.mrf.mxu0
    %v3628 = vadd.f32 0.0, %v3627
    %v3629 = vpop.f32.mrf.mxu0
    %3630 = vdwg.mxu0
    %3631 = vrot.lane.b32.xlu0 %v231, 120
    %v3632 = vpop.permute.xlu0 %3631
    %3633 = vrot.lane.b32.xlu0 %v231, 88
    %v3634 = vpop.permute.xlu0 %3633
    %v3635 = vsel %vm275, %v3632, 0
    %v3637 = vsel %vm275, %v3634, 0
    %3639 = vmatprep.subr.mxu0 0.0
    %3640 = vmatpush1.xpose.msra.mxu0 0.0
    %3641 = vmatprep.subr.mxu0 0.0
    %3642 = vmatpush1.xpose.msra.mxu0 0.0
    %3643 = vmatprep.subr.mxu0 0.0
    %3644 = vmatpush1.xpose.msra.mxu0 0.0
    %3645 = vmatprep.subr.mxu0 0.0
    %3646 = vmatpush1.xpose.msra.mxu0 0.0
    %3647 = vmatprep.subr.mxu0 0.0
    %3648 = vmatpush1.xpose.msra.mxu0 0.0
    %3649 = vmatprep.subr.mxu0 0.0
    %3650 = vmatpush1.xpose.msra.mxu0 0.0
    %3651 = vmatprep.subr.mxu0 0.0
    %3652 = vmatpush1.xpose.msra.mxu0 0.0
    %3653 = vmatprep.subr.mxu0 0.0
    %3654 = vmatpush1.xpose.msra.mxu0 0.0
    %3655 = vmatprep.subr.mxu0 0.0
    %3656 = vmatpush1.xpose.msra.mxu0 0.0
    %3657 = vmatprep.subr.mxu0 0.0
    %3658 = vmatpush1.xpose.msra.mxu0 0.0
    %3659 = vmatprep.subr.mxu0 0.0
    %3660 = vmatpush1.xpose.msra.mxu0 0.0
    %3661 = vmatprep.subr.mxu0 0.0
    %3662 = vmatpush1.xpose.msra.mxu0 0.0
    %3663 = vmatprep.subr.mxu0 0.0
    %3664 = vmatpush1.xpose.msra.mxu0 0.0
    %3665 = vmatprep.subr.mxu0 0.0
    %3666 = vmatpush1.xpose.msra.mxu0 0.0
    %3667 = vmatprep.subr.mxu0 0.0
    %3668 = vmatpush1.xpose.msra.mxu0 0.0
    %3669 = vmatprep.subr.mxu0 0.0
    %3670 = vmatpush1.xpose.msra.mxu0 %v3637
    %3671 = vmatprep.subr.mxu0 0.0
    %3672 = vmatpush2.xpose.msra.mxu0 0.0
    %3673 = vmatprep.subr.mxu0 0.0
    %3674 = vmatpush2.xpose.msra.mxu0 0.0
    %3675 = vmatprep.subr.mxu0 0.0
    %3676 = vmatpush2.xpose.msra.mxu0 0.0
    %3677 = vmatprep.subr.mxu0 0.0
    %3678 = vmatpush2.xpose.msra.mxu0 0.0
    %3679 = vmatprep.subr.mxu0 0.0
    %3680 = vmatpush2.xpose.msra.mxu0 0.0
    %3681 = vmatprep.subr.mxu0 0.0
    %3682 = vmatpush2.xpose.msra.mxu0 0.0
    %3683 = vmatprep.subr.mxu0 0.0
    %3684 = vmatpush2.xpose.msra.mxu0 0.0
    %3685 = vmatprep.subr.mxu0 0.0
    %3686 = vmatpush2.xpose.msra.mxu0 0.0
    %3687 = vmatprep.subr.mxu0 0.0
    %3688 = vmatpush2.xpose.msra.mxu0 0.0
    %3689 = vmatprep.subr.mxu0 0.0
    %3690 = vmatpush2.xpose.msra.mxu0 0.0
    %3691 = vmatprep.subr.mxu0 0.0
    %3692 = vmatpush2.xpose.msra.mxu0 0.0
    %3693 = vmatprep.subr.mxu0 0.0
    %3694 = vmatpush2.xpose.msra.mxu0 0.0
    %3695 = vmatprep.subr.mxu0 0.0
    %3696 = vmatpush2.xpose.msra.mxu0 0.0
    %3697 = vmatprep.subr.mxu0 0.0
    %3698 = vmatpush2.xpose.msra.mxu0 0.0
    %3699 = vmatprep.subr.mxu0 0.0
    %3700 = vmatpush2.xpose.msra.mxu0 0.0
    %3701 = vmatprep.subr.mxu0 0.0
    %3702 = vmatpush2.xpose.msra.mxu0 0.0
    %3703 = vmatprep.mubr.f32.mxu0 0.0
    %3704 = vmatmul.mubr.f32.gmra.mxu0 %v3635
    %v3705 = vpop.f32.mrf.mxu0
    %v3706 = vadd.f32 0.0, %v3705
    %v3707 = vpop.f32.mrf.mxu0
    %3708 = vdwg.mxu0
    %3709 = vrot.lane.b32.xlu0 %v237, 120
    %v3710 = vpop.permute.xlu0 %3709
    %3711 = vrot.lane.b32.xlu0 %v237, 88
    %v3712 = vpop.permute.xlu0 %3711
    %v3713 = vsel %vm275, %v3710, 0
    %v3715 = vsel %vm275, %v3712, 0
    %3717 = vmatprep.subr.mxu0 0.0
    %3718 = vmatpush1.xpose.msra.mxu0 0.0
    %3719 = vmatprep.subr.mxu0 0.0
    %3720 = vmatpush1.xpose.msra.mxu0 0.0
    %3721 = vmatprep.subr.mxu0 0.0
    %3722 = vmatpush1.xpose.msra.mxu0 0.0
    %3723 = vmatprep.subr.mxu0 0.0
    %3724 = vmatpush1.xpose.msra.mxu0 0.0
    %3725 = vmatprep.subr.mxu0 0.0
    %3726 = vmatpush1.xpose.msra.mxu0 0.0
    %3727 = vmatprep.subr.mxu0 0.0
    %3728 = vmatpush1.xpose.msra.mxu0 0.0
    %3729 = vmatprep.subr.mxu0 0.0
    %3730 = vmatpush1.xpose.msra.mxu0 0.0
    %3731 = vmatprep.subr.mxu0 0.0
    %3732 = vmatpush1.xpose.msra.mxu0 0.0
    %3733 = vmatprep.subr.mxu0 0.0
    %3734 = vmatpush1.xpose.msra.mxu0 0.0
    %3735 = vmatprep.subr.mxu0 0.0
    %3736 = vmatpush1.xpose.msra.mxu0 0.0
    %3737 = vmatprep.subr.mxu0 0.0
    %3738 = vmatpush1.xpose.msra.mxu0 0.0
    %3739 = vmatprep.subr.mxu0 0.0
    %3740 = vmatpush1.xpose.msra.mxu0 0.0
    %3741 = vmatprep.subr.mxu0 0.0
    %3742 = vmatpush1.xpose.msra.mxu0 0.0
    %3743 = vmatprep.subr.mxu0 0.0
    %3744 = vmatpush1.xpose.msra.mxu0 0.0
    %3745 = vmatprep.subr.mxu0 0.0
    %3746 = vmatpush1.xpose.msra.mxu0 0.0
    %3747 = vmatprep.subr.mxu0 0.0
    %3748 = vmatpush1.xpose.msra.mxu0 %v3715
    %3749 = vmatprep.subr.mxu0 0.0
    %3750 = vmatpush2.xpose.msra.mxu0 0.0
    %3751 = vmatprep.subr.mxu0 0.0
    %3752 = vmatpush2.xpose.msra.mxu0 0.0
    %3753 = vmatprep.subr.mxu0 0.0
    %3754 = vmatpush2.xpose.msra.mxu0 0.0
    %3755 = vmatprep.subr.mxu0 0.0
    %3756 = vmatpush2.xpose.msra.mxu0 0.0
    %3757 = vmatprep.subr.mxu0 0.0
    %3758 = vmatpush2.xpose.msra.mxu0 0.0
    %3759 = vmatprep.subr.mxu0 0.0
    %3760 = vmatpush2.xpose.msra.mxu0 0.0
    %3761 = vmatprep.subr.mxu0 0.0
    %3762 = vmatpush2.xpose.msra.mxu0 0.0
    %3763 = vmatprep.subr.mxu0 0.0
    %3764 = vmatpush2.xpose.msra.mxu0 0.0
    %3765 = vmatprep.subr.mxu0 0.0
    %3766 = vmatpush2.xpose.msra.mxu0 0.0
    %3767 = vmatprep.subr.mxu0 0.0
    %3768 = vmatpush2.xpose.msra.mxu0 0.0
    %3769 = vmatprep.subr.mxu0 0.0
    %3770 = vmatpush2.xpose.msra.mxu0 0.0
    %3771 = vmatprep.subr.mxu0 0.0
    %3772 = vmatpush2.xpose.msra.mxu0 0.0
    %3773 = vmatprep.subr.mxu0 0.0
    %3774 = vmatpush2.xpose.msra.mxu0 0.0
    %3775 = vmatprep.subr.mxu0 0.0
    %3776 = vmatpush2.xpose.msra.mxu0 0.0
    %3777 = vmatprep.subr.mxu0 0.0
    %3778 = vmatpush2.xpose.msra.mxu0 0.0
    %3779 = vmatprep.subr.mxu0 0.0
    %3780 = vmatpush2.xpose.msra.mxu0 0.0
    %3781 = vmatprep.mubr.f32.mxu0 0.0
    %3782 = vmatmul.mubr.f32.gmra.mxu0 %v3713
    %v3783 = vpop.f32.mrf.mxu0
    %v3784 = vadd.f32 0.0, %v3783
    %v3785 = vpop.f32.mrf.mxu0
    %3786 = vdwg.mxu0
    %3787 = vrot.lane.b32.xlu0 %v241, 120
    %v3788 = vpop.permute.xlu0 %3787
    %3789 = vrot.lane.b32.xlu0 %v241, 88
    %v3790 = vpop.permute.xlu0 %3789
    %v3791 = vsel %vm275, %v3788, 0
    %v3793 = vsel %vm275, %v3790, 0
    %3795 = vmatprep.subr.mxu0 0.0
    %3796 = vmatpush1.xpose.msra.mxu0 0.0
    %3797 = vmatprep.subr.mxu0 0.0
    %3798 = vmatpush1.xpose.msra.mxu0 0.0
    %3799 = vmatprep.subr.mxu0 0.0
    %3800 = vmatpush1.xpose.msra.mxu0 0.0
    %3801 = vmatprep.subr.mxu0 0.0
    %3802 = vmatpush1.xpose.msra.mxu0 0.0
    %3803 = vmatprep.subr.mxu0 0.0
    %3804 = vmatpush1.xpose.msra.mxu0 0.0
    %3805 = vmatprep.subr.mxu0 0.0
    %3806 = vmatpush1.xpose.msra.mxu0 0.0
    %3807 = vmatprep.subr.mxu0 0.0
    %3808 = vmatpush1.xpose.msra.mxu0 0.0
    %3809 = vmatprep.subr.mxu0 0.0
    %3810 = vmatpush1.xpose.msra.mxu0 0.0
    %3811 = vmatprep.subr.mxu0 0.0
    %3812 = vmatpush1.xpose.msra.mxu0 0.0
    %3813 = vmatprep.subr.mxu0 0.0
    %3814 = vmatpush1.xpose.msra.mxu0 0.0
    %3815 = vmatprep.subr.mxu0 0.0
    %3816 = vmatpush1.xpose.msra.mxu0 0.0
    %3817 = vmatprep.subr.mxu0 0.0
    %3818 = vmatpush1.xpose.msra.mxu0 0.0
    %3819 = vmatprep.subr.mxu0 0.0
    %3820 = vmatpush1.xpose.msra.mxu0 0.0
    %3821 = vmatprep.subr.mxu0 0.0
    %3822 = vmatpush1.xpose.msra.mxu0 0.0
    %3823 = vmatprep.subr.mxu0 0.0
    %3824 = vmatpush1.xpose.msra.mxu0 0.0
    %3825 = vmatprep.subr.mxu0 0.0
    %3826 = vmatpush1.xpose.msra.mxu0 %v3793
    %3827 = vmatprep.subr.mxu0 0.0
    %3828 = vmatpush2.xpose.msra.mxu0 0.0
    %3829 = vmatprep.subr.mxu0 0.0
    %3830 = vmatpush2.xpose.msra.mxu0 0.0
    %3831 = vmatprep.subr.mxu0 0.0
    %3832 = vmatpush2.xpose.msra.mxu0 0.0
    %3833 = vmatprep.subr.mxu0 0.0
    %3834 = vmatpush2.xpose.msra.mxu0 0.0
    %3835 = vmatprep.subr.mxu0 0.0
    %3836 = vmatpush2.xpose.msra.mxu0 0.0
    %3837 = vmatprep.subr.mxu0 0.0
    %3838 = vmatpush2.xpose.msra.mxu0 0.0
    %3839 = vmatprep.subr.mxu0 0.0
    %3840 = vmatpush2.xpose.msra.mxu0 0.0
    %3841 = vmatprep.subr.mxu0 0.0
    %3842 = vmatpush2.xpose.msra.mxu0 0.0
    %3843 = vmatprep.subr.mxu0 0.0
    %3844 = vmatpush2.xpose.msra.mxu0 0.0
    %3845 = vmatprep.subr.mxu0 0.0
    %3846 = vmatpush2.xpose.msra.mxu0 0.0
    %3847 = vmatprep.subr.mxu0 0.0
    %3848 = vmatpush2.xpose.msra.mxu0 0.0
    %3849 = vmatprep.subr.mxu0 0.0
    %3850 = vmatpush2.xpose.msra.mxu0 0.0
    %3851 = vmatprep.subr.mxu0 0.0
    %3852 = vmatpush2.xpose.msra.mxu0 0.0
    %3853 = vmatprep.subr.mxu0 0.0
    %3854 = vmatpush2.xpose.msra.mxu0 0.0
    %3855 = vmatprep.subr.mxu0 0.0
    %3856 = vmatpush2.xpose.msra.mxu0 0.0
    %3857 = vmatprep.subr.mxu0 0.0
    %3858 = vmatpush2.xpose.msra.mxu0 0.0
    %3859 = vmatprep.mubr.f32.mxu0 0.0
    %3860 = vmatmul.mubr.f32.gmra.mxu0 %v3791
    %v3861 = vpop.f32.mrf.mxu0
    %v3862 = vadd.f32 0.0, %v3861
    %v3863 = vpop.f32.mrf.mxu0
    %3864 = vdwg.mxu0
    %3865 = vrot.lane.b32.xlu0 %v247, 120
    %v3866 = vpop.permute.xlu0 %3865
    %3867 = vrot.lane.b32.xlu0 %v247, 88
    %v3868 = vpop.permute.xlu0 %3867
    %v3869 = vsel %vm275, %v3866, 0
    %v3871 = vsel %vm275, %v3868, 0
    %3873 = vmatprep.subr.mxu0 0.0
    %3874 = vmatpush1.xpose.msra.mxu0 0.0
    %3875 = vmatprep.subr.mxu0 0.0
    %3876 = vmatpush1.xpose.msra.mxu0 0.0
    %3877 = vmatprep.subr.mxu0 0.0
    %3878 = vmatpush1.xpose.msra.mxu0 0.0
    %3879 = vmatprep.subr.mxu0 0.0
    %3880 = vmatpush1.xpose.msra.mxu0 0.0
    %3881 = vmatprep.subr.mxu0 0.0
    %3882 = vmatpush1.xpose.msra.mxu0 0.0
    %3883 = vmatprep.subr.mxu0 0.0
    %3884 = vmatpush1.xpose.msra.mxu0 0.0
    %3885 = vmatprep.subr.mxu0 0.0
    %3886 = vmatpush1.xpose.msra.mxu0 0.0
    %3887 = vmatprep.subr.mxu0 0.0
    %3888 = vmatpush1.xpose.msra.mxu0 0.0
    %3889 = vmatprep.subr.mxu0 0.0
    %3890 = vmatpush1.xpose.msra.mxu0 0.0
    %3891 = vmatprep.subr.mxu0 0.0
    %3892 = vmatpush1.xpose.msra.mxu0 0.0
    %3893 = vmatprep.subr.mxu0 0.0
    %3894 = vmatpush1.xpose.msra.mxu0 0.0
    %3895 = vmatprep.subr.mxu0 0.0
    %3896 = vmatpush1.xpose.msra.mxu0 0.0
    %3897 = vmatprep.subr.mxu0 0.0
    %3898 = vmatpush1.xpose.msra.mxu0 0.0
    %3899 = vmatprep.subr.mxu0 0.0
    %3900 = vmatpush1.xpose.msra.mxu0 0.0
    %3901 = vmatprep.subr.mxu0 0.0
    %3902 = vmatpush1.xpose.msra.mxu0 0.0
    %3903 = vmatprep.subr.mxu0 0.0
    %3904 = vmatpush1.xpose.msra.mxu0 %v3871
    %3905 = vmatprep.subr.mxu0 0.0
    %3906 = vmatpush2.xpose.msra.mxu0 0.0
    %3907 = vmatprep.subr.mxu0 0.0
    %3908 = vmatpush2.xpose.msra.mxu0 0.0
    %3909 = vmatprep.subr.mxu0 0.0
    %3910 = vmatpush2.xpose.msra.mxu0 0.0
    %3911 = vmatprep.subr.mxu0 0.0
    %3912 = vmatpush2.xpose.msra.mxu0 0.0
    %3913 = vmatprep.subr.mxu0 0.0
    %3914 = vmatpush2.xpose.msra.mxu0 0.0
    %3915 = vmatprep.subr.mxu0 0.0
    %3916 = vmatpush2.xpose.msra.mxu0 0.0
    %3917 = vmatprep.subr.mxu0 0.0
    %3918 = vmatpush2.xpose.msra.mxu0 0.0
    %3919 = vmatprep.subr.mxu0 0.0
    %3920 = vmatpush2.xpose.msra.mxu0 0.0
    %3921 = vmatprep.subr.mxu0 0.0
    %3922 = vmatpush2.xpose.msra.mxu0 0.0
    %3923 = vmatprep.subr.mxu0 0.0
    %3924 = vmatpush2.xpose.msra.mxu0 0.0
    %3925 = vmatprep.subr.mxu0 0.0
    %3926 = vmatpush2.xpose.msra.mxu0 0.0
    %3927 = vmatprep.subr.mxu0 0.0
    %3928 = vmatpush2.xpose.msra.mxu0 0.0
    %3929 = vmatprep.subr.mxu0 0.0
    %3930 = vmatpush2.xpose.msra.mxu0 0.0
    %3931 = vmatprep.subr.mxu0 0.0
    %3932 = vmatpush2.xpose.msra.mxu0 0.0
    %3933 = vmatprep.subr.mxu0 0.0
    %3934 = vmatpush2.xpose.msra.mxu0 0.0
    %3935 = vmatprep.subr.mxu0 0.0
    %3936 = vmatpush2.xpose.msra.mxu0 0.0
    %3937 = vmatprep.mubr.f32.mxu0 0.0
    %3938 = vmatmul.mubr.f32.gmra.mxu0 %v3869
    %v3939 = vpop.f32.mrf.mxu0
    %v3940 = vadd.f32 0.0, %v3939
    %v3941 = vpop.f32.mrf.mxu0
    %3942 = vdwg.mxu0
    %3943 = vrot.lane.b32.xlu0 %v251, 120
    %v3944 = vpop.permute.xlu0 %3943
    %3945 = vrot.lane.b32.xlu0 %v251, 88
    %v3946 = vpop.permute.xlu0 %3945
    %v3947 = vsel %vm275, %v3944, 0
    %v3949 = vsel %vm275, %v3946, 0
    %3951 = vmatprep.subr.mxu0 0.0
    %3952 = vmatpush1.xpose.msra.mxu0 0.0
    %3953 = vmatprep.subr.mxu0 0.0
    %3954 = vmatpush1.xpose.msra.mxu0 0.0
    %3955 = vmatprep.subr.mxu0 0.0
    %3956 = vmatpush1.xpose.msra.mxu0 0.0
    %3957 = vmatprep.subr.mxu0 0.0
    %3958 = vmatpush1.xpose.msra.mxu0 0.0
    %3959 = vmatprep.subr.mxu0 0.0
    %3960 = vmatpush1.xpose.msra.mxu0 0.0
    %3961 = vmatprep.subr.mxu0 0.0
    %3962 = vmatpush1.xpose.msra.mxu0 0.0
    %3963 = vmatprep.subr.mxu0 0.0
    %3964 = vmatpush1.xpose.msra.mxu0 0.0
    %3965 = vmatprep.subr.mxu0 0.0
    %3966 = vmatpush1.xpose.msra.mxu0 0.0
    %3967 = vmatprep.subr.mxu0 0.0
    %3968 = vmatpush1.xpose.msra.mxu0 0.0
    %3969 = vmatprep.subr.mxu0 0.0
    %3970 = vmatpush1.xpose.msra.mxu0 0.0
    %3971 = vmatprep.subr.mxu0 0.0
    %3972 = vmatpush1.xpose.msra.mxu0 0.0
    %3973 = vmatprep.subr.mxu0 0.0
    %3974 = vmatpush1.xpose.msra.mxu0 0.0
    %3975 = vmatprep.subr.mxu0 0.0
    %3976 = vmatpush1.xpose.msra.mxu0 0.0
    %3977 = vmatprep.subr.mxu0 0.0
    %3978 = vmatpush1.xpose.msra.mxu0 0.0
    %3979 = vmatprep.subr.mxu0 0.0
    %3980 = vmatpush1.xpose.msra.mxu0 0.0
    %3981 = vmatprep.subr.mxu0 0.0
    %3982 = vmatpush1.xpose.msra.mxu0 %v3949
    %3983 = vmatprep.subr.mxu0 0.0
    %3984 = vmatpush2.xpose.msra.mxu0 0.0
    %3985 = vmatprep.subr.mxu0 0.0
    %3986 = vmatpush2.xpose.msra.mxu0 0.0
    %3987 = vmatprep.subr.mxu0 0.0
    %3988 = vmatpush2.xpose.msra.mxu0 0.0
    %3989 = vmatprep.subr.mxu0 0.0
    %3990 = vmatpush2.xpose.msra.mxu0 0.0
    %3991 = vmatprep.subr.mxu0 0.0
    %3992 = vmatpush2.xpose.msra.mxu0 0.0
    %3993 = vmatprep.subr.mxu0 0.0
    %3994 = vmatpush2.xpose.msra.mxu0 0.0
    %3995 = vmatprep.subr.mxu0 0.0
    %3996 = vmatpush2.xpose.msra.mxu0 0.0
    %3997 = vmatprep.subr.mxu0 0.0
    %3998 = vmatpush2.xpose.msra.mxu0 0.0
    %3999 = vmatprep.subr.mxu0 0.0
    %4000 = vmatpush2.xpose.msra.mxu0 0.0
    %4001 = vmatprep.subr.mxu0 0.0
    %4002 = vmatpush2.xpose.msra.mxu0 0.0
    %4003 = vmatprep.subr.mxu0 0.0
    %4004 = vmatpush2.xpose.msra.mxu0 0.0
    %4005 = vmatprep.subr.mxu0 0.0
    %4006 = vmatpush2.xpose.msra.mxu0 0.0
    %4007 = vmatprep.subr.mxu0 0.0
    %4008 = vmatpush2.xpose.msra.mxu0 0.0
    %4009 = vmatprep.subr.mxu0 0.0
    %4010 = vmatpush2.xpose.msra.mxu0 0.0
    %4011 = vmatprep.subr.mxu0 0.0
    %4012 = vmatpush2.xpose.msra.mxu0 0.0
    %4013 = vmatprep.subr.mxu0 0.0
    %4014 = vmatpush2.xpose.msra.mxu0 0.0
    %4015 = vmatprep.mubr.f32.mxu0 0.0
    %4016 = vmatmul.mubr.f32.gmra.mxu0 %v3947
    %v4017 = vpop.f32.mrf.mxu0
    %v4018 = vadd.f32 0.0, %v4017
    %v4019 = vpop.f32.mrf.mxu0
    %4020 = vdwg.mxu0
    %4021 = vrot.lane.b32.xlu0 %v257, 120
    %v4022 = vpop.permute.xlu0 %4021
    %4023 = vrot.lane.b32.xlu0 %v257, 88
    %v4024 = vpop.permute.xlu0 %4023
    %v4025 = vsel %vm275, %v4022, 0
    %v4027 = vsel %vm275, %v4024, 0
    %4029 = vmatprep.subr.mxu0 0.0
    %4030 = vmatpush1.xpose.msra.mxu0 0.0
    %4031 = vmatprep.subr.mxu0 0.0
    %4032 = vmatpush1.xpose.msra.mxu0 0.0
    %4033 = vmatprep.subr.mxu0 0.0
    %4034 = vmatpush1.xpose.msra.mxu0 0.0
    %4035 = vmatprep.subr.mxu0 0.0
    %4036 = vmatpush1.xpose.msra.mxu0 0.0
    %4037 = vmatprep.subr.mxu0 0.0
    %4038 = vmatpush1.xpose.msra.mxu0 0.0
    %4039 = vmatprep.subr.mxu0 0.0
    %4040 = vmatpush1.xpose.msra.mxu0 0.0
    %4041 = vmatprep.subr.mxu0 0.0
    %4042 = vmatpush1.xpose.msra.mxu0 0.0
    %4043 = vmatprep.subr.mxu0 0.0
    %4044 = vmatpush1.xpose.msra.mxu0 0.0
    %4045 = vmatprep.subr.mxu0 0.0
    %4046 = vmatpush1.xpose.msra.mxu0 0.0
    %4047 = vmatprep.subr.mxu0 0.0
    %4048 = vmatpush1.xpose.msra.mxu0 0.0
    %4049 = vmatprep.subr.mxu0 0.0
    %4050 = vmatpush1.xpose.msra.mxu0 0.0
    %4051 = vmatprep.subr.mxu0 0.0
    %4052 = vmatpush1.xpose.msra.mxu0 0.0
    %4053 = vmatprep.subr.mxu0 0.0
    %4054 = vmatpush1.xpose.msra.mxu0 0.0
    %4055 = vmatprep.subr.mxu0 0.0
    %4056 = vmatpush1.xpose.msra.mxu0 0.0
    %4057 = vmatprep.subr.mxu0 0.0
    %4058 = vmatpush1.xpose.msra.mxu0 0.0
    %4059 = vmatprep.subr.mxu0 0.0
    %4060 = vmatpush1.xpose.msra.mxu0 %v4027
    %4061 = vmatprep.subr.mxu0 0.0
    %4062 = vmatpush2.xpose.msra.mxu0 0.0
    %4063 = vmatprep.subr.mxu0 0.0
    %4064 = vmatpush2.xpose.msra.mxu0 0.0
    %4065 = vmatprep.subr.mxu0 0.0
    %4066 = vmatpush2.xpose.msra.mxu0 0.0
    %4067 = vmatprep.subr.mxu0 0.0
    %4068 = vmatpush2.xpose.msra.mxu0 0.0
    %4069 = vmatprep.subr.mxu0 0.0
    %4070 = vmatpush2.xpose.msra.mxu0 0.0
    %4071 = vmatprep.subr.mxu0 0.0
    %4072 = vmatpush2.xpose.msra.mxu0 0.0
    %4073 = vmatprep.subr.mxu0 0.0
    %4074 = vmatpush2.xpose.msra.mxu0 0.0
    %4075 = vmatprep.subr.mxu0 0.0
    %4076 = vmatpush2.xpose.msra.mxu0 0.0
    %4077 = vmatprep.subr.mxu0 0.0
    %4078 = vmatpush2.xpose.msra.mxu0 0.0
    %4079 = vmatprep.subr.mxu0 0.0
    %4080 = vmatpush2.xpose.msra.mxu0 0.0
    %4081 = vmatprep.subr.mxu0 0.0
    %4082 = vmatpush2.xpose.msra.mxu0 0.0
    %4083 = vmatprep.subr.mxu0 0.0
    %4084 = vmatpush2.xpose.msra.mxu0 0.0
    %4085 = vmatprep.subr.mxu0 0.0
    %4086 = vmatpush2.xpose.msra.mxu0 0.0
    %4087 = vmatprep.subr.mxu0 0.0
    %4088 = vmatpush2.xpose.msra.mxu0 0.0
    %4089 = vmatprep.subr.mxu0 0.0
    %4090 = vmatpush2.xpose.msra.mxu0 0.0
    %4091 = vmatprep.subr.mxu0 0.0
    %4092 = vmatpush2.xpose.msra.mxu0 0.0
    %4093 = vmatprep.mubr.f32.mxu0 0.0
    %4094 = vmatmul.mubr.f32.gmra.mxu0 %v4025
    %v4095 = vpop.f32.mrf.mxu0
    %v4096 = vadd.f32 0.0, %v4095
    %v4097 = vpop.f32.mrf.mxu0
    %4098 = vdwg.mxu0
    %4099 = vrot.lane.b32.xlu0 %v261, 120
    %v4100 = vpop.permute.xlu0 %4099
    %4101 = vrot.lane.b32.xlu0 %v261, 88
    %v4102 = vpop.permute.xlu0 %4101
    %v4103 = vsel %vm275, %v4100, 0
    %v4105 = vsel %vm275, %v4102, 0
    %4107 = vmatprep.subr.mxu0 0.0
    %4108 = vmatpush1.xpose.msra.mxu0 0.0
    %4109 = vmatprep.subr.mxu0 0.0
    %4110 = vmatpush1.xpose.msra.mxu0 0.0
    %4111 = vmatprep.subr.mxu0 0.0
    %4112 = vmatpush1.xpose.msra.mxu0 0.0
    %4113 = vmatprep.subr.mxu0 0.0
    %4114 = vmatpush1.xpose.msra.mxu0 0.0
    %4115 = vmatprep.subr.mxu0 0.0
    %4116 = vmatpush1.xpose.msra.mxu0 0.0
    %4117 = vmatprep.subr.mxu0 0.0
    %4118 = vmatpush1.xpose.msra.mxu0 0.0
    %4119 = vmatprep.subr.mxu0 0.0
    %4120 = vmatpush1.xpose.msra.mxu0 0.0
    %4121 = vmatprep.subr.mxu0 0.0
    %4122 = vmatpush1.xpose.msra.mxu0 0.0
    %4123 = vmatprep.subr.mxu0 0.0
    %4124 = vmatpush1.xpose.msra.mxu0 0.0
    %4125 = vmatprep.subr.mxu0 0.0
    %4126 = vmatpush1.xpose.msra.mxu0 0.0
    %4127 = vmatprep.subr.mxu0 0.0
    %4128 = vmatpush1.xpose.msra.mxu0 0.0
    %4129 = vmatprep.subr.mxu0 0.0
    %4130 = vmatpush1.xpose.msra.mxu0 0.0
    %4131 = vmatprep.subr.mxu0 0.0
    %4132 = vmatpush1.xpose.msra.mxu0 0.0
    %4133 = vmatprep.subr.mxu0 0.0
    %4134 = vmatpush1.xpose.msra.mxu0 0.0
    %4135 = vmatprep.subr.mxu0 0.0
    %4136 = vmatpush1.xpose.msra.mxu0 0.0
    %4137 = vmatprep.subr.mxu0 0.0
    %4138 = vmatpush1.xpose.msra.mxu0 %v4105
    %4139 = vmatprep.subr.mxu0 0.0
    %4140 = vmatpush2.xpose.msra.mxu0 0.0
    %4141 = vmatprep.subr.mxu0 0.0
    %4142 = vmatpush2.xpose.msra.mxu0 0.0
    %4143 = vmatprep.subr.mxu0 0.0
    %4144 = vmatpush2.xpose.msra.mxu0 0.0
    %4145 = vmatprep.subr.mxu0 0.0
    %4146 = vmatpush2.xpose.msra.mxu0 0.0
    %4147 = vmatprep.subr.mxu0 0.0
    %4148 = vmatpush2.xpose.msra.mxu0 0.0
    %4149 = vmatprep.subr.mxu0 0.0
    %4150 = vmatpush2.xpose.msra.mxu0 0.0
    %4151 = vmatprep.subr.mxu0 0.0
    %4152 = vmatpush2.xpose.msra.mxu0 0.0
    %4153 = vmatprep.subr.mxu0 0.0
    %4154 = vmatpush2.xpose.msra.mxu0 0.0
    %4155 = vmatprep.subr.mxu0 0.0
    %4156 = vmatpush2.xpose.msra.mxu0 0.0
    %4157 = vmatprep.subr.mxu0 0.0
    %4158 = vmatpush2.xpose.msra.mxu0 0.0
    %4159 = vmatprep.subr.mxu0 0.0
    %4160 = vmatpush2.xpose.msra.mxu0 0.0
    %4161 = vmatprep.subr.mxu0 0.0
    %4162 = vmatpush2.xpose.msra.mxu0 0.0
    %4163 = vmatprep.subr.mxu0 0.0
    %4164 = vmatpush2.xpose.msra.mxu0 0.0
    %4165 = vmatprep.subr.mxu0 0.0
    %4166 = vmatpush2.xpose.msra.mxu0 0.0
    %4167 = vmatprep.subr.mxu0 0.0
    %4168 = vmatpush2.xpose.msra.mxu0 0.0
    %4169 = vmatprep.subr.mxu0 0.0
    %4170 = vmatpush2.xpose.msra.mxu0 0.0
    %4171 = vmatprep.mubr.f32.mxu0 0.0
    %4172 = vmatmul.mubr.f32.gmra.mxu0 %v4103
    %v4173 = vpop.f32.mrf.mxu0
    %v4174 = vadd.f32 0.0, %v4173
    %v4175 = vpop.f32.mrf.mxu0
    %4176 = vdwg.mxu0
    %v4177 = vmul.f32 %v3004, 0.35355338
    %v4178 = vmul.f32 %v3082, 0.35355338
    %v4179 = vmul.f32 %v3160, 0.35355338
    %v4180 = vmul.f32 %v3238, 0.35355338
    %v4181 = vmul.f32 %v3316, 0.35355338
    %v4182 = vmul.f32 %v3394, 0.35355338
    %v4183 = vmul.f32 %v3472, 0.35355338
    %v4184 = vmul.f32 %v3550, 0.35355338
    %v4185 = vmul.f32 %v3628, 0.35355338
    %v4186 = vmul.f32 %v3706, 0.35355338
    %v4187 = vmul.f32 %v3784, 0.35355338
    %v4188 = vmul.f32 %v3862, 0.35355338
    %v4189 = vmul.f32 %v3940, 0.35355338
    %v4190 = vmul.f32 %v4018, 0.35355338
    %v4191 = vmul.f32 %v4096, 0.35355338
    %v4192 = vmul.f32 %v4174, 0.35355338
    %v4193 = vsel %vm275, %v4177, -inf
    %4194 = vmax.xlane.f32.xlu0 %v4193
    %v4195 = vpop.xlane.xlu0 %4194
    %v4196 = vsel %vm275, %v4178, -inf
    %4197 = vmax.xlane.f32.xlu0 %v4196
    %v4198 = vpop.xlane.xlu0 %4197
    %v4199 = vsel %vm275, %v4179, -inf
    %4200 = vmax.xlane.f32.xlu0 %v4199
    %v4201 = vpop.xlane.xlu0 %4200
    %v4202 = vsel %vm275, %v4180, -inf
    %4203 = vmax.xlane.f32.xlu0 %v4202
    %v4204 = vpop.xlane.xlu0 %4203
    %v4205 = vsel %vm275, %v4181, -inf
    %4206 = vmax.xlane.f32.xlu0 %v4205
    %v4207 = vpop.xlane.xlu0 %4206
    %v4208 = vsel %vm275, %v4182, -inf
    %4209 = vmax.xlane.f32.xlu0 %v4208
    %v4210 = vpop.xlane.xlu0 %4209
    %v4211 = vsel %vm275, %v4183, -inf
    %4212 = vmax.xlane.f32.xlu0 %v4211
    %v4213 = vpop.xlane.xlu0 %4212
    %v4214 = vsel %vm275, %v4184, -inf
    %4215 = vmax.xlane.f32.xlu0 %v4214
    %v4216 = vpop.xlane.xlu0 %4215
    %v4217 = vsel %vm275, %v4185, -inf
    %4218 = vmax.xlane.f32.xlu0 %v4217
    %v4219 = vpop.xlane.xlu0 %4218
    %v4220 = vsel %vm275, %v4186, -inf
    %4221 = vmax.xlane.f32.xlu0 %v4220
    %v4222 = vpop.xlane.xlu0 %4221
    %v4223 = vsel %vm275, %v4187, -inf
    %4224 = vmax.xlane.f32.xlu0 %v4223
    %v4225 = vpop.xlane.xlu0 %4224
    %v4226 = vsel %vm275, %v4188, -inf
    %4227 = vmax.xlane.f32.xlu0 %v4226
    %v4228 = vpop.xlane.xlu0 %4227
    %v4229 = vsel %vm275, %v4189, -inf
    %4230 = vmax.xlane.f32.xlu0 %v4229
    %v4231 = vpop.xlane.xlu0 %4230
    %v4232 = vsel %vm275, %v4190, -inf
    %4233 = vmax.xlane.f32.xlu0 %v4232
    %v4234 = vpop.xlane.xlu0 %4233
    %v4235 = vsel %vm275, %v4191, -inf
    %4236 = vmax.xlane.f32.xlu0 %v4235
    %v4237 = vpop.xlane.xlu0 %4236
    %v4238 = vsel %vm275, %v4192, -inf
    %4239 = vmax.xlane.f32.xlu0 %v4238
    %v4240 = vpop.xlane.xlu0 %4239
    %v4241 = vsub.f32 %v4177, %v4195
    %v4242 = vsub.f32 %v4178, %v4198
    %v4243 = vsub.f32 %v4179, %v4201
    %v4244 = vsub.f32 %v4180, %v4204
    %v4245 = vsub.f32 %v4181, %v4207
    %v4246 = vsub.f32 %v4182, %v4210
    %v4247 = vsub.f32 %v4183, %v4213
    %v4248 = vsub.f32 %v4184, %v4216
    %v4249 = vsub.f32 %v4185, %v4219
    %v4250 = vsub.f32 %v4186, %v4222
    %v4251 = vsub.f32 %v4187, %v4225
    %v4252 = vsub.f32 %v4188, %v4228
    %v4253 = vsub.f32 %v4189, %v4231
    %v4254 = vsub.f32 %v4190, %v4234
    %v4255 = vsub.f32 %v4191, %v4237
    %v4256 = vsub.f32 %v4192, %v4240
    %v4257 = vmul.f32 %v4241, 1.442695
    %v4258 = vpow.pop %v4257
    %v4259 = vmul.f32 %v4242, 1.442695
    %v4260 = vpow.pop %v4259
    %v4261 = vmul.f32 %v4243, 1.442695
    %v4262 = vpow.pop %v4261
    %v4263 = vmul.f32 %v4244, 1.442695
    %v4264 = vpow.pop %v4263
    %v4265 = vmul.f32 %v4245, 1.442695
    %v4266 = vpow.pop %v4265
    %v4267 = vmul.f32 %v4246, 1.442695
    %v4268 = vpow.pop %v4267
    %v4269 = vmul.f32 %v4247, 1.442695
    %v4270 = vpow.pop %v4269
    %v4271 = vmul.f32 %v4248, 1.442695
    %v4272 = vpow.pop %v4271
    %v4273 = vmul.f32 %v4249, 1.442695
    %v4274 = vpow.pop %v4273
    %v4275 = vmul.f32 %v4250, 1.442695
    %v4276 = vpow.pop %v4275
    %v4277 = vmul.f32 %v4251, 1.442695
    %v4278 = vpow.pop %v4277
    %v4279 = vmul.f32 %v4252, 1.442695
    %v4280 = vpow.pop %v4279
    %v4281 = vmul.f32 %v4253, 1.442695
    %v4282 = vpow.pop %v4281
    %v4283 = vmul.f32 %v4254, 1.442695
    %v4284 = vpow.pop %v4283
    %v4285 = vmul.f32 %v4255, 1.442695
    %v4286 = vpow.pop %v4285
    %v4287 = vmul.f32 %v4256, 1.442695
    %v4288 = vpow.pop %v4287
    %v4289 = vsel %vm275, %v4258, 0.0
    %4290 = vadd.xlane.f32.xlu0 %v4289
    %v4291 = vpop.xlane.xlu0 %4290
    %v4292 = vsel %vm275, %v4260, 0.0
    %4293 = vadd.xlane.f32.xlu0 %v4292
    %v4294 = vpop.xlane.xlu0 %4293
    %v4295 = vsel %vm275, %v4262, 0.0
    %4296 = vadd.xlane.f32.xlu0 %v4295
    %v4297 = vpop.xlane.xlu0 %4296
    %v4298 = vsel %vm275, %v4264, 0.0
    %4299 = vadd.xlane.f32.xlu0 %v4298
    %v4300 = vpop.xlane.xlu0 %4299
    %v4301 = vsel %vm275, %v4266, 0.0
    %4302 = vadd.xlane.f32.xlu0 %v4301
    %v4303 = vpop.xlane.xlu0 %4302
    %v4304 = vsel %vm275, %v4268, 0.0
    %4305 = vadd.xlane.f32.xlu0 %v4304
    %v4306 = vpop.xlane.xlu0 %4305
    %v4307 = vsel %vm275, %v4270, 0.0
    %4308 = vadd.xlane.f32.xlu0 %v4307
    %v4309 = vpop.xlane.xlu0 %4308
    %v4310 = vsel %vm275, %v4272, 0.0
    %4311 = vadd.xlane.f32.xlu0 %v4310
    %v4312 = vpop.xlane.xlu0 %4311
    %v4313 = vsel %vm275, %v4274, 0.0
    %4314 = vadd.xlane.f32.xlu0 %v4313
    %v4315 = vpop.xlane.xlu0 %4314
    %v4316 = vsel %vm275, %v4276, 0.0
    %4317 = vadd.xlane.f32.xlu0 %v4316
    %v4318 = vpop.xlane.xlu0 %4317
    %v4319 = vsel %vm275, %v4278, 0.0
    %4320 = vadd.xlane.f32.xlu0 %v4319
    %v4321 = vpop.xlane.xlu0 %4320
    %v4322 = vsel %vm275, %v4280, 0.0
    %4323 = vadd.xlane.f32.xlu0 %v4322
    %v4324 = vpop.xlane.xlu0 %4323
    %v4325 = vsel %vm275, %v4282, 0.0
    %4326 = vadd.xlane.f32.xlu0 %v4325
    %v4327 = vpop.xlane.xlu0 %4326
    %v4328 = vsel %vm275, %v4284, 0.0
    %4329 = vadd.xlane.f32.xlu0 %v4328
    %v4330 = vpop.xlane.xlu0 %4329
    %v4331 = vsel %vm275, %v4286, 0.0
    %4332 = vadd.xlane.f32.xlu0 %v4331
    %v4333 = vpop.xlane.xlu0 %4332
    %v4334 = vsel %vm275, %v4288, 0.0
    %4335 = vadd.xlane.f32.xlu0 %v4334
    %v4336 = vpop.xlane.xlu0 %4335
    %v4337 = vrcp.pop %v4291
    %v4338 = vrcp.pop %v4294
    %v4339 = vrcp.pop %v4297
    %v4340 = vrcp.pop %v4300
    %v4341 = vrcp.pop %v4303
    %v4342 = vrcp.pop %v4306
    %v4343 = vrcp.pop %v4309
    %v4344 = vrcp.pop %v4312
    %v4345 = vrcp.pop %v4315
    %v4346 = vrcp.pop %v4318
    %v4347 = vrcp.pop %v4321
    %v4348 = vrcp.pop %v4324
    %v4349 = vrcp.pop %v4327
    %v4350 = vrcp.pop %v4330
    %v4351 = vrcp.pop %v4333
    %v4352 = vrcp.pop %v4336
    %v4353 = vmul.f32 %v4258, %v4337
    %v4354 = vmul.f32 %v4260, %v4338
    %v4355 = vmul.f32 %v4262, %v4339
    %v4356 = vmul.f32 %v4264, %v4340
    %v4357 = vmul.f32 %v4266, %v4341
    %v4358 = vmul.f32 %v4268, %v4342
    %v4359 = vmul.f32 %v4270, %v4343
    %v4360 = vmul.f32 %v4272, %v4344
    %v4361 = vmul.f32 %v4274, %v4345
    %v4362 = vmul.f32 %v4276, %v4346
    %v4363 = vmul.f32 %v4278, %v4347
    %v4364 = vmul.f32 %v4280, %v4348
    %v4365 = vmul.f32 %v4282, %v4349
    %v4366 = vmul.f32 %v4284, %v4350
    %v4367 = vmul.f32 %v4286, %v4351
    %v4368 = vmul.f32 %v4288, %v4352
    %4369 = vrot.lane.b32.xlu0 %v187, 32
    %v4370 = vpop.permute.xlu0 %4369
    %v4373 = vsel %vm275, %v4353, 0
    %4375 = vmatprep.subr.mxu0 0.0
    %4376 = vmatpush1.msra.mxu0 0.0
    %4377 = vmatprep.subr.mxu0 0.0
    %4378 = vmatpush1.msra.mxu0 0.0
    %4379 = vmatprep.subr.mxu0 0.0
    %4380 = vmatpush1.msra.mxu0 0.0
    %4381 = vmatprep.subr.mxu0 0.0
    %4382 = vmatpush1.msra.mxu0 0.0
    %4383 = vmatprep.subr.mxu0 0.0
    %4384 = vmatpush1.msra.mxu0 0.0
    %4385 = vmatprep.subr.mxu0 0.0
    %4386 = vmatpush1.msra.mxu0 0.0
    %4387 = vmatprep.subr.mxu0 0.0
    %4388 = vmatpush1.msra.mxu0 0.0
    %4389 = vmatprep.subr.mxu0 0.0
    %4390 = vmatpush1.msra.mxu0 0.0
    %4391 = vmatprep.subr.mxu0 0.0
    %4392 = vmatpush1.msra.mxu0 0.0
    %4393 = vmatprep.subr.mxu0 0.0
    %4394 = vmatpush1.msra.mxu0 0.0
    %4395 = vmatprep.subr.mxu0 0.0
    %4396 = vmatpush1.msra.mxu0 0.0
    %4397 = vmatprep.subr.mxu0 0.0
    %4398 = vmatpush1.msra.mxu0 0.0
    %4399 = vmatprep.subr.mxu0 0.0
    %4400 = vmatpush1.msra.mxu0 0.0
    %4401 = vmatprep.subr.mxu0 0.0
    %4402 = vmatpush1.msra.mxu0 0.0
    %4403 = vmatprep.subr.mxu0 0.0
    %4404 = vmatpush1.msra.mxu0 0.0
    %4405 = vmatprep.subr.mxu0 0.0
    %4406 = vmatpush1.msra.mxu0 %v4370
    %4407 = vmatprep.subr.mxu0 0.0
    %4408 = vmatpush2.msra.mxu0 0.0
    %4409 = vmatprep.subr.mxu0 0.0
    %4410 = vmatpush2.msra.mxu0 0.0
    %4411 = vmatprep.subr.mxu0 0.0
    %4412 = vmatpush2.msra.mxu0 0.0
    %4413 = vmatprep.subr.mxu0 0.0
    %4414 = vmatpush2.msra.mxu0 0.0
    %4415 = vmatprep.subr.mxu0 0.0
    %4416 = vmatpush2.msra.mxu0 0.0
    %4417 = vmatprep.subr.mxu0 0.0
    %4418 = vmatpush2.msra.mxu0 0.0
    %4419 = vmatprep.subr.mxu0 0.0
    %4420 = vmatpush2.msra.mxu0 0.0
    %4421 = vmatprep.subr.mxu0 0.0
    %4422 = vmatpush2.msra.mxu0 0.0
    %4423 = vmatprep.subr.mxu0 0.0
    %4424 = vmatpush2.msra.mxu0 0.0
    %4425 = vmatprep.subr.mxu0 0.0
    %4426 = vmatpush2.msra.mxu0 0.0
    %4427 = vmatprep.subr.mxu0 0.0
    %4428 = vmatpush2.msra.mxu0 0.0
    %4429 = vmatprep.subr.mxu0 0.0
    %4430 = vmatpush2.msra.mxu0 0.0
    %4431 = vmatprep.subr.mxu0 0.0
    %4432 = vmatpush2.msra.mxu0 0.0
    %4433 = vmatprep.subr.mxu0 0.0
    %4434 = vmatpush2.msra.mxu0 0.0
    %4435 = vmatprep.subr.mxu0 0.0
    %4436 = vmatpush2.msra.mxu0 0.0
    %4437 = vmatprep.subr.mxu0 0.0
    %4438 = vmatpush2.msra.mxu0 0.0
    %4439 = vmatprep.mubr.f32.mxu0 0.0
    %4440 = vmatmul.mubr.f32.gmra.mxu0 %v4373
    %v4441 = vpop.f32.mrf.mxu0
    %v4442 = vadd.f32 0.0, %v4441
    %v4443 = vpop.f32.mrf.mxu0
    %4444 = vdwg.mxu0
    %4445 = vrot.lane.b32.xlu0 %v191, 32
    %v4446 = vpop.permute.xlu0 %4445
    %v4449 = vsel %vm275, %v4354, 0
    %4451 = vmatprep.subr.mxu0 0.0
    %4452 = vmatpush1.msra.mxu0 0.0
    %4453 = vmatprep.subr.mxu0 0.0
    %4454 = vmatpush1.msra.mxu0 0.0
    %4455 = vmatprep.subr.mxu0 0.0
    %4456 = vmatpush1.msra.mxu0 0.0
    %4457 = vmatprep.subr.mxu0 0.0
    %4458 = vmatpush1.msra.mxu0 0.0
    %4459 = vmatprep.subr.mxu0 0.0
    %4460 = vmatpush1.msra.mxu0 0.0
    %4461 = vmatprep.subr.mxu0 0.0
    %4462 = vmatpush1.msra.mxu0 0.0
    %4463 = vmatprep.subr.mxu0 0.0
    %4464 = vmatpush1.msra.mxu0 0.0
    %4465 = vmatprep.subr.mxu0 0.0
    %4466 = vmatpush1.msra.mxu0 0.0
    %4467 = vmatprep.subr.mxu0 0.0
    %4468 = vmatpush1.msra.mxu0 0.0
    %4469 = vmatprep.subr.mxu0 0.0
    %4470 = vmatpush1.msra.mxu0 0.0
    %4471 = vmatprep.subr.mxu0 0.0
    %4472 = vmatpush1.msra.mxu0 0.0
    %4473 = vmatprep.subr.mxu0 0.0
    %4474 = vmatpush1.msra.mxu0 0.0
    %4475 = vmatprep.subr.mxu0 0.0
    %4476 = vmatpush1.msra.mxu0 0.0
    %4477 = vmatprep.subr.mxu0 0.0
    %4478 = vmatpush1.msra.mxu0 0.0
    %4479 = vmatprep.subr.mxu0 0.0
    %4480 = vmatpush1.msra.mxu0 0.0
    %4481 = vmatprep.subr.mxu0 0.0
    %4482 = vmatpush1.msra.mxu0 %v4446
    %4483 = vmatprep.subr.mxu0 0.0
    %4484 = vmatpush2.msra.mxu0 0.0
    %4485 = vmatprep.subr.mxu0 0.0
    %4486 = vmatpush2.msra.mxu0 0.0
    %4487 = vmatprep.subr.mxu0 0.0
    %4488 = vmatpush2.msra.mxu0 0.0
    %4489 = vmatprep.subr.mxu0 0.0
    %4490 = vmatpush2.msra.mxu0 0.0
    %4491 = vmatprep.subr.mxu0 0.0
    %4492 = vmatpush2.msra.mxu0 0.0
    %4493 = vmatprep.subr.mxu0 0.0
    %4494 = vmatpush2.msra.mxu0 0.0
    %4495 = vmatprep.subr.mxu0 0.0
    %4496 = vmatpush2.msra.mxu0 0.0
    %4497 = vmatprep.subr.mxu0 0.0
    %4498 = vmatpush2.msra.mxu0 0.0
    %4499 = vmatprep.subr.mxu0 0.0
    %4500 = vmatpush2.msra.mxu0 0.0
    %4501 = vmatprep.subr.mxu0 0.0
    %4502 = vmatpush2.msra.mxu0 0.0
    %4503 = vmatprep.subr.mxu0 0.0
    %4504 = vmatpush2.msra.mxu0 0.0
    %4505 = vmatprep.subr.mxu0 0.0
    %4506 = vmatpush2.msra.mxu0 0.0
    %4507 = vmatprep.subr.mxu0 0.0
    %4508 = vmatpush2.msra.mxu0 0.0
    %4509 = vmatprep.subr.mxu0 0.0
    %4510 = vmatpush2.msra.mxu0 0.0
    %4511 = vmatprep.subr.mxu0 0.0
    %4512 = vmatpush2.msra.mxu0 0.0
    %4513 = vmatprep.subr.mxu0 0.0
    %4514 = vmatpush2.msra.mxu0 0.0
    %4515 = vmatprep.mubr.f32.mxu0 0.0
    %4516 = vmatmul.mubr.f32.gmra.mxu0 %v4449
    %v4517 = vpop.f32.mrf.mxu0
    %v4518 = vadd.f32 0.0, %v4517
    %v4519 = vpop.f32.mrf.mxu0
    %4520 = vdwg.mxu0
    %4521 = vrot.lane.b32.xlu0 %v197, 32
    %v4522 = vpop.permute.xlu0 %4521
    %v4525 = vsel %vm275, %v4355, 0
    %4527 = vmatprep.subr.mxu0 0.0
    %4528 = vmatpush1.msra.mxu0 0.0
    %4529 = vmatprep.subr.mxu0 0.0
    %4530 = vmatpush1.msra.mxu0 0.0
    %4531 = vmatprep.subr.mxu0 0.0
    %4532 = vmatpush1.msra.mxu0 0.0
    %4533 = vmatprep.subr.mxu0 0.0
    %4534 = vmatpush1.msra.mxu0 0.0
    %4535 = vmatprep.subr.mxu0 0.0
    %4536 = vmatpush1.msra.mxu0 0.0
    %4537 = vmatprep.subr.mxu0 0.0
    %4538 = vmatpush1.msra.mxu0 0.0
    %4539 = vmatprep.subr.mxu0 0.0
    %4540 = vmatpush1.msra.mxu0 0.0
    %4541 = vmatprep.subr.mxu0 0.0
    %4542 = vmatpush1.msra.mxu0 0.0
    %4543 = vmatprep.subr.mxu0 0.0
    %4544 = vmatpush1.msra.mxu0 0.0
    %4545 = vmatprep.subr.mxu0 0.0
    %4546 = vmatpush1.msra.mxu0 0.0
    %4547 = vmatprep.subr.mxu0 0.0
    %4548 = vmatpush1.msra.mxu0 0.0
    %4549 = vmatprep.subr.mxu0 0.0
    %4550 = vmatpush1.msra.mxu0 0.0
    %4551 = vmatprep.subr.mxu0 0.0
    %4552 = vmatpush1.msra.mxu0 0.0
    %4553 = vmatprep.subr.mxu0 0.0
    %4554 = vmatpush1.msra.mxu0 0.0
    %4555 = vmatprep.subr.mxu0 0.0
    %4556 = vmatpush1.msra.mxu0 0.0
    %4557 = vmatprep.subr.mxu0 0.0
    %4558 = vmatpush1.msra.mxu0 %v4522
    %4559 = vmatprep.subr.mxu0 0.0
    %4560 = vmatpush2.msra.mxu0 0.0
    %4561 = vmatprep.subr.mxu0 0.0
    %4562 = vmatpush2.msra.mxu0 0.0
    %4563 = vmatprep.subr.mxu0 0.0
    %4564 = vmatpush2.msra.mxu0 0.0
    %4565 = vmatprep.subr.mxu0 0.0
    %4566 = vmatpush2.msra.mxu0 0.0
    %4567 = vmatprep.subr.mxu0 0.0
    %4568 = vmatpush2.msra.mxu0 0.0
    %4569 = vmatprep.subr.mxu0 0.0
    %4570 = vmatpush2.msra.mxu0 0.0
    %4571 = vmatprep.subr.mxu0 0.0
    %4572 = vmatpush2.msra.mxu0 0.0
    %4573 = vmatprep.subr.mxu0 0.0
    %4574 = vmatpush2.msra.mxu0 0.0
    %4575 = vmatprep.subr.mxu0 0.0
    %4576 = vmatpush2.msra.mxu0 0.0
    %4577 = vmatprep.subr.mxu0 0.0
    %4578 = vmatpush2.msra.mxu0 0.0
    %4579 = vmatprep.subr.mxu0 0.0
    %4580 = vmatpush2.msra.mxu0 0.0
    %4581 = vmatprep.subr.mxu0 0.0
    %4582 = vmatpush2.msra.mxu0 0.0
    %4583 = vmatprep.subr.mxu0 0.0
    %4584 = vmatpush2.msra.mxu0 0.0
    %4585 = vmatprep.subr.mxu0 0.0
    %4586 = vmatpush2.msra.mxu0 0.0
    %4587 = vmatprep.subr.mxu0 0.0
    %4588 = vmatpush2.msra.mxu0 0.0
    %4589 = vmatprep.subr.mxu0 0.0
    %4590 = vmatpush2.msra.mxu0 0.0
    %4591 = vmatprep.mubr.f32.mxu0 0.0
    %4592 = vmatmul.mubr.f32.gmra.mxu0 %v4525
    %v4593 = vpop.f32.mrf.mxu0
    %v4594 = vadd.f32 0.0, %v4593
    %v4595 = vpop.f32.mrf.mxu0
    %4596 = vdwg.mxu0
    %4597 = vrot.lane.b32.xlu0 %v201, 32
    %v4598 = vpop.permute.xlu0 %4597
    %v4601 = vsel %vm275, %v4356, 0
    %4603 = vmatprep.subr.mxu0 0.0
    %4604 = vmatpush1.msra.mxu0 0.0
    %4605 = vmatprep.subr.mxu0 0.0
    %4606 = vmatpush1.msra.mxu0 0.0
    %4607 = vmatprep.subr.mxu0 0.0
    %4608 = vmatpush1.msra.mxu0 0.0
    %4609 = vmatprep.subr.mxu0 0.0
    %4610 = vmatpush1.msra.mxu0 0.0
    %4611 = vmatprep.subr.mxu0 0.0
    %4612 = vmatpush1.msra.mxu0 0.0
    %4613 = vmatprep.subr.mxu0 0.0
    %4614 = vmatpush1.msra.mxu0 0.0
    %4615 = vmatprep.subr.mxu0 0.0
    %4616 = vmatpush1.msra.mxu0 0.0
    %4617 = vmatprep.subr.mxu0 0.0
    %4618 = vmatpush1.msra.mxu0 0.0
    %4619 = vmatprep.subr.mxu0 0.0
    %4620 = vmatpush1.msra.mxu0 0.0
    %4621 = vmatprep.subr.mxu0 0.0
    %4622 = vmatpush1.msra.mxu0 0.0
    %4623 = vmatprep.subr.mxu0 0.0
    %4624 = vmatpush1.msra.mxu0 0.0
    %4625 = vmatprep.subr.mxu0 0.0
    %4626 = vmatpush1.msra.mxu0 0.0
    %4627 = vmatprep.subr.mxu0 0.0
    %4628 = vmatpush1.msra.mxu0 0.0
    %4629 = vmatprep.subr.mxu0 0.0
    %4630 = vmatpush1.msra.mxu0 0.0
    %4631 = vmatprep.subr.mxu0 0.0
    %4632 = vmatpush1.msra.mxu0 0.0
    %4633 = vmatprep.subr.mxu0 0.0
    %4634 = vmatpush1.msra.mxu0 %v4598
    %4635 = vmatprep.subr.mxu0 0.0
    %4636 = vmatpush2.msra.mxu0 0.0
    %4637 = vmatprep.subr.mxu0 0.0
    %4638 = vmatpush2.msra.mxu0 0.0
    %4639 = vmatprep.subr.mxu0 0.0
    %4640 = vmatpush2.msra.mxu0 0.0
    %4641 = vmatprep.subr.mxu0 0.0
    %4642 = vmatpush2.msra.mxu0 0.0
    %4643 = vmatprep.subr.mxu0 0.0
    %4644 = vmatpush2.msra.mxu0 0.0
    %4645 = vmatprep.subr.mxu0 0.0
    %4646 = vmatpush2.msra.mxu0 0.0
    %4647 = vmatprep.subr.mxu0 0.0
    %4648 = vmatpush2.msra.mxu0 0.0
    %4649 = vmatprep.subr.mxu0 0.0
    %4650 = vmatpush2.msra.mxu0 0.0
    %4651 = vmatprep.subr.mxu0 0.0
    %4652 = vmatpush2.msra.mxu0 0.0
    %4653 = vmatprep.subr.mxu0 0.0
    %4654 = vmatpush2.msra.mxu0 0.0
    %4655 = vmatprep.subr.mxu0 0.0
    %4656 = vmatpush2.msra.mxu0 0.0
    %4657 = vmatprep.subr.mxu0 0.0
    %4658 = vmatpush2.msra.mxu0 0.0
    %4659 = vmatprep.subr.mxu0 0.0
    %4660 = vmatpush2.msra.mxu0 0.0
    %4661 = vmatprep.subr.mxu0 0.0
    %4662 = vmatpush2.msra.mxu0 0.0
    %4663 = vmatprep.subr.mxu0 0.0
    %4664 = vmatpush2.msra.mxu0 0.0
    %4665 = vmatprep.subr.mxu0 0.0
    %4666 = vmatpush2.msra.mxu0 0.0
    %4667 = vmatprep.mubr.f32.mxu0 0.0
    %4668 = vmatmul.mubr.f32.gmra.mxu0 %v4601
    %v4669 = vpop.f32.mrf.mxu0
    %v4670 = vadd.f32 0.0, %v4669
    %v4671 = vpop.f32.mrf.mxu0
    %4672 = vdwg.mxu0
    %4673 = vrot.lane.b32.xlu0 %v207, 32
    %v4674 = vpop.permute.xlu0 %4673
    %v4677 = vsel %vm275, %v4357, 0
    %4679 = vmatprep.subr.mxu0 0.0
    %4680 = vmatpush1.msra.mxu0 0.0
    %4681 = vmatprep.subr.mxu0 0.0
    %4682 = vmatpush1.msra.mxu0 0.0
    %4683 = vmatprep.subr.mxu0 0.0
    %4684 = vmatpush1.msra.mxu0 0.0
    %4685 = vmatprep.subr.mxu0 0.0
    %4686 = vmatpush1.msra.mxu0 0.0
    %4687 = vmatprep.subr.mxu0 0.0
    %4688 = vmatpush1.msra.mxu0 0.0
    %4689 = vmatprep.subr.mxu0 0.0
    %4690 = vmatpush1.msra.mxu0 0.0
    %4691 = vmatprep.subr.mxu0 0.0
    %4692 = vmatpush1.msra.mxu0 0.0
    %4693 = vmatprep.subr.mxu0 0.0
    %4694 = vmatpush1.msra.mxu0 0.0
    %4695 = vmatprep.subr.mxu0 0.0
    %4696 = vmatpush1.msra.mxu0 0.0
    %4697 = vmatprep.subr.mxu0 0.0
    %4698 = vmatpush1.msra.mxu0 0.0
    %4699 = vmatprep.subr.mxu0 0.0
    %4700 = vmatpush1.msra.mxu0 0.0
    %4701 = vmatprep.subr.mxu0 0.0
    %4702 = vmatpush1.msra.mxu0 0.0
    %4703 = vmatprep.subr.mxu0 0.0
    %4704 = vmatpush1.msra.mxu0 0.0
    %4705 = vmatprep.subr.mxu0 0.0
    %4706 = vmatpush1.msra.mxu0 0.0
    %4707 = vmatprep.subr.mxu0 0.0
    %4708 = vmatpush1.msra.mxu0 0.0
    %4709 = vmatprep.subr.mxu0 0.0
    %4710 = vmatpush1.msra.mxu0 %v4674
    %4711 = vmatprep.subr.mxu0 0.0
    %4712 = vmatpush2.msra.mxu0 0.0
    %4713 = vmatprep.subr.mxu0 0.0
    %4714 = vmatpush2.msra.mxu0 0.0
    %4715 = vmatprep.subr.mxu0 0.0
    %4716 = vmatpush2.msra.mxu0 0.0
    %4717 = vmatprep.subr.mxu0 0.0
    %4718 = vmatpush2.msra.mxu0 0.0
    %4719 = vmatprep.subr.mxu0 0.0
    %4720 = vmatpush2.msra.mxu0 0.0
    %4721 = vmatprep.subr.mxu0 0.0
    %4722 = vmatpush2.msra.mxu0 0.0
    %4723 = vmatprep.subr.mxu0 0.0
    %4724 = vmatpush2.msra.mxu0 0.0
    %4725 = vmatprep.subr.mxu0 0.0
    %4726 = vmatpush2.msra.mxu0 0.0
    %4727 = vmatprep.subr.mxu0 0.0
    %4728 = vmatpush2.msra.mxu0 0.0
    %4729 = vmatprep.subr.mxu0 0.0
    %4730 = vmatpush2.msra.mxu0 0.0
    %4731 = vmatprep.subr.mxu0 0.0
    %4732 = vmatpush2.msra.mxu0 0.0
    %4733 = vmatprep.subr.mxu0 0.0
    %4734 = vmatpush2.msra.mxu0 0.0
    %4735 = vmatprep.subr.mxu0 0.0
    %4736 = vmatpush2.msra.mxu0 0.0
    %4737 = vmatprep.subr.mxu0 0.0
    %4738 = vmatpush2.msra.mxu0 0.0
    %4739 = vmatprep.subr.mxu0 0.0
    %4740 = vmatpush2.msra.mxu0 0.0
    %4741 = vmatprep.subr.mxu0 0.0
    %4742 = vmatpush2.msra.mxu0 0.0
    %4743 = vmatprep.mubr.f32.mxu0 0.0
    %4744 = vmatmul.mubr.f32.gmra.mxu0 %v4677
    %v4745 = vpop.f32.mrf.mxu0
    %v4746 = vadd.f32 0.0, %v4745
    %v4747 = vpop.f32.mrf.mxu0
    %4748 = vdwg.mxu0
    %4749 = vrot.lane.b32.xlu0 %v211, 32
    %v4750 = vpop.permute.xlu0 %4749
    %v4753 = vsel %vm275, %v4358, 0
    %4755 = vmatprep.subr.mxu0 0.0
    %4756 = vmatpush1.msra.mxu0 0.0
    %4757 = vmatprep.subr.mxu0 0.0
    %4758 = vmatpush1.msra.mxu0 0.0
    %4759 = vmatprep.subr.mxu0 0.0
    %4760 = vmatpush1.msra.mxu0 0.0
    %4761 = vmatprep.subr.mxu0 0.0
    %4762 = vmatpush1.msra.mxu0 0.0
    %4763 = vmatprep.subr.mxu0 0.0
    %4764 = vmatpush1.msra.mxu0 0.0
    %4765 = vmatprep.subr.mxu0 0.0
    %4766 = vmatpush1.msra.mxu0 0.0
    %4767 = vmatprep.subr.mxu0 0.0
    %4768 = vmatpush1.msra.mxu0 0.0
    %4769 = vmatprep.subr.mxu0 0.0
    %4770 = vmatpush1.msra.mxu0 0.0
    %4771 = vmatprep.subr.mxu0 0.0
    %4772 = vmatpush1.msra.mxu0 0.0
    %4773 = vmatprep.subr.mxu0 0.0
    %4774 = vmatpush1.msra.mxu0 0.0
    %4775 = vmatprep.subr.mxu0 0.0
    %4776 = vmatpush1.msra.mxu0 0.0
    %4777 = vmatprep.subr.mxu0 0.0
    %4778 = vmatpush1.msra.mxu0 0.0
    %4779 = vmatprep.subr.mxu0 0.0
    %4780 = vmatpush1.msra.mxu0 0.0
    %4781 = vmatprep.subr.mxu0 0.0
    %4782 = vmatpush1.msra.mxu0 0.0
    %4783 = vmatprep.subr.mxu0 0.0
    %4784 = vmatpush1.msra.mxu0 0.0
    %4785 = vmatprep.subr.mxu0 0.0
    %4786 = vmatpush1.msra.mxu0 %v4750
    %4787 = vmatprep.subr.mxu0 0.0
    %4788 = vmatpush2.msra.mxu0 0.0
    %4789 = vmatprep.subr.mxu0 0.0
    %4790 = vmatpush2.msra.mxu0 0.0
    %4791 = vmatprep.subr.mxu0 0.0
    %4792 = vmatpush2.msra.mxu0 0.0
    %4793 = vmatprep.subr.mxu0 0.0
    %4794 = vmatpush2.msra.mxu0 0.0
    %4795 = vmatprep.subr.mxu0 0.0
    %4796 = vmatpush2.msra.mxu0 0.0
    %4797 = vmatprep.subr.mxu0 0.0
    %4798 = vmatpush2.msra.mxu0 0.0
    %4799 = vmatprep.subr.mxu0 0.0
    %4800 = vmatpush2.msra.mxu0 0.0
    %4801 = vmatprep.subr.mxu0 0.0
    %4802 = vmatpush2.msra.mxu0 0.0
    %4803 = vmatprep.subr.mxu0 0.0
    %4804 = vmatpush2.msra.mxu0 0.0
    %4805 = vmatprep.subr.mxu0 0.0
    %4806 = vmatpush2.msra.mxu0 0.0
    %4807 = vmatprep.subr.mxu0 0.0
    %4808 = vmatpush2.msra.mxu0 0.0
    %4809 = vmatprep.subr.mxu0 0.0
    %4810 = vmatpush2.msra.mxu0 0.0
    %4811 = vmatprep.subr.mxu0 0.0
    %4812 = vmatpush2.msra.mxu0 0.0
    %4813 = vmatprep.subr.mxu0 0.0
    %4814 = vmatpush2.msra.mxu0 0.0
    %4815 = vmatprep.subr.mxu0 0.0
    %4816 = vmatpush2.msra.mxu0 0.0
    %4817 = vmatprep.subr.mxu0 0.0
    %4818 = vmatpush2.msra.mxu0 0.0
    %4819 = vmatprep.mubr.f32.mxu0 0.0
    %4820 = vmatmul.mubr.f32.gmra.mxu0 %v4753
    %v4821 = vpop.f32.mrf.mxu0
    %v4822 = vadd.f32 0.0, %v4821
    %v4823 = vpop.f32.mrf.mxu0
    %4824 = vdwg.mxu0
    %4825 = vrot.lane.b32.xlu0 %v217, 32
    %v4826 = vpop.permute.xlu0 %4825
    %v4829 = vsel %vm275, %v4359, 0
    %4831 = vmatprep.subr.mxu0 0.0
    %4832 = vmatpush1.msra.mxu0 0.0
    %4833 = vmatprep.subr.mxu0 0.0
    %4834 = vmatpush1.msra.mxu0 0.0
    %4835 = vmatprep.subr.mxu0 0.0
    %4836 = vmatpush1.msra.mxu0 0.0
    %4837 = vmatprep.subr.mxu0 0.0
    %4838 = vmatpush1.msra.mxu0 0.0
    %4839 = vmatprep.subr.mxu0 0.0
    %4840 = vmatpush1.msra.mxu0 0.0
    %4841 = vmatprep.subr.mxu0 0.0
    %4842 = vmatpush1.msra.mxu0 0.0
    %4843 = vmatprep.subr.mxu0 0.0
    %4844 = vmatpush1.msra.mxu0 0.0
    %4845 = vmatprep.subr.mxu0 0.0
    %4846 = vmatpush1.msra.mxu0 0.0
    %4847 = vmatprep.subr.mxu0 0.0
    %4848 = vmatpush1.msra.mxu0 0.0
    %4849 = vmatprep.subr.mxu0 0.0
    %4850 = vmatpush1.msra.mxu0 0.0
    %4851 = vmatprep.subr.mxu0 0.0
    %4852 = vmatpush1.msra.mxu0 0.0
    %4853 = vmatprep.subr.mxu0 0.0
    %4854 = vmatpush1.msra.mxu0 0.0
    %4855 = vmatprep.subr.mxu0 0.0
    %4856 = vmatpush1.msra.mxu0 0.0
    %4857 = vmatprep.subr.mxu0 0.0
    %4858 = vmatpush1.msra.mxu0 0.0
    %4859 = vmatprep.subr.mxu0 0.0
    %4860 = vmatpush1.msra.mxu0 0.0
    %4861 = vmatprep.subr.mxu0 0.0
    %4862 = vmatpush1.msra.mxu0 %v4826
    %4863 = vmatprep.subr.mxu0 0.0
    %4864 = vmatpush2.msra.mxu0 0.0
    %4865 = vmatprep.subr.mxu0 0.0
    %4866 = vmatpush2.msra.mxu0 0.0
    %4867 = vmatprep.subr.mxu0 0.0
    %4868 = vmatpush2.msra.mxu0 0.0
    %4869 = vmatprep.subr.mxu0 0.0
    %4870 = vmatpush2.msra.mxu0 0.0
    %4871 = vmatprep.subr.mxu0 0.0
    %4872 = vmatpush2.msra.mxu0 0.0
    %4873 = vmatprep.subr.mxu0 0.0
    %4874 = vmatpush2.msra.mxu0 0.0
    %4875 = vmatprep.subr.mxu0 0.0
    %4876 = vmatpush2.msra.mxu0 0.0
    %4877 = vmatprep.subr.mxu0 0.0
    %4878 = vmatpush2.msra.mxu0 0.0
    %4879 = vmatprep.subr.mxu0 0.0
    %4880 = vmatpush2.msra.mxu0 0.0
    %4881 = vmatprep.subr.mxu0 0.0
    %4882 = vmatpush2.msra.mxu0 0.0
    %4883 = vmatprep.subr.mxu0 0.0
    %4884 = vmatpush2.msra.mxu0 0.0
    %4885 = vmatprep.subr.mxu0 0.0
    %4886 = vmatpush2.msra.mxu0 0.0
    %4887 = vmatprep.subr.mxu0 0.0
    %4888 = vmatpush2.msra.mxu0 0.0
    %4889 = vmatprep.subr.mxu0 0.0
    %4890 = vmatpush2.msra.mxu0 0.0
    %4891 = vmatprep.subr.mxu0 0.0
    %4892 = vmatpush2.msra.mxu0 0.0
    %4893 = vmatprep.subr.mxu0 0.0
    %4894 = vmatpush2.msra.mxu0 0.0
    %4895 = vmatprep.mubr.f32.mxu0 0.0
    %4896 = vmatmul.mubr.f32.gmra.mxu0 %v4829
    %v4897 = vpop.f32.mrf.mxu0
    %v4898 = vadd.f32 0.0, %v4897
    %v4899 = vpop.f32.mrf.mxu0
    %4900 = vdwg.mxu0
    %4901 = vrot.lane.b32.xlu0 %v221, 32
    %v4902 = vpop.permute.xlu0 %4901
    %v4905 = vsel %vm275, %v4360, 0
    %4907 = vmatprep.subr.mxu0 0.0
    %4908 = vmatpush1.msra.mxu0 0.0
    %4909 = vmatprep.subr.mxu0 0.0
    %4910 = vmatpush1.msra.mxu0 0.0
    %4911 = vmatprep.subr.mxu0 0.0
    %4912 = vmatpush1.msra.mxu0 0.0
    %4913 = vmatprep.subr.mxu0 0.0
    %4914 = vmatpush1.msra.mxu0 0.0
    %4915 = vmatprep.subr.mxu0 0.0
    %4916 = vmatpush1.msra.mxu0 0.0
    %4917 = vmatprep.subr.mxu0 0.0
    %4918 = vmatpush1.msra.mxu0 0.0
    %4919 = vmatprep.subr.mxu0 0.0
    %4920 = vmatpush1.msra.mxu0 0.0
    %4921 = vmatprep.subr.mxu0 0.0
    %4922 = vmatpush1.msra.mxu0 0.0
    %4923 = vmatprep.subr.mxu0 0.0
    %4924 = vmatpush1.msra.mxu0 0.0
    %4925 = vmatprep.subr.mxu0 0.0
    %4926 = vmatpush1.msra.mxu0 0.0
    %4927 = vmatprep.subr.mxu0 0.0
    %4928 = vmatpush1.msra.mxu0 0.0
    %4929 = vmatprep.subr.mxu0 0.0
    %4930 = vmatpush1.msra.mxu0 0.0
    %4931 = vmatprep.subr.mxu0 0.0
    %4932 = vmatpush1.msra.mxu0 0.0
    %4933 = vmatprep.subr.mxu0 0.0
    %4934 = vmatpush1.msra.mxu0 0.0
    %4935 = vmatprep.subr.mxu0 0.0
    %4936 = vmatpush1.msra.mxu0 0.0
    %4937 = vmatprep.subr.mxu0 0.0
    %4938 = vmatpush1.msra.mxu0 %v4902
    %4939 = vmatprep.subr.mxu0 0.0
    %4940 = vmatpush2.msra.mxu0 0.0
    %4941 = vmatprep.subr.mxu0 0.0
    %4942 = vmatpush2.msra.mxu0 0.0
    %4943 = vmatprep.subr.mxu0 0.0
    %4944 = vmatpush2.msra.mxu0 0.0
    %4945 = vmatprep.subr.mxu0 0.0
    %4946 = vmatpush2.msra.mxu0 0.0
    %4947 = vmatprep.subr.mxu0 0.0
    %4948 = vmatpush2.msra.mxu0 0.0
    %4949 = vmatprep.subr.mxu0 0.0
    %4950 = vmatpush2.msra.mxu0 0.0
    %4951 = vmatprep.subr.mxu0 0.0
    %4952 = vmatpush2.msra.mxu0 0.0
    %4953 = vmatprep.subr.mxu0 0.0
    %4954 = vmatpush2.msra.mxu0 0.0
    %4955 = vmatprep.subr.mxu0 0.0
    %4956 = vmatpush2.msra.mxu0 0.0
    %4957 = vmatprep.subr.mxu0 0.0
    %4958 = vmatpush2.msra.mxu0 0.0
    %4959 = vmatprep.subr.mxu0 0.0
    %4960 = vmatpush2.msra.mxu0 0.0
    %4961 = vmatprep.subr.mxu0 0.0
    %4962 = vmatpush2.msra.mxu0 0.0
    %4963 = vmatprep.subr.mxu0 0.0
    %4964 = vmatpush2.msra.mxu0 0.0
    %4965 = vmatprep.subr.mxu0 0.0
    %4966 = vmatpush2.msra.mxu0 0.0
    %4967 = vmatprep.subr.mxu0 0.0
    %4968 = vmatpush2.msra.mxu0 0.0
    %4969 = vmatprep.subr.mxu0 0.0
    %4970 = vmatpush2.msra.mxu0 0.0
    %4971 = vmatprep.mubr.f32.mxu0 0.0
    %4972 = vmatmul.mubr.f32.gmra.mxu0 %v4905
    %v4973 = vpop.f32.mrf.mxu0
    %v4974 = vadd.f32 0.0, %v4973
    %v4975 = vpop.f32.mrf.mxu0
    %4976 = vdwg.mxu0
    %4977 = vrot.lane.b32.xlu0 %v227, 32
    %v4978 = vpop.permute.xlu0 %4977
    %v4981 = vsel %vm275, %v4361, 0
    %4983 = vmatprep.subr.mxu0 0.0
    %4984 = vmatpush1.msra.mxu0 0.0
    %4985 = vmatprep.subr.mxu0 0.0
    %4986 = vmatpush1.msra.mxu0 0.0
    %4987 = vmatprep.subr.mxu0 0.0
    %4988 = vmatpush1.msra.mxu0 0.0
    %4989 = vmatprep.subr.mxu0 0.0
    %4990 = vmatpush1.msra.mxu0 0.0
    %4991 = vmatprep.subr.mxu0 0.0
    %4992 = vmatpush1.msra.mxu0 0.0
    %4993 = vmatprep.subr.mxu0 0.0
    %4994 = vmatpush1.msra.mxu0 0.0
    %4995 = vmatprep.subr.mxu0 0.0
    %4996 = vmatpush1.msra.mxu0 0.0
    %4997 = vmatprep.subr.mxu0 0.0
    %4998 = vmatpush1.msra.mxu0 0.0
    %4999 = vmatprep.subr.mxu0 0.0
    %5000 = vmatpush1.msra.mxu0 0.0
    %5001 = vmatprep.subr.mxu0 0.0
    %5002 = vmatpush1.msra.mxu0 0.0
    %5003 = vmatprep.subr.mxu0 0.0
    %5004 = vmatpush1.msra.mxu0 0.0
    %5005 = vmatprep.subr.mxu0 0.0
    %5006 = vmatpush1.msra.mxu0 0.0
    %5007 = vmatprep.subr.mxu0 0.0
    %5008 = vmatpush1.msra.mxu0 0.0
    %5009 = vmatprep.subr.mxu0 0.0
    %5010 = vmatpush1.msra.mxu0 0.0
    %5011 = vmatprep.subr.mxu0 0.0
    %5012 = vmatpush1.msra.mxu0 0.0
    %5013 = vmatprep.subr.mxu0 0.0
    %5014 = vmatpush1.msra.mxu0 %v4978
    %5015 = vmatprep.subr.mxu0 0.0
    %5016 = vmatpush2.msra.mxu0 0.0
    %5017 = vmatprep.subr.mxu0 0.0
    %5018 = vmatpush2.msra.mxu0 0.0
    %5019 = vmatprep.subr.mxu0 0.0
    %5020 = vmatpush2.msra.mxu0 0.0
    %5021 = vmatprep.subr.mxu0 0.0
    %5022 = vmatpush2.msra.mxu0 0.0
    %5023 = vmatprep.subr.mxu0 0.0
    %5024 = vmatpush2.msra.mxu0 0.0
    %5025 = vmatprep.subr.mxu0 0.0
    %5026 = vmatpush2.msra.mxu0 0.0
    %5027 = vmatprep.subr.mxu0 0.0
    %5028 = vmatpush2.msra.mxu0 0.0
    %5029 = vmatprep.subr.mxu0 0.0
    %5030 = vmatpush2.msra.mxu0 0.0
    %5031 = vmatprep.subr.mxu0 0.0
    %5032 = vmatpush2.msra.mxu0 0.0
    %5033 = vmatprep.subr.mxu0 0.0
    %5034 = vmatpush2.msra.mxu0 0.0
    %5035 = vmatprep.subr.mxu0 0.0
    %5036 = vmatpush2.msra.mxu0 0.0
    %5037 = vmatprep.subr.mxu0 0.0
    %5038 = vmatpush2.msra.mxu0 0.0
    %5039 = vmatprep.subr.mxu0 0.0
    %5040 = vmatpush2.msra.mxu0 0.0
    %5041 = vmatprep.subr.mxu0 0.0
    %5042 = vmatpush2.msra.mxu0 0.0
    %5043 = vmatprep.subr.mxu0 0.0
    %5044 = vmatpush2.msra.mxu0 0.0
    %5045 = vmatprep.subr.mxu0 0.0
    %5046 = vmatpush2.msra.mxu0 0.0
    %5047 = vmatprep.mubr.f32.mxu0 0.0
    %5048 = vmatmul.mubr.f32.gmra.mxu0 %v4981
    %v5049 = vpop.f32.mrf.mxu0
    %v5050 = vadd.f32 0.0, %v5049
    %v5051 = vpop.f32.mrf.mxu0
    %5052 = vdwg.mxu0
    %5053 = vrot.lane.b32.xlu0 %v231, 32
    %v5054 = vpop.permute.xlu0 %5053
    %v5057 = vsel %vm275, %v4362, 0
    %5059 = vmatprep.subr.mxu0 0.0
    %5060 = vmatpush1.msra.mxu0 0.0
    %5061 = vmatprep.subr.mxu0 0.0
    %5062 = vmatpush1.msra.mxu0 0.0
    %5063 = vmatprep.subr.mxu0 0.0
    %5064 = vmatpush1.msra.mxu0 0.0
    %5065 = vmatprep.subr.mxu0 0.0
    %5066 = vmatpush1.msra.mxu0 0.0
    %5067 = vmatprep.subr.mxu0 0.0
    %5068 = vmatpush1.msra.mxu0 0.0
    %5069 = vmatprep.subr.mxu0 0.0
    %5070 = vmatpush1.msra.mxu0 0.0
    %5071 = vmatprep.subr.mxu0 0.0
    %5072 = vmatpush1.msra.mxu0 0.0
    %5073 = vmatprep.subr.mxu0 0.0
    %5074 = vmatpush1.msra.mxu0 0.0
    %5075 = vmatprep.subr.mxu0 0.0
    %5076 = vmatpush1.msra.mxu0 0.0
    %5077 = vmatprep.subr.mxu0 0.0
    %5078 = vmatpush1.msra.mxu0 0.0
    %5079 = vmatprep.subr.mxu0 0.0
    %5080 = vmatpush1.msra.mxu0 0.0
    %5081 = vmatprep.subr.mxu0 0.0
    %5082 = vmatpush1.msra.mxu0 0.0
    %5083 = vmatprep.subr.mxu0 0.0
    %5084 = vmatpush1.msra.mxu0 0.0
    %5085 = vmatprep.subr.mxu0 0.0
    %5086 = vmatpush1.msra.mxu0 0.0
    %5087 = vmatprep.subr.mxu0 0.0
    %5088 = vmatpush1.msra.mxu0 0.0
    %5089 = vmatprep.subr.mxu0 0.0
    %5090 = vmatpush1.msra.mxu0 %v5054
    %5091 = vmatprep.subr.mxu0 0.0
    %5092 = vmatpush2.msra.mxu0 0.0
    %5093 = vmatprep.subr.mxu0 0.0
    %5094 = vmatpush2.msra.mxu0 0.0
    %5095 = vmatprep.subr.mxu0 0.0
    %5096 = vmatpush2.msra.mxu0 0.0
    %5097 = vmatprep.subr.mxu0 0.0
    %5098 = vmatpush2.msra.mxu0 0.0
    %5099 = vmatprep.subr.mxu0 0.0
    %5100 = vmatpush2.msra.mxu0 0.0
    %5101 = vmatprep.subr.mxu0 0.0
    %5102 = vmatpush2.msra.mxu0 0.0
    %5103 = vmatprep.subr.mxu0 0.0
    %5104 = vmatpush2.msra.mxu0 0.0
    %5105 = vmatprep.subr.mxu0 0.0
    %5106 = vmatpush2.msra.mxu0 0.0
    %5107 = vmatprep.subr.mxu0 0.0
    %5108 = vmatpush2.msra.mxu0 0.0
    %5109 = vmatprep.subr.mxu0 0.0
    %5110 = vmatpush2.msra.mxu0 0.0
    %5111 = vmatprep.subr.mxu0 0.0
    %5112 = vmatpush2.msra.mxu0 0.0
    %5113 = vmatprep.subr.mxu0 0.0
    %5114 = vmatpush2.msra.mxu0 0.0
    %5115 = vmatprep.subr.mxu0 0.0
    %5116 = vmatpush2.msra.mxu0 0.0
    %5117 = vmatprep.subr.mxu0 0.0
    %5118 = vmatpush2.msra.mxu0 0.0
    %5119 = vmatprep.subr.mxu0 0.0
    %5120 = vmatpush2.msra.mxu0 0.0
    %5121 = vmatprep.subr.mxu0 0.0
    %5122 = vmatpush2.msra.mxu0 0.0
    %5123 = vmatprep.mubr.f32.mxu0 0.0
    %5124 = vmatmul.mubr.f32.gmra.mxu0 %v5057
    %v5125 = vpop.f32.mrf.mxu0
    %v5126 = vadd.f32 0.0, %v5125
    %v5127 = vpop.f32.mrf.mxu0
    %5128 = vdwg.mxu0
    %5129 = vrot.lane.b32.xlu0 %v237, 32
    %v5130 = vpop.permute.xlu0 %5129
    %v5133 = vsel %vm275, %v4363, 0
    %5135 = vmatprep.subr.mxu0 0.0
    %5136 = vmatpush1.msra.mxu0 0.0
    %5137 = vmatprep.subr.mxu0 0.0
    %5138 = vmatpush1.msra.mxu0 0.0
    %5139 = vmatprep.subr.mxu0 0.0
    %5140 = vmatpush1.msra.mxu0 0.0
    %5141 = vmatprep.subr.mxu0 0.0
    %5142 = vmatpush1.msra.mxu0 0.0
    %5143 = vmatprep.subr.mxu0 0.0
    %5144 = vmatpush1.msra.mxu0 0.0
    %5145 = vmatprep.subr.mxu0 0.0
    %5146 = vmatpush1.msra.mxu0 0.0
    %5147 = vmatprep.subr.mxu0 0.0
    %5148 = vmatpush1.msra.mxu0 0.0
    %5149 = vmatprep.subr.mxu0 0.0
    %5150 = vmatpush1.msra.mxu0 0.0
    %5151 = vmatprep.subr.mxu0 0.0
    %5152 = vmatpush1.msra.mxu0 0.0
    %5153 = vmatprep.subr.mxu0 0.0
    %5154 = vmatpush1.msra.mxu0 0.0
    %5155 = vmatprep.subr.mxu0 0.0
    %5156 = vmatpush1.msra.mxu0 0.0
    %5157 = vmatprep.subr.mxu0 0.0
    %5158 = vmatpush1.msra.mxu0 0.0
    %5159 = vmatprep.subr.mxu0 0.0
    %5160 = vmatpush1.msra.mxu0 0.0
    %5161 = vmatprep.subr.mxu0 0.0
    %5162 = vmatpush1.msra.mxu0 0.0
    %5163 = vmatprep.subr.mxu0 0.0
    %5164 = vmatpush1.msra.mxu0 0.0
    %5165 = vmatprep.subr.mxu0 0.0
    %5166 = vmatpush1.msra.mxu0 %v5130
    %5167 = vmatprep.subr.mxu0 0.0
    %5168 = vmatpush2.msra.mxu0 0.0
    %5169 = vmatprep.subr.mxu0 0.0
    %5170 = vmatpush2.msra.mxu0 0.0
    %5171 = vmatprep.subr.mxu0 0.0
    %5172 = vmatpush2.msra.mxu0 0.0
    %5173 = vmatprep.subr.mxu0 0.0
    %5174 = vmatpush2.msra.mxu0 0.0
    %5175 = vmatprep.subr.mxu0 0.0
    %5176 = vmatpush2.msra.mxu0 0.0
    %5177 = vmatprep.subr.mxu0 0.0
    %5178 = vmatpush2.msra.mxu0 0.0
    %5179 = vmatprep.subr.mxu0 0.0
    %5180 = vmatpush2.msra.mxu0 0.0
    %5181 = vmatprep.subr.mxu0 0.0
    %5182 = vmatpush2.msra.mxu0 0.0
    %5183 = vmatprep.subr.mxu0 0.0
    %5184 = vmatpush2.msra.mxu0 0.0
    %5185 = vmatprep.subr.mxu0 0.0
    %5186 = vmatpush2.msra.mxu0 0.0
    %5187 = vmatprep.subr.mxu0 0.0
    %5188 = vmatpush2.msra.mxu0 0.0
    %5189 = vmatprep.subr.mxu0 0.0
    %5190 = vmatpush2.msra.mxu0 0.0
    %5191 = vmatprep.subr.mxu0 0.0
    %5192 = vmatpush2.msra.mxu0 0.0
    %5193 = vmatprep.subr.mxu0 0.0
    %5194 = vmatpush2.msra.mxu0 0.0
    %5195 = vmatprep.subr.mxu0 0.0
    %5196 = vmatpush2.msra.mxu0 0.0
    %5197 = vmatprep.subr.mxu0 0.0
    %5198 = vmatpush2.msra.mxu0 0.0
    %5199 = vmatprep.mubr.f32.mxu0 0.0
    %5200 = vmatmul.mubr.f32.gmra.mxu0 %v5133
    %v5201 = vpop.f32.mrf.mxu0
    %v5202 = vadd.f32 0.0, %v5201
    %v5203 = vpop.f32.mrf.mxu0
    %5204 = vdwg.mxu0
    %5205 = vrot.lane.b32.xlu0 %v241, 32
    %v5206 = vpop.permute.xlu0 %5205
    %v5209 = vsel %vm275, %v4364, 0
    %5211 = vmatprep.subr.mxu0 0.0
    %5212 = vmatpush1.msra.mxu0 0.0
    %5213 = vmatprep.subr.mxu0 0.0
    %5214 = vmatpush1.msra.mxu0 0.0
    %5215 = vmatprep.subr.mxu0 0.0
    %5216 = vmatpush1.msra.mxu0 0.0
    %5217 = vmatprep.subr.mxu0 0.0
    %5218 = vmatpush1.msra.mxu0 0.0
    %5219 = vmatprep.subr.mxu0 0.0
    %5220 = vmatpush1.msra.mxu0 0.0
    %5221 = vmatprep.subr.mxu0 0.0
    %5222 = vmatpush1.msra.mxu0 0.0
    %5223 = vmatprep.subr.mxu0 0.0
    %5224 = vmatpush1.msra.mxu0 0.0
    %5225 = vmatprep.subr.mxu0 0.0
    %5226 = vmatpush1.msra.mxu0 0.0
    %5227 = vmatprep.subr.mxu0 0.0
    %5228 = vmatpush1.msra.mxu0 0.0
    %5229 = vmatprep.subr.mxu0 0.0
    %5230 = vmatpush1.msra.mxu0 0.0
    %5231 = vmatprep.subr.mxu0 0.0
    %5232 = vmatpush1.msra.mxu0 0.0
    %5233 = vmatprep.subr.mxu0 0.0
    %5234 = vmatpush1.msra.mxu0 0.0
    %5235 = vmatprep.subr.mxu0 0.0
    %5236 = vmatpush1.msra.mxu0 0.0
    %5237 = vmatprep.subr.mxu0 0.0
    %5238 = vmatpush1.msra.mxu0 0.0
    %5239 = vmatprep.subr.mxu0 0.0
    %5240 = vmatpush1.msra.mxu0 0.0
    %5241 = vmatprep.subr.mxu0 0.0
    %5242 = vmatpush1.msra.mxu0 %v5206
    %5243 = vmatprep.subr.mxu0 0.0
    %5244 = vmatpush2.msra.mxu0 0.0
    %5245 = vmatprep.subr.mxu0 0.0
    %5246 = vmatpush2.msra.mxu0 0.0
    %5247 = vmatprep.subr.mxu0 0.0
    %5248 = vmatpush2.msra.mxu0 0.0
    %5249 = vmatprep.subr.mxu0 0.0
    %5250 = vmatpush2.msra.mxu0 0.0
    %5251 = vmatprep.subr.mxu0 0.0
    %5252 = vmatpush2.msra.mxu0 0.0
    %5253 = vmatprep.subr.mxu0 0.0
    %5254 = vmatpush2.msra.mxu0 0.0
    %5255 = vmatprep.subr.mxu0 0.0
    %5256 = vmatpush2.msra.mxu0 0.0
    %5257 = vmatprep.subr.mxu0 0.0
    %5258 = vmatpush2.msra.mxu0 0.0
    %5259 = vmatprep.subr.mxu0 0.0
    %5260 = vmatpush2.msra.mxu0 0.0
    %5261 = vmatprep.subr.mxu0 0.0
    %5262 = vmatpush2.msra.mxu0 0.0
    %5263 = vmatprep.subr.mxu0 0.0
    %5264 = vmatpush2.msra.mxu0 0.0
    %5265 = vmatprep.subr.mxu0 0.0
    %5266 = vmatpush2.msra.mxu0 0.0
    %5267 = vmatprep.subr.mxu0 0.0
    %5268 = vmatpush2.msra.mxu0 0.0
    %5269 = vmatprep.subr.mxu0 0.0
    %5270 = vmatpush2.msra.mxu0 0.0
    %5271 = vmatprep.subr.mxu0 0.0
    %5272 = vmatpush2.msra.mxu0 0.0
    %5273 = vmatprep.subr.mxu0 0.0
    %5274 = vmatpush2.msra.mxu0 0.0
    %5275 = vmatprep.mubr.f32.mxu0 0.0
    %5276 = vmatmul.mubr.f32.gmra.mxu0 %v5209
    %v5277 = vpop.f32.mrf.mxu0
    %v5278 = vadd.f32 0.0, %v5277
    %v5279 = vpop.f32.mrf.mxu0
    %5280 = vdwg.mxu0
    %5281 = vrot.lane.b32.xlu0 %v247, 32
    %v5282 = vpop.permute.xlu0 %5281
    %v5285 = vsel %vm275, %v4365, 0
    %5287 = vmatprep.subr.mxu0 0.0
    %5288 = vmatpush1.msra.mxu0 0.0
    %5289 = vmatprep.subr.mxu0 0.0
    %5290 = vmatpush1.msra.mxu0 0.0
    %5291 = vmatprep.subr.mxu0 0.0
    %5292 = vmatpush1.msra.mxu0 0.0
    %5293 = vmatprep.subr.mxu0 0.0
    %5294 = vmatpush1.msra.mxu0 0.0
    %5295 = vmatprep.subr.mxu0 0.0
    %5296 = vmatpush1.msra.mxu0 0.0
    %5297 = vmatprep.subr.mxu0 0.0
    %5298 = vmatpush1.msra.mxu0 0.0
    %5299 = vmatprep.subr.mxu0 0.0
    %5300 = vmatpush1.msra.mxu0 0.0
    %5301 = vmatprep.subr.mxu0 0.0
    %5302 = vmatpush1.msra.mxu0 0.0
    %5303 = vmatprep.subr.mxu0 0.0
    %5304 = vmatpush1.msra.mxu0 0.0
    %5305 = vmatprep.subr.mxu0 0.0
    %5306 = vmatpush1.msra.mxu0 0.0
    %5307 = vmatprep.subr.mxu0 0.0
    %5308 = vmatpush1.msra.mxu0 0.0
    %5309 = vmatprep.subr.mxu0 0.0
    %5310 = vmatpush1.msra.mxu0 0.0
    %5311 = vmatprep.subr.mxu0 0.0
    %5312 = vmatpush1.msra.mxu0 0.0
    %5313 = vmatprep.subr.mxu0 0.0
    %5314 = vmatpush1.msra.mxu0 0.0
    %5315 = vmatprep.subr.mxu0 0.0
    %5316 = vmatpush1.msra.mxu0 0.0
    %5317 = vmatprep.subr.mxu0 0.0
    %5318 = vmatpush1.msra.mxu0 %v5282
    %5319 = vmatprep.subr.mxu0 0.0
    %5320 = vmatpush2.msra.mxu0 0.0
    %5321 = vmatprep.subr.mxu0 0.0
    %5322 = vmatpush2.msra.mxu0 0.0
    %5323 = vmatprep.subr.mxu0 0.0
    %5324 = vmatpush2.msra.mxu0 0.0
    %5325 = vmatprep.subr.mxu0 0.0
    %5326 = vmatpush2.msra.mxu0 0.0
    %5327 = vmatprep.subr.mxu0 0.0
    %5328 = vmatpush2.msra.mxu0 0.0
    %5329 = vmatprep.subr.mxu0 0.0
    %5330 = vmatpush2.msra.mxu0 0.0
    %5331 = vmatprep.subr.mxu0 0.0
    %5332 = vmatpush2.msra.mxu0 0.0
    %5333 = vmatprep.subr.mxu0 0.0
    %5334 = vmatpush2.msra.mxu0 0.0
    %5335 = vmatprep.subr.mxu0 0.0
    %5336 = vmatpush2.msra.mxu0 0.0
    %5337 = vmatprep.subr.mxu0 0.0
    %5338 = vmatpush2.msra.mxu0 0.0
    %5339 = vmatprep.subr.mxu0 0.0
    %5340 = vmatpush2.msra.mxu0 0.0
    %5341 = vmatprep.subr.mxu0 0.0
    %5342 = vmatpush2.msra.mxu0 0.0
    %5343 = vmatprep.subr.mxu0 0.0
    %5344 = vmatpush2.msra.mxu0 0.0
    %5345 = vmatprep.subr.mxu0 0.0
    %5346 = vmatpush2.msra.mxu0 0.0
    %5347 = vmatprep.subr.mxu0 0.0
    %5348 = vmatpush2.msra.mxu0 0.0
    %5349 = vmatprep.subr.mxu0 0.0
    %5350 = vmatpush2.msra.mxu0 0.0
    %5351 = vmatprep.mubr.f32.mxu0 0.0
    %5352 = vmatmul.mubr.f32.gmra.mxu0 %v5285
    %v5353 = vpop.f32.mrf.mxu0
    %v5354 = vadd.f32 0.0, %v5353
    %v5355 = vpop.f32.mrf.mxu0
    %5356 = vdwg.mxu0
    %5357 = vrot.lane.b32.xlu0 %v251, 32
    %v5358 = vpop.permute.xlu0 %5357
    %v5361 = vsel %vm275, %v4366, 0
    %5363 = vmatprep.subr.mxu0 0.0
    %5364 = vmatpush1.msra.mxu0 0.0
    %5365 = vmatprep.subr.mxu0 0.0
    %5366 = vmatpush1.msra.mxu0 0.0
    %5367 = vmatprep.subr.mxu0 0.0
    %5368 = vmatpush1.msra.mxu0 0.0
    %5369 = vmatprep.subr.mxu0 0.0
    %5370 = vmatpush1.msra.mxu0 0.0
    %5371 = vmatprep.subr.mxu0 0.0
    %5372 = vmatpush1.msra.mxu0 0.0
    %5373 = vmatprep.subr.mxu0 0.0
    %5374 = vmatpush1.msra.mxu0 0.0
    %5375 = vmatprep.subr.mxu0 0.0
    %5376 = vmatpush1.msra.mxu0 0.0
    %5377 = vmatprep.subr.mxu0 0.0
    %5378 = vmatpush1.msra.mxu0 0.0
    %5379 = vmatprep.subr.mxu0 0.0
    %5380 = vmatpush1.msra.mxu0 0.0
    %5381 = vmatprep.subr.mxu0 0.0
    %5382 = vmatpush1.msra.mxu0 0.0
    %5383 = vmatprep.subr.mxu0 0.0
    %5384 = vmatpush1.msra.mxu0 0.0
    %5385 = vmatprep.subr.mxu0 0.0
    %5386 = vmatpush1.msra.mxu0 0.0
    %5387 = vmatprep.subr.mxu0 0.0
    %5388 = vmatpush1.msra.mxu0 0.0
    %5389 = vmatprep.subr.mxu0 0.0
    %5390 = vmatpush1.msra.mxu0 0.0
    %5391 = vmatprep.subr.mxu0 0.0
    %5392 = vmatpush1.msra.mxu0 0.0
    %5393 = vmatprep.subr.mxu0 0.0
    %5394 = vmatpush1.msra.mxu0 %v5358
    %5395 = vmatprep.subr.mxu0 0.0
    %5396 = vmatpush2.msra.mxu0 0.0
    %5397 = vmatprep.subr.mxu0 0.0
    %5398 = vmatpush2.msra.mxu0 0.0
    %5399 = vmatprep.subr.mxu0 0.0
    %5400 = vmatpush2.msra.mxu0 0.0
    %5401 = vmatprep.subr.mxu0 0.0
    %5402 = vmatpush2.msra.mxu0 0.0
    %5403 = vmatprep.subr.mxu0 0.0
    %5404 = vmatpush2.msra.mxu0 0.0
    %5405 = vmatprep.subr.mxu0 0.0
    %5406 = vmatpush2.msra.mxu0 0.0
    %5407 = vmatprep.subr.mxu0 0.0
    %5408 = vmatpush2.msra.mxu0 0.0
    %5409 = vmatprep.subr.mxu0 0.0
    %5410 = vmatpush2.msra.mxu0 0.0
    %5411 = vmatprep.subr.mxu0 0.0
    %5412 = vmatpush2.msra.mxu0 0.0
    %5413 = vmatprep.subr.mxu0 0.0
    %5414 = vmatpush2.msra.mxu0 0.0
    %5415 = vmatprep.subr.mxu0 0.0
    %5416 = vmatpush2.msra.mxu0 0.0
    %5417 = vmatprep.subr.mxu0 0.0
    %5418 = vmatpush2.msra.mxu0 0.0
    %5419 = vmatprep.subr.mxu0 0.0
    %5420 = vmatpush2.msra.mxu0 0.0
    %5421 = vmatprep.subr.mxu0 0.0
    %5422 = vmatpush2.msra.mxu0 0.0
    %5423 = vmatprep.subr.mxu0 0.0
    %5424 = vmatpush2.msra.mxu0 0.0
    %5425 = vmatprep.subr.mxu0 0.0
    %5426 = vmatpush2.msra.mxu0 0.0
    %5427 = vmatprep.mubr.f32.mxu0 0.0
    %5428 = vmatmul.mubr.f32.gmra.mxu0 %v5361
    %v5429 = vpop.f32.mrf.mxu0
    %v5430 = vadd.f32 0.0, %v5429
    %v5431 = vpop.f32.mrf.mxu0
    %5432 = vdwg.mxu0
    %5433 = vrot.lane.b32.xlu0 %v257, 32
    %v5434 = vpop.permute.xlu0 %5433
    %v5437 = vsel %vm275, %v4367, 0
    %5439 = vmatprep.subr.mxu0 0.0
    %5440 = vmatpush1.msra.mxu0 0.0
    %5441 = vmatprep.subr.mxu0 0.0
    %5442 = vmatpush1.msra.mxu0 0.0
    %5443 = vmatprep.subr.mxu0 0.0
    %5444 = vmatpush1.msra.mxu0 0.0
    %5445 = vmatprep.subr.mxu0 0.0
    %5446 = vmatpush1.msra.mxu0 0.0
    %5447 = vmatprep.subr.mxu0 0.0
    %5448 = vmatpush1.msra.mxu0 0.0
    %5449 = vmatprep.subr.mxu0 0.0
    %5450 = vmatpush1.msra.mxu0 0.0
    %5451 = vmatprep.subr.mxu0 0.0
    %5452 = vmatpush1.msra.mxu0 0.0
    %5453 = vmatprep.subr.mxu0 0.0
    %5454 = vmatpush1.msra.mxu0 0.0
    %5455 = vmatprep.subr.mxu0 0.0
    %5456 = vmatpush1.msra.mxu0 0.0
    %5457 = vmatprep.subr.mxu0 0.0
    %5458 = vmatpush1.msra.mxu0 0.0
    %5459 = vmatprep.subr.mxu0 0.0
    %5460 = vmatpush1.msra.mxu0 0.0
    %5461 = vmatprep.subr.mxu0 0.0
    %5462 = vmatpush1.msra.mxu0 0.0
    %5463 = vmatprep.subr.mxu0 0.0
    %5464 = vmatpush1.msra.mxu0 0.0
    %5465 = vmatprep.subr.mxu0 0.0
    %5466 = vmatpush1.msra.mxu0 0.0
    %5467 = vmatprep.subr.mxu0 0.0
    %5468 = vmatpush1.msra.mxu0 0.0
    %5469 = vmatprep.subr.mxu0 0.0
    %5470 = vmatpush1.msra.mxu0 %v5434
    %5471 = vmatprep.subr.mxu0 0.0
    %5472 = vmatpush2.msra.mxu0 0.0
    %5473 = vmatprep.subr.mxu0 0.0
    %5474 = vmatpush2.msra.mxu0 0.0
    %5475 = vmatprep.subr.mxu0 0.0
    %5476 = vmatpush2.msra.mxu0 0.0
    %5477 = vmatprep.subr.mxu0 0.0
    %5478 = vmatpush2.msra.mxu0 0.0
    %5479 = vmatprep.subr.mxu0 0.0
    %5480 = vmatpush2.msra.mxu0 0.0
    %5481 = vmatprep.subr.mxu0 0.0
    %5482 = vmatpush2.msra.mxu0 0.0
    %5483 = vmatprep.subr.mxu0 0.0
    %5484 = vmatpush2.msra.mxu0 0.0
    %5485 = vmatprep.subr.mxu0 0.0
    %5486 = vmatpush2.msra.mxu0 0.0
    %5487 = vmatprep.subr.mxu0 0.0
    %5488 = vmatpush2.msra.mxu0 0.0
    %5489 = vmatprep.subr.mxu0 0.0
    %5490 = vmatpush2.msra.mxu0 0.0
    %5491 = vmatprep.subr.mxu0 0.0
    %5492 = vmatpush2.msra.mxu0 0.0
    %5493 = vmatprep.subr.mxu0 0.0
    %5494 = vmatpush2.msra.mxu0 0.0
    %5495 = vmatprep.subr.mxu0 0.0
    %5496 = vmatpush2.msra.mxu0 0.0
    %5497 = vmatprep.subr.mxu0 0.0
    %5498 = vmatpush2.msra.mxu0 0.0
    %5499 = vmatprep.subr.mxu0 0.0
    %5500 = vmatpush2.msra.mxu0 0.0
    %5501 = vmatprep.subr.mxu0 0.0
    %5502 = vmatpush2.msra.mxu0 0.0
    %5503 = vmatprep.mubr.f32.mxu0 0.0
    %5504 = vmatmul.mubr.f32.gmra.mxu0 %v5437
    %v5505 = vpop.f32.mrf.mxu0
    %v5506 = vadd.f32 0.0, %v5505
    %v5507 = vpop.f32.mrf.mxu0
    %5508 = vdwg.mxu0
    %5509 = vrot.lane.b32.xlu0 %v261, 32
    %v5510 = vpop.permute.xlu0 %5509
    %v5513 = vsel %vm275, %v4368, 0
    %5515 = vmatprep.subr.mxu0 0.0
    %5516 = vmatpush1.msra.mxu0 0.0
    %5517 = vmatprep.subr.mxu0 0.0
    %5518 = vmatpush1.msra.mxu0 0.0
    %5519 = vmatprep.subr.mxu0 0.0
    %5520 = vmatpush1.msra.mxu0 0.0
    %5521 = vmatprep.subr.mxu0 0.0
    %5522 = vmatpush1.msra.mxu0 0.0
    %5523 = vmatprep.subr.mxu0 0.0
    %5524 = vmatpush1.msra.mxu0 0.0
    %5525 = vmatprep.subr.mxu0 0.0
    %5526 = vmatpush1.msra.mxu0 0.0
    %5527 = vmatprep.subr.mxu0 0.0
    %5528 = vmatpush1.msra.mxu0 0.0
    %5529 = vmatprep.subr.mxu0 0.0
    %5530 = vmatpush1.msra.mxu0 0.0
    %5531 = vmatprep.subr.mxu0 0.0
    %5532 = vmatpush1.msra.mxu0 0.0
    %5533 = vmatprep.subr.mxu0 0.0
    %5534 = vmatpush1.msra.mxu0 0.0
    %5535 = vmatprep.subr.mxu0 0.0
    %5536 = vmatpush1.msra.mxu0 0.0
    %5537 = vmatprep.subr.mxu0 0.0
    %5538 = vmatpush1.msra.mxu0 0.0
    %5539 = vmatprep.subr.mxu0 0.0
    %5540 = vmatpush1.msra.mxu0 0.0
    %5541 = vmatprep.subr.mxu0 0.0
    %5542 = vmatpush1.msra.mxu0 0.0
    %5543 = vmatprep.subr.mxu0 0.0
    %5544 = vmatpush1.msra.mxu0 0.0
    %5545 = vmatprep.subr.mxu0 0.0
    %5546 = vmatpush1.msra.mxu0 %v5510
    %5547 = vmatprep.subr.mxu0 0.0
    %5548 = vmatpush2.msra.mxu0 0.0
    %5549 = vmatprep.subr.mxu0 0.0
    %5550 = vmatpush2.msra.mxu0 0.0
    %5551 = vmatprep.subr.mxu0 0.0
    %5552 = vmatpush2.msra.mxu0 0.0
    %5553 = vmatprep.subr.mxu0 0.0
    %5554 = vmatpush2.msra.mxu0 0.0
    %5555 = vmatprep.subr.mxu0 0.0
    %5556 = vmatpush2.msra.mxu0 0.0
    %5557 = vmatprep.subr.mxu0 0.0
    %5558 = vmatpush2.msra.mxu0 0.0
    %5559 = vmatprep.subr.mxu0 0.0
    %5560 = vmatpush2.msra.mxu0 0.0
    %5561 = vmatprep.subr.mxu0 0.0
    %5562 = vmatpush2.msra.mxu0 0.0
    %5563 = vmatprep.subr.mxu0 0.0
    %5564 = vmatpush2.msra.mxu0 0.0
    %5565 = vmatprep.subr.mxu0 0.0
    %5566 = vmatpush2.msra.mxu0 0.0
    %5567 = vmatprep.subr.mxu0 0.0
    %5568 = vmatpush2.msra.mxu0 0.0
    %5569 = vmatprep.subr.mxu0 0.0
    %5570 = vmatpush2.msra.mxu0 0.0
    %5571 = vmatprep.subr.mxu0 0.0
    %5572 = vmatpush2.msra.mxu0 0.0
    %5573 = vmatprep.subr.mxu0 0.0
    %5574 = vmatpush2.msra.mxu0 0.0
    %5575 = vmatprep.subr.mxu0 0.0
    %5576 = vmatpush2.msra.mxu0 0.0
    %5577 = vmatprep.subr.mxu0 0.0
    %5578 = vmatpush2.msra.mxu0 0.0
    %5579 = vmatprep.mubr.f32.mxu0 0.0
    %5580 = vmatmul.mubr.f32.gmra.mxu0 %v5513
    %v5581 = vpop.f32.mrf.mxu0
    %v5582 = vadd.f32 0.0, %v5581
    %v5583 = vpop.f32.mrf.mxu0
    %5584 = vdwg.mxu0
    %v5585 = vadd.f32 %v2913, %v4442
    %v5586 = vadd.f32 %v2914, %v4518
    %v5587 = vadd.f32 %v2915, %v4594
    %v5588 = vadd.f32 %v2916, %v4670
    %v5589 = vadd.f32 %v2917, %v4746
    %v5590 = vadd.f32 %v2918, %v4822
    %v5591 = vadd.f32 %v2919, %v4898
    %v5592 = vadd.f32 %v2920, %v4974
    %v5593 = vadd.f32 %v2921, %v5050
    %v5594 = vadd.f32 %v2922, %v5126
    %v5595 = vadd.f32 %v2923, %v5202
    %v5596 = vadd.f32 %v2924, %v5278
    %v5597 = vadd.f32 %v2925, %v5354
    %v5598 = vadd.f32 %v2926, %v5430
    %v5599 = vadd.f32 %v2927, %v5506
    %v5600 = vadd.f32 %v2928, %v5582
    %5601 = vrot.lane.b32.xlu0 %v187, 112
    %v5602 = vpop.permute.xlu0 %5601
    %5603 = vrot.lane.b32.xlu0 %v187, 80
    %v5604 = vpop.permute.xlu0 %5603
    %v5605 = vsel %vm275, %v5602, 0
    %v5607 = vsel %vm275, %v5604, 0
    %5609 = vmatprep.subr.mxu0 0.0
    %5610 = vmatpush1.xpose.msra.mxu0 0.0
    %5611 = vmatprep.subr.mxu0 0.0
    %5612 = vmatpush1.xpose.msra.mxu0 0.0
    %5613 = vmatprep.subr.mxu0 0.0
    %5614 = vmatpush1.xpose.msra.mxu0 0.0
    %5615 = vmatprep.subr.mxu0 0.0
    %5616 = vmatpush1.xpose.msra.mxu0 0.0
    %5617 = vmatprep.subr.mxu0 0.0
    %5618 = vmatpush1.xpose.msra.mxu0 0.0
    %5619 = vmatprep.subr.mxu0 0.0
    %5620 = vmatpush1.xpose.msra.mxu0 0.0
    %5621 = vmatprep.subr.mxu0 0.0
    %5622 = vmatpush1.xpose.msra.mxu0 0.0
    %5623 = vmatprep.subr.mxu0 0.0
    %5624 = vmatpush1.xpose.msra.mxu0 0.0
    %5625 = vmatprep.subr.mxu0 0.0
    %5626 = vmatpush1.xpose.msra.mxu0 0.0
    %5627 = vmatprep.subr.mxu0 0.0
    %5628 = vmatpush1.xpose.msra.mxu0 0.0
    %5629 = vmatprep.subr.mxu0 0.0
    %5630 = vmatpush1.xpose.msra.mxu0 0.0
    %5631 = vmatprep.subr.mxu0 0.0
    %5632 = vmatpush1.xpose.msra.mxu0 0.0
    %5633 = vmatprep.subr.mxu0 0.0
    %5634 = vmatpush1.xpose.msra.mxu0 0.0
    %5635 = vmatprep.subr.mxu0 0.0
    %5636 = vmatpush1.xpose.msra.mxu0 0.0
    %5637 = vmatprep.subr.mxu0 0.0
    %5638 = vmatpush1.xpose.msra.mxu0 0.0
    %5639 = vmatprep.subr.mxu0 0.0
    %5640 = vmatpush1.xpose.msra.mxu0 %v5607
    %5641 = vmatprep.subr.mxu0 0.0
    %5642 = vmatpush2.xpose.msra.mxu0 0.0
    %5643 = vmatprep.subr.mxu0 0.0
    %5644 = vmatpush2.xpose.msra.mxu0 0.0
    %5645 = vmatprep.subr.mxu0 0.0
    %5646 = vmatpush2.xpose.msra.mxu0 0.0
    %5647 = vmatprep.subr.mxu0 0.0
    %5648 = vmatpush2.xpose.msra.mxu0 0.0
    %5649 = vmatprep.subr.mxu0 0.0
    %5650 = vmatpush2.xpose.msra.mxu0 0.0
    %5651 = vmatprep.subr.mxu0 0.0
    %5652 = vmatpush2.xpose.msra.mxu0 0.0
    %5653 = vmatprep.subr.mxu0 0.0
    %5654 = vmatpush2.xpose.msra.mxu0 0.0
    %5655 = vmatprep.subr.mxu0 0.0
    %5656 = vmatpush2.xpose.msra.mxu0 0.0
    %5657 = vmatprep.subr.mxu0 0.0
    %5658 = vmatpush2.xpose.msra.mxu0 0.0
    %5659 = vmatprep.subr.mxu0 0.0
    %5660 = vmatpush2.xpose.msra.mxu0 0.0
    %5661 = vmatprep.subr.mxu0 0.0
    %5662 = vmatpush2.xpose.msra.mxu0 0.0
    %5663 = vmatprep.subr.mxu0 0.0
    %5664 = vmatpush2.xpose.msra.mxu0 0.0
    %5665 = vmatprep.subr.mxu0 0.0
    %5666 = vmatpush2.xpose.msra.mxu0 0.0
    %5667 = vmatprep.subr.mxu0 0.0
    %5668 = vmatpush2.xpose.msra.mxu0 0.0
    %5669 = vmatprep.subr.mxu0 0.0
    %5670 = vmatpush2.xpose.msra.mxu0 0.0
    %5671 = vmatprep.subr.mxu0 0.0
    %5672 = vmatpush2.xpose.msra.mxu0 0.0
    %5673 = vmatprep.mubr.f32.mxu0 0.0
    %5674 = vmatmul.mubr.f32.gmra.mxu0 %v5605
    %v5675 = vpop.f32.mrf.mxu0
    %v5676 = vadd.f32 0.0, %v5675
    %v5677 = vpop.f32.mrf.mxu0
    %5678 = vdwg.mxu0
    %5679 = vrot.lane.b32.xlu0 %v191, 112
    %v5680 = vpop.permute.xlu0 %5679
    %5681 = vrot.lane.b32.xlu0 %v191, 80
    %v5682 = vpop.permute.xlu0 %5681
    %v5683 = vsel %vm275, %v5680, 0
    %v5685 = vsel %vm275, %v5682, 0
    %5687 = vmatprep.subr.mxu0 0.0
    %5688 = vmatpush1.xpose.msra.mxu0 0.0
    %5689 = vmatprep.subr.mxu0 0.0
    %5690 = vmatpush1.xpose.msra.mxu0 0.0
    %5691 = vmatprep.subr.mxu0 0.0
    %5692 = vmatpush1.xpose.msra.mxu0 0.0
    %5693 = vmatprep.subr.mxu0 0.0
    %5694 = vmatpush1.xpose.msra.mxu0 0.0
    %5695 = vmatprep.subr.mxu0 0.0
    %5696 = vmatpush1.xpose.msra.mxu0 0.0
    %5697 = vmatprep.subr.mxu0 0.0
    %5698 = vmatpush1.xpose.msra.mxu0 0.0
    %5699 = vmatprep.subr.mxu0 0.0
    %5700 = vmatpush1.xpose.msra.mxu0 0.0
    %5701 = vmatprep.subr.mxu0 0.0
    %5702 = vmatpush1.xpose.msra.mxu0 0.0
    %5703 = vmatprep.subr.mxu0 0.0
    %5704 = vmatpush1.xpose.msra.mxu0 0.0
    %5705 = vmatprep.subr.mxu0 0.0
    %5706 = vmatpush1.xpose.msra.mxu0 0.0
    %5707 = vmatprep.subr.mxu0 0.0
    %5708 = vmatpush1.xpose.msra.mxu0 0.0
    %5709 = vmatprep.subr.mxu0 0.0
    %5710 = vmatpush1.xpose.msra.mxu0 0.0
    %5711 = vmatprep.subr.mxu0 0.0
    %5712 = vmatpush1.xpose.msra.mxu0 0.0
    %5713 = vmatprep.subr.mxu0 0.0
    %5714 = vmatpush1.xpose.msra.mxu0 0.0
    %5715 = vmatprep.subr.mxu0 0.0
    %5716 = vmatpush1.xpose.msra.mxu0 0.0
    %5717 = vmatprep.subr.mxu0 0.0
    %5718 = vmatpush1.xpose.msra.mxu0 %v5685
    %5719 = vmatprep.subr.mxu0 0.0
    %5720 = vmatpush2.xpose.msra.mxu0 0.0
    %5721 = vmatprep.subr.mxu0 0.0
    %5722 = vmatpush2.xpose.msra.mxu0 0.0
    %5723 = vmatprep.subr.mxu0 0.0
    %5724 = vmatpush2.xpose.msra.mxu0 0.0
    %5725 = vmatprep.subr.mxu0 0.0
    %5726 = vmatpush2.xpose.msra.mxu0 0.0
    %5727 = vmatprep.subr.mxu0 0.0
    %5728 = vmatpush2.xpose.msra.mxu0 0.0
    %5729 = vmatprep.subr.mxu0 0.0
    %5730 = vmatpush2.xpose.msra.mxu0 0.0
    %5731 = vmatprep.subr.mxu0 0.0
    %5732 = vmatpush2.xpose.msra.mxu0 0.0
    %5733 = vmatprep.subr.mxu0 0.0
    %5734 = vmatpush2.xpose.msra.mxu0 0.0
    %5735 = vmatprep.subr.mxu0 0.0
    %5736 = vmatpush2.xpose.msra.mxu0 0.0
    %5737 = vmatprep.subr.mxu0 0.0
    %5738 = vmatpush2.xpose.msra.mxu0 0.0
    %5739 = vmatprep.subr.mxu0 0.0
    %5740 = vmatpush2.xpose.msra.mxu0 0.0
    %5741 = vmatprep.subr.mxu0 0.0
    %5742 = vmatpush2.xpose.msra.mxu0 0.0
    %5743 = vmatprep.subr.mxu0 0.0
    %5744 = vmatpush2.xpose.msra.mxu0 0.0
    %5745 = vmatprep.subr.mxu0 0.0
    %5746 = vmatpush2.xpose.msra.mxu0 0.0
    %5747 = vmatprep.subr.mxu0 0.0
    %5748 = vmatpush2.xpose.msra.mxu0 0.0
    %5749 = vmatprep.subr.mxu0 0.0
    %5750 = vmatpush2.xpose.msra.mxu0 0.0
    %5751 = vmatprep.mubr.f32.mxu0 0.0
    %5752 = vmatmul.mubr.f32.gmra.mxu0 %v5683
    %v5753 = vpop.f32.mrf.mxu0
    %v5754 = vadd.f32 0.0, %v5753
    %v5755 = vpop.f32.mrf.mxu0
    %5756 = vdwg.mxu0
    %5757 = vrot.lane.b32.xlu0 %v197, 112
    %v5758 = vpop.permute.xlu0 %5757
    %5759 = vrot.lane.b32.xlu0 %v197, 80
    %v5760 = vpop.permute.xlu0 %5759
    %v5761 = vsel %vm275, %v5758, 0
    %v5763 = vsel %vm275, %v5760, 0
    %5765 = vmatprep.subr.mxu0 0.0
    %5766 = vmatpush1.xpose.msra.mxu0 0.0
    %5767 = vmatprep.subr.mxu0 0.0
    %5768 = vmatpush1.xpose.msra.mxu0 0.0
    %5769 = vmatprep.subr.mxu0 0.0
    %5770 = vmatpush1.xpose.msra.mxu0 0.0
    %5771 = vmatprep.subr.mxu0 0.0
    %5772 = vmatpush1.xpose.msra.mxu0 0.0
    %5773 = vmatprep.subr.mxu0 0.0
    %5774 = vmatpush1.xpose.msra.mxu0 0.0
    %5775 = vmatprep.subr.mxu0 0.0
    %5776 = vmatpush1.xpose.msra.mxu0 0.0
    %5777 = vmatprep.subr.mxu0 0.0
    %5778 = vmatpush1.xpose.msra.mxu0 0.0
    %5779 = vmatprep.subr.mxu0 0.0
    %5780 = vmatpush1.xpose.msra.mxu0 0.0
    %5781 = vmatprep.subr.mxu0 0.0
    %5782 = vmatpush1.xpose.msra.mxu0 0.0
    %5783 = vmatprep.subr.mxu0 0.0
    %5784 = vmatpush1.xpose.msra.mxu0 0.0
    %5785 = vmatprep.subr.mxu0 0.0
    %5786 = vmatpush1.xpose.msra.mxu0 0.0
    %5787 = vmatprep.subr.mxu0 0.0
    %5788 = vmatpush1.xpose.msra.mxu0 0.0
    %5789 = vmatprep.subr.mxu0 0.0
    %5790 = vmatpush1.xpose.msra.mxu0 0.0
    %5791 = vmatprep.subr.mxu0 0.0
    %5792 = vmatpush1.xpose.msra.mxu0 0.0
    %5793 = vmatprep.subr.mxu0 0.0
    %5794 = vmatpush1.xpose.msra.mxu0 0.0
    %5795 = vmatprep.subr.mxu0 0.0
    %5796 = vmatpush1.xpose.msra.mxu0 %v5763
    %5797 = vmatprep.subr.mxu0 0.0
    %5798 = vmatpush2.xpose.msra.mxu0 0.0
    %5799 = vmatprep.subr.mxu0 0.0
    %5800 = vmatpush2.xpose.msra.mxu0 0.0
    %5801 = vmatprep.subr.mxu0 0.0
    %5802 = vmatpush2.xpose.msra.mxu0 0.0
    %5803 = vmatprep.subr.mxu0 0.0
    %5804 = vmatpush2.xpose.msra.mxu0 0.0
    %5805 = vmatprep.subr.mxu0 0.0
    %5806 = vmatpush2.xpose.msra.mxu0 0.0
    %5807 = vmatprep.subr.mxu0 0.0
    %5808 = vmatpush2.xpose.msra.mxu0 0.0
    %5809 = vmatprep.subr.mxu0 0.0
    %5810 = vmatpush2.xpose.msra.mxu0 0.0
    %5811 = vmatprep.subr.mxu0 0.0
    %5812 = vmatpush2.xpose.msra.mxu0 0.0
    %5813 = vmatprep.subr.mxu0 0.0
    %5814 = vmatpush2.xpose.msra.mxu0 0.0
    %5815 = vmatprep.subr.mxu0 0.0
    %5816 = vmatpush2.xpose.msra.mxu0 0.0
    %5817 = vmatprep.subr.mxu0 0.0
    %5818 = vmatpush2.xpose.msra.mxu0 0.0
    %5819 = vmatprep.subr.mxu0 0.0
    %5820 = vmatpush2.xpose.msra.mxu0 0.0
    %5821 = vmatprep.subr.mxu0 0.0
    %5822 = vmatpush2.xpose.msra.mxu0 0.0
    %5823 = vmatprep.subr.mxu0 0.0
    %5824 = vmatpush2.xpose.msra.mxu0 0.0
    %5825 = vmatprep.subr.mxu0 0.0
    %5826 = vmatpush2.xpose.msra.mxu0 0.0
    %5827 = vmatprep.subr.mxu0 0.0
    %5828 = vmatpush2.xpose.msra.mxu0 0.0
    %5829 = vmatprep.mubr.f32.mxu0 0.0
    %5830 = vmatmul.mubr.f32.gmra.mxu0 %v5761
    %v5831 = vpop.f32.mrf.mxu0
    %v5832 = vadd.f32 0.0, %v5831
    %v5833 = vpop.f32.mrf.mxu0
    %5834 = vdwg.mxu0
    %5835 = vrot.lane.b32.xlu0 %v201, 112
    %v5836 = vpop.permute.xlu0 %5835
    %5837 = vrot.lane.b32.xlu0 %v201, 80
    %v5838 = vpop.permute.xlu0 %5837
    %v5839 = vsel %vm275, %v5836, 0
    %v5841 = vsel %vm275, %v5838, 0
    %5843 = vmatprep.subr.mxu0 0.0
    %5844 = vmatpush1.xpose.msra.mxu0 0.0
    %5845 = vmatprep.subr.mxu0 0.0
    %5846 = vmatpush1.xpose.msra.mxu0 0.0
    %5847 = vmatprep.subr.mxu0 0.0
    %5848 = vmatpush1.xpose.msra.mxu0 0.0
    %5849 = vmatprep.subr.mxu0 0.0
    %5850 = vmatpush1.xpose.msra.mxu0 0.0
    %5851 = vmatprep.subr.mxu0 0.0
    %5852 = vmatpush1.xpose.msra.mxu0 0.0
    %5853 = vmatprep.subr.mxu0 0.0
    %5854 = vmatpush1.xpose.msra.mxu0 0.0
    %5855 = vmatprep.subr.mxu0 0.0
    %5856 = vmatpush1.xpose.msra.mxu0 0.0
    %5857 = vmatprep.subr.mxu0 0.0
    %5858 = vmatpush1.xpose.msra.mxu0 0.0
    %5859 = vmatprep.subr.mxu0 0.0
    %5860 = vmatpush1.xpose.msra.mxu0 0.0
    %5861 = vmatprep.subr.mxu0 0.0
    %5862 = vmatpush1.xpose.msra.mxu0 0.0
    %5863 = vmatprep.subr.mxu0 0.0
    %5864 = vmatpush1.xpose.msra.mxu0 0.0
    %5865 = vmatprep.subr.mxu0 0.0
    %5866 = vmatpush1.xpose.msra.mxu0 0.0
    %5867 = vmatprep.subr.mxu0 0.0
    %5868 = vmatpush1.xpose.msra.mxu0 0.0
    %5869 = vmatprep.subr.mxu0 0.0
    %5870 = vmatpush1.xpose.msra.mxu0 0.0
    %5871 = vmatprep.subr.mxu0 0.0
    %5872 = vmatpush1.xpose.msra.mxu0 0.0
    %5873 = vmatprep.subr.mxu0 0.0
    %5874 = vmatpush1.xpose.msra.mxu0 %v5841
    %5875 = vmatprep.subr.mxu0 0.0
    %5876 = vmatpush2.xpose.msra.mxu0 0.0
    %5877 = vmatprep.subr.mxu0 0.0
    %5878 = vmatpush2.xpose.msra.mxu0 0.0
    %5879 = vmatprep.subr.mxu0 0.0
    %5880 = vmatpush2.xpose.msra.mxu0 0.0
    %5881 = vmatprep.subr.mxu0 0.0
    %5882 = vmatpush2.xpose.msra.mxu0 0.0
    %5883 = vmatprep.subr.mxu0 0.0
    %5884 = vmatpush2.xpose.msra.mxu0 0.0
    %5885 = vmatprep.subr.mxu0 0.0
    %5886 = vmatpush2.xpose.msra.mxu0 0.0
    %5887 = vmatprep.subr.mxu0 0.0
    %5888 = vmatpush2.xpose.msra.mxu0 0.0
    %5889 = vmatprep.subr.mxu0 0.0
    %5890 = vmatpush2.xpose.msra.mxu0 0.0
    %5891 = vmatprep.subr.mxu0 0.0
    %5892 = vmatpush2.xpose.msra.mxu0 0.0
    %5893 = vmatprep.subr.mxu0 0.0
    %5894 = vmatpush2.xpose.msra.mxu0 0.0
    %5895 = vmatprep.subr.mxu0 0.0
    %5896 = vmatpush2.xpose.msra.mxu0 0.0
    %5897 = vmatprep.subr.mxu0 0.0
    %5898 = vmatpush2.xpose.msra.mxu0 0.0
    %5899 = vmatprep.subr.mxu0 0.0
    %5900 = vmatpush2.xpose.msra.mxu0 0.0
    %5901 = vmatprep.subr.mxu0 0.0
    %5902 = vmatpush2.xpose.msra.mxu0 0.0
    %5903 = vmatprep.subr.mxu0 0.0
    %5904 = vmatpush2.xpose.msra.mxu0 0.0
    %5905 = vmatprep.subr.mxu0 0.0
    %5906 = vmatpush2.xpose.msra.mxu0 0.0
    %5907 = vmatprep.mubr.f32.mxu0 0.0
    %5908 = vmatmul.mubr.f32.gmra.mxu0 %v5839
    %v5909 = vpop.f32.mrf.mxu0
    %v5910 = vadd.f32 0.0, %v5909
    %v5911 = vpop.f32.mrf.mxu0
    %5912 = vdwg.mxu0
    %5913 = vrot.lane.b32.xlu0 %v207, 112
    %v5914 = vpop.permute.xlu0 %5913
    %5915 = vrot.lane.b32.xlu0 %v207, 80
    %v5916 = vpop.permute.xlu0 %5915
    %v5917 = vsel %vm275, %v5914, 0
    %v5919 = vsel %vm275, %v5916, 0
    %5921 = vmatprep.subr.mxu0 0.0
    %5922 = vmatpush1.xpose.msra.mxu0 0.0
    %5923 = vmatprep.subr.mxu0 0.0
    %5924 = vmatpush1.xpose.msra.mxu0 0.0
    %5925 = vmatprep.subr.mxu0 0.0
    %5926 = vmatpush1.xpose.msra.mxu0 0.0
    %5927 = vmatprep.subr.mxu0 0.0
    %5928 = vmatpush1.xpose.msra.mxu0 0.0
    %5929 = vmatprep.subr.mxu0 0.0
    %5930 = vmatpush1.xpose.msra.mxu0 0.0
    %5931 = vmatprep.subr.mxu0 0.0
    %5932 = vmatpush1.xpose.msra.mxu0 0.0
    %5933 = vmatprep.subr.mxu0 0.0
    %5934 = vmatpush1.xpose.msra.mxu0 0.0
    %5935 = vmatprep.subr.mxu0 0.0
    %5936 = vmatpush1.xpose.msra.mxu0 0.0
    %5937 = vmatprep.subr.mxu0 0.0
    %5938 = vmatpush1.xpose.msra.mxu0 0.0
    %5939 = vmatprep.subr.mxu0 0.0
    %5940 = vmatpush1.xpose.msra.mxu0 0.0
    %5941 = vmatprep.subr.mxu0 0.0
    %5942 = vmatpush1.xpose.msra.mxu0 0.0
    %5943 = vmatprep.subr.mxu0 0.0
    %5944 = vmatpush1.xpose.msra.mxu0 0.0
    %5945 = vmatprep.subr.mxu0 0.0
    %5946 = vmatpush1.xpose.msra.mxu0 0.0
    %5947 = vmatprep.subr.mxu0 0.0
    %5948 = vmatpush1.xpose.msra.mxu0 0.0
    %5949 = vmatprep.subr.mxu0 0.0
    %5950 = vmatpush1.xpose.msra.mxu0 0.0
    %5951 = vmatprep.subr.mxu0 0.0
    %5952 = vmatpush1.xpose.msra.mxu0 %v5919
    %5953 = vmatprep.subr.mxu0 0.0
    %5954 = vmatpush2.xpose.msra.mxu0 0.0
    %5955 = vmatprep.subr.mxu0 0.0
    %5956 = vmatpush2.xpose.msra.mxu0 0.0
    %5957 = vmatprep.subr.mxu0 0.0
    %5958 = vmatpush2.xpose.msra.mxu0 0.0
    %5959 = vmatprep.subr.mxu0 0.0
    %5960 = vmatpush2.xpose.msra.mxu0 0.0
    %5961 = vmatprep.subr.mxu0 0.0
    %5962 = vmatpush2.xpose.msra.mxu0 0.0
    %5963 = vmatprep.subr.mxu0 0.0
    %5964 = vmatpush2.xpose.msra.mxu0 0.0
    %5965 = vmatprep.subr.mxu0 0.0
    %5966 = vmatpush2.xpose.msra.mxu0 0.0
    %5967 = vmatprep.subr.mxu0 0.0
    %5968 = vmatpush2.xpose.msra.mxu0 0.0
    %5969 = vmatprep.subr.mxu0 0.0
    %5970 = vmatpush2.xpose.msra.mxu0 0.0
    %5971 = vmatprep.subr.mxu0 0.0
    %5972 = vmatpush2.xpose.msra.mxu0 0.0
    %5973 = vmatprep.subr.mxu0 0.0
    %5974 = vmatpush2.xpose.msra.mxu0 0.0
    %5975 = vmatprep.subr.mxu0 0.0
    %5976 = vmatpush2.xpose.msra.mxu0 0.0
    %5977 = vmatprep.subr.mxu0 0.0
    %5978 = vmatpush2.xpose.msra.mxu0 0.0
    %5979 = vmatprep.subr.mxu0 0.0
    %5980 = vmatpush2.xpose.msra.mxu0 0.0
    %5981 = vmatprep.subr.mxu0 0.0
    %5982 = vmatpush2.xpose.msra.mxu0 0.0
    %5983 = vmatprep.subr.mxu0 0.0
    %5984 = vmatpush2.xpose.msra.mxu0 0.0
    %5985 = vmatprep.mubr.f32.mxu0 0.0
    %5986 = vmatmul.mubr.f32.gmra.mxu0 %v5917
    %v5987 = vpop.f32.mrf.mxu0
    %v5988 = vadd.f32 0.0, %v5987
    %v5989 = vpop.f32.mrf.mxu0
    %5990 = vdwg.mxu0
    %5991 = vrot.lane.b32.xlu0 %v211, 112
    %v5992 = vpop.permute.xlu0 %5991
    %5993 = vrot.lane.b32.xlu0 %v211, 80
    %v5994 = vpop.permute.xlu0 %5993
    %v5995 = vsel %vm275, %v5992, 0
    %v5997 = vsel %vm275, %v5994, 0
    %5999 = vmatprep.subr.mxu0 0.0
    %6000 = vmatpush1.xpose.msra.mxu0 0.0
    %6001 = vmatprep.subr.mxu0 0.0
    %6002 = vmatpush1.xpose.msra.mxu0 0.0
    %6003 = vmatprep.subr.mxu0 0.0
    %6004 = vmatpush1.xpose.msra.mxu0 0.0
    %6005 = vmatprep.subr.mxu0 0.0
    %6006 = vmatpush1.xpose.msra.mxu0 0.0
    %6007 = vmatprep.subr.mxu0 0.0
    %6008 = vmatpush1.xpose.msra.mxu0 0.0
    %6009 = vmatprep.subr.mxu0 0.0
    %6010 = vmatpush1.xpose.msra.mxu0 0.0
    %6011 = vmatprep.subr.mxu0 0.0
    %6012 = vmatpush1.xpose.msra.mxu0 0.0
    %6013 = vmatprep.subr.mxu0 0.0
    %6014 = vmatpush1.xpose.msra.mxu0 0.0
    %6015 = vmatprep.subr.mxu0 0.0
    %6016 = vmatpush1.xpose.msra.mxu0 0.0
    %6017 = vmatprep.subr.mxu0 0.0
    %6018 = vmatpush1.xpose.msra.mxu0 0.0
    %6019 = vmatprep.subr.mxu0 0.0
    %6020 = vmatpush1.xpose.msra.mxu0 0.0
    %6021 = vmatprep.subr.mxu0 0.0
    %6022 = vmatpush1.xpose.msra.mxu0 0.0
    %6023 = vmatprep.subr.mxu0 0.0
    %6024 = vmatpush1.xpose.msra.mxu0 0.0
    %6025 = vmatprep.subr.mxu0 0.0
    %6026 = vmatpush1.xpose.msra.mxu0 0.0
    %6027 = vmatprep.subr.mxu0 0.0
    %6028 = vmatpush1.xpose.msra.mxu0 0.0
    %6029 = vmatprep.subr.mxu0 0.0
    %6030 = vmatpush1.xpose.msra.mxu0 %v5997
    %6031 = vmatprep.subr.mxu0 0.0
    %6032 = vmatpush2.xpose.msra.mxu0 0.0
    %6033 = vmatprep.subr.mxu0 0.0
    %6034 = vmatpush2.xpose.msra.mxu0 0.0
    %6035 = vmatprep.subr.mxu0 0.0
    %6036 = vmatpush2.xpose.msra.mxu0 0.0
    %6037 = vmatprep.subr.mxu0 0.0
    %6038 = vmatpush2.xpose.msra.mxu0 0.0
    %6039 = vmatprep.subr.mxu0 0.0
    %6040 = vmatpush2.xpose.msra.mxu0 0.0
    %6041 = vmatprep.subr.mxu0 0.0
    %6042 = vmatpush2.xpose.msra.mxu0 0.0
    %6043 = vmatprep.subr.mxu0 0.0
    %6044 = vmatpush2.xpose.msra.mxu0 0.0
    %6045 = vmatprep.subr.mxu0 0.0
    %6046 = vmatpush2.xpose.msra.mxu0 0.0
    %6047 = vmatprep.subr.mxu0 0.0
    %6048 = vmatpush2.xpose.msra.mxu0 0.0
    %6049 = vmatprep.subr.mxu0 0.0
    %6050 = vmatpush2.xpose.msra.mxu0 0.0
    %6051 = vmatprep.subr.mxu0 0.0
    %6052 = vmatpush2.xpose.msra.mxu0 0.0
    %6053 = vmatprep.subr.mxu0 0.0
    %6054 = vmatpush2.xpose.msra.mxu0 0.0
    %6055 = vmatprep.subr.mxu0 0.0
    %6056 = vmatpush2.xpose.msra.mxu0 0.0
    %6057 = vmatprep.subr.mxu0 0.0
    %6058 = vmatpush2.xpose.msra.mxu0 0.0
    %6059 = vmatprep.subr.mxu0 0.0
    %6060 = vmatpush2.xpose.msra.mxu0 0.0
    %6061 = vmatprep.subr.mxu0 0.0
    %6062 = vmatpush2.xpose.msra.mxu0 0.0
    %6063 = vmatprep.mubr.f32.mxu0 0.0
    %6064 = vmatmul.mubr.f32.gmra.mxu0 %v5995
    %v6065 = vpop.f32.mrf.mxu0
    %v6066 = vadd.f32 0.0, %v6065
    %v6067 = vpop.f32.mrf.mxu0
    %6068 = vdwg.mxu0
    %6069 = vrot.lane.b32.xlu0 %v217, 112
    %v6070 = vpop.permute.xlu0 %6069
    %6071 = vrot.lane.b32.xlu0 %v217, 80
    %v6072 = vpop.permute.xlu0 %6071
    %v6073 = vsel %vm275, %v6070, 0
    %v6075 = vsel %vm275, %v6072, 0
    %6077 = vmatprep.subr.mxu0 0.0
    %6078 = vmatpush1.xpose.msra.mxu0 0.0
    %6079 = vmatprep.subr.mxu0 0.0
    %6080 = vmatpush1.xpose.msra.mxu0 0.0
    %6081 = vmatprep.subr.mxu0 0.0
    %6082 = vmatpush1.xpose.msra.mxu0 0.0
    %6083 = vmatprep.subr.mxu0 0.0
    %6084 = vmatpush1.xpose.msra.mxu0 0.0
    %6085 = vmatprep.subr.mxu0 0.0
    %6086 = vmatpush1.xpose.msra.mxu0 0.0
    %6087 = vmatprep.subr.mxu0 0.0
    %6088 = vmatpush1.xpose.msra.mxu0 0.0
    %6089 = vmatprep.subr.mxu0 0.0
    %6090 = vmatpush1.xpose.msra.mxu0 0.0
    %6091 = vmatprep.subr.mxu0 0.0
    %6092 = vmatpush1.xpose.msra.mxu0 0.0
    %6093 = vmatprep.subr.mxu0 0.0
    %6094 = vmatpush1.xpose.msra.mxu0 0.0
    %6095 = vmatprep.subr.mxu0 0.0
    %6096 = vmatpush1.xpose.msra.mxu0 0.0
    %6097 = vmatprep.subr.mxu0 0.0
    %6098 = vmatpush1.xpose.msra.mxu0 0.0
    %6099 = vmatprep.subr.mxu0 0.0
    %6100 = vmatpush1.xpose.msra.mxu0 0.0
    %6101 = vmatprep.subr.mxu0 0.0
    %6102 = vmatpush1.xpose.msra.mxu0 0.0
    %6103 = vmatprep.subr.mxu0 0.0
    %6104 = vmatpush1.xpose.msra.mxu0 0.0
    %6105 = vmatprep.subr.mxu0 0.0
    %6106 = vmatpush1.xpose.msra.mxu0 0.0
    %6107 = vmatprep.subr.mxu0 0.0
    %6108 = vmatpush1.xpose.msra.mxu0 %v6075
    %6109 = vmatprep.subr.mxu0 0.0
    %6110 = vmatpush2.xpose.msra.mxu0 0.0
    %6111 = vmatprep.subr.mxu0 0.0
    %6112 = vmatpush2.xpose.msra.mxu0 0.0
    %6113 = vmatprep.subr.mxu0 0.0
    %6114 = vmatpush2.xpose.msra.mxu0 0.0
    %6115 = vmatprep.subr.mxu0 0.0
    %6116 = vmatpush2.xpose.msra.mxu0 0.0
    %6117 = vmatprep.subr.mxu0 0.0
    %6118 = vmatpush2.xpose.msra.mxu0 0.0
    %6119 = vmatprep.subr.mxu0 0.0
    %6120 = vmatpush2.xpose.msra.mxu0 0.0
    %6121 = vmatprep.subr.mxu0 0.0
    %6122 = vmatpush2.xpose.msra.mxu0 0.0
    %6123 = vmatprep.subr.mxu0 0.0
    %6124 = vmatpush2.xpose.msra.mxu0 0.0
    %6125 = vmatprep.subr.mxu0 0.0
    %6126 = vmatpush2.xpose.msra.mxu0 0.0
    %6127 = vmatprep.subr.mxu0 0.0
    %6128 = vmatpush2.xpose.msra.mxu0 0.0
    %6129 = vmatprep.subr.mxu0 0.0
    %6130 = vmatpush2.xpose.msra.mxu0 0.0
    %6131 = vmatprep.subr.mxu0 0.0
    %6132 = vmatpush2.xpose.msra.mxu0 0.0
    %6133 = vmatprep.subr.mxu0 0.0
    %6134 = vmatpush2.xpose.msra.mxu0 0.0
    %6135 = vmatprep.subr.mxu0 0.0
    %6136 = vmatpush2.xpose.msra.mxu0 0.0
    %6137 = vmatprep.subr.mxu0 0.0
    %6138 = vmatpush2.xpose.msra.mxu0 0.0
    %6139 = vmatprep.subr.mxu0 0.0
    %6140 = vmatpush2.xpose.msra.mxu0 0.0
    %6141 = vmatprep.mubr.f32.mxu0 0.0
    %6142 = vmatmul.mubr.f32.gmra.mxu0 %v6073
    %v6143 = vpop.f32.mrf.mxu0
    %v6144 = vadd.f32 0.0, %v6143
    %v6145 = vpop.f32.mrf.mxu0
    %6146 = vdwg.mxu0
    %6147 = vrot.lane.b32.xlu0 %v221, 112
    %v6148 = vpop.permute.xlu0 %6147
    %6149 = vrot.lane.b32.xlu0 %v221, 80
    %v6150 = vpop.permute.xlu0 %6149
    %v6151 = vsel %vm275, %v6148, 0
    %v6153 = vsel %vm275, %v6150, 0
    %6155 = vmatprep.subr.mxu0 0.0
    %6156 = vmatpush1.xpose.msra.mxu0 0.0
    %6157 = vmatprep.subr.mxu0 0.0
    %6158 = vmatpush1.xpose.msra.mxu0 0.0
    %6159 = vmatprep.subr.mxu0 0.0
    %6160 = vmatpush1.xpose.msra.mxu0 0.0
    %6161 = vmatprep.subr.mxu0 0.0
    %6162 = vmatpush1.xpose.msra.mxu0 0.0
    %6163 = vmatprep.subr.mxu0 0.0
    %6164 = vmatpush1.xpose.msra.mxu0 0.0
    %6165 = vmatprep.subr.mxu0 0.0
    %6166 = vmatpush1.xpose.msra.mxu0 0.0
    %6167 = vmatprep.subr.mxu0 0.0
    %6168 = vmatpush1.xpose.msra.mxu0 0.0
    %6169 = vmatprep.subr.mxu0 0.0
    %6170 = vmatpush1.xpose.msra.mxu0 0.0
    %6171 = vmatprep.subr.mxu0 0.0
    %6172 = vmatpush1.xpose.msra.mxu0 0.0
    %6173 = vmatprep.subr.mxu0 0.0
    %6174 = vmatpush1.xpose.msra.mxu0 0.0
    %6175 = vmatprep.subr.mxu0 0.0
    %6176 = vmatpush1.xpose.msra.mxu0 0.0
    %6177 = vmatprep.subr.mxu0 0.0
    %6178 = vmatpush1.xpose.msra.mxu0 0.0
    %6179 = vmatprep.subr.mxu0 0.0
    %6180 = vmatpush1.xpose.msra.mxu0 0.0
    %6181 = vmatprep.subr.mxu0 0.0
    %6182 = vmatpush1.xpose.msra.mxu0 0.0
    %6183 = vmatprep.subr.mxu0 0.0
    %6184 = vmatpush1.xpose.msra.mxu0 0.0
    %6185 = vmatprep.subr.mxu0 0.0
    %6186 = vmatpush1.xpose.msra.mxu0 %v6153
    %6187 = vmatprep.subr.mxu0 0.0
    %6188 = vmatpush2.xpose.msra.mxu0 0.0
    %6189 = vmatprep.subr.mxu0 0.0
    %6190 = vmatpush2.xpose.msra.mxu0 0.0
    %6191 = vmatprep.subr.mxu0 0.0
    %6192 = vmatpush2.xpose.msra.mxu0 0.0
    %6193 = vmatprep.subr.mxu0 0.0
    %6194 = vmatpush2.xpose.msra.mxu0 0.0
    %6195 = vmatprep.subr.mxu0 0.0
    %6196 = vmatpush2.xpose.msra.mxu0 0.0
    %6197 = vmatprep.subr.mxu0 0.0
    %6198 = vmatpush2.xpose.msra.mxu0 0.0
    %6199 = vmatprep.subr.mxu0 0.0
    %6200 = vmatpush2.xpose.msra.mxu0 0.0
    %6201 = vmatprep.subr.mxu0 0.0
    %6202 = vmatpush2.xpose.msra.mxu0 0.0
    %6203 = vmatprep.subr.mxu0 0.0
    %6204 = vmatpush2.xpose.msra.mxu0 0.0
    %6205 = vmatprep.subr.mxu0 0.0
    %6206 = vmatpush2.xpose.msra.mxu0 0.0
    %6207 = vmatprep.subr.mxu0 0.0
    %6208 = vmatpush2.xpose.msra.mxu0 0.0
    %6209 = vmatprep.subr.mxu0 0.0
    %6210 = vmatpush2.xpose.msra.mxu0 0.0
    %6211 = vmatprep.subr.mxu0 0.0
    %6212 = vmatpush2.xpose.msra.mxu0 0.0
    %6213 = vmatprep.subr.mxu0 0.0
    %6214 = vmatpush2.xpose.msra.mxu0 0.0
    %6215 = vmatprep.subr.mxu0 0.0
    %6216 = vmatpush2.xpose.msra.mxu0 0.0
    %6217 = vmatprep.subr.mxu0 0.0
    %6218 = vmatpush2.xpose.msra.mxu0 0.0
    %6219 = vmatprep.mubr.f32.mxu0 0.0
    %6220 = vmatmul.mubr.f32.gmra.mxu0 %v6151
    %v6221 = vpop.f32.mrf.mxu0
    %v6222 = vadd.f32 0.0, %v6221
    %v6223 = vpop.f32.mrf.mxu0
    %6224 = vdwg.mxu0
    %6225 = vrot.lane.b32.xlu0 %v227, 112
    %v6226 = vpop.permute.xlu0 %6225
    %6227 = vrot.lane.b32.xlu0 %v227, 80
    %v6228 = vpop.permute.xlu0 %6227
    %v6229 = vsel %vm275, %v6226, 0
    %v6231 = vsel %vm275, %v6228, 0
    %6233 = vmatprep.subr.mxu0 0.0
    %6234 = vmatpush1.xpose.msra.mxu0 0.0
    %6235 = vmatprep.subr.mxu0 0.0
    %6236 = vmatpush1.xpose.msra.mxu0 0.0
    %6237 = vmatprep.subr.mxu0 0.0
    %6238 = vmatpush1.xpose.msra.mxu0 0.0
    %6239 = vmatprep.subr.mxu0 0.0
    %6240 = vmatpush1.xpose.msra.mxu0 0.0
    %6241 = vmatprep.subr.mxu0 0.0
    %6242 = vmatpush1.xpose.msra.mxu0 0.0
    %6243 = vmatprep.subr.mxu0 0.0
    %6244 = vmatpush1.xpose.msra.mxu0 0.0
    %6245 = vmatprep.subr.mxu0 0.0
    %6246 = vmatpush1.xpose.msra.mxu0 0.0
    %6247 = vmatprep.subr.mxu0 0.0
    %6248 = vmatpush1.xpose.msra.mxu0 0.0
    %6249 = vmatprep.subr.mxu0 0.0
    %6250 = vmatpush1.xpose.msra.mxu0 0.0
    %6251 = vmatprep.subr.mxu0 0.0
    %6252 = vmatpush1.xpose.msra.mxu0 0.0
    %6253 = vmatprep.subr.mxu0 0.0
    %6254 = vmatpush1.xpose.msra.mxu0 0.0
    %6255 = vmatprep.subr.mxu0 0.0
    %6256 = vmatpush1.xpose.msra.mxu0 0.0
    %6257 = vmatprep.subr.mxu0 0.0
    %6258 = vmatpush1.xpose.msra.mxu0 0.0
    %6259 = vmatprep.subr.mxu0 0.0
    %6260 = vmatpush1.xpose.msra.mxu0 0.0
    %6261 = vmatprep.subr.mxu0 0.0
    %6262 = vmatpush1.xpose.msra.mxu0 0.0
    %6263 = vmatprep.subr.mxu0 0.0
    %6264 = vmatpush1.xpose.msra.mxu0 %v6231
    %6265 = vmatprep.subr.mxu0 0.0
    %6266 = vmatpush2.xpose.msra.mxu0 0.0
    %6267 = vmatprep.subr.mxu0 0.0
    %6268 = vmatpush2.xpose.msra.mxu0 0.0
    %6269 = vmatprep.subr.mxu0 0.0
    %6270 = vmatpush2.xpose.msra.mxu0 0.0
    %6271 = vmatprep.subr.mxu0 0.0
    %6272 = vmatpush2.xpose.msra.mxu0 0.0
    %6273 = vmatprep.subr.mxu0 0.0
    %6274 = vmatpush2.xpose.msra.mxu0 0.0
    %6275 = vmatprep.subr.mxu0 0.0
    %6276 = vmatpush2.xpose.msra.mxu0 0.0
    %6277 = vmatprep.subr.mxu0 0.0
    %6278 = vmatpush2.xpose.msra.mxu0 0.0
    %6279 = vmatprep.subr.mxu0 0.0
    %6280 = vmatpush2.xpose.msra.mxu0 0.0
    %6281 = vmatprep.subr.mxu0 0.0
    %6282 = vmatpush2.xpose.msra.mxu0 0.0
    %6283 = vmatprep.subr.mxu0 0.0
    %6284 = vmatpush2.xpose.msra.mxu0 0.0
    %6285 = vmatprep.subr.mxu0 0.0
    %6286 = vmatpush2.xpose.msra.mxu0 0.0
    %6287 = vmatprep.subr.mxu0 0.0
    %6288 = vmatpush2.xpose.msra.mxu0 0.0
    %6289 = vmatprep.subr.mxu0 0.0
    %6290 = vmatpush2.xpose.msra.mxu0 0.0
    %6291 = vmatprep.subr.mxu0 0.0
    %6292 = vmatpush2.xpose.msra.mxu0 0.0
    %6293 = vmatprep.subr.mxu0 0.0
    %6294 = vmatpush2.xpose.msra.mxu0 0.0
    %6295 = vmatprep.subr.mxu0 0.0
    %6296 = vmatpush2.xpose.msra.mxu0 0.0
    %6297 = vmatprep.mubr.f32.mxu0 0.0
    %6298 = vmatmul.mubr.f32.gmra.mxu0 %v6229
    %v6299 = vpop.f32.mrf.mxu0
    %v6300 = vadd.f32 0.0, %v6299
    %v6301 = vpop.f32.mrf.mxu0
    %6302 = vdwg.mxu0
    %6303 = vrot.lane.b32.xlu0 %v231, 112
    %v6304 = vpop.permute.xlu0 %6303
    %6305 = vrot.lane.b32.xlu0 %v231, 80
    %v6306 = vpop.permute.xlu0 %6305
    %v6307 = vsel %vm275, %v6304, 0
    %v6309 = vsel %vm275, %v6306, 0
    %6311 = vmatprep.subr.mxu0 0.0
    %6312 = vmatpush1.xpose.msra.mxu0 0.0
    %6313 = vmatprep.subr.mxu0 0.0
    %6314 = vmatpush1.xpose.msra.mxu0 0.0
    %6315 = vmatprep.subr.mxu0 0.0
    %6316 = vmatpush1.xpose.msra.mxu0 0.0
    %6317 = vmatprep.subr.mxu0 0.0
    %6318 = vmatpush1.xpose.msra.mxu0 0.0
    %6319 = vmatprep.subr.mxu0 0.0
    %6320 = vmatpush1.xpose.msra.mxu0 0.0
    %6321 = vmatprep.subr.mxu0 0.0
    %6322 = vmatpush1.xpose.msra.mxu0 0.0
    %6323 = vmatprep.subr.mxu0 0.0
    %6324 = vmatpush1.xpose.msra.mxu0 0.0
    %6325 = vmatprep.subr.mxu0 0.0
    %6326 = vmatpush1.xpose.msra.mxu0 0.0
    %6327 = vmatprep.subr.mxu0 0.0
    %6328 = vmatpush1.xpose.msra.mxu0 0.0
    %6329 = vmatprep.subr.mxu0 0.0
    %6330 = vmatpush1.xpose.msra.mxu0 0.0
    %6331 = vmatprep.subr.mxu0 0.0
    %6332 = vmatpush1.xpose.msra.mxu0 0.0
    %6333 = vmatprep.subr.mxu0 0.0
    %6334 = vmatpush1.xpose.msra.mxu0 0.0
    %6335 = vmatprep.subr.mxu0 0.0
    %6336 = vmatpush1.xpose.msra.mxu0 0.0
    %6337 = vmatprep.subr.mxu0 0.0
    %6338 = vmatpush1.xpose.msra.mxu0 0.0
    %6339 = vmatprep.subr.mxu0 0.0
    %6340 = vmatpush1.xpose.msra.mxu0 0.0
    %6341 = vmatprep.subr.mxu0 0.0
    %6342 = vmatpush1.xpose.msra.mxu0 %v6309
    %6343 = vmatprep.subr.mxu0 0.0
    %6344 = vmatpush2.xpose.msra.mxu0 0.0
    %6345 = vmatprep.subr.mxu0 0.0
    %6346 = vmatpush2.xpose.msra.mxu0 0.0
    %6347 = vmatprep.subr.mxu0 0.0
    %6348 = vmatpush2.xpose.msra.mxu0 0.0
    %6349 = vmatprep.subr.mxu0 0.0
    %6350 = vmatpush2.xpose.msra.mxu0 0.0
    %6351 = vmatprep.subr.mxu0 0.0
    %6352 = vmatpush2.xpose.msra.mxu0 0.0
    %6353 = vmatprep.subr.mxu0 0.0
    %6354 = vmatpush2.xpose.msra.mxu0 0.0
    %6355 = vmatprep.subr.mxu0 0.0
    %6356 = vmatpush2.xpose.msra.mxu0 0.0
    %6357 = vmatprep.subr.mxu0 0.0
    %6358 = vmatpush2.xpose.msra.mxu0 0.0
    %6359 = vmatprep.subr.mxu0 0.0
    %6360 = vmatpush2.xpose.msra.mxu0 0.0
    %6361 = vmatprep.subr.mxu0 0.0
    %6362 = vmatpush2.xpose.msra.mxu0 0.0
    %6363 = vmatprep.subr.mxu0 0.0
    %6364 = vmatpush2.xpose.msra.mxu0 0.0
    %6365 = vmatprep.subr.mxu0 0.0
    %6366 = vmatpush2.xpose.msra.mxu0 0.0
    %6367 = vmatprep.subr.mxu0 0.0
    %6368 = vmatpush2.xpose.msra.mxu0 0.0
    %6369 = vmatprep.subr.mxu0 0.0
    %6370 = vmatpush2.xpose.msra.mxu0 0.0
    %6371 = vmatprep.subr.mxu0 0.0
    %6372 = vmatpush2.xpose.msra.mxu0 0.0
    %6373 = vmatprep.subr.mxu0 0.0
    %6374 = vmatpush2.xpose.msra.mxu0 0.0
    %6375 = vmatprep.mubr.f32.mxu0 0.0
    %6376 = vmatmul.mubr.f32.gmra.mxu0 %v6307
    %v6377 = vpop.f32.mrf.mxu0
    %v6378 = vadd.f32 0.0, %v6377
    %v6379 = vpop.f32.mrf.mxu0
    %6380 = vdwg.mxu0
    %6381 = vrot.lane.b32.xlu0 %v237, 112
    %v6382 = vpop.permute.xlu0 %6381
    %6383 = vrot.lane.b32.xlu0 %v237, 80
    %v6384 = vpop.permute.xlu0 %6383
    %v6385 = vsel %vm275, %v6382, 0
    %v6387 = vsel %vm275, %v6384, 0
    %6389 = vmatprep.subr.mxu0 0.0
    %6390 = vmatpush1.xpose.msra.mxu0 0.0
    %6391 = vmatprep.subr.mxu0 0.0
    %6392 = vmatpush1.xpose.msra.mxu0 0.0
    %6393 = vmatprep.subr.mxu0 0.0
    %6394 = vmatpush1.xpose.msra.mxu0 0.0
    %6395 = vmatprep.subr.mxu0 0.0
    %6396 = vmatpush1.xpose.msra.mxu0 0.0
    %6397 = vmatprep.subr.mxu0 0.0
    %6398 = vmatpush1.xpose.msra.mxu0 0.0
    %6399 = vmatprep.subr.mxu0 0.0
    %6400 = vmatpush1.xpose.msra.mxu0 0.0
    %6401 = vmatprep.subr.mxu0 0.0
    %6402 = vmatpush1.xpose.msra.mxu0 0.0
    %6403 = vmatprep.subr.mxu0 0.0
    %6404 = vmatpush1.xpose.msra.mxu0 0.0
    %6405 = vmatprep.subr.mxu0 0.0
    %6406 = vmatpush1.xpose.msra.mxu0 0.0
    %6407 = vmatprep.subr.mxu0 0.0
    %6408 = vmatpush1.xpose.msra.mxu0 0.0
    %6409 = vmatprep.subr.mxu0 0.0
    %6410 = vmatpush1.xpose.msra.mxu0 0.0
    %6411 = vmatprep.subr.mxu0 0.0
    %6412 = vmatpush1.xpose.msra.mxu0 0.0
    %6413 = vmatprep.subr.mxu0 0.0
    %6414 = vmatpush1.xpose.msra.mxu0 0.0
    %6415 = vmatprep.subr.mxu0 0.0
    %6416 = vmatpush1.xpose.msra.mxu0 0.0
    %6417 = vmatprep.subr.mxu0 0.0
    %6418 = vmatpush1.xpose.msra.mxu0 0.0
    %6419 = vmatprep.subr.mxu0 0.0
    %6420 = vmatpush1.xpose.msra.mxu0 %v6387
    %6421 = vmatprep.subr.mxu0 0.0
    %6422 = vmatpush2.xpose.msra.mxu0 0.0
    %6423 = vmatprep.subr.mxu0 0.0
    %6424 = vmatpush2.xpose.msra.mxu0 0.0
    %6425 = vmatprep.subr.mxu0 0.0
    %6426 = vmatpush2.xpose.msra.mxu0 0.0
    %6427 = vmatprep.subr.mxu0 0.0
    %6428 = vmatpush2.xpose.msra.mxu0 0.0
    %6429 = vmatprep.subr.mxu0 0.0
    %6430 = vmatpush2.xpose.msra.mxu0 0.0
    %6431 = vmatprep.subr.mxu0 0.0
    %6432 = vmatpush2.xpose.msra.mxu0 0.0
    %6433 = vmatprep.subr.mxu0 0.0
    %6434 = vmatpush2.xpose.msra.mxu0 0.0
    %6435 = vmatprep.subr.mxu0 0.0
    %6436 = vmatpush2.xpose.msra.mxu0 0.0
    %6437 = vmatprep.subr.mxu0 0.0
    %6438 = vmatpush2.xpose.msra.mxu0 0.0
    %6439 = vmatprep.subr.mxu0 0.0
    %6440 = vmatpush2.xpose.msra.mxu0 0.0
    %6441 = vmatprep.subr.mxu0 0.0
    %6442 = vmatpush2.xpose.msra.mxu0 0.0
    %6443 = vmatprep.subr.mxu0 0.0
    %6444 = vmatpush2.xpose.msra.mxu0 0.0
    %6445 = vmatprep.subr.mxu0 0.0
    %6446 = vmatpush2.xpose.msra.mxu0 0.0
    %6447 = vmatprep.subr.mxu0 0.0
    %6448 = vmatpush2.xpose.msra.mxu0 0.0
    %6449 = vmatprep.subr.mxu0 0.0
    %6450 = vmatpush2.xpose.msra.mxu0 0.0
    %6451 = vmatprep.subr.mxu0 0.0
    %6452 = vmatpush2.xpose.msra.mxu0 0.0
    %6453 = vmatprep.mubr.f32.mxu0 0.0
    %6454 = vmatmul.mubr.f32.gmra.mxu0 %v6385
    %v6455 = vpop.f32.mrf.mxu0
    %v6456 = vadd.f32 0.0, %v6455
    %v6457 = vpop.f32.mrf.mxu0
    %6458 = vdwg.mxu0
    %6459 = vrot.lane.b32.xlu0 %v241, 112
    %v6460 = vpop.permute.xlu0 %6459
    %6461 = vrot.lane.b32.xlu0 %v241, 80
    %v6462 = vpop.permute.xlu0 %6461
    %v6463 = vsel %vm275, %v6460, 0
    %v6465 = vsel %vm275, %v6462, 0
    %6467 = vmatprep.subr.mxu0 0.0
    %6468 = vmatpush1.xpose.msra.mxu0 0.0
    %6469 = vmatprep.subr.mxu0 0.0
    %6470 = vmatpush1.xpose.msra.mxu0 0.0
    %6471 = vmatprep.subr.mxu0 0.0
    %6472 = vmatpush1.xpose.msra.mxu0 0.0
    %6473 = vmatprep.subr.mxu0 0.0
    %6474 = vmatpush1.xpose.msra.mxu0 0.0
    %6475 = vmatprep.subr.mxu0 0.0
    %6476 = vmatpush1.xpose.msra.mxu0 0.0
    %6477 = vmatprep.subr.mxu0 0.0
    %6478 = vmatpush1.xpose.msra.mxu0 0.0
    %6479 = vmatprep.subr.mxu0 0.0
    %6480 = vmatpush1.xpose.msra.mxu0 0.0
    %6481 = vmatprep.subr.mxu0 0.0
    %6482 = vmatpush1.xpose.msra.mxu0 0.0
    %6483 = vmatprep.subr.mxu0 0.0
    %6484 = vmatpush1.xpose.msra.mxu0 0.0
    %6485 = vmatprep.subr.mxu0 0.0
    %6486 = vmatpush1.xpose.msra.mxu0 0.0
    %6487 = vmatprep.subr.mxu0 0.0
    %6488 = vmatpush1.xpose.msra.mxu0 0.0
    %6489 = vmatprep.subr.mxu0 0.0
    %6490 = vmatpush1.xpose.msra.mxu0 0.0
    %6491 = vmatprep.subr.mxu0 0.0
    %6492 = vmatpush1.xpose.msra.mxu0 0.0
    %6493 = vmatprep.subr.mxu0 0.0
    %6494 = vmatpush1.xpose.msra.mxu0 0.0
    %6495 = vmatprep.subr.mxu0 0.0
    %6496 = vmatpush1.xpose.msra.mxu0 0.0
    %6497 = vmatprep.subr.mxu0 0.0
    %6498 = vmatpush1.xpose.msra.mxu0 %v6465
    %6499 = vmatprep.subr.mxu0 0.0
    %6500 = vmatpush2.xpose.msra.mxu0 0.0
    %6501 = vmatprep.subr.mxu0 0.0
    %6502 = vmatpush2.xpose.msra.mxu0 0.0
    %6503 = vmatprep.subr.mxu0 0.0
    %6504 = vmatpush2.xpose.msra.mxu0 0.0
    %6505 = vmatprep.subr.mxu0 0.0
    %6506 = vmatpush2.xpose.msra.mxu0 0.0
    %6507 = vmatprep.subr.mxu0 0.0
    %6508 = vmatpush2.xpose.msra.mxu0 0.0
    %6509 = vmatprep.subr.mxu0 0.0
    %6510 = vmatpush2.xpose.msra.mxu0 0.0
    %6511 = vmatprep.subr.mxu0 0.0
    %6512 = vmatpush2.xpose.msra.mxu0 0.0
    %6513 = vmatprep.subr.mxu0 0.0
    %6514 = vmatpush2.xpose.msra.mxu0 0.0
    %6515 = vmatprep.subr.mxu0 0.0
    %6516 = vmatpush2.xpose.msra.mxu0 0.0
    %6517 = vmatprep.subr.mxu0 0.0
    %6518 = vmatpush2.xpose.msra.mxu0 0.0
    %6519 = vmatprep.subr.mxu0 0.0
    %6520 = vmatpush2.xpose.msra.mxu0 0.0
    %6521 = vmatprep.subr.mxu0 0.0
    %6522 = vmatpush2.xpose.msra.mxu0 0.0
    %6523 = vmatprep.subr.mxu0 0.0
    %6524 = vmatpush2.xpose.msra.mxu0 0.0
    %6525 = vmatprep.subr.mxu0 0.0
    %6526 = vmatpush2.xpose.msra.mxu0 0.0
    %6527 = vmatprep.subr.mxu0 0.0
    %6528 = vmatpush2.xpose.msra.mxu0 0.0
    %6529 = vmatprep.subr.mxu0 0.0
    %6530 = vmatpush2.xpose.msra.mxu0 0.0
    %6531 = vmatprep.mubr.f32.mxu0 0.0
    %6532 = vmatmul.mubr.f32.gmra.mxu0 %v6463
    %v6533 = vpop.f32.mrf.mxu0
    %v6534 = vadd.f32 0.0, %v6533
    %v6535 = vpop.f32.mrf.mxu0
    %6536 = vdwg.mxu0
    %6537 = vrot.lane.b32.xlu0 %v247, 112
    %v6538 = vpop.permute.xlu0 %6537
    %6539 = vrot.lane.b32.xlu0 %v247, 80
    %v6540 = vpop.permute.xlu0 %6539
    %v6541 = vsel %vm275, %v6538, 0
    %v6543 = vsel %vm275, %v6540, 0
    %6545 = vmatprep.subr.mxu0 0.0
    %6546 = vmatpush1.xpose.msra.mxu0 0.0
    %6547 = vmatprep.subr.mxu0 0.0
    %6548 = vmatpush1.xpose.msra.mxu0 0.0
    %6549 = vmatprep.subr.mxu0 0.0
    %6550 = vmatpush1.xpose.msra.mxu0 0.0
    %6551 = vmatprep.subr.mxu0 0.0
    %6552 = vmatpush1.xpose.msra.mxu0 0.0
    %6553 = vmatprep.subr.mxu0 0.0
    %6554 = vmatpush1.xpose.msra.mxu0 0.0
    %6555 = vmatprep.subr.mxu0 0.0
    %6556 = vmatpush1.xpose.msra.mxu0 0.0
    %6557 = vmatprep.subr.mxu0 0.0
    %6558 = vmatpush1.xpose.msra.mxu0 0.0
    %6559 = vmatprep.subr.mxu0 0.0
    %6560 = vmatpush1.xpose.msra.mxu0 0.0
    %6561 = vmatprep.subr.mxu0 0.0
    %6562 = vmatpush1.xpose.msra.mxu0 0.0
    %6563 = vmatprep.subr.mxu0 0.0
    %6564 = vmatpush1.xpose.msra.mxu0 0.0
    %6565 = vmatprep.subr.mxu0 0.0
    %6566 = vmatpush1.xpose.msra.mxu0 0.0
    %6567 = vmatprep.subr.mxu0 0.0
    %6568 = vmatpush1.xpose.msra.mxu0 0.0
    %6569 = vmatprep.subr.mxu0 0.0
    %6570 = vmatpush1.xpose.msra.mxu0 0.0
    %6571 = vmatprep.subr.mxu0 0.0
    %6572 = vmatpush1.xpose.msra.mxu0 0.0
    %6573 = vmatprep.subr.mxu0 0.0
    %6574 = vmatpush1.xpose.msra.mxu0 0.0
    %6575 = vmatprep.subr.mxu0 0.0
    %6576 = vmatpush1.xpose.msra.mxu0 %v6543
    %6577 = vmatprep.subr.mxu0 0.0
    %6578 = vmatpush2.xpose.msra.mxu0 0.0
    %6579 = vmatprep.subr.mxu0 0.0
    %6580 = vmatpush2.xpose.msra.mxu0 0.0
    %6581 = vmatprep.subr.mxu0 0.0
    %6582 = vmatpush2.xpose.msra.mxu0 0.0
    %6583 = vmatprep.subr.mxu0 0.0
    %6584 = vmatpush2.xpose.msra.mxu0 0.0
    %6585 = vmatprep.subr.mxu0 0.0
    %6586 = vmatpush2.xpose.msra.mxu0 0.0
    %6587 = vmatprep.subr.mxu0 0.0
    %6588 = vmatpush2.xpose.msra.mxu0 0.0
    %6589 = vmatprep.subr.mxu0 0.0
    %6590 = vmatpush2.xpose.msra.mxu0 0.0
    %6591 = vmatprep.subr.mxu0 0.0
    %6592 = vmatpush2.xpose.msra.mxu0 0.0
    %6593 = vmatprep.subr.mxu0 0.0
    %6594 = vmatpush2.xpose.msra.mxu0 0.0
    %6595 = vmatprep.subr.mxu0 0.0
    %6596 = vmatpush2.xpose.msra.mxu0 0.0
    %6597 = vmatprep.subr.mxu0 0.0
    %6598 = vmatpush2.xpose.msra.mxu0 0.0
    %6599 = vmatprep.subr.mxu0 0.0
    %6600 = vmatpush2.xpose.msra.mxu0 0.0
    %6601 = vmatprep.subr.mxu0 0.0
    %6602 = vmatpush2.xpose.msra.mxu0 0.0
    %6603 = vmatprep.subr.mxu0 0.0
    %6604 = vmatpush2.xpose.msra.mxu0 0.0
    %6605 = vmatprep.subr.mxu0 0.0
    %6606 = vmatpush2.xpose.msra.mxu0 0.0
    %6607 = vmatprep.subr.mxu0 0.0
    %6608 = vmatpush2.xpose.msra.mxu0 0.0
    %6609 = vmatprep.mubr.f32.mxu0 0.0
    %6610 = vmatmul.mubr.f32.gmra.mxu0 %v6541
    %v6611 = vpop.f32.mrf.mxu0
    %v6612 = vadd.f32 0.0, %v6611
    %v6613 = vpop.f32.mrf.mxu0
    %6614 = vdwg.mxu0
    %6615 = vrot.lane.b32.xlu0 %v251, 112
    %v6616 = vpop.permute.xlu0 %6615
    %6617 = vrot.lane.b32.xlu0 %v251, 80
    %v6618 = vpop.permute.xlu0 %6617
    %v6619 = vsel %vm275, %v6616, 0
    %v6621 = vsel %vm275, %v6618, 0
    %6623 = vmatprep.subr.mxu0 0.0
    %6624 = vmatpush1.xpose.msra.mxu0 0.0
    %6625 = vmatprep.subr.mxu0 0.0
    %6626 = vmatpush1.xpose.msra.mxu0 0.0
    %6627 = vmatprep.subr.mxu0 0.0
    %6628 = vmatpush1.xpose.msra.mxu0 0.0
    %6629 = vmatprep.subr.mxu0 0.0
    %6630 = vmatpush1.xpose.msra.mxu0 0.0
    %6631 = vmatprep.subr.mxu0 0.0
    %6632 = vmatpush1.xpose.msra.mxu0 0.0
    %6633 = vmatprep.subr.mxu0 0.0
    %6634 = vmatpush1.xpose.msra.mxu0 0.0
    %6635 = vmatprep.subr.mxu0 0.0
    %6636 = vmatpush1.xpose.msra.mxu0 0.0
    %6637 = vmatprep.subr.mxu0 0.0
    %6638 = vmatpush1.xpose.msra.mxu0 0.0
    %6639 = vmatprep.subr.mxu0 0.0
    %6640 = vmatpush1.xpose.msra.mxu0 0.0
    %6641 = vmatprep.subr.mxu0 0.0
    %6642 = vmatpush1.xpose.msra.mxu0 0.0
    %6643 = vmatprep.subr.mxu0 0.0
    %6644 = vmatpush1.xpose.msra.mxu0 0.0
    %6645 = vmatprep.subr.mxu0 0.0
    %6646 = vmatpush1.xpose.msra.mxu0 0.0
    %6647 = vmatprep.subr.mxu0 0.0
    %6648 = vmatpush1.xpose.msra.mxu0 0.0
    %6649 = vmatprep.subr.mxu0 0.0
    %6650 = vmatpush1.xpose.msra.mxu0 0.0
    %6651 = vmatprep.subr.mxu0 0.0
    %6652 = vmatpush1.xpose.msra.mxu0 0.0
    %6653 = vmatprep.subr.mxu0 0.0
    %6654 = vmatpush1.xpose.msra.mxu0 %v6621
    %6655 = vmatprep.subr.mxu0 0.0
    %6656 = vmatpush2.xpose.msra.mxu0 0.0
    %6657 = vmatprep.subr.mxu0 0.0
    %6658 = vmatpush2.xpose.msra.mxu0 0.0
    %6659 = vmatprep.subr.mxu0 0.0
    %6660 = vmatpush2.xpose.msra.mxu0 0.0
    %6661 = vmatprep.subr.mxu0 0.0
    %6662 = vmatpush2.xpose.msra.mxu0 0.0
    %6663 = vmatprep.subr.mxu0 0.0
    %6664 = vmatpush2.xpose.msra.mxu0 0.0
    %6665 = vmatprep.subr.mxu0 0.0
    %6666 = vmatpush2.xpose.msra.mxu0 0.0
    %6667 = vmatprep.subr.mxu0 0.0
    %6668 = vmatpush2.xpose.msra.mxu0 0.0
    %6669 = vmatprep.subr.mxu0 0.0
    %6670 = vmatpush2.xpose.msra.mxu0 0.0
    %6671 = vmatprep.subr.mxu0 0.0
    %6672 = vmatpush2.xpose.msra.mxu0 0.0
    %6673 = vmatprep.subr.mxu0 0.0
    %6674 = vmatpush2.xpose.msra.mxu0 0.0
    %6675 = vmatprep.subr.mxu0 0.0
    %6676 = vmatpush2.xpose.msra.mxu0 0.0
    %6677 = vmatprep.subr.mxu0 0.0
    %6678 = vmatpush2.xpose.msra.mxu0 0.0
    %6679 = vmatprep.subr.mxu0 0.0
    %6680 = vmatpush2.xpose.msra.mxu0 0.0
    %6681 = vmatprep.subr.mxu0 0.0
    %6682 = vmatpush2.xpose.msra.mxu0 0.0
    %6683 = vmatprep.subr.mxu0 0.0
    %6684 = vmatpush2.xpose.msra.mxu0 0.0
    %6685 = vmatprep.subr.mxu0 0.0
    %6686 = vmatpush2.xpose.msra.mxu0 0.0
    %6687 = vmatprep.mubr.f32.mxu0 0.0
    %6688 = vmatmul.mubr.f32.gmra.mxu0 %v6619
    %v6689 = vpop.f32.mrf.mxu0
    %v6690 = vadd.f32 0.0, %v6689
    %v6691 = vpop.f32.mrf.mxu0
    %6692 = vdwg.mxu0
    %6693 = vrot.lane.b32.xlu0 %v257, 112
    %v6694 = vpop.permute.xlu0 %6693
    %6695 = vrot.lane.b32.xlu0 %v257, 80
    %v6696 = vpop.permute.xlu0 %6695
    %v6697 = vsel %vm275, %v6694, 0
    %v6699 = vsel %vm275, %v6696, 0
    %6701 = vmatprep.subr.mxu0 0.0
    %6702 = vmatpush1.xpose.msra.mxu0 0.0
    %6703 = vmatprep.subr.mxu0 0.0
    %6704 = vmatpush1.xpose.msra.mxu0 0.0
    %6705 = vmatprep.subr.mxu0 0.0
    %6706 = vmatpush1.xpose.msra.mxu0 0.0
    %6707 = vmatprep.subr.mxu0 0.0
    %6708 = vmatpush1.xpose.msra.mxu0 0.0
    %6709 = vmatprep.subr.mxu0 0.0
    %6710 = vmatpush1.xpose.msra.mxu0 0.0
    %6711 = vmatprep.subr.mxu0 0.0
    %6712 = vmatpush1.xpose.msra.mxu0 0.0
    %6713 = vmatprep.subr.mxu0 0.0
    %6714 = vmatpush1.xpose.msra.mxu0 0.0
    %6715 = vmatprep.subr.mxu0 0.0
    %6716 = vmatpush1.xpose.msra.mxu0 0.0
    %6717 = vmatprep.subr.mxu0 0.0
    %6718 = vmatpush1.xpose.msra.mxu0 0.0
    %6719 = vmatprep.subr.mxu0 0.0
    %6720 = vmatpush1.xpose.msra.mxu0 0.0
    %6721 = vmatprep.subr.mxu0 0.0
    %6722 = vmatpush1.xpose.msra.mxu0 0.0
    %6723 = vmatprep.subr.mxu0 0.0
    %6724 = vmatpush1.xpose.msra.mxu0 0.0
    %6725 = vmatprep.subr.mxu0 0.0
    %6726 = vmatpush1.xpose.msra.mxu0 0.0
    %6727 = vmatprep.subr.mxu0 0.0
    %6728 = vmatpush1.xpose.msra.mxu0 0.0
    %6729 = vmatprep.subr.mxu0 0.0
    %6730 = vmatpush1.xpose.msra.mxu0 0.0
    %6731 = vmatprep.subr.mxu0 0.0
    %6732 = vmatpush1.xpose.msra.mxu0 %v6699
    %6733 = vmatprep.subr.mxu0 0.0
    %6734 = vmatpush2.xpose.msra.mxu0 0.0
    %6735 = vmatprep.subr.mxu0 0.0
    %6736 = vmatpush2.xpose.msra.mxu0 0.0
    %6737 = vmatprep.subr.mxu0 0.0
    %6738 = vmatpush2.xpose.msra.mxu0 0.0
    %6739 = vmatprep.subr.mxu0 0.0
    %6740 = vmatpush2.xpose.msra.mxu0 0.0
    %6741 = vmatprep.subr.mxu0 0.0
    %6742 = vmatpush2.xpose.msra.mxu0 0.0
    %6743 = vmatprep.subr.mxu0 0.0
    %6744 = vmatpush2.xpose.msra.mxu0 0.0
    %6745 = vmatprep.subr.mxu0 0.0
    %6746 = vmatpush2.xpose.msra.mxu0 0.0
    %6747 = vmatprep.subr.mxu0 0.0
    %6748 = vmatpush2.xpose.msra.mxu0 0.0
    %6749 = vmatprep.subr.mxu0 0.0
    %6750 = vmatpush2.xpose.msra.mxu0 0.0
    %6751 = vmatprep.subr.mxu0 0.0
    %6752 = vmatpush2.xpose.msra.mxu0 0.0
    %6753 = vmatprep.subr.mxu0 0.0
    %6754 = vmatpush2.xpose.msra.mxu0 0.0
    %6755 = vmatprep.subr.mxu0 0.0
    %6756 = vmatpush2.xpose.msra.mxu0 0.0
    %6757 = vmatprep.subr.mxu0 0.0
    %6758 = vmatpush2.xpose.msra.mxu0 0.0
    %6759 = vmatprep.subr.mxu0 0.0
    %6760 = vmatpush2.xpose.msra.mxu0 0.0
    %6761 = vmatprep.subr.mxu0 0.0
    %6762 = vmatpush2.xpose.msra.mxu0 0.0
    %6763 = vmatprep.subr.mxu0 0.0
    %6764 = vmatpush2.xpose.msra.mxu0 0.0
    %6765 = vmatprep.mubr.f32.mxu0 0.0
    %6766 = vmatmul.mubr.f32.gmra.mxu0 %v6697
    %v6767 = vpop.f32.mrf.mxu0
    %v6768 = vadd.f32 0.0, %v6767
    %v6769 = vpop.f32.mrf.mxu0
    %6770 = vdwg.mxu0
    %6771 = vrot.lane.b32.xlu0 %v261, 112
    %v6772 = vpop.permute.xlu0 %6771
    %6773 = vrot.lane.b32.xlu0 %v261, 80
    %v6774 = vpop.permute.xlu0 %6773
    %v6775 = vsel %vm275, %v6772, 0
    %v6777 = vsel %vm275, %v6774, 0
    %6779 = vmatprep.subr.mxu0 0.0
    %6780 = vmatpush1.xpose.msra.mxu0 0.0
    %6781 = vmatprep.subr.mxu0 0.0
    %6782 = vmatpush1.xpose.msra.mxu0 0.0
    %6783 = vmatprep.subr.mxu0 0.0
    %6784 = vmatpush1.xpose.msra.mxu0 0.0
    %6785 = vmatprep.subr.mxu0 0.0
    %6786 = vmatpush1.xpose.msra.mxu0 0.0
    %6787 = vmatprep.subr.mxu0 0.0
    %6788 = vmatpush1.xpose.msra.mxu0 0.0
    %6789 = vmatprep.subr.mxu0 0.0
    %6790 = vmatpush1.xpose.msra.mxu0 0.0
    %6791 = vmatprep.subr.mxu0 0.0
    %6792 = vmatpush1.xpose.msra.mxu0 0.0
    %6793 = vmatprep.subr.mxu0 0.0
    %6794 = vmatpush1.xpose.msra.mxu0 0.0
    %6795 = vmatprep.subr.mxu0 0.0
    %6796 = vmatpush1.xpose.msra.mxu0 0.0
    %6797 = vmatprep.subr.mxu0 0.0
    %6798 = vmatpush1.xpose.msra.mxu0 0.0
    %6799 = vmatprep.subr.mxu0 0.0
    %6800 = vmatpush1.xpose.msra.mxu0 0.0
    %6801 = vmatprep.subr.mxu0 0.0
    %6802 = vmatpush1.xpose.msra.mxu0 0.0
    %6803 = vmatprep.subr.mxu0 0.0
    %6804 = vmatpush1.xpose.msra.mxu0 0.0
    %6805 = vmatprep.subr.mxu0 0.0
    %6806 = vmatpush1.xpose.msra.mxu0 0.0
    %6807 = vmatprep.subr.mxu0 0.0
    %6808 = vmatpush1.xpose.msra.mxu0 0.0
    %6809 = vmatprep.subr.mxu0 0.0
    %6810 = vmatpush1.xpose.msra.mxu0 %v6777
    %6811 = vmatprep.subr.mxu0 0.0
    %6812 = vmatpush2.xpose.msra.mxu0 0.0
    %6813 = vmatprep.subr.mxu0 0.0
    %6814 = vmatpush2.xpose.msra.mxu0 0.0
    %6815 = vmatprep.subr.mxu0 0.0
    %6816 = vmatpush2.xpose.msra.mxu0 0.0
    %6817 = vmatprep.subr.mxu0 0.0
    %6818 = vmatpush2.xpose.msra.mxu0 0.0
    %6819 = vmatprep.subr.mxu0 0.0
    %6820 = vmatpush2.xpose.msra.mxu0 0.0
    %6821 = vmatprep.subr.mxu0 0.0
    %6822 = vmatpush2.xpose.msra.mxu0 0.0
    %6823 = vmatprep.subr.mxu0 0.0
    %6824 = vmatpush2.xpose.msra.mxu0 0.0
    %6825 = vmatprep.subr.mxu0 0.0
    %6826 = vmatpush2.xpose.msra.mxu0 0.0
    %6827 = vmatprep.subr.mxu0 0.0
    %6828 = vmatpush2.xpose.msra.mxu0 0.0
    %6829 = vmatprep.subr.mxu0 0.0
    %6830 = vmatpush2.xpose.msra.mxu0 0.0
    %6831 = vmatprep.subr.mxu0 0.0
    %6832 = vmatpush2.xpose.msra.mxu0 0.0
    %6833 = vmatprep.subr.mxu0 0.0
    %6834 = vmatpush2.xpose.msra.mxu0 0.0
    %6835 = vmatprep.subr.mxu0 0.0
    %6836 = vmatpush2.xpose.msra.mxu0 0.0
    %6837 = vmatprep.subr.mxu0 0.0
    %6838 = vmatpush2.xpose.msra.mxu0 0.0
    %6839 = vmatprep.subr.mxu0 0.0
    %6840 = vmatpush2.xpose.msra.mxu0 0.0
    %6841 = vmatprep.subr.mxu0 0.0
    %6842 = vmatpush2.xpose.msra.mxu0 0.0
    %6843 = vmatprep.mubr.f32.mxu0 0.0
    %6844 = vmatmul.mubr.f32.gmra.mxu0 %v6775
    %v6845 = vpop.f32.mrf.mxu0
    %v6846 = vadd.f32 0.0, %v6845
    %v6847 = vpop.f32.mrf.mxu0
    %6848 = vdwg.mxu0
    %v6849 = vmul.f32 %v5676, 0.35355338
    %v6850 = vmul.f32 %v5754, 0.35355338
    %v6851 = vmul.f32 %v5832, 0.35355338
    %v6852 = vmul.f32 %v5910, 0.35355338
    %v6853 = vmul.f32 %v5988, 0.35355338
    %v6854 = vmul.f32 %v6066, 0.35355338
    %v6855 = vmul.f32 %v6144, 0.35355338
    %v6856 = vmul.f32 %v6222, 0.35355338
    %v6857 = vmul.f32 %v6300, 0.35355338
    %v6858 = vmul.f32 %v6378, 0.35355338
    %v6859 = vmul.f32 %v6456, 0.35355338
    %v6860 = vmul.f32 %v6534, 0.35355338
    %v6861 = vmul.f32 %v6612, 0.35355338
    %v6862 = vmul.f32 %v6690, 0.35355338
    %v6863 = vmul.f32 %v6768, 0.35355338
    %v6864 = vmul.f32 %v6846, 0.35355338
    %v6865 = vsel %vm275, %v6849, -inf
    %6866 = vmax.xlane.f32.xlu0 %v6865
    %v6867 = vpop.xlane.xlu0 %6866
    %v6868 = vsel %vm275, %v6850, -inf
    %6869 = vmax.xlane.f32.xlu0 %v6868
    %v6870 = vpop.xlane.xlu0 %6869
    %v6871 = vsel %vm275, %v6851, -inf
    %6872 = vmax.xlane.f32.xlu0 %v6871
    %v6873 = vpop.xlane.xlu0 %6872
    %v6874 = vsel %vm275, %v6852, -inf
    %6875 = vmax.xlane.f32.xlu0 %v6874
    %v6876 = vpop.xlane.xlu0 %6875
    %v6877 = vsel %vm275, %v6853, -inf
    %6878 = vmax.xlane.f32.xlu0 %v6877
    %v6879 = vpop.xlane.xlu0 %6878
    %v6880 = vsel %vm275, %v6854, -inf
    %6881 = vmax.xlane.f32.xlu0 %v6880
    %v6882 = vpop.xlane.xlu0 %6881
    %v6883 = vsel %vm275, %v6855, -inf
    %6884 = vmax.xlane.f32.xlu0 %v6883
    %v6885 = vpop.xlane.xlu0 %6884
    %v6886 = vsel %vm275, %v6856, -inf
    %6887 = vmax.xlane.f32.xlu0 %v6886
    %v6888 = vpop.xlane.xlu0 %6887
    %v6889 = vsel %vm275, %v6857, -inf
    %6890 = vmax.xlane.f32.xlu0 %v6889
    %v6891 = vpop.xlane.xlu0 %6890
    %v6892 = vsel %vm275, %v6858, -inf
    %6893 = vmax.xlane.f32.xlu0 %v6892
    %v6894 = vpop.xlane.xlu0 %6893
    %v6895 = vsel %vm275, %v6859, -inf
    %6896 = vmax.xlane.f32.xlu0 %v6895
    %v6897 = vpop.xlane.xlu0 %6896
    %v6898 = vsel %vm275, %v6860, -inf
    %6899 = vmax.xlane.f32.xlu0 %v6898
    %v6900 = vpop.xlane.xlu0 %6899
    %v6901 = vsel %vm275, %v6861, -inf
    %6902 = vmax.xlane.f32.xlu0 %v6901
    %v6903 = vpop.xlane.xlu0 %6902
    %v6904 = vsel %vm275, %v6862, -inf
    %6905 = vmax.xlane.f32.xlu0 %v6904
    %v6906 = vpop.xlane.xlu0 %6905
    %v6907 = vsel %vm275, %v6863, -inf
    %6908 = vmax.xlane.f32.xlu0 %v6907
    %v6909 = vpop.xlane.xlu0 %6908
    %v6910 = vsel %vm275, %v6864, -inf
    %6911 = vmax.xlane.f32.xlu0 %v6910
    %v6912 = vpop.xlane.xlu0 %6911
    %v6913 = vsub.f32 %v6849, %v6867
    %v6914 = vsub.f32 %v6850, %v6870
    %v6915 = vsub.f32 %v6851, %v6873
    %v6916 = vsub.f32 %v6852, %v6876
    %v6917 = vsub.f32 %v6853, %v6879
    %v6918 = vsub.f32 %v6854, %v6882
    %v6919 = vsub.f32 %v6855, %v6885
    %v6920 = vsub.f32 %v6856, %v6888
    %v6921 = vsub.f32 %v6857, %v6891
    %v6922 = vsub.f32 %v6858, %v6894
    %v6923 = vsub.f32 %v6859, %v6897
    %v6924 = vsub.f32 %v6860, %v6900
    %v6925 = vsub.f32 %v6861, %v6903
    %v6926 = vsub.f32 %v6862, %v6906
    %v6927 = vsub.f32 %v6863, %v6909
    %v6928 = vsub.f32 %v6864, %v6912
    %v6929 = vmul.f32 %v6913, 1.442695
    %v6930 = vpow.pop %v6929
    %v6931 = vmul.f32 %v6914, 1.442695
    %v6932 = vpow.pop %v6931
    %v6933 = vmul.f32 %v6915, 1.442695
    %v6934 = vpow.pop %v6933
    %v6935 = vmul.f32 %v6916, 1.442695
    %v6936 = vpow.pop %v6935
    %v6937 = vmul.f32 %v6917, 1.442695
    %v6938 = vpow.pop %v6937
    %v6939 = vmul.f32 %v6918, 1.442695
    %v6940 = vpow.pop %v6939
    %v6941 = vmul.f32 %v6919, 1.442695
    %v6942 = vpow.pop %v6941
    %v6943 = vmul.f32 %v6920, 1.442695
    %v6944 = vpow.pop %v6943
    %v6945 = vmul.f32 %v6921, 1.442695
    %v6946 = vpow.pop %v6945
    %v6947 = vmul.f32 %v6922, 1.442695
    %v6948 = vpow.pop %v6947
    %v6949 = vmul.f32 %v6923, 1.442695
    %v6950 = vpow.pop %v6949
    %v6951 = vmul.f32 %v6924, 1.442695
    %v6952 = vpow.pop %v6951
    %v6953 = vmul.f32 %v6925, 1.442695
    %v6954 = vpow.pop %v6953
    %v6955 = vmul.f32 %v6926, 1.442695
    %v6956 = vpow.pop %v6955
    %v6957 = vmul.f32 %v6927, 1.442695
    %v6958 = vpow.pop %v6957
    %v6959 = vmul.f32 %v6928, 1.442695
    %v6960 = vpow.pop %v6959
    %v6961 = vsel %vm275, %v6930, 0.0
    %6962 = vadd.xlane.f32.xlu0 %v6961
    %v6963 = vpop.xlane.xlu0 %6962
    %v6964 = vsel %vm275, %v6932, 0.0
    %6965 = vadd.xlane.f32.xlu0 %v6964
    %v6966 = vpop.xlane.xlu0 %6965
    %v6967 = vsel %vm275, %v6934, 0.0
    %6968 = vadd.xlane.f32.xlu0 %v6967
    %v6969 = vpop.xlane.xlu0 %6968
    %v6970 = vsel %vm275, %v6936, 0.0
    %6971 = vadd.xlane.f32.xlu0 %v6970
    %v6972 = vpop.xlane.xlu0 %6971
    %v6973 = vsel %vm275, %v6938, 0.0
    %6974 = vadd.xlane.f32.xlu0 %v6973
    %v6975 = vpop.xlane.xlu0 %6974
    %v6976 = vsel %vm275, %v6940, 0.0
    %6977 = vadd.xlane.f32.xlu0 %v6976
    %v6978 = vpop.xlane.xlu0 %6977
    %v6979 = vsel %vm275, %v6942, 0.0
    %6980 = vadd.xlane.f32.xlu0 %v6979
    %v6981 = vpop.xlane.xlu0 %6980
    %v6982 = vsel %vm275, %v6944, 0.0
    %6983 = vadd.xlane.f32.xlu0 %v6982
    %v6984 = vpop.xlane.xlu0 %6983
    %v6985 = vsel %vm275, %v6946, 0.0
    %6986 = vadd.xlane.f32.xlu0 %v6985
    %v6987 = vpop.xlane.xlu0 %6986
    %v6988 = vsel %vm275, %v6948, 0.0
    %6989 = vadd.xlane.f32.xlu0 %v6988
    %v6990 = vpop.xlane.xlu0 %6989
    %v6991 = vsel %vm275, %v6950, 0.0
    %6992 = vadd.xlane.f32.xlu0 %v6991
    %v6993 = vpop.xlane.xlu0 %6992
    %v6994 = vsel %vm275, %v6952, 0.0
    %6995 = vadd.xlane.f32.xlu0 %v6994
    %v6996 = vpop.xlane.xlu0 %6995
    %v6997 = vsel %vm275, %v6954, 0.0
    %6998 = vadd.xlane.f32.xlu0 %v6997
    %v6999 = vpop.xlane.xlu0 %6998
    %v7000 = vsel %vm275, %v6956, 0.0
    %7001 = vadd.xlane.f32.xlu0 %v7000
    %v7002 = vpop.xlane.xlu0 %7001
    %v7003 = vsel %vm275, %v6958, 0.0
    %7004 = vadd.xlane.f32.xlu0 %v7003
    %v7005 = vpop.xlane.xlu0 %7004
    %v7006 = vsel %vm275, %v6960, 0.0
    %7007 = vadd.xlane.f32.xlu0 %v7006
    %v7008 = vpop.xlane.xlu0 %7007
    %v7009 = vrcp.pop %v6963
    %v7010 = vrcp.pop %v6966
    %v7011 = vrcp.pop %v6969
    %v7012 = vrcp.pop %v6972
    %v7013 = vrcp.pop %v6975
    %v7014 = vrcp.pop %v6978
    %v7015 = vrcp.pop %v6981
    %v7016 = vrcp.pop %v6984
    %v7017 = vrcp.pop %v6987
    %v7018 = vrcp.pop %v6990
    %v7019 = vrcp.pop %v6993
    %v7020 = vrcp.pop %v6996
    %v7021 = vrcp.pop %v6999
    %v7022 = vrcp.pop %v7002
    %v7023 = vrcp.pop %v7005
    %v7024 = vrcp.pop %v7008
    %v7025 = vmul.f32 %v6930, %v7009
    %v7026 = vmul.f32 %v6932, %v7010
    %v7027 = vmul.f32 %v6934, %v7011
    %v7028 = vmul.f32 %v6936, %v7012
    %v7029 = vmul.f32 %v6938, %v7013
    %v7030 = vmul.f32 %v6940, %v7014
    %v7031 = vmul.f32 %v6942, %v7015
    %v7032 = vmul.f32 %v6944, %v7016
    %v7033 = vmul.f32 %v6946, %v7017
    %v7034 = vmul.f32 %v6948, %v7018
    %v7035 = vmul.f32 %v6950, %v7019
    %v7036 = vmul.f32 %v6952, %v7020
    %v7037 = vmul.f32 %v6954, %v7021
    %v7038 = vmul.f32 %v6956, %v7022
    %v7039 = vmul.f32 %v6958, %v7023
    %v7040 = vmul.f32 %v6960, %v7024
    %v7042 = vsel %vm275, %v7025, 0
    %7044 = vmatprep.subr.mxu0 0.0
    %7045 = vmatpush1.msra.mxu0 0.0
    %7046 = vmatprep.subr.mxu0 0.0
    %7047 = vmatpush1.msra.mxu0 0.0
    %7048 = vmatprep.subr.mxu0 0.0
    %7049 = vmatpush1.msra.mxu0 0.0
    %7050 = vmatprep.subr.mxu0 0.0
    %7051 = vmatpush1.msra.mxu0 0.0
    %7052 = vmatprep.subr.mxu0 0.0
    %7053 = vmatpush1.msra.mxu0 0.0
    %7054 = vmatprep.subr.mxu0 0.0
    %7055 = vmatpush1.msra.mxu0 0.0
    %7056 = vmatprep.subr.mxu0 0.0
    %7057 = vmatpush1.msra.mxu0 0.0
    %7058 = vmatprep.subr.mxu0 0.0
    %7059 = vmatpush1.msra.mxu0 0.0
    %7060 = vmatprep.subr.mxu0 0.0
    %7061 = vmatpush1.msra.mxu0 0.0
    %7062 = vmatprep.subr.mxu0 0.0
    %7063 = vmatpush1.msra.mxu0 0.0
    %7064 = vmatprep.subr.mxu0 0.0
    %7065 = vmatpush1.msra.mxu0 0.0
    %7066 = vmatprep.subr.mxu0 0.0
    %7067 = vmatpush1.msra.mxu0 0.0
    %7068 = vmatprep.subr.mxu0 0.0
    %7069 = vmatpush1.msra.mxu0 0.0
    %7070 = vmatprep.subr.mxu0 0.0
    %7071 = vmatpush1.msra.mxu0 0.0
    %7072 = vmatprep.subr.mxu0 0.0
    %7073 = vmatpush1.msra.mxu0 0.0
    %7074 = vmatprep.subr.mxu0 0.0
    %7075 = vmatpush1.msra.mxu0 %v189
    %7076 = vmatprep.subr.mxu0 0.0
    %7077 = vmatpush2.msra.mxu0 0.0
    %7078 = vmatprep.subr.mxu0 0.0
    %7079 = vmatpush2.msra.mxu0 0.0
    %7080 = vmatprep.subr.mxu0 0.0
    %7081 = vmatpush2.msra.mxu0 0.0
    %7082 = vmatprep.subr.mxu0 0.0
    %7083 = vmatpush2.msra.mxu0 0.0
    %7084 = vmatprep.subr.mxu0 0.0
    %7085 = vmatpush2.msra.mxu0 0.0
    %7086 = vmatprep.subr.mxu0 0.0
    %7087 = vmatpush2.msra.mxu0 0.0
    %7088 = vmatprep.subr.mxu0 0.0
    %7089 = vmatpush2.msra.mxu0 0.0
    %7090 = vmatprep.subr.mxu0 0.0
    %7091 = vmatpush2.msra.mxu0 0.0
    %7092 = vmatprep.subr.mxu0 0.0
    %7093 = vmatpush2.msra.mxu0 0.0
    %7094 = vmatprep.subr.mxu0 0.0
    %7095 = vmatpush2.msra.mxu0 0.0
    %7096 = vmatprep.subr.mxu0 0.0
    %7097 = vmatpush2.msra.mxu0 0.0
    %7098 = vmatprep.subr.mxu0 0.0
    %7099 = vmatpush2.msra.mxu0 0.0
    %7100 = vmatprep.subr.mxu0 0.0
    %7101 = vmatpush2.msra.mxu0 0.0
    %7102 = vmatprep.subr.mxu0 0.0
    %7103 = vmatpush2.msra.mxu0 0.0
    %7104 = vmatprep.subr.mxu0 0.0
    %7105 = vmatpush2.msra.mxu0 0.0
    %7106 = vmatprep.subr.mxu0 0.0
    %7107 = vmatpush2.msra.mxu0 0.0
    %7108 = vmatprep.mubr.f32.mxu0 0.0
    %7109 = vmatmul.mubr.f32.gmra.mxu0 %v7042
    %v7110 = vpop.f32.mrf.mxu0
    %v7111 = vadd.f32 0.0, %v7110
    %v7112 = vpop.f32.mrf.mxu0
    %7113 = vdwg.mxu0
    %v7115 = vsel %vm275, %v7026, 0
    %7117 = vmatprep.subr.mxu0 0.0
    %7118 = vmatpush1.msra.mxu0 0.0
    %7119 = vmatprep.subr.mxu0 0.0
    %7120 = vmatpush1.msra.mxu0 0.0
    %7121 = vmatprep.subr.mxu0 0.0
    %7122 = vmatpush1.msra.mxu0 0.0
    %7123 = vmatprep.subr.mxu0 0.0
    %7124 = vmatpush1.msra.mxu0 0.0
    %7125 = vmatprep.subr.mxu0 0.0
    %7126 = vmatpush1.msra.mxu0 0.0
    %7127 = vmatprep.subr.mxu0 0.0
    %7128 = vmatpush1.msra.mxu0 0.0
    %7129 = vmatprep.subr.mxu0 0.0
    %7130 = vmatpush1.msra.mxu0 0.0
    %7131 = vmatprep.subr.mxu0 0.0
    %7132 = vmatpush1.msra.mxu0 0.0
    %7133 = vmatprep.subr.mxu0 0.0
    %7134 = vmatpush1.msra.mxu0 0.0
    %7135 = vmatprep.subr.mxu0 0.0
    %7136 = vmatpush1.msra.mxu0 0.0
    %7137 = vmatprep.subr.mxu0 0.0
    %7138 = vmatpush1.msra.mxu0 0.0
    %7139 = vmatprep.subr.mxu0 0.0
    %7140 = vmatpush1.msra.mxu0 0.0
    %7141 = vmatprep.subr.mxu0 0.0
    %7142 = vmatpush1.msra.mxu0 0.0
    %7143 = vmatprep.subr.mxu0 0.0
    %7144 = vmatpush1.msra.mxu0 0.0
    %7145 = vmatprep.subr.mxu0 0.0
    %7146 = vmatpush1.msra.mxu0 0.0
    %7147 = vmatprep.subr.mxu0 0.0
    %7148 = vmatpush1.msra.mxu0 %v193
    %7149 = vmatprep.subr.mxu0 0.0
    %7150 = vmatpush2.msra.mxu0 0.0
    %7151 = vmatprep.subr.mxu0 0.0
    %7152 = vmatpush2.msra.mxu0 0.0
    %7153 = vmatprep.subr.mxu0 0.0
    %7154 = vmatpush2.msra.mxu0 0.0
    %7155 = vmatprep.subr.mxu0 0.0
    %7156 = vmatpush2.msra.mxu0 0.0
    %7157 = vmatprep.subr.mxu0 0.0
    %7158 = vmatpush2.msra.mxu0 0.0
    %7159 = vmatprep.subr.mxu0 0.0
    %7160 = vmatpush2.msra.mxu0 0.0
    %7161 = vmatprep.subr.mxu0 0.0
    %7162 = vmatpush2.msra.mxu0 0.0
    %7163 = vmatprep.subr.mxu0 0.0
    %7164 = vmatpush2.msra.mxu0 0.0
    %7165 = vmatprep.subr.mxu0 0.0
    %7166 = vmatpush2.msra.mxu0 0.0
    %7167 = vmatprep.subr.mxu0 0.0
    %7168 = vmatpush2.msra.mxu0 0.0
    %7169 = vmatprep.subr.mxu0 0.0
    %7170 = vmatpush2.msra.mxu0 0.0
    %7171 = vmatprep.subr.mxu0 0.0
    %7172 = vmatpush2.msra.mxu0 0.0
    %7173 = vmatprep.subr.mxu0 0.0
    %7174 = vmatpush2.msra.mxu0 0.0
    %7175 = vmatprep.subr.mxu0 0.0
    %7176 = vmatpush2.msra.mxu0 0.0
    %7177 = vmatprep.subr.mxu0 0.0
    %7178 = vmatpush2.msra.mxu0 0.0
    %7179 = vmatprep.subr.mxu0 0.0
    %7180 = vmatpush2.msra.mxu0 0.0
    %7181 = vmatprep.mubr.f32.mxu0 0.0
    %7182 = vmatmul.mubr.f32.gmra.mxu0 %v7115
    %v7183 = vpop.f32.mrf.mxu0
    %v7184 = vadd.f32 0.0, %v7183
    %v7185 = vpop.f32.mrf.mxu0
    %7186 = vdwg.mxu0
    %v7188 = vsel %vm275, %v7027, 0
    %7190 = vmatprep.subr.mxu0 0.0
    %7191 = vmatpush1.msra.mxu0 0.0
    %7192 = vmatprep.subr.mxu0 0.0
    %7193 = vmatpush1.msra.mxu0 0.0
    %7194 = vmatprep.subr.mxu0 0.0
    %7195 = vmatpush1.msra.mxu0 0.0
    %7196 = vmatprep.subr.mxu0 0.0
    %7197 = vmatpush1.msra.mxu0 0.0
    %7198 = vmatprep.subr.mxu0 0.0
    %7199 = vmatpush1.msra.mxu0 0.0
    %7200 = vmatprep.subr.mxu0 0.0
    %7201 = vmatpush1.msra.mxu0 0.0
    %7202 = vmatprep.subr.mxu0 0.0
    %7203 = vmatpush1.msra.mxu0 0.0
    %7204 = vmatprep.subr.mxu0 0.0
    %7205 = vmatpush1.msra.mxu0 0.0
    %7206 = vmatprep.subr.mxu0 0.0
    %7207 = vmatpush1.msra.mxu0 0.0
    %7208 = vmatprep.subr.mxu0 0.0
    %7209 = vmatpush1.msra.mxu0 0.0
    %7210 = vmatprep.subr.mxu0 0.0
    %7211 = vmatpush1.msra.mxu0 0.0
    %7212 = vmatprep.subr.mxu0 0.0
    %7213 = vmatpush1.msra.mxu0 0.0
    %7214 = vmatprep.subr.mxu0 0.0
    %7215 = vmatpush1.msra.mxu0 0.0
    %7216 = vmatprep.subr.mxu0 0.0
    %7217 = vmatpush1.msra.mxu0 0.0
    %7218 = vmatprep.subr.mxu0 0.0
    %7219 = vmatpush1.msra.mxu0 0.0
    %7220 = vmatprep.subr.mxu0 0.0
    %7221 = vmatpush1.msra.mxu0 %v199
    %7222 = vmatprep.subr.mxu0 0.0
    %7223 = vmatpush2.msra.mxu0 0.0
    %7224 = vmatprep.subr.mxu0 0.0
    %7225 = vmatpush2.msra.mxu0 0.0
    %7226 = vmatprep.subr.mxu0 0.0
    %7227 = vmatpush2.msra.mxu0 0.0
    %7228 = vmatprep.subr.mxu0 0.0
    %7229 = vmatpush2.msra.mxu0 0.0
    %7230 = vmatprep.subr.mxu0 0.0
    %7231 = vmatpush2.msra.mxu0 0.0
    %7232 = vmatprep.subr.mxu0 0.0
    %7233 = vmatpush2.msra.mxu0 0.0
    %7234 = vmatprep.subr.mxu0 0.0
    %7235 = vmatpush2.msra.mxu0 0.0
    %7236 = vmatprep.subr.mxu0 0.0
    %7237 = vmatpush2.msra.mxu0 0.0
    %7238 = vmatprep.subr.mxu0 0.0
    %7239 = vmatpush2.msra.mxu0 0.0
    %7240 = vmatprep.subr.mxu0 0.0
    %7241 = vmatpush2.msra.mxu0 0.0
    %7242 = vmatprep.subr.mxu0 0.0
    %7243 = vmatpush2.msra.mxu0 0.0
    %7244 = vmatprep.subr.mxu0 0.0
    %7245 = vmatpush2.msra.mxu0 0.0
    %7246 = vmatprep.subr.mxu0 0.0
    %7247 = vmatpush2.msra.mxu0 0.0
    %7248 = vmatprep.subr.mxu0 0.0
    %7249 = vmatpush2.msra.mxu0 0.0
    %7250 = vmatprep.subr.mxu0 0.0
    %7251 = vmatpush2.msra.mxu0 0.0
    %7252 = vmatprep.subr.mxu0 0.0
    %7253 = vmatpush2.msra.mxu0 0.0
    %7254 = vmatprep.mubr.f32.mxu0 0.0
    %7255 = vmatmul.mubr.f32.gmra.mxu0 %v7188
    %v7256 = vpop.f32.mrf.mxu0
    %v7257 = vadd.f32 0.0, %v7256
    %v7258 = vpop.f32.mrf.mxu0
    %7259 = vdwg.mxu0
    %v7261 = vsel %vm275, %v7028, 0
    %7263 = vmatprep.subr.mxu0 0.0
    %7264 = vmatpush1.msra.mxu0 0.0
    %7265 = vmatprep.subr.mxu0 0.0
    %7266 = vmatpush1.msra.mxu0 0.0
    %7267 = vmatprep.subr.mxu0 0.0
    %7268 = vmatpush1.msra.mxu0 0.0
    %7269 = vmatprep.subr.mxu0 0.0
    %7270 = vmatpush1.msra.mxu0 0.0
    %7271 = vmatprep.subr.mxu0 0.0
    %7272 = vmatpush1.msra.mxu0 0.0
    %7273 = vmatprep.subr.mxu0 0.0
    %7274 = vmatpush1.msra.mxu0 0.0
    %7275 = vmatprep.subr.mxu0 0.0
    %7276 = vmatpush1.msra.mxu0 0.0
    %7277 = vmatprep.subr.mxu0 0.0
    %7278 = vmatpush1.msra.mxu0 0.0
    %7279 = vmatprep.subr.mxu0 0.0
    %7280 = vmatpush1.msra.mxu0 0.0
    %7281 = vmatprep.subr.mxu0 0.0
    %7282 = vmatpush1.msra.mxu0 0.0
    %7283 = vmatprep.subr.mxu0 0.0
    %7284 = vmatpush1.msra.mxu0 0.0
    %7285 = vmatprep.subr.mxu0 0.0
    %7286 = vmatpush1.msra.mxu0 0.0
    %7287 = vmatprep.subr.mxu0 0.0
    %7288 = vmatpush1.msra.mxu0 0.0
    %7289 = vmatprep.subr.mxu0 0.0
    %7290 = vmatpush1.msra.mxu0 0.0
    %7291 = vmatprep.subr.mxu0 0.0
    %7292 = vmatpush1.msra.mxu0 0.0
    %7293 = vmatprep.subr.mxu0 0.0
    %7294 = vmatpush1.msra.mxu0 %v203
    %7295 = vmatprep.subr.mxu0 0.0
    %7296 = vmatpush2.msra.mxu0 0.0
    %7297 = vmatprep.subr.mxu0 0.0
    %7298 = vmatpush2.msra.mxu0 0.0
    %7299 = vmatprep.subr.mxu0 0.0
    %7300 = vmatpush2.msra.mxu0 0.0
    %7301 = vmatprep.subr.mxu0 0.0
    %7302 = vmatpush2.msra.mxu0 0.0
    %7303 = vmatprep.subr.mxu0 0.0
    %7304 = vmatpush2.msra.mxu0 0.0
    %7305 = vmatprep.subr.mxu0 0.0
    %7306 = vmatpush2.msra.mxu0 0.0
    %7307 = vmatprep.subr.mxu0 0.0
    %7308 = vmatpush2.msra.mxu0 0.0
    %7309 = vmatprep.subr.mxu0 0.0
    %7310 = vmatpush2.msra.mxu0 0.0
    %7311 = vmatprep.subr.mxu0 0.0
    %7312 = vmatpush2.msra.mxu0 0.0
    %7313 = vmatprep.subr.mxu0 0.0
    %7314 = vmatpush2.msra.mxu0 0.0
    %7315 = vmatprep.subr.mxu0 0.0
    %7316 = vmatpush2.msra.mxu0 0.0
    %7317 = vmatprep.subr.mxu0 0.0
    %7318 = vmatpush2.msra.mxu0 0.0
    %7319 = vmatprep.subr.mxu0 0.0
    %7320 = vmatpush2.msra.mxu0 0.0
    %7321 = vmatprep.subr.mxu0 0.0
    %7322 = vmatpush2.msra.mxu0 0.0
    %7323 = vmatprep.subr.mxu0 0.0
    %7324 = vmatpush2.msra.mxu0 0.0
    %7325 = vmatprep.subr.mxu0 0.0
    %7326 = vmatpush2.msra.mxu0 0.0
    %7327 = vmatprep.mubr.f32.mxu0 0.0
    %7328 = vmatmul.mubr.f32.gmra.mxu0 %v7261
    %v7329 = vpop.f32.mrf.mxu0
    %v7330 = vadd.f32 0.0, %v7329
    %v7331 = vpop.f32.mrf.mxu0
    %7332 = vdwg.mxu0
    %v7334 = vsel %vm275, %v7029, 0
    %7336 = vmatprep.subr.mxu0 0.0
    %7337 = vmatpush1.msra.mxu0 0.0
    %7338 = vmatprep.subr.mxu0 0.0
    %7339 = vmatpush1.msra.mxu0 0.0
    %7340 = vmatprep.subr.mxu0 0.0
    %7341 = vmatpush1.msra.mxu0 0.0
    %7342 = vmatprep.subr.mxu0 0.0
    %7343 = vmatpush1.msra.mxu0 0.0
    %7344 = vmatprep.subr.mxu0 0.0
    %7345 = vmatpush1.msra.mxu0 0.0
    %7346 = vmatprep.subr.mxu0 0.0
    %7347 = vmatpush1.msra.mxu0 0.0
    %7348 = vmatprep.subr.mxu0 0.0
    %7349 = vmatpush1.msra.mxu0 0.0
    %7350 = vmatprep.subr.mxu0 0.0
    %7351 = vmatpush1.msra.mxu0 0.0
    %7352 = vmatprep.subr.mxu0 0.0
    %7353 = vmatpush1.msra.mxu0 0.0
    %7354 = vmatprep.subr.mxu0 0.0
    %7355 = vmatpush1.msra.mxu0 0.0
    %7356 = vmatprep.subr.mxu0 0.0
    %7357 = vmatpush1.msra.mxu0 0.0
    %7358 = vmatprep.subr.mxu0 0.0
    %7359 = vmatpush1.msra.mxu0 0.0
    %7360 = vmatprep.subr.mxu0 0.0
    %7361 = vmatpush1.msra.mxu0 0.0
    %7362 = vmatprep.subr.mxu0 0.0
    %7363 = vmatpush1.msra.mxu0 0.0
    %7364 = vmatprep.subr.mxu0 0.0
    %7365 = vmatpush1.msra.mxu0 0.0
    %7366 = vmatprep.subr.mxu0 0.0
    %7367 = vmatpush1.msra.mxu0 %v209
    %7368 = vmatprep.subr.mxu0 0.0
    %7369 = vmatpush2.msra.mxu0 0.0
    %7370 = vmatprep.subr.mxu0 0.0
    %7371 = vmatpush2.msra.mxu0 0.0
    %7372 = vmatprep.subr.mxu0 0.0
    %7373 = vmatpush2.msra.mxu0 0.0
    %7374 = vmatprep.subr.mxu0 0.0
    %7375 = vmatpush2.msra.mxu0 0.0
    %7376 = vmatprep.subr.mxu0 0.0
    %7377 = vmatpush2.msra.mxu0 0.0
    %7378 = vmatprep.subr.mxu0 0.0
    %7379 = vmatpush2.msra.mxu0 0.0
    %7380 = vmatprep.subr.mxu0 0.0
    %7381 = vmatpush2.msra.mxu0 0.0
    %7382 = vmatprep.subr.mxu0 0.0
    %7383 = vmatpush2.msra.mxu0 0.0
    %7384 = vmatprep.subr.mxu0 0.0
    %7385 = vmatpush2.msra.mxu0 0.0
    %7386 = vmatprep.subr.mxu0 0.0
    %7387 = vmatpush2.msra.mxu0 0.0
    %7388 = vmatprep.subr.mxu0 0.0
    %7389 = vmatpush2.msra.mxu0 0.0
    %7390 = vmatprep.subr.mxu0 0.0
    %7391 = vmatpush2.msra.mxu0 0.0
    %7392 = vmatprep.subr.mxu0 0.0
    %7393 = vmatpush2.msra.mxu0 0.0
    %7394 = vmatprep.subr.mxu0 0.0
    %7395 = vmatpush2.msra.mxu0 0.0
    %7396 = vmatprep.subr.mxu0 0.0
    %7397 = vmatpush2.msra.mxu0 0.0
    %7398 = vmatprep.subr.mxu0 0.0
    %7399 = vmatpush2.msra.mxu0 0.0
    %7400 = vmatprep.mubr.f32.mxu0 0.0
    %7401 = vmatmul.mubr.f32.gmra.mxu0 %v7334
    %v7402 = vpop.f32.mrf.mxu0
    %v7403 = vadd.f32 0.0, %v7402
    %v7404 = vpop.f32.mrf.mxu0
    %7405 = vdwg.mxu0
    %v7407 = vsel %vm275, %v7030, 0
    %7409 = vmatprep.subr.mxu0 0.0
    %7410 = vmatpush1.msra.mxu0 0.0
    %7411 = vmatprep.subr.mxu0 0.0
    %7412 = vmatpush1.msra.mxu0 0.0
    %7413 = vmatprep.subr.mxu0 0.0
    %7414 = vmatpush1.msra.mxu0 0.0
    %7415 = vmatprep.subr.mxu0 0.0
    %7416 = vmatpush1.msra.mxu0 0.0
    %7417 = vmatprep.subr.mxu0 0.0
    %7418 = vmatpush1.msra.mxu0 0.0
    %7419 = vmatprep.subr.mxu0 0.0
    %7420 = vmatpush1.msra.mxu0 0.0
    %7421 = vmatprep.subr.mxu0 0.0
    %7422 = vmatpush1.msra.mxu0 0.0
    %7423 = vmatprep.subr.mxu0 0.0
    %7424 = vmatpush1.msra.mxu0 0.0
    %7425 = vmatprep.subr.mxu0 0.0
    %7426 = vmatpush1.msra.mxu0 0.0
    %7427 = vmatprep.subr.mxu0 0.0
    %7428 = vmatpush1.msra.mxu0 0.0
    %7429 = vmatprep.subr.mxu0 0.0
    %7430 = vmatpush1.msra.mxu0 0.0
    %7431 = vmatprep.subr.mxu0 0.0
    %7432 = vmatpush1.msra.mxu0 0.0
    %7433 = vmatprep.subr.mxu0 0.0
    %7434 = vmatpush1.msra.mxu0 0.0
    %7435 = vmatprep.subr.mxu0 0.0
    %7436 = vmatpush1.msra.mxu0 0.0
    %7437 = vmatprep.subr.mxu0 0.0
    %7438 = vmatpush1.msra.mxu0 0.0
    %7439 = vmatprep.subr.mxu0 0.0
    %7440 = vmatpush1.msra.mxu0 %v213
    %7441 = vmatprep.subr.mxu0 0.0
    %7442 = vmatpush2.msra.mxu0 0.0
    %7443 = vmatprep.subr.mxu0 0.0
    %7444 = vmatpush2.msra.mxu0 0.0
    %7445 = vmatprep.subr.mxu0 0.0
    %7446 = vmatpush2.msra.mxu0 0.0
    %7447 = vmatprep.subr.mxu0 0.0
    %7448 = vmatpush2.msra.mxu0 0.0
    %7449 = vmatprep.subr.mxu0 0.0
    %7450 = vmatpush2.msra.mxu0 0.0
    %7451 = vmatprep.subr.mxu0 0.0
    %7452 = vmatpush2.msra.mxu0 0.0
    %7453 = vmatprep.subr.mxu0 0.0
    %7454 = vmatpush2.msra.mxu0 0.0
    %7455 = vmatprep.subr.mxu0 0.0
    %7456 = vmatpush2.msra.mxu0 0.0
    %7457 = vmatprep.subr.mxu0 0.0
    %7458 = vmatpush2.msra.mxu0 0.0
    %7459 = vmatprep.subr.mxu0 0.0
    %7460 = vmatpush2.msra.mxu0 0.0
    %7461 = vmatprep.subr.mxu0 0.0
    %7462 = vmatpush2.msra.mxu0 0.0
    %7463 = vmatprep.subr.mxu0 0.0
    %7464 = vmatpush2.msra.mxu0 0.0
    %7465 = vmatprep.subr.mxu0 0.0
    %7466 = vmatpush2.msra.mxu0 0.0
    %7467 = vmatprep.subr.mxu0 0.0
    %7468 = vmatpush2.msra.mxu0 0.0
    %7469 = vmatprep.subr.mxu0 0.0
    %7470 = vmatpush2.msra.mxu0 0.0
    %7471 = vmatprep.subr.mxu0 0.0
    %7472 = vmatpush2.msra.mxu0 0.0
    %7473 = vmatprep.mubr.f32.mxu0 0.0
    %7474 = vmatmul.mubr.f32.gmra.mxu0 %v7407
    %v7475 = vpop.f32.mrf.mxu0
    %v7476 = vadd.f32 0.0, %v7475
    %v7477 = vpop.f32.mrf.mxu0
    %7478 = vdwg.mxu0
    %v7480 = vsel %vm275, %v7031, 0
    %7482 = vmatprep.subr.mxu0 0.0
    %7483 = vmatpush1.msra.mxu0 0.0
    %7484 = vmatprep.subr.mxu0 0.0
    %7485 = vmatpush1.msra.mxu0 0.0
    %7486 = vmatprep.subr.mxu0 0.0
    %7487 = vmatpush1.msra.mxu0 0.0
    %7488 = vmatprep.subr.mxu0 0.0
    %7489 = vmatpush1.msra.mxu0 0.0
    %7490 = vmatprep.subr.mxu0 0.0
    %7491 = vmatpush1.msra.mxu0 0.0
    %7492 = vmatprep.subr.mxu0 0.0
    %7493 = vmatpush1.msra.mxu0 0.0
    %7494 = vmatprep.subr.mxu0 0.0
    %7495 = vmatpush1.msra.mxu0 0.0
    %7496 = vmatprep.subr.mxu0 0.0
    %7497 = vmatpush1.msra.mxu0 0.0
    %7498 = vmatprep.subr.mxu0 0.0
    %7499 = vmatpush1.msra.mxu0 0.0
    %7500 = vmatprep.subr.mxu0 0.0
    %7501 = vmatpush1.msra.mxu0 0.0
    %7502 = vmatprep.subr.mxu0 0.0
    %7503 = vmatpush1.msra.mxu0 0.0
    %7504 = vmatprep.subr.mxu0 0.0
    %7505 = vmatpush1.msra.mxu0 0.0
    %7506 = vmatprep.subr.mxu0 0.0
    %7507 = vmatpush1.msra.mxu0 0.0
    %7508 = vmatprep.subr.mxu0 0.0
    %7509 = vmatpush1.msra.mxu0 0.0
    %7510 = vmatprep.subr.mxu0 0.0
    %7511 = vmatpush1.msra.mxu0 0.0
    %7512 = vmatprep.subr.mxu0 0.0
    %7513 = vmatpush1.msra.mxu0 %v219
    %7514 = vmatprep.subr.mxu0 0.0
    %7515 = vmatpush2.msra.mxu0 0.0
    %7516 = vmatprep.subr.mxu0 0.0
    %7517 = vmatpush2.msra.mxu0 0.0
    %7518 = vmatprep.subr.mxu0 0.0
    %7519 = vmatpush2.msra.mxu0 0.0
    %7520 = vmatprep.subr.mxu0 0.0
    %7521 = vmatpush2.msra.mxu0 0.0
    %7522 = vmatprep.subr.mxu0 0.0
    %7523 = vmatpush2.msra.mxu0 0.0
    %7524 = vmatprep.subr.mxu0 0.0
    %7525 = vmatpush2.msra.mxu0 0.0
    %7526 = vmatprep.subr.mxu0 0.0
    %7527 = vmatpush2.msra.mxu0 0.0
    %7528 = vmatprep.subr.mxu0 0.0
    %7529 = vmatpush2.msra.mxu0 0.0
    %7530 = vmatprep.subr.mxu0 0.0
    %7531 = vmatpush2.msra.mxu0 0.0
    %7532 = vmatprep.subr.mxu0 0.0
    %7533 = vmatpush2.msra.mxu0 0.0
    %7534 = vmatprep.subr.mxu0 0.0
    %7535 = vmatpush2.msra.mxu0 0.0
    %7536 = vmatprep.subr.mxu0 0.0
    %7537 = vmatpush2.msra.mxu0 0.0
    %7538 = vmatprep.subr.mxu0 0.0
    %7539 = vmatpush2.msra.mxu0 0.0
    %7540 = vmatprep.subr.mxu0 0.0
    %7541 = vmatpush2.msra.mxu0 0.0
    %7542 = vmatprep.subr.mxu0 0.0
    %7543 = vmatpush2.msra.mxu0 0.0
    %7544 = vmatprep.subr.mxu0 0.0
    %7545 = vmatpush2.msra.mxu0 0.0
    %7546 = vmatprep.mubr.f32.mxu0 0.0
    %7547 = vmatmul.mubr.f32.gmra.mxu0 %v7480
    %v7548 = vpop.f32.mrf.mxu0
    %v7549 = vadd.f32 0.0, %v7548
    %v7550 = vpop.f32.mrf.mxu0
    %7551 = vdwg.mxu0
    %v7553 = vsel %vm275, %v7032, 0
    %7555 = vmatprep.subr.mxu0 0.0
    %7556 = vmatpush1.msra.mxu0 0.0
    %7557 = vmatprep.subr.mxu0 0.0
    %7558 = vmatpush1.msra.mxu0 0.0
    %7559 = vmatprep.subr.mxu0 0.0
    %7560 = vmatpush1.msra.mxu0 0.0
    %7561 = vmatprep.subr.mxu0 0.0
    %7562 = vmatpush1.msra.mxu0 0.0
    %7563 = vmatprep.subr.mxu0 0.0
    %7564 = vmatpush1.msra.mxu0 0.0
    %7565 = vmatprep.subr.mxu0 0.0
    %7566 = vmatpush1.msra.mxu0 0.0
    %7567 = vmatprep.subr.mxu0 0.0
    %7568 = vmatpush1.msra.mxu0 0.0
    %7569 = vmatprep.subr.mxu0 0.0
    %7570 = vmatpush1.msra.mxu0 0.0
    %7571 = vmatprep.subr.mxu0 0.0
    %7572 = vmatpush1.msra.mxu0 0.0
    %7573 = vmatprep.subr.mxu0 0.0
    %7574 = vmatpush1.msra.mxu0 0.0
    %7575 = vmatprep.subr.mxu0 0.0
    %7576 = vmatpush1.msra.mxu0 0.0
    %7577 = vmatprep.subr.mxu0 0.0
    %7578 = vmatpush1.msra.mxu0 0.0
    %7579 = vmatprep.subr.mxu0 0.0
    %7580 = vmatpush1.msra.mxu0 0.0
    %7581 = vmatprep.subr.mxu0 0.0
    %7582 = vmatpush1.msra.mxu0 0.0
    %7583 = vmatprep.subr.mxu0 0.0
    %7584 = vmatpush1.msra.mxu0 0.0
    %7585 = vmatprep.subr.mxu0 0.0
    %7586 = vmatpush1.msra.mxu0 %v223
    %7587 = vmatprep.subr.mxu0 0.0
    %7588 = vmatpush2.msra.mxu0 0.0
    %7589 = vmatprep.subr.mxu0 0.0
    %7590 = vmatpush2.msra.mxu0 0.0
    %7591 = vmatprep.subr.mxu0 0.0
    %7592 = vmatpush2.msra.mxu0 0.0
    %7593 = vmatprep.subr.mxu0 0.0
    %7594 = vmatpush2.msra.mxu0 0.0
    %7595 = vmatprep.subr.mxu0 0.0
    %7596 = vmatpush2.msra.mxu0 0.0
    %7597 = vmatprep.subr.mxu0 0.0
    %7598 = vmatpush2.msra.mxu0 0.0
    %7599 = vmatprep.subr.mxu0 0.0
    %7600 = vmatpush2.msra.mxu0 0.0
    %7601 = vmatprep.subr.mxu0 0.0
    %7602 = vmatpush2.msra.mxu0 0.0
    %7603 = vmatprep.subr.mxu0 0.0
    %7604 = vmatpush2.msra.mxu0 0.0
    %7605 = vmatprep.subr.mxu0 0.0
    %7606 = vmatpush2.msra.mxu0 0.0
    %7607 = vmatprep.subr.mxu0 0.0
    %7608 = vmatpush2.msra.mxu0 0.0
    %7609 = vmatprep.subr.mxu0 0.0
    %7610 = vmatpush2.msra.mxu0 0.0
    %7611 = vmatprep.subr.mxu0 0.0
    %7612 = vmatpush2.msra.mxu0 0.0
    %7613 = vmatprep.subr.mxu0 0.0
    %7614 = vmatpush2.msra.mxu0 0.0
    %7615 = vmatprep.subr.mxu0 0.0
    %7616 = vmatpush2.msra.mxu0 0.0
    %7617 = vmatprep.subr.mxu0 0.0
    %7618 = vmatpush2.msra.mxu0 0.0
    %7619 = vmatprep.mubr.f32.mxu0 0.0
    %7620 = vmatmul.mubr.f32.gmra.mxu0 %v7553
    %v7621 = vpop.f32.mrf.mxu0
    %v7622 = vadd.f32 0.0, %v7621
    %v7623 = vpop.f32.mrf.mxu0
    %7624 = vdwg.mxu0
    %v7626 = vsel %vm275, %v7033, 0
    %7628 = vmatprep.subr.mxu0 0.0
    %7629 = vmatpush1.msra.mxu0 0.0
    %7630 = vmatprep.subr.mxu0 0.0
    %7631 = vmatpush1.msra.mxu0 0.0
    %7632 = vmatprep.subr.mxu0 0.0
    %7633 = vmatpush1.msra.mxu0 0.0
    %7634 = vmatprep.subr.mxu0 0.0
    %7635 = vmatpush1.msra.mxu0 0.0
    %7636 = vmatprep.subr.mxu0 0.0
    %7637 = vmatpush1.msra.mxu0 0.0
    %7638 = vmatprep.subr.mxu0 0.0
    %7639 = vmatpush1.msra.mxu0 0.0
    %7640 = vmatprep.subr.mxu0 0.0
    %7641 = vmatpush1.msra.mxu0 0.0
    %7642 = vmatprep.subr.mxu0 0.0
    %7643 = vmatpush1.msra.mxu0 0.0
    %7644 = vmatprep.subr.mxu0 0.0
    %7645 = vmatpush1.msra.mxu0 0.0
    %7646 = vmatprep.subr.mxu0 0.0
    %7647 = vmatpush1.msra.mxu0 0.0
    %7648 = vmatprep.subr.mxu0 0.0
    %7649 = vmatpush1.msra.mxu0 0.0
    %7650 = vmatprep.subr.mxu0 0.0
    %7651 = vmatpush1.msra.mxu0 0.0
    %7652 = vmatprep.subr.mxu0 0.0
    %7653 = vmatpush1.msra.mxu0 0.0
    %7654 = vmatprep.subr.mxu0 0.0
    %7655 = vmatpush1.msra.mxu0 0.0
    %7656 = vmatprep.subr.mxu0 0.0
    %7657 = vmatpush1.msra.mxu0 0.0
    %7658 = vmatprep.subr.mxu0 0.0
    %7659 = vmatpush1.msra.mxu0 %v229
    %7660 = vmatprep.subr.mxu0 0.0
    %7661 = vmatpush2.msra.mxu0 0.0
    %7662 = vmatprep.subr.mxu0 0.0
    %7663 = vmatpush2.msra.mxu0 0.0
    %7664 = vmatprep.subr.mxu0 0.0
    %7665 = vmatpush2.msra.mxu0 0.0
    %7666 = vmatprep.subr.mxu0 0.0
    %7667 = vmatpush2.msra.mxu0 0.0
    %7668 = vmatprep.subr.mxu0 0.0
    %7669 = vmatpush2.msra.mxu0 0.0
    %7670 = vmatprep.subr.mxu0 0.0
    %7671 = vmatpush2.msra.mxu0 0.0
    %7672 = vmatprep.subr.mxu0 0.0
    %7673 = vmatpush2.msra.mxu0 0.0
    %7674 = vmatprep.subr.mxu0 0.0
    %7675 = vmatpush2.msra.mxu0 0.0
    %7676 = vmatprep.subr.mxu0 0.0
    %7677 = vmatpush2.msra.mxu0 0.0
    %7678 = vmatprep.subr.mxu0 0.0
    %7679 = vmatpush2.msra.mxu0 0.0
    %7680 = vmatprep.subr.mxu0 0.0
    %7681 = vmatpush2.msra.mxu0 0.0
    %7682 = vmatprep.subr.mxu0 0.0
    %7683 = vmatpush2.msra.mxu0 0.0
    %7684 = vmatprep.subr.mxu0 0.0
    %7685 = vmatpush2.msra.mxu0 0.0
    %7686 = vmatprep.subr.mxu0 0.0
    %7687 = vmatpush2.msra.mxu0 0.0
    %7688 = vmatprep.subr.mxu0 0.0
    %7689 = vmatpush2.msra.mxu0 0.0
    %7690 = vmatprep.subr.mxu0 0.0
    %7691 = vmatpush2.msra.mxu0 0.0
    %7692 = vmatprep.mubr.f32.mxu0 0.0
    %7693 = vmatmul.mubr.f32.gmra.mxu0 %v7626
    %v7694 = vpop.f32.mrf.mxu0
    %v7695 = vadd.f32 0.0, %v7694
    %v7696 = vpop.f32.mrf.mxu0
    %7697 = vdwg.mxu0
    %v7699 = vsel %vm275, %v7034, 0
    %7701 = vmatprep.subr.mxu0 0.0
    %7702 = vmatpush1.msra.mxu0 0.0
    %7703 = vmatprep.subr.mxu0 0.0
    %7704 = vmatpush1.msra.mxu0 0.0
    %7705 = vmatprep.subr.mxu0 0.0
    %7706 = vmatpush1.msra.mxu0 0.0
    %7707 = vmatprep.subr.mxu0 0.0
    %7708 = vmatpush1.msra.mxu0 0.0
    %7709 = vmatprep.subr.mxu0 0.0
    %7710 = vmatpush1.msra.mxu0 0.0
    %7711 = vmatprep.subr.mxu0 0.0
    %7712 = vmatpush1.msra.mxu0 0.0
    %7713 = vmatprep.subr.mxu0 0.0
    %7714 = vmatpush1.msra.mxu0 0.0
    %7715 = vmatprep.subr.mxu0 0.0
    %7716 = vmatpush1.msra.mxu0 0.0
    %7717 = vmatprep.subr.mxu0 0.0
    %7718 = vmatpush1.msra.mxu0 0.0
    %7719 = vmatprep.subr.mxu0 0.0
    %7720 = vmatpush1.msra.mxu0 0.0
    %7721 = vmatprep.subr.mxu0 0.0
    %7722 = vmatpush1.msra.mxu0 0.0
    %7723 = vmatprep.subr.mxu0 0.0
    %7724 = vmatpush1.msra.mxu0 0.0
    %7725 = vmatprep.subr.mxu0 0.0
    %7726 = vmatpush1.msra.mxu0 0.0
    %7727 = vmatprep.subr.mxu0 0.0
    %7728 = vmatpush1.msra.mxu0 0.0
    %7729 = vmatprep.subr.mxu0 0.0
    %7730 = vmatpush1.msra.mxu0 0.0
    %7731 = vmatprep.subr.mxu0 0.0
    %7732 = vmatpush1.msra.mxu0 %v233
    %7733 = vmatprep.subr.mxu0 0.0
    %7734 = vmatpush2.msra.mxu0 0.0
    %7735 = vmatprep.subr.mxu0 0.0
    %7736 = vmatpush2.msra.mxu0 0.0
    %7737 = vmatprep.subr.mxu0 0.0
    %7738 = vmatpush2.msra.mxu0 0.0
    %7739 = vmatprep.subr.mxu0 0.0
    %7740 = vmatpush2.msra.mxu0 0.0
    %7741 = vmatprep.subr.mxu0 0.0
    %7742 = vmatpush2.msra.mxu0 0.0
    %7743 = vmatprep.subr.mxu0 0.0
    %7744 = vmatpush2.msra.mxu0 0.0
    %7745 = vmatprep.subr.mxu0 0.0
    %7746 = vmatpush2.msra.mxu0 0.0
    %7747 = vmatprep.subr.mxu0 0.0
    %7748 = vmatpush2.msra.mxu0 0.0
    %7749 = vmatprep.subr.mxu0 0.0
    %7750 = vmatpush2.msra.mxu0 0.0
    %7751 = vmatprep.subr.mxu0 0.0
    %7752 = vmatpush2.msra.mxu0 0.0
    %7753 = vmatprep.subr.mxu0 0.0
    %7754 = vmatpush2.msra.mxu0 0.0
    %7755 = vmatprep.subr.mxu0 0.0
    %7756 = vmatpush2.msra.mxu0 0.0
    %7757 = vmatprep.subr.mxu0 0.0
    %7758 = vmatpush2.msra.mxu0 0.0
    %7759 = vmatprep.subr.mxu0 0.0
    %7760 = vmatpush2.msra.mxu0 0.0
    %7761 = vmatprep.subr.mxu0 0.0
    %7762 = vmatpush2.msra.mxu0 0.0
    %7763 = vmatprep.subr.mxu0 0.0
    %7764 = vmatpush2.msra.mxu0 0.0
    %7765 = vmatprep.mubr.f32.mxu0 0.0
    %7766 = vmatmul.mubr.f32.gmra.mxu0 %v7699
    %v7767 = vpop.f32.mrf.mxu0
    %v7768 = vadd.f32 0.0, %v7767
    %v7769 = vpop.f32.mrf.mxu0
    %7770 = vdwg.mxu0
    %v7772 = vsel %vm275, %v7035, 0
    %7774 = vmatprep.subr.mxu0 0.0
    %7775 = vmatpush1.msra.mxu0 0.0
    %7776 = vmatprep.subr.mxu0 0.0
    %7777 = vmatpush1.msra.mxu0 0.0
    %7778 = vmatprep.subr.mxu0 0.0
    %7779 = vmatpush1.msra.mxu0 0.0
    %7780 = vmatprep.subr.mxu0 0.0
    %7781 = vmatpush1.msra.mxu0 0.0
    %7782 = vmatprep.subr.mxu0 0.0
    %7783 = vmatpush1.msra.mxu0 0.0
    %7784 = vmatprep.subr.mxu0 0.0
    %7785 = vmatpush1.msra.mxu0 0.0
    %7786 = vmatprep.subr.mxu0 0.0
    %7787 = vmatpush1.msra.mxu0 0.0
    %7788 = vmatprep.subr.mxu0 0.0
    %7789 = vmatpush1.msra.mxu0 0.0
    %7790 = vmatprep.subr.mxu0 0.0
    %7791 = vmatpush1.msra.mxu0 0.0
    %7792 = vmatprep.subr.mxu0 0.0
    %7793 = vmatpush1.msra.mxu0 0.0
    %7794 = vmatprep.subr.mxu0 0.0
    %7795 = vmatpush1.msra.mxu0 0.0
    %7796 = vmatprep.subr.mxu0 0.0
    %7797 = vmatpush1.msra.mxu0 0.0
    %7798 = vmatprep.subr.mxu0 0.0
    %7799 = vmatpush1.msra.mxu0 0.0
    %7800 = vmatprep.subr.mxu0 0.0
    %7801 = vmatpush1.msra.mxu0 0.0
    %7802 = vmatprep.subr.mxu0 0.0
    %7803 = vmatpush1.msra.mxu0 0.0
    %7804 = vmatprep.subr.mxu0 0.0
    %7805 = vmatpush1.msra.mxu0 %v239
    %7806 = vmatprep.subr.mxu0 0.0
    %7807 = vmatpush2.msra.mxu0 0.0
    %7808 = vmatprep.subr.mxu0 0.0
    %7809 = vmatpush2.msra.mxu0 0.0
    %7810 = vmatprep.subr.mxu0 0.0
    %7811 = vmatpush2.msra.mxu0 0.0
    %7812 = vmatprep.subr.mxu0 0.0
    %7813 = vmatpush2.msra.mxu0 0.0
    %7814 = vmatprep.subr.mxu0 0.0
    %7815 = vmatpush2.msra.mxu0 0.0
    %7816 = vmatprep.subr.mxu0 0.0
    %7817 = vmatpush2.msra.mxu0 0.0
    %7818 = vmatprep.subr.mxu0 0.0
    %7819 = vmatpush2.msra.mxu0 0.0
    %7820 = vmatprep.subr.mxu0 0.0
    %7821 = vmatpush2.msra.mxu0 0.0
    %7822 = vmatprep.subr.mxu0 0.0
    %7823 = vmatpush2.msra.mxu0 0.0
    %7824 = vmatprep.subr.mxu0 0.0
    %7825 = vmatpush2.msra.mxu0 0.0
    %7826 = vmatprep.subr.mxu0 0.0
    %7827 = vmatpush2.msra.mxu0 0.0
    %7828 = vmatprep.subr.mxu0 0.0
    %7829 = vmatpush2.msra.mxu0 0.0
    %7830 = vmatprep.subr.mxu0 0.0
    %7831 = vmatpush2.msra.mxu0 0.0
    %7832 = vmatprep.subr.mxu0 0.0
    %7833 = vmatpush2.msra.mxu0 0.0
    %7834 = vmatprep.subr.mxu0 0.0
    %7835 = vmatpush2.msra.mxu0 0.0
    %7836 = vmatprep.subr.mxu0 0.0
    %7837 = vmatpush2.msra.mxu0 0.0
    %7838 = vmatprep.mubr.f32.mxu0 0.0
    %7839 = vmatmul.mubr.f32.gmra.mxu0 %v7772
    %v7840 = vpop.f32.mrf.mxu0
    %v7841 = vadd.f32 0.0, %v7840
    %v7842 = vpop.f32.mrf.mxu0
    %7843 = vdwg.mxu0
    %v7845 = vsel %vm275, %v7036, 0
    %7847 = vmatprep.subr.mxu0 0.0
    %7848 = vmatpush1.msra.mxu0 0.0
    %7849 = vmatprep.subr.mxu0 0.0
    %7850 = vmatpush1.msra.mxu0 0.0
    %7851 = vmatprep.subr.mxu0 0.0
    %7852 = vmatpush1.msra.mxu0 0.0
    %7853 = vmatprep.subr.mxu0 0.0
    %7854 = vmatpush1.msra.mxu0 0.0
    %7855 = vmatprep.subr.mxu0 0.0
    %7856 = vmatpush1.msra.mxu0 0.0
    %7857 = vmatprep.subr.mxu0 0.0
    %7858 = vmatpush1.msra.mxu0 0.0
    %7859 = vmatprep.subr.mxu0 0.0
    %7860 = vmatpush1.msra.mxu0 0.0
    %7861 = vmatprep.subr.mxu0 0.0
    %7862 = vmatpush1.msra.mxu0 0.0
    %7863 = vmatprep.subr.mxu0 0.0
    %7864 = vmatpush1.msra.mxu0 0.0
    %7865 = vmatprep.subr.mxu0 0.0
    %7866 = vmatpush1.msra.mxu0 0.0
    %7867 = vmatprep.subr.mxu0 0.0
    %7868 = vmatpush1.msra.mxu0 0.0
    %7869 = vmatprep.subr.mxu0 0.0
    %7870 = vmatpush1.msra.mxu0 0.0
    %7871 = vmatprep.subr.mxu0 0.0
    %7872 = vmatpush1.msra.mxu0 0.0
    %7873 = vmatprep.subr.mxu0 0.0
    %7874 = vmatpush1.msra.mxu0 0.0
    %7875 = vmatprep.subr.mxu0 0.0
    %7876 = vmatpush1.msra.mxu0 0.0
    %7877 = vmatprep.subr.mxu0 0.0
    %7878 = vmatpush1.msra.mxu0 %v243
    %7879 = vmatprep.subr.mxu0 0.0
    %7880 = vmatpush2.msra.mxu0 0.0
    %7881 = vmatprep.subr.mxu0 0.0
    %7882 = vmatpush2.msra.mxu0 0.0
    %7883 = vmatprep.subr.mxu0 0.0
    %7884 = vmatpush2.msra.mxu0 0.0
    %7885 = vmatprep.subr.mxu0 0.0
    %7886 = vmatpush2.msra.mxu0 0.0
    %7887 = vmatprep.subr.mxu0 0.0
    %7888 = vmatpush2.msra.mxu0 0.0
    %7889 = vmatprep.subr.mxu0 0.0
    %7890 = vmatpush2.msra.mxu0 0.0
    %7891 = vmatprep.subr.mxu0 0.0
    %7892 = vmatpush2.msra.mxu0 0.0
    %7893 = vmatprep.subr.mxu0 0.0
    %7894 = vmatpush2.msra.mxu0 0.0
    %7895 = vmatprep.subr.mxu0 0.0
    %7896 = vmatpush2.msra.mxu0 0.0
    %7897 = vmatprep.subr.mxu0 0.0
    %7898 = vmatpush2.msra.mxu0 0.0
    %7899 = vmatprep.subr.mxu0 0.0
    %7900 = vmatpush2.msra.mxu0 0.0
    %7901 = vmatprep.subr.mxu0 0.0
    %7902 = vmatpush2.msra.mxu0 0.0
    %7903 = vmatprep.subr.mxu0 0.0
    %7904 = vmatpush2.msra.mxu0 0.0
    %7905 = vmatprep.subr.mxu0 0.0
    %7906 = vmatpush2.msra.mxu0 0.0
    %7907 = vmatprep.subr.mxu0 0.0
    %7908 = vmatpush2.msra.mxu0 0.0
    %7909 = vmatprep.subr.mxu0 0.0
    %7910 = vmatpush2.msra.mxu0 0.0
    %7911 = vmatprep.mubr.f32.mxu0 0.0
    %7912 = vmatmul.mubr.f32.gmra.mxu0 %v7845
    %v7913 = vpop.f32.mrf.mxu0
    %v7914 = vadd.f32 0.0, %v7913
    %v7915 = vpop.f32.mrf.mxu0
    %7916 = vdwg.mxu0
    %v7918 = vsel %vm275, %v7037, 0
    %7920 = vmatprep.subr.mxu0 0.0
    %7921 = vmatpush1.msra.mxu0 0.0
    %7922 = vmatprep.subr.mxu0 0.0
    %7923 = vmatpush1.msra.mxu0 0.0
    %7924 = vmatprep.subr.mxu0 0.0
    %7925 = vmatpush1.msra.mxu0 0.0
    %7926 = vmatprep.subr.mxu0 0.0
    %7927 = vmatpush1.msra.mxu0 0.0
    %7928 = vmatprep.subr.mxu0 0.0
    %7929 = vmatpush1.msra.mxu0 0.0
    %7930 = vmatprep.subr.mxu0 0.0
    %7931 = vmatpush1.msra.mxu0 0.0
    %7932 = vmatprep.subr.mxu0 0.0
    %7933 = vmatpush1.msra.mxu0 0.0
    %7934 = vmatprep.subr.mxu0 0.0
    %7935 = vmatpush1.msra.mxu0 0.0
    %7936 = vmatprep.subr.mxu0 0.0
    %7937 = vmatpush1.msra.mxu0 0.0
    %7938 = vmatprep.subr.mxu0 0.0
    %7939 = vmatpush1.msra.mxu0 0.0
    %7940 = vmatprep.subr.mxu0 0.0
    %7941 = vmatpush1.msra.mxu0 0.0
    %7942 = vmatprep.subr.mxu0 0.0
    %7943 = vmatpush1.msra.mxu0 0.0
    %7944 = vmatprep.subr.mxu0 0.0
    %7945 = vmatpush1.msra.mxu0 0.0
    %7946 = vmatprep.subr.mxu0 0.0
    %7947 = vmatpush1.msra.mxu0 0.0
    %7948 = vmatprep.subr.mxu0 0.0
    %7949 = vmatpush1.msra.mxu0 0.0
    %7950 = vmatprep.subr.mxu0 0.0
    %7951 = vmatpush1.msra.mxu0 %v249
    %7952 = vmatprep.subr.mxu0 0.0
    %7953 = vmatpush2.msra.mxu0 0.0
    %7954 = vmatprep.subr.mxu0 0.0
    %7955 = vmatpush2.msra.mxu0 0.0
    %7956 = vmatprep.subr.mxu0 0.0
    %7957 = vmatpush2.msra.mxu0 0.0
    %7958 = vmatprep.subr.mxu0 0.0
    %7959 = vmatpush2.msra.mxu0 0.0
    %7960 = vmatprep.subr.mxu0 0.0
    %7961 = vmatpush2.msra.mxu0 0.0
    %7962 = vmatprep.subr.mxu0 0.0
    %7963 = vmatpush2.msra.mxu0 0.0
    %7964 = vmatprep.subr.mxu0 0.0
    %7965 = vmatpush2.msra.mxu0 0.0
    %7966 = vmatprep.subr.mxu0 0.0
    %7967 = vmatpush2.msra.mxu0 0.0
    %7968 = vmatprep.subr.mxu0 0.0
    %7969 = vmatpush2.msra.mxu0 0.0
    %7970 = vmatprep.subr.mxu0 0.0
    %7971 = vmatpush2.msra.mxu0 0.0
    %7972 = vmatprep.subr.mxu0 0.0
    %7973 = vmatpush2.msra.mxu0 0.0
    %7974 = vmatprep.subr.mxu0 0.0
    %7975 = vmatpush2.msra.mxu0 0.0
    %7976 = vmatprep.subr.mxu0 0.0
    %7977 = vmatpush2.msra.mxu0 0.0
    %7978 = vmatprep.subr.mxu0 0.0
    %7979 = vmatpush2.msra.mxu0 0.0
    %7980 = vmatprep.subr.mxu0 0.0
    %7981 = vmatpush2.msra.mxu0 0.0
    %7982 = vmatprep.subr.mxu0 0.0
    %7983 = vmatpush2.msra.mxu0 0.0
    %7984 = vmatprep.mubr.f32.mxu0 0.0
    %7985 = vmatmul.mubr.f32.gmra.mxu0 %v7918
    %v7986 = vpop.f32.mrf.mxu0
    %v7987 = vadd.f32 0.0, %v7986
    %v7988 = vpop.f32.mrf.mxu0
    %7989 = vdwg.mxu0
    %v7991 = vsel %vm275, %v7038, 0
    %7993 = vmatprep.subr.mxu0 0.0
    %7994 = vmatpush1.msra.mxu0 0.0
    %7995 = vmatprep.subr.mxu0 0.0
    %7996 = vmatpush1.msra.mxu0 0.0
    %7997 = vmatprep.subr.mxu0 0.0
    %7998 = vmatpush1.msra.mxu0 0.0
    %7999 = vmatprep.subr.mxu0 0.0
    %8000 = vmatpush1.msra.mxu0 0.0
    %8001 = vmatprep.subr.mxu0 0.0
    %8002 = vmatpush1.msra.mxu0 0.0
    %8003 = vmatprep.subr.mxu0 0.0
    %8004 = vmatpush1.msra.mxu0 0.0
    %8005 = vmatprep.subr.mxu0 0.0
    %8006 = vmatpush1.msra.mxu0 0.0
    %8007 = vmatprep.subr.mxu0 0.0
    %8008 = vmatpush1.msra.mxu0 0.0
    %8009 = vmatprep.subr.mxu0 0.0
    %8010 = vmatpush1.msra.mxu0 0.0
    %8011 = vmatprep.subr.mxu0 0.0
    %8012 = vmatpush1.msra.mxu0 0.0
    %8013 = vmatprep.subr.mxu0 0.0
    %8014 = vmatpush1.msra.mxu0 0.0
    %8015 = vmatprep.subr.mxu0 0.0
    %8016 = vmatpush1.msra.mxu0 0.0
    %8017 = vmatprep.subr.mxu0 0.0
    %8018 = vmatpush1.msra.mxu0 0.0
    %8019 = vmatprep.subr.mxu0 0.0
    %8020 = vmatpush1.msra.mxu0 0.0
    %8021 = vmatprep.subr.mxu0 0.0
    %8022 = vmatpush1.msra.mxu0 0.0
    %8023 = vmatprep.subr.mxu0 0.0
    %8024 = vmatpush1.msra.mxu0 %v253
    %8025 = vmatprep.subr.mxu0 0.0
    %8026 = vmatpush2.msra.mxu0 0.0
    %8027 = vmatprep.subr.mxu0 0.0
    %8028 = vmatpush2.msra.mxu0 0.0
    %8029 = vmatprep.subr.mxu0 0.0
    %8030 = vmatpush2.msra.mxu0 0.0
    %8031 = vmatprep.subr.mxu0 0.0
    %8032 = vmatpush2.msra.mxu0 0.0
    %8033 = vmatprep.subr.mxu0 0.0
    %8034 = vmatpush2.msra.mxu0 0.0
    %8035 = vmatprep.subr.mxu0 0.0
    %8036 = vmatpush2.msra.mxu0 0.0
    %8037 = vmatprep.subr.mxu0 0.0
    %8038 = vmatpush2.msra.mxu0 0.0
    %8039 = vmatprep.subr.mxu0 0.0
    %8040 = vmatpush2.msra.mxu0 0.0
    %8041 = vmatprep.subr.mxu0 0.0
    %8042 = vmatpush2.msra.mxu0 0.0
    %8043 = vmatprep.subr.mxu0 0.0
    %8044 = vmatpush2.msra.mxu0 0.0
    %8045 = vmatprep.subr.mxu0 0.0
    %8046 = vmatpush2.msra.mxu0 0.0
    %8047 = vmatprep.subr.mxu0 0.0
    %8048 = vmatpush2.msra.mxu0 0.0
    %8049 = vmatprep.subr.mxu0 0.0
    %8050 = vmatpush2.msra.mxu0 0.0
    %8051 = vmatprep.subr.mxu0 0.0
    %8052 = vmatpush2.msra.mxu0 0.0
    %8053 = vmatprep.subr.mxu0 0.0
    %8054 = vmatpush2.msra.mxu0 0.0
    %8055 = vmatprep.subr.mxu0 0.0
    %8056 = vmatpush2.msra.mxu0 0.0
    %8057 = vmatprep.mubr.f32.mxu0 0.0
    %8058 = vmatmul.mubr.f32.gmra.mxu0 %v7991
    %v8059 = vpop.f32.mrf.mxu0
    %v8060 = vadd.f32 0.0, %v8059
    %v8061 = vpop.f32.mrf.mxu0
    %8062 = vdwg.mxu0
    %v8064 = vsel %vm275, %v7039, 0
    %8066 = vmatprep.subr.mxu0 0.0
    %8067 = vmatpush1.msra.mxu0 0.0
    %8068 = vmatprep.subr.mxu0 0.0
    %8069 = vmatpush1.msra.mxu0 0.0
    %8070 = vmatprep.subr.mxu0 0.0
    %8071 = vmatpush1.msra.mxu0 0.0
    %8072 = vmatprep.subr.mxu0 0.0
    %8073 = vmatpush1.msra.mxu0 0.0
    %8074 = vmatprep.subr.mxu0 0.0
    %8075 = vmatpush1.msra.mxu0 0.0
    %8076 = vmatprep.subr.mxu0 0.0
    %8077 = vmatpush1.msra.mxu0 0.0
    %8078 = vmatprep.subr.mxu0 0.0
    %8079 = vmatpush1.msra.mxu0 0.0
    %8080 = vmatprep.subr.mxu0 0.0
    %8081 = vmatpush1.msra.mxu0 0.0
    %8082 = vmatprep.subr.mxu0 0.0
    %8083 = vmatpush1.msra.mxu0 0.0
    %8084 = vmatprep.subr.mxu0 0.0
    %8085 = vmatpush1.msra.mxu0 0.0
    %8086 = vmatprep.subr.mxu0 0.0
    %8087 = vmatpush1.msra.mxu0 0.0
    %8088 = vmatprep.subr.mxu0 0.0
    %8089 = vmatpush1.msra.mxu0 0.0
    %8090 = vmatprep.subr.mxu0 0.0
    %8091 = vmatpush1.msra.mxu0 0.0
    %8092 = vmatprep.subr.mxu0 0.0
    %8093 = vmatpush1.msra.mxu0 0.0
    %8094 = vmatprep.subr.mxu0 0.0
    %8095 = vmatpush1.msra.mxu0 0.0
    %8096 = vmatprep.subr.mxu0 0.0
    %8097 = vmatpush1.msra.mxu0 %v259
    %8098 = vmatprep.subr.mxu0 0.0
    %8099 = vmatpush2.msra.mxu0 0.0
    %8100 = vmatprep.subr.mxu0 0.0
    %8101 = vmatpush2.msra.mxu0 0.0
    %8102 = vmatprep.subr.mxu0 0.0
    %8103 = vmatpush2.msra.mxu0 0.0
    %8104 = vmatprep.subr.mxu0 0.0
    %8105 = vmatpush2.msra.mxu0 0.0
    %8106 = vmatprep.subr.mxu0 0.0
    %8107 = vmatpush2.msra.mxu0 0.0
    %8108 = vmatprep.subr.mxu0 0.0
    %8109 = vmatpush2.msra.mxu0 0.0
    %8110 = vmatprep.subr.mxu0 0.0
    %8111 = vmatpush2.msra.mxu0 0.0
    %8112 = vmatprep.subr.mxu0 0.0
    %8113 = vmatpush2.msra.mxu0 0.0
    %8114 = vmatprep.subr.mxu0 0.0
    %8115 = vmatpush2.msra.mxu0 0.0
    %8116 = vmatprep.subr.mxu0 0.0
    %8117 = vmatpush2.msra.mxu0 0.0
    %8118 = vmatprep.subr.mxu0 0.0
    %8119 = vmatpush2.msra.mxu0 0.0
    %8120 = vmatprep.subr.mxu0 0.0
    %8121 = vmatpush2.msra.mxu0 0.0
    %8122 = vmatprep.subr.mxu0 0.0
    %8123 = vmatpush2.msra.mxu0 0.0
    %8124 = vmatprep.subr.mxu0 0.0
    %8125 = vmatpush2.msra.mxu0 0.0
    %8126 = vmatprep.subr.mxu0 0.0
    %8127 = vmatpush2.msra.mxu0 0.0
    %8128 = vmatprep.subr.mxu0 0.0
    %8129 = vmatpush2.msra.mxu0 0.0
    %8130 = vmatprep.mubr.f32.mxu0 0.0
    %8131 = vmatmul.mubr.f32.gmra.mxu0 %v8064
    %v8132 = vpop.f32.mrf.mxu0
    %v8133 = vadd.f32 0.0, %v8132
    %v8134 = vpop.f32.mrf.mxu0
    %8135 = vdwg.mxu0
    %v8137 = vsel %vm275, %v7040, 0
    %8139 = vmatprep.subr.mxu0 0.0
    %8140 = vmatpush1.msra.mxu0 0.0
    %8141 = vmatprep.subr.mxu0 0.0
    %8142 = vmatpush1.msra.mxu0 0.0
    %8143 = vmatprep.subr.mxu0 0.0
    %8144 = vmatpush1.msra.mxu0 0.0
    %8145 = vmatprep.subr.mxu0 0.0
    %8146 = vmatpush1.msra.mxu0 0.0
    %8147 = vmatprep.subr.mxu0 0.0
    %8148 = vmatpush1.msra.mxu0 0.0
    %8149 = vmatprep.subr.mxu0 0.0
    %8150 = vmatpush1.msra.mxu0 0.0
    %8151 = vmatprep.subr.mxu0 0.0
    %8152 = vmatpush1.msra.mxu0 0.0
    %8153 = vmatprep.subr.mxu0 0.0
    %8154 = vmatpush1.msra.mxu0 0.0
    %8155 = vmatprep.subr.mxu0 0.0
    %8156 = vmatpush1.msra.mxu0 0.0
    %8157 = vmatprep.subr.mxu0 0.0
    %8158 = vmatpush1.msra.mxu0 0.0
    %8159 = vmatprep.subr.mxu0 0.0
    %8160 = vmatpush1.msra.mxu0 0.0
    %8161 = vmatprep.subr.mxu0 0.0
    %8162 = vmatpush1.msra.mxu0 0.0
    %8163 = vmatprep.subr.mxu0 0.0
    %8164 = vmatpush1.msra.mxu0 0.0
    %8165 = vmatprep.subr.mxu0 0.0
    %8166 = vmatpush1.msra.mxu0 0.0
    %8167 = vmatprep.subr.mxu0 0.0
    %8168 = vmatpush1.msra.mxu0 0.0
    %8169 = vmatprep.subr.mxu0 0.0
    %8170 = vmatpush1.msra.mxu0 %v263
    %8171 = vmatprep.subr.mxu0 0.0
    %8172 = vmatpush2.msra.mxu0 0.0
    %8173 = vmatprep.subr.mxu0 0.0
    %8174 = vmatpush2.msra.mxu0 0.0
    %8175 = vmatprep.subr.mxu0 0.0
    %8176 = vmatpush2.msra.mxu0 0.0
    %8177 = vmatprep.subr.mxu0 0.0
    %8178 = vmatpush2.msra.mxu0 0.0
    %8179 = vmatprep.subr.mxu0 0.0
    %8180 = vmatpush2.msra.mxu0 0.0
    %8181 = vmatprep.subr.mxu0 0.0
    %8182 = vmatpush2.msra.mxu0 0.0
    %8183 = vmatprep.subr.mxu0 0.0
    %8184 = vmatpush2.msra.mxu0 0.0
    %8185 = vmatprep.subr.mxu0 0.0
    %8186 = vmatpush2.msra.mxu0 0.0
    %8187 = vmatprep.subr.mxu0 0.0
    %8188 = vmatpush2.msra.mxu0 0.0
    %8189 = vmatprep.subr.mxu0 0.0
    %8190 = vmatpush2.msra.mxu0 0.0
    %8191 = vmatprep.subr.mxu0 0.0
    %8192 = vmatpush2.msra.mxu0 0.0
    %8193 = vmatprep.subr.mxu0 0.0
    %8194 = vmatpush2.msra.mxu0 0.0
    %8195 = vmatprep.subr.mxu0 0.0
    %8196 = vmatpush2.msra.mxu0 0.0
    %8197 = vmatprep.subr.mxu0 0.0
    %8198 = vmatpush2.msra.mxu0 0.0
    %8199 = vmatprep.subr.mxu0 0.0
    %8200 = vmatpush2.msra.mxu0 0.0
    %8201 = vmatprep.subr.mxu0 0.0
    %8202 = vmatpush2.msra.mxu0 0.0
    %8203 = vmatprep.mubr.f32.mxu0 0.0
    %8204 = vmatmul.mubr.f32.gmra.mxu0 %v8137
    %v8205 = vpop.f32.mrf.mxu0
    %v8206 = vadd.f32 0.0, %v8205
    %v8207 = vpop.f32.mrf.mxu0
    %8208 = vdwg.mxu0
    %v8209 = vadd.f32 %v5585, %v7111
    %v8210 = vadd.f32 %v5586, %v7184
    %v8211 = vadd.f32 %v5587, %v7257
    %v8212 = vadd.f32 %v5588, %v7330
    %v8213 = vadd.f32 %v5589, %v7403
    %v8214 = vadd.f32 %v5590, %v7476
    %v8215 = vadd.f32 %v5591, %v7549
    %v8216 = vadd.f32 %v5592, %v7622
    %v8217 = vadd.f32 %v5593, %v7695
    %v8218 = vadd.f32 %v5594, %v7768
    %v8219 = vadd.f32 %v5595, %v7841
    %v8220 = vadd.f32 %v5596, %v7914
    %v8221 = vadd.f32 %v5597, %v7987
    %v8222 = vadd.f32 %v5598, %v8060
    %v8223 = vadd.f32 %v5599, %v8133
    %v8224 = vadd.f32 %v5600, %v8206
    %8225 = vrot.lane.b32.xlu0 %v187, 104
    %v8226 = vpop.permute.xlu0 %8225
    %8227 = vrot.lane.b32.xlu0 %v187, 72
    %v8228 = vpop.permute.xlu0 %8227
    %v8229 = vsel %vm275, %v8226, 0
    %v8231 = vsel %vm275, %v8228, 0
    %8233 = vmatprep.subr.mxu0 0.0
    %8234 = vmatpush1.xpose.msra.mxu0 0.0
    %8235 = vmatprep.subr.mxu0 0.0
    %8236 = vmatpush1.xpose.msra.mxu0 0.0
    %8237 = vmatprep.subr.mxu0 0.0
    %8238 = vmatpush1.xpose.msra.mxu0 0.0
    %8239 = vmatprep.subr.mxu0 0.0
    %8240 = vmatpush1.xpose.msra.mxu0 0.0
    %8241 = vmatprep.subr.mxu0 0.0
    %8242 = vmatpush1.xpose.msra.mxu0 0.0
    %8243 = vmatprep.subr.mxu0 0.0
    %8244 = vmatpush1.xpose.msra.mxu0 0.0
    %8245 = vmatprep.subr.mxu0 0.0
    %8246 = vmatpush1.xpose.msra.mxu0 0.0
    %8247 = vmatprep.subr.mxu0 0.0
    %8248 = vmatpush1.xpose.msra.mxu0 0.0
    %8249 = vmatprep.subr.mxu0 0.0
    %8250 = vmatpush1.xpose.msra.mxu0 0.0
    %8251 = vmatprep.subr.mxu0 0.0
    %8252 = vmatpush1.xpose.msra.mxu0 0.0
    %8253 = vmatprep.subr.mxu0 0.0
    %8254 = vmatpush1.xpose.msra.mxu0 0.0
    %8255 = vmatprep.subr.mxu0 0.0
    %8256 = vmatpush1.xpose.msra.mxu0 0.0
    %8257 = vmatprep.subr.mxu0 0.0
    %8258 = vmatpush1.xpose.msra.mxu0 0.0
    %8259 = vmatprep.subr.mxu0 0.0
    %8260 = vmatpush1.xpose.msra.mxu0 0.0
    %8261 = vmatprep.subr.mxu0 0.0
    %8262 = vmatpush1.xpose.msra.mxu0 0.0
    %8263 = vmatprep.subr.mxu0 0.0
    %8264 = vmatpush1.xpose.msra.mxu0 %v8231
    %8265 = vmatprep.subr.mxu0 0.0
    %8266 = vmatpush2.xpose.msra.mxu0 0.0
    %8267 = vmatprep.subr.mxu0 0.0
    %8268 = vmatpush2.xpose.msra.mxu0 0.0
    %8269 = vmatprep.subr.mxu0 0.0
    %8270 = vmatpush2.xpose.msra.mxu0 0.0
    %8271 = vmatprep.subr.mxu0 0.0
    %8272 = vmatpush2.xpose.msra.mxu0 0.0
    %8273 = vmatprep.subr.mxu0 0.0
    %8274 = vmatpush2.xpose.msra.mxu0 0.0
    %8275 = vmatprep.subr.mxu0 0.0
    %8276 = vmatpush2.xpose.msra.mxu0 0.0
    %8277 = vmatprep.subr.mxu0 0.0
    %8278 = vmatpush2.xpose.msra.mxu0 0.0
    %8279 = vmatprep.subr.mxu0 0.0
    %8280 = vmatpush2.xpose.msra.mxu0 0.0
    %8281 = vmatprep.subr.mxu0 0.0
    %8282 = vmatpush2.xpose.msra.mxu0 0.0
    %8283 = vmatprep.subr.mxu0 0.0
    %8284 = vmatpush2.xpose.msra.mxu0 0.0
    %8285 = vmatprep.subr.mxu0 0.0
    %8286 = vmatpush2.xpose.msra.mxu0 0.0
    %8287 = vmatprep.subr.mxu0 0.0
    %8288 = vmatpush2.xpose.msra.mxu0 0.0
    %8289 = vmatprep.subr.mxu0 0.0
    %8290 = vmatpush2.xpose.msra.mxu0 0.0
    %8291 = vmatprep.subr.mxu0 0.0
    %8292 = vmatpush2.xpose.msra.mxu0 0.0
    %8293 = vmatprep.subr.mxu0 0.0
    %8294 = vmatpush2.xpose.msra.mxu0 0.0
    %8295 = vmatprep.subr.mxu0 0.0
    %8296 = vmatpush2.xpose.msra.mxu0 0.0
    %8297 = vmatprep.mubr.f32.mxu0 0.0
    %8298 = vmatmul.mubr.f32.gmra.mxu0 %v8229
    %v8299 = vpop.f32.mrf.mxu0
    %v8300 = vadd.f32 0.0, %v8299
    %v8301 = vpop.f32.mrf.mxu0
    %8302 = vdwg.mxu0
    %8303 = vrot.lane.b32.xlu0 %v191, 104
    %v8304 = vpop.permute.xlu0 %8303
    %8305 = vrot.lane.b32.xlu0 %v191, 72
    %v8306 = vpop.permute.xlu0 %8305
    %v8307 = vsel %vm275, %v8304, 0
    %v8309 = vsel %vm275, %v8306, 0
    %8311 = vmatprep.subr.mxu0 0.0
    %8312 = vmatpush1.xpose.msra.mxu0 0.0
    %8313 = vmatprep.subr.mxu0 0.0
    %8314 = vmatpush1.xpose.msra.mxu0 0.0
    %8315 = vmatprep.subr.mxu0 0.0
    %8316 = vmatpush1.xpose.msra.mxu0 0.0
    %8317 = vmatprep.subr.mxu0 0.0
    %8318 = vmatpush1.xpose.msra.mxu0 0.0
    %8319 = vmatprep.subr.mxu0 0.0
    %8320 = vmatpush1.xpose.msra.mxu0 0.0
    %8321 = vmatprep.subr.mxu0 0.0
    %8322 = vmatpush1.xpose.msra.mxu0 0.0
    %8323 = vmatprep.subr.mxu0 0.0
    %8324 = vmatpush1.xpose.msra.mxu0 0.0
    %8325 = vmatprep.subr.mxu0 0.0
    %8326 = vmatpush1.xpose.msra.mxu0 0.0
    %8327 = vmatprep.subr.mxu0 0.0
    %8328 = vmatpush1.xpose.msra.mxu0 0.0
    %8329 = vmatprep.subr.mxu0 0.0
    %8330 = vmatpush1.xpose.msra.mxu0 0.0
    %8331 = vmatprep.subr.mxu0 0.0
    %8332 = vmatpush1.xpose.msra.mxu0 0.0
    %8333 = vmatprep.subr.mxu0 0.0
    %8334 = vmatpush1.xpose.msra.mxu0 0.0
    %8335 = vmatprep.subr.mxu0 0.0
    %8336 = vmatpush1.xpose.msra.mxu0 0.0
    %8337 = vmatprep.subr.mxu0 0.0
    %8338 = vmatpush1.xpose.msra.mxu0 0.0
    %8339 = vmatprep.subr.mxu0 0.0
    %8340 = vmatpush1.xpose.msra.mxu0 0.0
    %8341 = vmatprep.subr.mxu0 0.0
    %8342 = vmatpush1.xpose.msra.mxu0 %v8309
    %8343 = vmatprep.subr.mxu0 0.0
    %8344 = vmatpush2.xpose.msra.mxu0 0.0
    %8345 = vmatprep.subr.mxu0 0.0
    %8346 = vmatpush2.xpose.msra.mxu0 0.0
    %8347 = vmatprep.subr.mxu0 0.0
    %8348 = vmatpush2.xpose.msra.mxu0 0.0
    %8349 = vmatprep.subr.mxu0 0.0
    %8350 = vmatpush2.xpose.msra.mxu0 0.0
    %8351 = vmatprep.subr.mxu0 0.0
    %8352 = vmatpush2.xpose.msra.mxu0 0.0
    %8353 = vmatprep.subr.mxu0 0.0
    %8354 = vmatpush2.xpose.msra.mxu0 0.0
    %8355 = vmatprep.subr.mxu0 0.0
    %8356 = vmatpush2.xpose.msra.mxu0 0.0
    %8357 = vmatprep.subr.mxu0 0.0
    %8358 = vmatpush2.xpose.msra.mxu0 0.0
    %8359 = vmatprep.subr.mxu0 0.0
    %8360 = vmatpush2.xpose.msra.mxu0 0.0
    %8361 = vmatprep.subr.mxu0 0.0
    %8362 = vmatpush2.xpose.msra.mxu0 0.0
    %8363 = vmatprep.subr.mxu0 0.0
    %8364 = vmatpush2.xpose.msra.mxu0 0.0
    %8365 = vmatprep.subr.mxu0 0.0
    %8366 = vmatpush2.xpose.msra.mxu0 0.0
    %8367 = vmatprep.subr.mxu0 0.0
    %8368 = vmatpush2.xpose.msra.mxu0 0.0
    %8369 = vmatprep.subr.mxu0 0.0
    %8370 = vmatpush2.xpose.msra.mxu0 0.0
    %8371 = vmatprep.subr.mxu0 0.0
    %8372 = vmatpush2.xpose.msra.mxu0 0.0
    %8373 = vmatprep.subr.mxu0 0.0
    %8374 = vmatpush2.xpose.msra.mxu0 0.0
    %8375 = vmatprep.mubr.f32.mxu0 0.0
    %8376 = vmatmul.mubr.f32.gmra.mxu0 %v8307
    %v8377 = vpop.f32.mrf.mxu0
    %v8378 = vadd.f32 0.0, %v8377
    %v8379 = vpop.f32.mrf.mxu0
    %8380 = vdwg.mxu0
    %8381 = vrot.lane.b32.xlu0 %v197, 104
    %v8382 = vpop.permute.xlu0 %8381
    %8383 = vrot.lane.b32.xlu0 %v197, 72
    %v8384 = vpop.permute.xlu0 %8383
    %v8385 = vsel %vm275, %v8382, 0
    %v8387 = vsel %vm275, %v8384, 0
    %8389 = vmatprep.subr.mxu0 0.0
    %8390 = vmatpush1.xpose.msra.mxu0 0.0
    %8391 = vmatprep.subr.mxu0 0.0
    %8392 = vmatpush1.xpose.msra.mxu0 0.0
    %8393 = vmatprep.subr.mxu0 0.0
    %8394 = vmatpush1.xpose.msra.mxu0 0.0
    %8395 = vmatprep.subr.mxu0 0.0
    %8396 = vmatpush1.xpose.msra.mxu0 0.0
    %8397 = vmatprep.subr.mxu0 0.0
    %8398 = vmatpush1.xpose.msra.mxu0 0.0
    %8399 = vmatprep.subr.mxu0 0.0
    %8400 = vmatpush1.xpose.msra.mxu0 0.0
    %8401 = vmatprep.subr.mxu0 0.0
    %8402 = vmatpush1.xpose.msra.mxu0 0.0
    %8403 = vmatprep.subr.mxu0 0.0
    %8404 = vmatpush1.xpose.msra.mxu0 0.0
    %8405 = vmatprep.subr.mxu0 0.0
    %8406 = vmatpush1.xpose.msra.mxu0 0.0
    %8407 = vmatprep.subr.mxu0 0.0
    %8408 = vmatpush1.xpose.msra.mxu0 0.0
    %8409 = vmatprep.subr.mxu0 0.0
    %8410 = vmatpush1.xpose.msra.mxu0 0.0
    %8411 = vmatprep.subr.mxu0 0.0
    %8412 = vmatpush1.xpose.msra.mxu0 0.0
    %8413 = vmatprep.subr.mxu0 0.0
    %8414 = vmatpush1.xpose.msra.mxu0 0.0
    %8415 = vmatprep.subr.mxu0 0.0
    %8416 = vmatpush1.xpose.msra.mxu0 0.0
    %8417 = vmatprep.subr.mxu0 0.0
    %8418 = vmatpush1.xpose.msra.mxu0 0.0
    %8419 = vmatprep.subr.mxu0 0.0
    %8420 = vmatpush1.xpose.msra.mxu0 %v8387
    %8421 = vmatprep.subr.mxu0 0.0
    %8422 = vmatpush2.xpose.msra.mxu0 0.0
    %8423 = vmatprep.subr.mxu0 0.0
    %8424 = vmatpush2.xpose.msra.mxu0 0.0
    %8425 = vmatprep.subr.mxu0 0.0
    %8426 = vmatpush2.xpose.msra.mxu0 0.0
    %8427 = vmatprep.subr.mxu0 0.0
    %8428 = vmatpush2.xpose.msra.mxu0 0.0
    %8429 = vmatprep.subr.mxu0 0.0
    %8430 = vmatpush2.xpose.msra.mxu0 0.0
    %8431 = vmatprep.subr.mxu0 0.0
    %8432 = vmatpush2.xpose.msra.mxu0 0.0
    %8433 = vmatprep.subr.mxu0 0.0
    %8434 = vmatpush2.xpose.msra.mxu0 0.0
    %8435 = vmatprep.subr.mxu0 0.0
    %8436 = vmatpush2.xpose.msra.mxu0 0.0
    %8437 = vmatprep.subr.mxu0 0.0
    %8438 = vmatpush2.xpose.msra.mxu0 0.0
    %8439 = vmatprep.subr.mxu0 0.0
    %8440 = vmatpush2.xpose.msra.mxu0 0.0
    %8441 = vmatprep.subr.mxu0 0.0
    %8442 = vmatpush2.xpose.msra.mxu0 0.0
    %8443 = vmatprep.subr.mxu0 0.0
    %8444 = vmatpush2.xpose.msra.mxu0 0.0
    %8445 = vmatprep.subr.mxu0 0.0
    %8446 = vmatpush2.xpose.msra.mxu0 0.0
    %8447 = vmatprep.subr.mxu0 0.0
    %8448 = vmatpush2.xpose.msra.mxu0 0.0
    %8449 = vmatprep.subr.mxu0 0.0
    %8450 = vmatpush2.xpose.msra.mxu0 0.0
    %8451 = vmatprep.subr.mxu0 0.0
    %8452 = vmatpush2.xpose.msra.mxu0 0.0
    %8453 = vmatprep.mubr.f32.mxu0 0.0
    %8454 = vmatmul.mubr.f32.gmra.mxu0 %v8385
    %v8455 = vpop.f32.mrf.mxu0
    %v8456 = vadd.f32 0.0, %v8455
    %v8457 = vpop.f32.mrf.mxu0
    %8458 = vdwg.mxu0
    %8459 = vrot.lane.b32.xlu0 %v201, 104
    %v8460 = vpop.permute.xlu0 %8459
    %8461 = vrot.lane.b32.xlu0 %v201, 72
    %v8462 = vpop.permute.xlu0 %8461
    %v8463 = vsel %vm275, %v8460, 0
    %v8465 = vsel %vm275, %v8462, 0
    %8467 = vmatprep.subr.mxu0 0.0
    %8468 = vmatpush1.xpose.msra.mxu0 0.0
    %8469 = vmatprep.subr.mxu0 0.0
    %8470 = vmatpush1.xpose.msra.mxu0 0.0
    %8471 = vmatprep.subr.mxu0 0.0
    %8472 = vmatpush1.xpose.msra.mxu0 0.0
    %8473 = vmatprep.subr.mxu0 0.0
    %8474 = vmatpush1.xpose.msra.mxu0 0.0
    %8475 = vmatprep.subr.mxu0 0.0
    %8476 = vmatpush1.xpose.msra.mxu0 0.0
    %8477 = vmatprep.subr.mxu0 0.0
    %8478 = vmatpush1.xpose.msra.mxu0 0.0
    %8479 = vmatprep.subr.mxu0 0.0
    %8480 = vmatpush1.xpose.msra.mxu0 0.0
    %8481 = vmatprep.subr.mxu0 0.0
    %8482 = vmatpush1.xpose.msra.mxu0 0.0
    %8483 = vmatprep.subr.mxu0 0.0
    %8484 = vmatpush1.xpose.msra.mxu0 0.0
    %8485 = vmatprep.subr.mxu0 0.0
    %8486 = vmatpush1.xpose.msra.mxu0 0.0
    %8487 = vmatprep.subr.mxu0 0.0
    %8488 = vmatpush1.xpose.msra.mxu0 0.0
    %8489 = vmatprep.subr.mxu0 0.0
    %8490 = vmatpush1.xpose.msra.mxu0 0.0
    %8491 = vmatprep.subr.mxu0 0.0
    %8492 = vmatpush1.xpose.msra.mxu0 0.0
    %8493 = vmatprep.subr.mxu0 0.0
    %8494 = vmatpush1.xpose.msra.mxu0 0.0
    %8495 = vmatprep.subr.mxu0 0.0
    %8496 = vmatpush1.xpose.msra.mxu0 0.0
    %8497 = vmatprep.subr.mxu0 0.0
    %8498 = vmatpush1.xpose.msra.mxu0 %v8465
    %8499 = vmatprep.subr.mxu0 0.0
    %8500 = vmatpush2.xpose.msra.mxu0 0.0
    %8501 = vmatprep.subr.mxu0 0.0
    %8502 = vmatpush2.xpose.msra.mxu0 0.0
    %8503 = vmatprep.subr.mxu0 0.0
    %8504 = vmatpush2.xpose.msra.mxu0 0.0
    %8505 = vmatprep.subr.mxu0 0.0
    %8506 = vmatpush2.xpose.msra.mxu0 0.0
    %8507 = vmatprep.subr.mxu0 0.0
    %8508 = vmatpush2.xpose.msra.mxu0 0.0
    %8509 = vmatprep.subr.mxu0 0.0
    %8510 = vmatpush2.xpose.msra.mxu0 0.0
    %8511 = vmatprep.subr.mxu0 0.0
    %8512 = vmatpush2.xpose.msra.mxu0 0.0
    %8513 = vmatprep.subr.mxu0 0.0
    %8514 = vmatpush2.xpose.msra.mxu0 0.0
    %8515 = vmatprep.subr.mxu0 0.0
    %8516 = vmatpush2.xpose.msra.mxu0 0.0
    %8517 = vmatprep.subr.mxu0 0.0
    %8518 = vmatpush2.xpose.msra.mxu0 0.0
    %8519 = vmatprep.subr.mxu0 0.0
    %8520 = vmatpush2.xpose.msra.mxu0 0.0
    %8521 = vmatprep.subr.mxu0 0.0
    %8522 = vmatpush2.xpose.msra.mxu0 0.0
    %8523 = vmatprep.subr.mxu0 0.0
    %8524 = vmatpush2.xpose.msra.mxu0 0.0
    %8525 = vmatprep.subr.mxu0 0.0
    %8526 = vmatpush2.xpose.msra.mxu0 0.0
    %8527 = vmatprep.subr.mxu0 0.0
    %8528 = vmatpush2.xpose.msra.mxu0 0.0
    %8529 = vmatprep.subr.mxu0 0.0
    %8530 = vmatpush2.xpose.msra.mxu0 0.0
    %8531 = vmatprep.mubr.f32.mxu0 0.0
    %8532 = vmatmul.mubr.f32.gmra.mxu0 %v8463
    %v8533 = vpop.f32.mrf.mxu0
    %v8534 = vadd.f32 0.0, %v8533
    %v8535 = vpop.f32.mrf.mxu0
    %8536 = vdwg.mxu0
    %8537 = vrot.lane.b32.xlu0 %v207, 104
    %v8538 = vpop.permute.xlu0 %8537
    %8539 = vrot.lane.b32.xlu0 %v207, 72
    %v8540 = vpop.permute.xlu0 %8539
    %v8541 = vsel %vm275, %v8538, 0
    %v8543 = vsel %vm275, %v8540, 0
    %8545 = vmatprep.subr.mxu0 0.0
    %8546 = vmatpush1.xpose.msra.mxu0 0.0
    %8547 = vmatprep.subr.mxu0 0.0
    %8548 = vmatpush1.xpose.msra.mxu0 0.0
    %8549 = vmatprep.subr.mxu0 0.0
    %8550 = vmatpush1.xpose.msra.mxu0 0.0
    %8551 = vmatprep.subr.mxu0 0.0
    %8552 = vmatpush1.xpose.msra.mxu0 0.0
    %8553 = vmatprep.subr.mxu0 0.0
    %8554 = vmatpush1.xpose.msra.mxu0 0.0
    %8555 = vmatprep.subr.mxu0 0.0
    %8556 = vmatpush1.xpose.msra.mxu0 0.0
    %8557 = vmatprep.subr.mxu0 0.0
    %8558 = vmatpush1.xpose.msra.mxu0 0.0
    %8559 = vmatprep.subr.mxu0 0.0
    %8560 = vmatpush1.xpose.msra.mxu0 0.0
    %8561 = vmatprep.subr.mxu0 0.0
    %8562 = vmatpush1.xpose.msra.mxu0 0.0
    %8563 = vmatprep.subr.mxu0 0.0
    %8564 = vmatpush1.xpose.msra.mxu0 0.0
    %8565 = vmatprep.subr.mxu0 0.0
    %8566 = vmatpush1.xpose.msra.mxu0 0.0
    %8567 = vmatprep.subr.mxu0 0.0
    %8568 = vmatpush1.xpose.msra.mxu0 0.0
    %8569 = vmatprep.subr.mxu0 0.0
    %8570 = vmatpush1.xpose.msra.mxu0 0.0
    %8571 = vmatprep.subr.mxu0 0.0
    %8572 = vmatpush1.xpose.msra.mxu0 0.0
    %8573 = vmatprep.subr.mxu0 0.0
    %8574 = vmatpush1.xpose.msra.mxu0 0.0
    %8575 = vmatprep.subr.mxu0 0.0
    %8576 = vmatpush1.xpose.msra.mxu0 %v8543
    %8577 = vmatprep.subr.mxu0 0.0
    %8578 = vmatpush2.xpose.msra.mxu0 0.0
    %8579 = vmatprep.subr.mxu0 0.0
    %8580 = vmatpush2.xpose.msra.mxu0 0.0
    %8581 = vmatprep.subr.mxu0 0.0
    %8582 = vmatpush2.xpose.msra.mxu0 0.0
    %8583 = vmatprep.subr.mxu0 0.0
    %8584 = vmatpush2.xpose.msra.mxu0 0.0
    %8585 = vmatprep.subr.mxu0 0.0
    %8586 = vmatpush2.xpose.msra.mxu0 0.0
    %8587 = vmatprep.subr.mxu0 0.0
    %8588 = vmatpush2.xpose.msra.mxu0 0.0
    %8589 = vmatprep.subr.mxu0 0.0
    %8590 = vmatpush2.xpose.msra.mxu0 0.0
    %8591 = vmatprep.subr.mxu0 0.0
    %8592 = vmatpush2.xpose.msra.mxu0 0.0
    %8593 = vmatprep.subr.mxu0 0.0
    %8594 = vmatpush2.xpose.msra.mxu0 0.0
    %8595 = vmatprep.subr.mxu0 0.0
    %8596 = vmatpush2.xpose.msra.mxu0 0.0
    %8597 = vmatprep.subr.mxu0 0.0
    %8598 = vmatpush2.xpose.msra.mxu0 0.0
    %8599 = vmatprep.subr.mxu0 0.0
    %8600 = vmatpush2.xpose.msra.mxu0 0.0
    %8601 = vmatprep.subr.mxu0 0.0
    %8602 = vmatpush2.xpose.msra.mxu0 0.0
    %8603 = vmatprep.subr.mxu0 0.0
    %8604 = vmatpush2.xpose.msra.mxu0 0.0
    %8605 = vmatprep.subr.mxu0 0.0
    %8606 = vmatpush2.xpose.msra.mxu0 0.0
    %8607 = vmatprep.subr.mxu0 0.0
    %8608 = vmatpush2.xpose.msra.mxu0 0.0
    %8609 = vmatprep.mubr.f32.mxu0 0.0
    %8610 = vmatmul.mubr.f32.gmra.mxu0 %v8541
    %v8611 = vpop.f32.mrf.mxu0
    %v8612 = vadd.f32 0.0, %v8611
    %v8613 = vpop.f32.mrf.mxu0
    %8614 = vdwg.mxu0
    %8615 = vrot.lane.b32.xlu0 %v211, 104
    %v8616 = vpop.permute.xlu0 %8615
    %8617 = vrot.lane.b32.xlu0 %v211, 72
    %v8618 = vpop.permute.xlu0 %8617
    %v8619 = vsel %vm275, %v8616, 0
    %v8621 = vsel %vm275, %v8618, 0
    %8623 = vmatprep.subr.mxu0 0.0
    %8624 = vmatpush1.xpose.msra.mxu0 0.0
    %8625 = vmatprep.subr.mxu0 0.0
    %8626 = vmatpush1.xpose.msra.mxu0 0.0
    %8627 = vmatprep.subr.mxu0 0.0
    %8628 = vmatpush1.xpose.msra.mxu0 0.0
    %8629 = vmatprep.subr.mxu0 0.0
    %8630 = vmatpush1.xpose.msra.mxu0 0.0
    %8631 = vmatprep.subr.mxu0 0.0
    %8632 = vmatpush1.xpose.msra.mxu0 0.0
    %8633 = vmatprep.subr.mxu0 0.0
    %8634 = vmatpush1.xpose.msra.mxu0 0.0
    %8635 = vmatprep.subr.mxu0 0.0
    %8636 = vmatpush1.xpose.msra.mxu0 0.0
    %8637 = vmatprep.subr.mxu0 0.0
    %8638 = vmatpush1.xpose.msra.mxu0 0.0
    %8639 = vmatprep.subr.mxu0 0.0
    %8640 = vmatpush1.xpose.msra.mxu0 0.0
    %8641 = vmatprep.subr.mxu0 0.0
    %8642 = vmatpush1.xpose.msra.mxu0 0.0
    %8643 = vmatprep.subr.mxu0 0.0
    %8644 = vmatpush1.xpose.msra.mxu0 0.0
    %8645 = vmatprep.subr.mxu0 0.0
    %8646 = vmatpush1.xpose.msra.mxu0 0.0
    %8647 = vmatprep.subr.mxu0 0.0
    %8648 = vmatpush1.xpose.msra.mxu0 0.0
    %8649 = vmatprep.subr.mxu0 0.0
    %8650 = vmatpush1.xpose.msra.mxu0 0.0
    %8651 = vmatprep.subr.mxu0 0.0
    %8652 = vmatpush1.xpose.msra.mxu0 0.0
    %8653 = vmatprep.subr.mxu0 0.0
    %8654 = vmatpush1.xpose.msra.mxu0 %v8621
    %8655 = vmatprep.subr.mxu0 0.0
    %8656 = vmatpush2.xpose.msra.mxu0 0.0
    %8657 = vmatprep.subr.mxu0 0.0
    %8658 = vmatpush2.xpose.msra.mxu0 0.0
    %8659 = vmatprep.subr.mxu0 0.0
    %8660 = vmatpush2.xpose.msra.mxu0 0.0
    %8661 = vmatprep.subr.mxu0 0.0
    %8662 = vmatpush2.xpose.msra.mxu0 0.0
    %8663 = vmatprep.subr.mxu0 0.0
    %8664 = vmatpush2.xpose.msra.mxu0 0.0
    %8665 = vmatprep.subr.mxu0 0.0
    %8666 = vmatpush2.xpose.msra.mxu0 0.0
    %8667 = vmatprep.subr.mxu0 0.0
    %8668 = vmatpush2.xpose.msra.mxu0 0.0
    %8669 = vmatprep.subr.mxu0 0.0
    %8670 = vmatpush2.xpose.msra.mxu0 0.0
    %8671 = vmatprep.subr.mxu0 0.0
    %8672 = vmatpush2.xpose.msra.mxu0 0.0
    %8673 = vmatprep.subr.mxu0 0.0
    %8674 = vmatpush2.xpose.msra.mxu0 0.0
    %8675 = vmatprep.subr.mxu0 0.0
    %8676 = vmatpush2.xpose.msra.mxu0 0.0
    %8677 = vmatprep.subr.mxu0 0.0
    %8678 = vmatpush2.xpose.msra.mxu0 0.0
    %8679 = vmatprep.subr.mxu0 0.0
    %8680 = vmatpush2.xpose.msra.mxu0 0.0
    %8681 = vmatprep.subr.mxu0 0.0
    %8682 = vmatpush2.xpose.msra.mxu0 0.0
    %8683 = vmatprep.subr.mxu0 0.0
    %8684 = vmatpush2.xpose.msra.mxu0 0.0
    %8685 = vmatprep.subr.mxu0 0.0
    %8686 = vmatpush2.xpose.msra.mxu0 0.0
    %8687 = vmatprep.mubr.f32.mxu0 0.0
    %8688 = vmatmul.mubr.f32.gmra.mxu0 %v8619
    %v8689 = vpop.f32.mrf.mxu0
    %v8690 = vadd.f32 0.0, %v8689
    %v8691 = vpop.f32.mrf.mxu0
    %8692 = vdwg.mxu0
    %8693 = vrot.lane.b32.xlu0 %v217, 104
    %v8694 = vpop.permute.xlu0 %8693
    %8695 = vrot.lane.b32.xlu0 %v217, 72
    %v8696 = vpop.permute.xlu0 %8695
    %v8697 = vsel %vm275, %v8694, 0
    %v8699 = vsel %vm275, %v8696, 0
    %8701 = vmatprep.subr.mxu0 0.0
    %8702 = vmatpush1.xpose.msra.mxu0 0.0
    %8703 = vmatprep.subr.mxu0 0.0
    %8704 = vmatpush1.xpose.msra.mxu0 0.0
    %8705 = vmatprep.subr.mxu0 0.0
    %8706 = vmatpush1.xpose.msra.mxu0 0.0
    %8707 = vmatprep.subr.mxu0 0.0
    %8708 = vmatpush1.xpose.msra.mxu0 0.0
    %8709 = vmatprep.subr.mxu0 0.0
    %8710 = vmatpush1.xpose.msra.mxu0 0.0
    %8711 = vmatprep.subr.mxu0 0.0
    %8712 = vmatpush1.xpose.msra.mxu0 0.0
    %8713 = vmatprep.subr.mxu0 0.0
    %8714 = vmatpush1.xpose.msra.mxu0 0.0
    %8715 = vmatprep.subr.mxu0 0.0
    %8716 = vmatpush1.xpose.msra.mxu0 0.0
    %8717 = vmatprep.subr.mxu0 0.0
    %8718 = vmatpush1.xpose.msra.mxu0 0.0
    %8719 = vmatprep.subr.mxu0 0.0
    %8720 = vmatpush1.xpose.msra.mxu0 0.0
    %8721 = vmatprep.subr.mxu0 0.0
    %8722 = vmatpush1.xpose.msra.mxu0 0.0
    %8723 = vmatprep.subr.mxu0 0.0
    %8724 = vmatpush1.xpose.msra.mxu0 0.0
    %8725 = vmatprep.subr.mxu0 0.0
    %8726 = vmatpush1.xpose.msra.mxu0 0.0
    %8727 = vmatprep.subr.mxu0 0.0
    %8728 = vmatpush1.xpose.msra.mxu0 0.0
    %8729 = vmatprep.subr.mxu0 0.0
    %8730 = vmatpush1.xpose.msra.mxu0 0.0
    %8731 = vmatprep.subr.mxu0 0.0
    %8732 = vmatpush1.xpose.msra.mxu0 %v8699
    %8733 = vmatprep.subr.mxu0 0.0
    %8734 = vmatpush2.xpose.msra.mxu0 0.0
    %8735 = vmatprep.subr.mxu0 0.0
    %8736 = vmatpush2.xpose.msra.mxu0 0.0
    %8737 = vmatprep.subr.mxu0 0.0
    %8738 = vmatpush2.xpose.msra.mxu0 0.0
    %8739 = vmatprep.subr.mxu0 0.0
    %8740 = vmatpush2.xpose.msra.mxu0 0.0
    %8741 = vmatprep.subr.mxu0 0.0
    %8742 = vmatpush2.xpose.msra.mxu0 0.0
    %8743 = vmatprep.subr.mxu0 0.0
    %8744 = vmatpush2.xpose.msra.mxu0 0.0
    %8745 = vmatprep.subr.mxu0 0.0
    %8746 = vmatpush2.xpose.msra.mxu0 0.0
    %8747 = vmatprep.subr.mxu0 0.0
    %8748 = vmatpush2.xpose.msra.mxu0 0.0
    %8749 = vmatprep.subr.mxu0 0.0
    %8750 = vmatpush2.xpose.msra.mxu0 0.0
    %8751 = vmatprep.subr.mxu0 0.0
    %8752 = vmatpush2.xpose.msra.mxu0 0.0
    %8753 = vmatprep.subr.mxu0 0.0
    %8754 = vmatpush2.xpose.msra.mxu0 0.0
    %8755 = vmatprep.subr.mxu0 0.0
    %8756 = vmatpush2.xpose.msra.mxu0 0.0
    %8757 = vmatprep.subr.mxu0 0.0
    %8758 = vmatpush2.xpose.msra.mxu0 0.0
    %8759 = vmatprep.subr.mxu0 0.0
    %8760 = vmatpush2.xpose.msra.mxu0 0.0
    %8761 = vmatprep.subr.mxu0 0.0
    %8762 = vmatpush2.xpose.msra.mxu0 0.0
    %8763 = vmatprep.subr.mxu0 0.0
    %8764 = vmatpush2.xpose.msra.mxu0 0.0
    %8765 = vmatprep.mubr.f32.mxu0 0.0
    %8766 = vmatmul.mubr.f32.gmra.mxu0 %v8697
    %v8767 = vpop.f32.mrf.mxu0
    %v8768 = vadd.f32 0.0, %v8767
    %v8769 = vpop.f32.mrf.mxu0
    %8770 = vdwg.mxu0
    %8771 = vrot.lane.b32.xlu0 %v221, 104
    %v8772 = vpop.permute.xlu0 %8771
    %8773 = vrot.lane.b32.xlu0 %v221, 72
    %v8774 = vpop.permute.xlu0 %8773
    %v8775 = vsel %vm275, %v8772, 0
    %v8777 = vsel %vm275, %v8774, 0
    %8779 = vmatprep.subr.mxu0 0.0
    %8780 = vmatpush1.xpose.msra.mxu0 0.0
    %8781 = vmatprep.subr.mxu0 0.0
    %8782 = vmatpush1.xpose.msra.mxu0 0.0
    %8783 = vmatprep.subr.mxu0 0.0
    %8784 = vmatpush1.xpose.msra.mxu0 0.0
    %8785 = vmatprep.subr.mxu0 0.0
    %8786 = vmatpush1.xpose.msra.mxu0 0.0
    %8787 = vmatprep.subr.mxu0 0.0
    %8788 = vmatpush1.xpose.msra.mxu0 0.0
    %8789 = vmatprep.subr.mxu0 0.0
    %8790 = vmatpush1.xpose.msra.mxu0 0.0
    %8791 = vmatprep.subr.mxu0 0.0
    %8792 = vmatpush1.xpose.msra.mxu0 0.0
    %8793 = vmatprep.subr.mxu0 0.0
    %8794 = vmatpush1.xpose.msra.mxu0 0.0
    %8795 = vmatprep.subr.mxu0 0.0
    %8796 = vmatpush1.xpose.msra.mxu0 0.0
    %8797 = vmatprep.subr.mxu0 0.0
    %8798 = vmatpush1.xpose.msra.mxu0 0.0
    %8799 = vmatprep.subr.mxu0 0.0
    %8800 = vmatpush1.xpose.msra.mxu0 0.0
    %8801 = vmatprep.subr.mxu0 0.0
    %8802 = vmatpush1.xpose.msra.mxu0 0.0
    %8803 = vmatprep.subr.mxu0 0.0
    %8804 = vmatpush1.xpose.msra.mxu0 0.0
    %8805 = vmatprep.subr.mxu0 0.0
    %8806 = vmatpush1.xpose.msra.mxu0 0.0
    %8807 = vmatprep.subr.mxu0 0.0
    %8808 = vmatpush1.xpose.msra.mxu0 0.0
    %8809 = vmatprep.subr.mxu0 0.0
    %8810 = vmatpush1.xpose.msra.mxu0 %v8777
    %8811 = vmatprep.subr.mxu0 0.0
    %8812 = vmatpush2.xpose.msra.mxu0 0.0
    %8813 = vmatprep.subr.mxu0 0.0
    %8814 = vmatpush2.xpose.msra.mxu0 0.0
    %8815 = vmatprep.subr.mxu0 0.0
    %8816 = vmatpush2.xpose.msra.mxu0 0.0
    %8817 = vmatprep.subr.mxu0 0.0
    %8818 = vmatpush2.xpose.msra.mxu0 0.0
    %8819 = vmatprep.subr.mxu0 0.0
    %8820 = vmatpush2.xpose.msra.mxu0 0.0
    %8821 = vmatprep.subr.mxu0 0.0
    %8822 = vmatpush2.xpose.msra.mxu0 0.0
    %8823 = vmatprep.subr.mxu0 0.0
    %8824 = vmatpush2.xpose.msra.mxu0 0.0
    %8825 = vmatprep.subr.mxu0 0.0
    %8826 = vmatpush2.xpose.msra.mxu0 0.0
    %8827 = vmatprep.subr.mxu0 0.0
    %8828 = vmatpush2.xpose.msra.mxu0 0.0
    %8829 = vmatprep.subr.mxu0 0.0
    %8830 = vmatpush2.xpose.msra.mxu0 0.0
    %8831 = vmatprep.subr.mxu0 0.0
    %8832 = vmatpush2.xpose.msra.mxu0 0.0
    %8833 = vmatprep.subr.mxu0 0.0
    %8834 = vmatpush2.xpose.msra.mxu0 0.0
    %8835 = vmatprep.subr.mxu0 0.0
    %8836 = vmatpush2.xpose.msra.mxu0 0.0
    %8837 = vmatprep.subr.mxu0 0.0
    %8838 = vmatpush2.xpose.msra.mxu0 0.0
    %8839 = vmatprep.subr.mxu0 0.0
    %8840 = vmatpush2.xpose.msra.mxu0 0.0
    %8841 = vmatprep.subr.mxu0 0.0
    %8842 = vmatpush2.xpose.msra.mxu0 0.0
    %8843 = vmatprep.mubr.f32.mxu0 0.0
    %8844 = vmatmul.mubr.f32.gmra.mxu0 %v8775
    %v8845 = vpop.f32.mrf.mxu0
    %v8846 = vadd.f32 0.0, %v8845
    %v8847 = vpop.f32.mrf.mxu0
    %8848 = vdwg.mxu0
    %8849 = vrot.lane.b32.xlu0 %v227, 104
    %v8850 = vpop.permute.xlu0 %8849
    %8851 = vrot.lane.b32.xlu0 %v227, 72
    %v8852 = vpop.permute.xlu0 %8851
    %v8853 = vsel %vm275, %v8850, 0
    %v8855 = vsel %vm275, %v8852, 0
    %8857 = vmatprep.subr.mxu0 0.0
    %8858 = vmatpush1.xpose.msra.mxu0 0.0
    %8859 = vmatprep.subr.mxu0 0.0
    %8860 = vmatpush1.xpose.msra.mxu0 0.0
    %8861 = vmatprep.subr.mxu0 0.0
    %8862 = vmatpush1.xpose.msra.mxu0 0.0
    %8863 = vmatprep.subr.mxu0 0.0
    %8864 = vmatpush1.xpose.msra.mxu0 0.0
    %8865 = vmatprep.subr.mxu0 0.0
    %8866 = vmatpush1.xpose.msra.mxu0 0.0
    %8867 = vmatprep.subr.mxu0 0.0
    %8868 = vmatpush1.xpose.msra.mxu0 0.0
    %8869 = vmatprep.subr.mxu0 0.0
    %8870 = vmatpush1.xpose.msra.mxu0 0.0
    %8871 = vmatprep.subr.mxu0 0.0
    %8872 = vmatpush1.xpose.msra.mxu0 0.0
    %8873 = vmatprep.subr.mxu0 0.0
    %8874 = vmatpush1.xpose.msra.mxu0 0.0
    %8875 = vmatprep.subr.mxu0 0.0
    %8876 = vmatpush1.xpose.msra.mxu0 0.0
    %8877 = vmatprep.subr.mxu0 0.0
    %8878 = vmatpush1.xpose.msra.mxu0 0.0
    %8879 = vmatprep.subr.mxu0 0.0
    %8880 = vmatpush1.xpose.msra.mxu0 0.0
    %8881 = vmatprep.subr.mxu0 0.0
    %8882 = vmatpush1.xpose.msra.mxu0 0.0
    %8883 = vmatprep.subr.mxu0 0.0
    %8884 = vmatpush1.xpose.msra.mxu0 0.0
    %8885 = vmatprep.subr.mxu0 0.0
    %8886 = vmatpush1.xpose.msra.mxu0 0.0
    %8887 = vmatprep.subr.mxu0 0.0
    %8888 = vmatpush1.xpose.msra.mxu0 %v8855
    %8889 = vmatprep.subr.mxu0 0.0
    %8890 = vmatpush2.xpose.msra.mxu0 0.0
    %8891 = vmatprep.subr.mxu0 0.0
    %8892 = vmatpush2.xpose.msra.mxu0 0.0
    %8893 = vmatprep.subr.mxu0 0.0
    %8894 = vmatpush2.xpose.msra.mxu0 0.0
    %8895 = vmatprep.subr.mxu0 0.0
    %8896 = vmatpush2.xpose.msra.mxu0 0.0
    %8897 = vmatprep.subr.mxu0 0.0
    %8898 = vmatpush2.xpose.msra.mxu0 0.0
    %8899 = vmatprep.subr.mxu0 0.0
    %8900 = vmatpush2.xpose.msra.mxu0 0.0
    %8901 = vmatprep.subr.mxu0 0.0
    %8902 = vmatpush2.xpose.msra.mxu0 0.0
    %8903 = vmatprep.subr.mxu0 0.0
    %8904 = vmatpush2.xpose.msra.mxu0 0.0
    %8905 = vmatprep.subr.mxu0 0.0
    %8906 = vmatpush2.xpose.msra.mxu0 0.0
    %8907 = vmatprep.subr.mxu0 0.0
    %8908 = vmatpush2.xpose.msra.mxu0 0.0
    %8909 = vmatprep.subr.mxu0 0.0
    %8910 = vmatpush2.xpose.msra.mxu0 0.0
    %8911 = vmatprep.subr.mxu0 0.0
    %8912 = vmatpush2.xpose.msra.mxu0 0.0
    %8913 = vmatprep.subr.mxu0 0.0
    %8914 = vmatpush2.xpose.msra.mxu0 0.0
    %8915 = vmatprep.subr.mxu0 0.0
    %8916 = vmatpush2.xpose.msra.mxu0 0.0
    %8917 = vmatprep.subr.mxu0 0.0
    %8918 = vmatpush2.xpose.msra.mxu0 0.0
    %8919 = vmatprep.subr.mxu0 0.0
    %8920 = vmatpush2.xpose.msra.mxu0 0.0
    %8921 = vmatprep.mubr.f32.mxu0 0.0
    %8922 = vmatmul.mubr.f32.gmra.mxu0 %v8853
    %v8923 = vpop.f32.mrf.mxu0
    %v8924 = vadd.f32 0.0, %v8923
    %v8925 = vpop.f32.mrf.mxu0
    %8926 = vdwg.mxu0
    %8927 = vrot.lane.b32.xlu0 %v231, 104
    %v8928 = vpop.permute.xlu0 %8927
    %8929 = vrot.lane.b32.xlu0 %v231, 72
    %v8930 = vpop.permute.xlu0 %8929
    %v8931 = vsel %vm275, %v8928, 0
    %v8933 = vsel %vm275, %v8930, 0
    %8935 = vmatprep.subr.mxu0 0.0
    %8936 = vmatpush1.xpose.msra.mxu0 0.0
    %8937 = vmatprep.subr.mxu0 0.0
    %8938 = vmatpush1.xpose.msra.mxu0 0.0
    %8939 = vmatprep.subr.mxu0 0.0
    %8940 = vmatpush1.xpose.msra.mxu0 0.0
    %8941 = vmatprep.subr.mxu0 0.0
    %8942 = vmatpush1.xpose.msra.mxu0 0.0
    %8943 = vmatprep.subr.mxu0 0.0
    %8944 = vmatpush1.xpose.msra.mxu0 0.0
    %8945 = vmatprep.subr.mxu0 0.0
    %8946 = vmatpush1.xpose.msra.mxu0 0.0
    %8947 = vmatprep.subr.mxu0 0.0
    %8948 = vmatpush1.xpose.msra.mxu0 0.0
    %8949 = vmatprep.subr.mxu0 0.0
    %8950 = vmatpush1.xpose.msra.mxu0 0.0
    %8951 = vmatprep.subr.mxu0 0.0
    %8952 = vmatpush1.xpose.msra.mxu0 0.0
    %8953 = vmatprep.subr.mxu0 0.0
    %8954 = vmatpush1.xpose.msra.mxu0 0.0
    %8955 = vmatprep.subr.mxu0 0.0
    %8956 = vmatpush1.xpose.msra.mxu0 0.0
    %8957 = vmatprep.subr.mxu0 0.0
    %8958 = vmatpush1.xpose.msra.mxu0 0.0
    %8959 = vmatprep.subr.mxu0 0.0
    %8960 = vmatpush1.xpose.msra.mxu0 0.0
    %8961 = vmatprep.subr.mxu0 0.0
    %8962 = vmatpush1.xpose.msra.mxu0 0.0
    %8963 = vmatprep.subr.mxu0 0.0
    %8964 = vmatpush1.xpose.msra.mxu0 0.0
    %8965 = vmatprep.subr.mxu0 0.0
    %8966 = vmatpush1.xpose.msra.mxu0 %v8933
    %8967 = vmatprep.subr.mxu0 0.0
    %8968 = vmatpush2.xpose.msra.mxu0 0.0
    %8969 = vmatprep.subr.mxu0 0.0
    %8970 = vmatpush2.xpose.msra.mxu0 0.0
    %8971 = vmatprep.subr.mxu0 0.0
    %8972 = vmatpush2.xpose.msra.mxu0 0.0
    %8973 = vmatprep.subr.mxu0 0.0
    %8974 = vmatpush2.xpose.msra.mxu0 0.0
    %8975 = vmatprep.subr.mxu0 0.0
    %8976 = vmatpush2.xpose.msra.mxu0 0.0
    %8977 = vmatprep.subr.mxu0 0.0
    %8978 = vmatpush2.xpose.msra.mxu0 0.0
    %8979 = vmatprep.subr.mxu0 0.0
    %8980 = vmatpush2.xpose.msra.mxu0 0.0
    %8981 = vmatprep.subr.mxu0 0.0
    %8982 = vmatpush2.xpose.msra.mxu0 0.0
    %8983 = vmatprep.subr.mxu0 0.0
    %8984 = vmatpush2.xpose.msra.mxu0 0.0
    %8985 = vmatprep.subr.mxu0 0.0
    %8986 = vmatpush2.xpose.msra.mxu0 0.0
    %8987 = vmatprep.subr.mxu0 0.0
    %8988 = vmatpush2.xpose.msra.mxu0 0.0
    %8989 = vmatprep.subr.mxu0 0.0
    %8990 = vmatpush2.xpose.msra.mxu0 0.0
    %8991 = vmatprep.subr.mxu0 0.0
    %8992 = vmatpush2.xpose.msra.mxu0 0.0
    %8993 = vmatprep.subr.mxu0 0.0
    %8994 = vmatpush2.xpose.msra.mxu0 0.0
    %8995 = vmatprep.subr.mxu0 0.0
    %8996 = vmatpush2.xpose.msra.mxu0 0.0
    %8997 = vmatprep.subr.mxu0 0.0
    %8998 = vmatpush2.xpose.msra.mxu0 0.0
    %8999 = vmatprep.mubr.f32.mxu0 0.0
    %9000 = vmatmul.mubr.f32.gmra.mxu0 %v8931
    %v9001 = vpop.f32.mrf.mxu0
    %v9002 = vadd.f32 0.0, %v9001
    %v9003 = vpop.f32.mrf.mxu0
    %9004 = vdwg.mxu0
    %9005 = vrot.lane.b32.xlu0 %v237, 104
    %v9006 = vpop.permute.xlu0 %9005
    %9007 = vrot.lane.b32.xlu0 %v237, 72
    %v9008 = vpop.permute.xlu0 %9007
    %v9009 = vsel %vm275, %v9006, 0
    %v9011 = vsel %vm275, %v9008, 0
    %9013 = vmatprep.subr.mxu0 0.0
    %9014 = vmatpush1.xpose.msra.mxu0 0.0
    %9015 = vmatprep.subr.mxu0 0.0
    %9016 = vmatpush1.xpose.msra.mxu0 0.0
    %9017 = vmatprep.subr.mxu0 0.0
    %9018 = vmatpush1.xpose.msra.mxu0 0.0
    %9019 = vmatprep.subr.mxu0 0.0
    %9020 = vmatpush1.xpose.msra.mxu0 0.0
    %9021 = vmatprep.subr.mxu0 0.0
    %9022 = vmatpush1.xpose.msra.mxu0 0.0
    %9023 = vmatprep.subr.mxu0 0.0
    %9024 = vmatpush1.xpose.msra.mxu0 0.0
    %9025 = vmatprep.subr.mxu0 0.0
    %9026 = vmatpush1.xpose.msra.mxu0 0.0
    %9027 = vmatprep.subr.mxu0 0.0
    %9028 = vmatpush1.xpose.msra.mxu0 0.0
    %9029 = vmatprep.subr.mxu0 0.0
    %9030 = vmatpush1.xpose.msra.mxu0 0.0
    %9031 = vmatprep.subr.mxu0 0.0
    %9032 = vmatpush1.xpose.msra.mxu0 0.0
    %9033 = vmatprep.subr.mxu0 0.0
    %9034 = vmatpush1.xpose.msra.mxu0 0.0
    %9035 = vmatprep.subr.mxu0 0.0
    %9036 = vmatpush1.xpose.msra.mxu0 0.0
    %9037 = vmatprep.subr.mxu0 0.0
    %9038 = vmatpush1.xpose.msra.mxu0 0.0
    %9039 = vmatprep.subr.mxu0 0.0
    %9040 = vmatpush1.xpose.msra.mxu0 0.0
    %9041 = vmatprep.subr.mxu0 0.0
    %9042 = vmatpush1.xpose.msra.mxu0 0.0
    %9043 = vmatprep.subr.mxu0 0.0
    %9044 = vmatpush1.xpose.msra.mxu0 %v9011
    %9045 = vmatprep.subr.mxu0 0.0
    %9046 = vmatpush2.xpose.msra.mxu0 0.0
    %9047 = vmatprep.subr.mxu0 0.0
    %9048 = vmatpush2.xpose.msra.mxu0 0.0
    %9049 = vmatprep.subr.mxu0 0.0
    %9050 = vmatpush2.xpose.msra.mxu0 0.0
    %9051 = vmatprep.subr.mxu0 0.0
    %9052 = vmatpush2.xpose.msra.mxu0 0.0
    %9053 = vmatprep.subr.mxu0 0.0
    %9054 = vmatpush2.xpose.msra.mxu0 0.0
    %9055 = vmatprep.subr.mxu0 0.0
    %9056 = vmatpush2.xpose.msra.mxu0 0.0
    %9057 = vmatprep.subr.mxu0 0.0
    %9058 = vmatpush2.xpose.msra.mxu0 0.0
    %9059 = vmatprep.subr.mxu0 0.0
    %9060 = vmatpush2.xpose.msra.mxu0 0.0
    %9061 = vmatprep.subr.mxu0 0.0
    %9062 = vmatpush2.xpose.msra.mxu0 0.0
    %9063 = vmatprep.subr.mxu0 0.0
    %9064 = vmatpush2.xpose.msra.mxu0 0.0
    %9065 = vmatprep.subr.mxu0 0.0
    %9066 = vmatpush2.xpose.msra.mxu0 0.0
    %9067 = vmatprep.subr.mxu0 0.0
    %9068 = vmatpush2.xpose.msra.mxu0 0.0
    %9069 = vmatprep.subr.mxu0 0.0
    %9070 = vmatpush2.xpose.msra.mxu0 0.0
    %9071 = vmatprep.subr.mxu0 0.0
    %9072 = vmatpush2.xpose.msra.mxu0 0.0
    %9073 = vmatprep.subr.mxu0 0.0
    %9074 = vmatpush2.xpose.msra.mxu0 0.0
    %9075 = vmatprep.subr.mxu0 0.0
    %9076 = vmatpush2.xpose.msra.mxu0 0.0
    %9077 = vmatprep.mubr.f32.mxu0 0.0
    %9078 = vmatmul.mubr.f32.gmra.mxu0 %v9009
    %v9079 = vpop.f32.mrf.mxu0
    %v9080 = vadd.f32 0.0, %v9079
    %v9081 = vpop.f32.mrf.mxu0
    %9082 = vdwg.mxu0
    %9083 = vrot.lane.b32.xlu0 %v241, 104
    %v9084 = vpop.permute.xlu0 %9083
    %9085 = vrot.lane.b32.xlu0 %v241, 72
    %v9086 = vpop.permute.xlu0 %9085
    %v9087 = vsel %vm275, %v9084, 0
    %v9089 = vsel %vm275, %v9086, 0
    %9091 = vmatprep.subr.mxu0 0.0
    %9092 = vmatpush1.xpose.msra.mxu0 0.0
    %9093 = vmatprep.subr.mxu0 0.0
    %9094 = vmatpush1.xpose.msra.mxu0 0.0
    %9095 = vmatprep.subr.mxu0 0.0
    %9096 = vmatpush1.xpose.msra.mxu0 0.0
    %9097 = vmatprep.subr.mxu0 0.0
    %9098 = vmatpush1.xpose.msra.mxu0 0.0
    %9099 = vmatprep.subr.mxu0 0.0
    %9100 = vmatpush1.xpose.msra.mxu0 0.0
    %9101 = vmatprep.subr.mxu0 0.0
    %9102 = vmatpush1.xpose.msra.mxu0 0.0
    %9103 = vmatprep.subr.mxu0 0.0
    %9104 = vmatpush1.xpose.msra.mxu0 0.0
    %9105 = vmatprep.subr.mxu0 0.0
    %9106 = vmatpush1.xpose.msra.mxu0 0.0
    %9107 = vmatprep.subr.mxu0 0.0
    %9108 = vmatpush1.xpose.msra.mxu0 0.0
    %9109 = vmatprep.subr.mxu0 0.0
    %9110 = vmatpush1.xpose.msra.mxu0 0.0
    %9111 = vmatprep.subr.mxu0 0.0
    %9112 = vmatpush1.xpose.msra.mxu0 0.0
    %9113 = vmatprep.subr.mxu0 0.0
    %9114 = vmatpush1.xpose.msra.mxu0 0.0
    %9115 = vmatprep.subr.mxu0 0.0
    %9116 = vmatpush1.xpose.msra.mxu0 0.0
    %9117 = vmatprep.subr.mxu0 0.0
    %9118 = vmatpush1.xpose.msra.mxu0 0.0
    %9119 = vmatprep.subr.mxu0 0.0
    %9120 = vmatpush1.xpose.msra.mxu0 0.0
    %9121 = vmatprep.subr.mxu0 0.0
    %9122 = vmatpush1.xpose.msra.mxu0 %v9089
    %9123 = vmatprep.subr.mxu0 0.0
    %9124 = vmatpush2.xpose.msra.mxu0 0.0
    %9125 = vmatprep.subr.mxu0 0.0
    %9126 = vmatpush2.xpose.msra.mxu0 0.0
    %9127 = vmatprep.subr.mxu0 0.0
    %9128 = vmatpush2.xpose.msra.mxu0 0.0
    %9129 = vmatprep.subr.mxu0 0.0
    %9130 = vmatpush2.xpose.msra.mxu0 0.0
    %9131 = vmatprep.subr.mxu0 0.0
    %9132 = vmatpush2.xpose.msra.mxu0 0.0
    %9133 = vmatprep.subr.mxu0 0.0
    %9134 = vmatpush2.xpose.msra.mxu0 0.0
    %9135 = vmatprep.subr.mxu0 0.0
    %9136 = vmatpush2.xpose.msra.mxu0 0.0
    %9137 = vmatprep.subr.mxu0 0.0
    %9138 = vmatpush2.xpose.msra.mxu0 0.0
    %9139 = vmatprep.subr.mxu0 0.0
    %9140 = vmatpush2.xpose.msra.mxu0 0.0
    %9141 = vmatprep.subr.mxu0 0.0
    %9142 = vmatpush2.xpose.msra.mxu0 0.0
    %9143 = vmatprep.subr.mxu0 0.0
    %9144 = vmatpush2.xpose.msra.mxu0 0.0
    %9145 = vmatprep.subr.mxu0 0.0
    %9146 = vmatpush2.xpose.msra.mxu0 0.0
    %9147 = vmatprep.subr.mxu0 0.0
    %9148 = vmatpush2.xpose.msra.mxu0 0.0
    %9149 = vmatprep.subr.mxu0 0.0
    %9150 = vmatpush2.xpose.msra.mxu0 0.0
    %9151 = vmatprep.subr.mxu0 0.0
    %9152 = vmatpush2.xpose.msra.mxu0 0.0
    %9153 = vmatprep.subr.mxu0 0.0
    %9154 = vmatpush2.xpose.msra.mxu0 0.0
    %9155 = vmatprep.mubr.f32.mxu0 0.0
    %9156 = vmatmul.mubr.f32.gmra.mxu0 %v9087
    %v9157 = vpop.f32.mrf.mxu0
    %v9158 = vadd.f32 0.0, %v9157
    %v9159 = vpop.f32.mrf.mxu0
    %9160 = vdwg.mxu0
    %9161 = vrot.lane.b32.xlu0 %v247, 104
    %v9162 = vpop.permute.xlu0 %9161
    %9163 = vrot.lane.b32.xlu0 %v247, 72
    %v9164 = vpop.permute.xlu0 %9163
    %v9165 = vsel %vm275, %v9162, 0
    %v9167 = vsel %vm275, %v9164, 0
    %9169 = vmatprep.subr.mxu0 0.0
    %9170 = vmatpush1.xpose.msra.mxu0 0.0
    %9171 = vmatprep.subr.mxu0 0.0
    %9172 = vmatpush1.xpose.msra.mxu0 0.0
    %9173 = vmatprep.subr.mxu0 0.0
    %9174 = vmatpush1.xpose.msra.mxu0 0.0
    %9175 = vmatprep.subr.mxu0 0.0
    %9176 = vmatpush1.xpose.msra.mxu0 0.0
    %9177 = vmatprep.subr.mxu0 0.0
    %9178 = vmatpush1.xpose.msra.mxu0 0.0
    %9179 = vmatprep.subr.mxu0 0.0
    %9180 = vmatpush1.xpose.msra.mxu0 0.0
    %9181 = vmatprep.subr.mxu0 0.0
    %9182 = vmatpush1.xpose.msra.mxu0 0.0
    %9183 = vmatprep.subr.mxu0 0.0
    %9184 = vmatpush1.xpose.msra.mxu0 0.0
    %9185 = vmatprep.subr.mxu0 0.0
    %9186 = vmatpush1.xpose.msra.mxu0 0.0
    %9187 = vmatprep.subr.mxu0 0.0
    %9188 = vmatpush1.xpose.msra.mxu0 0.0
    %9189 = vmatprep.subr.mxu0 0.0
    %9190 = vmatpush1.xpose.msra.mxu0 0.0
    %9191 = vmatprep.subr.mxu0 0.0
    %9192 = vmatpush1.xpose.msra.mxu0 0.0
    %9193 = vmatprep.subr.mxu0 0.0
    %9194 = vmatpush1.xpose.msra.mxu0 0.0
    %9195 = vmatprep.subr.mxu0 0.0
    %9196 = vmatpush1.xpose.msra.mxu0 0.0
    %9197 = vmatprep.subr.mxu0 0.0
    %9198 = vmatpush1.xpose.msra.mxu0 0.0
    %9199 = vmatprep.subr.mxu0 0.0
    %9200 = vmatpush1.xpose.msra.mxu0 %v9167
    %9201 = vmatprep.subr.mxu0 0.0
    %9202 = vmatpush2.xpose.msra.mxu0 0.0
    %9203 = vmatprep.subr.mxu0 0.0
    %9204 = vmatpush2.xpose.msra.mxu0 0.0
    %9205 = vmatprep.subr.mxu0 0.0
    %9206 = vmatpush2.xpose.msra.mxu0 0.0
    %9207 = vmatprep.subr.mxu0 0.0
    %9208 = vmatpush2.xpose.msra.mxu0 0.0
    %9209 = vmatprep.subr.mxu0 0.0
    %9210 = vmatpush2.xpose.msra.mxu0 0.0
    %9211 = vmatprep.subr.mxu0 0.0
    %9212 = vmatpush2.xpose.msra.mxu0 0.0
    %9213 = vmatprep.subr.mxu0 0.0
    %9214 = vmatpush2.xpose.msra.mxu0 0.0
    %9215 = vmatprep.subr.mxu0 0.0
    %9216 = vmatpush2.xpose.msra.mxu0 0.0
    %9217 = vmatprep.subr.mxu0 0.0
    %9218 = vmatpush2.xpose.msra.mxu0 0.0
    %9219 = vmatprep.subr.mxu0 0.0
    %9220 = vmatpush2.xpose.msra.mxu0 0.0
    %9221 = vmatprep.subr.mxu0 0.0
    %9222 = vmatpush2.xpose.msra.mxu0 0.0
    %9223 = vmatprep.subr.mxu0 0.0
    %9224 = vmatpush2.xpose.msra.mxu0 0.0
    %9225 = vmatprep.subr.mxu0 0.0
    %9226 = vmatpush2.xpose.msra.mxu0 0.0
    %9227 = vmatprep.subr.mxu0 0.0
    %9228 = vmatpush2.xpose.msra.mxu0 0.0
    %9229 = vmatprep.subr.mxu0 0.0
    %9230 = vmatpush2.xpose.msra.mxu0 0.0
    %9231 = vmatprep.subr.mxu0 0.0
    %9232 = vmatpush2.xpose.msra.mxu0 0.0
    %9233 = vmatprep.mubr.f32.mxu0 0.0
    %9234 = vmatmul.mubr.f32.gmra.mxu0 %v9165
    %v9235 = vpop.f32.mrf.mxu0
    %v9236 = vadd.f32 0.0, %v9235
    %v9237 = vpop.f32.mrf.mxu0
    %9238 = vdwg.mxu0
    %9239 = vrot.lane.b32.xlu0 %v251, 104
    %v9240 = vpop.permute.xlu0 %9239
    %9241 = vrot.lane.b32.xlu0 %v251, 72
    %v9242 = vpop.permute.xlu0 %9241
    %v9243 = vsel %vm275, %v9240, 0
    %v9245 = vsel %vm275, %v9242, 0
    %9247 = vmatprep.subr.mxu0 0.0
    %9248 = vmatpush1.xpose.msra.mxu0 0.0
    %9249 = vmatprep.subr.mxu0 0.0
    %9250 = vmatpush1.xpose.msra.mxu0 0.0
    %9251 = vmatprep.subr.mxu0 0.0
    %9252 = vmatpush1.xpose.msra.mxu0 0.0
    %9253 = vmatprep.subr.mxu0 0.0
    %9254 = vmatpush1.xpose.msra.mxu0 0.0
    %9255 = vmatprep.subr.mxu0 0.0
    %9256 = vmatpush1.xpose.msra.mxu0 0.0
    %9257 = vmatprep.subr.mxu0 0.0
    %9258 = vmatpush1.xpose.msra.mxu0 0.0
    %9259 = vmatprep.subr.mxu0 0.0
    %9260 = vmatpush1.xpose.msra.mxu0 0.0
    %9261 = vmatprep.subr.mxu0 0.0
    %9262 = vmatpush1.xpose.msra.mxu0 0.0
    %9263 = vmatprep.subr.mxu0 0.0
    %9264 = vmatpush1.xpose.msra.mxu0 0.0
    %9265 = vmatprep.subr.mxu0 0.0
    %9266 = vmatpush1.xpose.msra.mxu0 0.0
    %9267 = vmatprep.subr.mxu0 0.0
    %9268 = vmatpush1.xpose.msra.mxu0 0.0
    %9269 = vmatprep.subr.mxu0 0.0
    %9270 = vmatpush1.xpose.msra.mxu0 0.0
    %9271 = vmatprep.subr.mxu0 0.0
    %9272 = vmatpush1.xpose.msra.mxu0 0.0
    %9273 = vmatprep.subr.mxu0 0.0
    %9274 = vmatpush1.xpose.msra.mxu0 0.0
    %9275 = vmatprep.subr.mxu0 0.0
    %9276 = vmatpush1.xpose.msra.mxu0 0.0
    %9277 = vmatprep.subr.mxu0 0.0
    %9278 = vmatpush1.xpose.msra.mxu0 %v9245
    %9279 = vmatprep.subr.mxu0 0.0
    %9280 = vmatpush2.xpose.msra.mxu0 0.0
    %9281 = vmatprep.subr.mxu0 0.0
    %9282 = vmatpush2.xpose.msra.mxu0 0.0
    %9283 = vmatprep.subr.mxu0 0.0
    %9284 = vmatpush2.xpose.msra.mxu0 0.0
    %9285 = vmatprep.subr.mxu0 0.0
    %9286 = vmatpush2.xpose.msra.mxu0 0.0
    %9287 = vmatprep.subr.mxu0 0.0
    %9288 = vmatpush2.xpose.msra.mxu0 0.0
    %9289 = vmatprep.subr.mxu0 0.0
    %9290 = vmatpush2.xpose.msra.mxu0 0.0
    %9291 = vmatprep.subr.mxu0 0.0
    %9292 = vmatpush2.xpose.msra.mxu0 0.0
    %9293 = vmatprep.subr.mxu0 0.0
    %9294 = vmatpush2.xpose.msra.mxu0 0.0
    %9295 = vmatprep.subr.mxu0 0.0
    %9296 = vmatpush2.xpose.msra.mxu0 0.0
    %9297 = vmatprep.subr.mxu0 0.0
    %9298 = vmatpush2.xpose.msra.mxu0 0.0
    %9299 = vmatprep.subr.mxu0 0.0
    %9300 = vmatpush2.xpose.msra.mxu0 0.0
    %9301 = vmatprep.subr.mxu0 0.0
    %9302 = vmatpush2.xpose.msra.mxu0 0.0
    %9303 = vmatprep.subr.mxu0 0.0
    %9304 = vmatpush2.xpose.msra.mxu0 0.0
    %9305 = vmatprep.subr.mxu0 0.0
    %9306 = vmatpush2.xpose.msra.mxu0 0.0
    %9307 = vmatprep.subr.mxu0 0.0
    %9308 = vmatpush2.xpose.msra.mxu0 0.0
    %9309 = vmatprep.subr.mxu0 0.0
    %9310 = vmatpush2.xpose.msra.mxu0 0.0
    %9311 = vmatprep.mubr.f32.mxu0 0.0
    %9312 = vmatmul.mubr.f32.gmra.mxu0 %v9243
    %v9313 = vpop.f32.mrf.mxu0
    %v9314 = vadd.f32 0.0, %v9313
    %v9315 = vpop.f32.mrf.mxu0
    %9316 = vdwg.mxu0
    %9317 = vrot.lane.b32.xlu0 %v257, 104
    %v9318 = vpop.permute.xlu0 %9317
    %9319 = vrot.lane.b32.xlu0 %v257, 72
    %v9320 = vpop.permute.xlu0 %9319
    %v9321 = vsel %vm275, %v9318, 0
    %v9323 = vsel %vm275, %v9320, 0
    %9325 = vmatprep.subr.mxu0 0.0
    %9326 = vmatpush1.xpose.msra.mxu0 0.0
    %9327 = vmatprep.subr.mxu0 0.0
    %9328 = vmatpush1.xpose.msra.mxu0 0.0
    %9329 = vmatprep.subr.mxu0 0.0
    %9330 = vmatpush1.xpose.msra.mxu0 0.0
    %9331 = vmatprep.subr.mxu0 0.0
    %9332 = vmatpush1.xpose.msra.mxu0 0.0
    %9333 = vmatprep.subr.mxu0 0.0
    %9334 = vmatpush1.xpose.msra.mxu0 0.0
    %9335 = vmatprep.subr.mxu0 0.0
    %9336 = vmatpush1.xpose.msra.mxu0 0.0
    %9337 = vmatprep.subr.mxu0 0.0
    %9338 = vmatpush1.xpose.msra.mxu0 0.0
    %9339 = vmatprep.subr.mxu0 0.0
    %9340 = vmatpush1.xpose.msra.mxu0 0.0
    %9341 = vmatprep.subr.mxu0 0.0
    %9342 = vmatpush1.xpose.msra.mxu0 0.0
    %9343 = vmatprep.subr.mxu0 0.0
    %9344 = vmatpush1.xpose.msra.mxu0 0.0
    %9345 = vmatprep.subr.mxu0 0.0
    %9346 = vmatpush1.xpose.msra.mxu0 0.0
    %9347 = vmatprep.subr.mxu0 0.0
    %9348 = vmatpush1.xpose.msra.mxu0 0.0
    %9349 = vmatprep.subr.mxu0 0.0
    %9350 = vmatpush1.xpose.msra.mxu0 0.0
    %9351 = vmatprep.subr.mxu0 0.0
    %9352 = vmatpush1.xpose.msra.mxu0 0.0
    %9353 = vmatprep.subr.mxu0 0.0
    %9354 = vmatpush1.xpose.msra.mxu0 0.0
    %9355 = vmatprep.subr.mxu0 0.0
    %9356 = vmatpush1.xpose.msra.mxu0 %v9323
    %9357 = vmatprep.subr.mxu0 0.0
    %9358 = vmatpush2.xpose.msra.mxu0 0.0
    %9359 = vmatprep.subr.mxu0 0.0
    %9360 = vmatpush2.xpose.msra.mxu0 0.0
    %9361 = vmatprep.subr.mxu0 0.0
    %9362 = vmatpush2.xpose.msra.mxu0 0.0
    %9363 = vmatprep.subr.mxu0 0.0
    %9364 = vmatpush2.xpose.msra.mxu0 0.0
    %9365 = vmatprep.subr.mxu0 0.0
    %9366 = vmatpush2.xpose.msra.mxu0 0.0
    %9367 = vmatprep.subr.mxu0 0.0
    %9368 = vmatpush2.xpose.msra.mxu0 0.0
    %9369 = vmatprep.subr.mxu0 0.0
    %9370 = vmatpush2.xpose.msra.mxu0 0.0
    %9371 = vmatprep.subr.mxu0 0.0
    %9372 = vmatpush2.xpose.msra.mxu0 0.0
    %9373 = vmatprep.subr.mxu0 0.0
    %9374 = vmatpush2.xpose.msra.mxu0 0.0
    %9375 = vmatprep.subr.mxu0 0.0
    %9376 = vmatpush2.xpose.msra.mxu0 0.0
    %9377 = vmatprep.subr.mxu0 0.0
    %9378 = vmatpush2.xpose.msra.mxu0 0.0
    %9379 = vmatprep.subr.mxu0 0.0
    %9380 = vmatpush2.xpose.msra.mxu0 0.0
    %9381 = vmatprep.subr.mxu0 0.0
    %9382 = vmatpush2.xpose.msra.mxu0 0.0
    %9383 = vmatprep.subr.mxu0 0.0
    %9384 = vmatpush2.xpose.msra.mxu0 0.0
    %9385 = vmatprep.subr.mxu0 0.0
    %9386 = vmatpush2.xpose.msra.mxu0 0.0
    %9387 = vmatprep.subr.mxu0 0.0
    %9388 = vmatpush2.xpose.msra.mxu0 0.0
    %9389 = vmatprep.mubr.f32.mxu0 0.0
    %9390 = vmatmul.mubr.f32.gmra.mxu0 %v9321
    %v9391 = vpop.f32.mrf.mxu0
    %v9392 = vadd.f32 0.0, %v9391
    %v9393 = vpop.f32.mrf.mxu0
    %9394 = vdwg.mxu0
    %9395 = vrot.lane.b32.xlu0 %v261, 104
    %v9396 = vpop.permute.xlu0 %9395
    %9397 = vrot.lane.b32.xlu0 %v261, 72
    %v9398 = vpop.permute.xlu0 %9397
    %v9399 = vsel %vm275, %v9396, 0
    %v9401 = vsel %vm275, %v9398, 0
    %9403 = vmatprep.subr.mxu0 0.0
    %9404 = vmatpush1.xpose.msra.mxu0 0.0
    %9405 = vmatprep.subr.mxu0 0.0
    %9406 = vmatpush1.xpose.msra.mxu0 0.0
    %9407 = vmatprep.subr.mxu0 0.0
    %9408 = vmatpush1.xpose.msra.mxu0 0.0
    %9409 = vmatprep.subr.mxu0 0.0
    %9410 = vmatpush1.xpose.msra.mxu0 0.0
    %9411 = vmatprep.subr.mxu0 0.0
    %9412 = vmatpush1.xpose.msra.mxu0 0.0
    %9413 = vmatprep.subr.mxu0 0.0
    %9414 = vmatpush1.xpose.msra.mxu0 0.0
    %9415 = vmatprep.subr.mxu0 0.0
    %9416 = vmatpush1.xpose.msra.mxu0 0.0
    %9417 = vmatprep.subr.mxu0 0.0
    %9418 = vmatpush1.xpose.msra.mxu0 0.0
    %9419 = vmatprep.subr.mxu0 0.0
    %9420 = vmatpush1.xpose.msra.mxu0 0.0
    %9421 = vmatprep.subr.mxu0 0.0
    %9422 = vmatpush1.xpose.msra.mxu0 0.0
    %9423 = vmatprep.subr.mxu0 0.0
    %9424 = vmatpush1.xpose.msra.mxu0 0.0
    %9425 = vmatprep.subr.mxu0 0.0
    %9426 = vmatpush1.xpose.msra.mxu0 0.0
    %9427 = vmatprep.subr.mxu0 0.0
    %9428 = vmatpush1.xpose.msra.mxu0 0.0
    %9429 = vmatprep.subr.mxu0 0.0
    %9430 = vmatpush1.xpose.msra.mxu0 0.0
    %9431 = vmatprep.subr.mxu0 0.0
    %9432 = vmatpush1.xpose.msra.mxu0 0.0
    %9433 = vmatprep.subr.mxu0 0.0
    %9434 = vmatpush1.xpose.msra.mxu0 %v9401
    %9435 = vmatprep.subr.mxu0 0.0
    %9436 = vmatpush2.xpose.msra.mxu0 0.0
    %9437 = vmatprep.subr.mxu0 0.0
    %9438 = vmatpush2.xpose.msra.mxu0 0.0
    %9439 = vmatprep.subr.mxu0 0.0
    %9440 = vmatpush2.xpose.msra.mxu0 0.0
    %9441 = vmatprep.subr.mxu0 0.0
    %9442 = vmatpush2.xpose.msra.mxu0 0.0
    %9443 = vmatprep.subr.mxu0 0.0
    %9444 = vmatpush2.xpose.msra.mxu0 0.0
    %9445 = vmatprep.subr.mxu0 0.0
    %9446 = vmatpush2.xpose.msra.mxu0 0.0
    %9447 = vmatprep.subr.mxu0 0.0
    %9448 = vmatpush2.xpose.msra.mxu0 0.0
    %9449 = vmatprep.subr.mxu0 0.0
    %9450 = vmatpush2.xpose.msra.mxu0 0.0
    %9451 = vmatprep.subr.mxu0 0.0
    %9452 = vmatpush2.xpose.msra.mxu0 0.0
    %9453 = vmatprep.subr.mxu0 0.0
    %9454 = vmatpush2.xpose.msra.mxu0 0.0
    %9455 = vmatprep.subr.mxu0 0.0
    %9456 = vmatpush2.xpose.msra.mxu0 0.0
    %9457 = vmatprep.subr.mxu0 0.0
    %9458 = vmatpush2.xpose.msra.mxu0 0.0
    %9459 = vmatprep.subr.mxu0 0.0
    %9460 = vmatpush2.xpose.msra.mxu0 0.0
    %9461 = vmatprep.subr.mxu0 0.0
    %9462 = vmatpush2.xpose.msra.mxu0 0.0
    %9463 = vmatprep.subr.mxu0 0.0
    %9464 = vmatpush2.xpose.msra.mxu0 0.0
    %9465 = vmatprep.subr.mxu0 0.0
    %9466 = vmatpush2.xpose.msra.mxu0 0.0
    %9467 = vmatprep.mubr.f32.mxu0 0.0
    %9468 = vmatmul.mubr.f32.gmra.mxu0 %v9399
    %v9469 = vpop.f32.mrf.mxu0
    %v9470 = vadd.f32 0.0, %v9469
    %v9471 = vpop.f32.mrf.mxu0
    %9472 = vdwg.mxu0
    %v9473 = vmul.f32 %v8300, 0.35355338
    %v9474 = vmul.f32 %v8378, 0.35355338
    %v9475 = vmul.f32 %v8456, 0.35355338
    %v9476 = vmul.f32 %v8534, 0.35355338
    %v9477 = vmul.f32 %v8612, 0.35355338
    %v9478 = vmul.f32 %v8690, 0.35355338
    %v9479 = vmul.f32 %v8768, 0.35355338
    %v9480 = vmul.f32 %v8846, 0.35355338
    %v9481 = vmul.f32 %v8924, 0.35355338
    %v9482 = vmul.f32 %v9002, 0.35355338
    %v9483 = vmul.f32 %v9080, 0.35355338
    %v9484 = vmul.f32 %v9158, 0.35355338
    %v9485 = vmul.f32 %v9236, 0.35355338
    %v9486 = vmul.f32 %v9314, 0.35355338
    %v9487 = vmul.f32 %v9392, 0.35355338
    %v9488 = vmul.f32 %v9470, 0.35355338
    %v9489 = vsel %vm275, %v9473, -inf
    %9490 = vmax.xlane.f32.xlu0 %v9489
    %v9491 = vpop.xlane.xlu0 %9490
    %v9492 = vsel %vm275, %v9474, -inf
    %9493 = vmax.xlane.f32.xlu0 %v9492
    %v9494 = vpop.xlane.xlu0 %9493
    %v9495 = vsel %vm275, %v9475, -inf
    %9496 = vmax.xlane.f32.xlu0 %v9495
    %v9497 = vpop.xlane.xlu0 %9496
    %v9498 = vsel %vm275, %v9476, -inf
    %9499 = vmax.xlane.f32.xlu0 %v9498
    %v9500 = vpop.xlane.xlu0 %9499
    %v9501 = vsel %vm275, %v9477, -inf
    %9502 = vmax.xlane.f32.xlu0 %v9501
    %v9503 = vpop.xlane.xlu0 %9502
    %v9504 = vsel %vm275, %v9478, -inf
    %9505 = vmax.xlane.f32.xlu0 %v9504
    %v9506 = vpop.xlane.xlu0 %9505
    %v9507 = vsel %vm275, %v9479, -inf
    %9508 = vmax.xlane.f32.xlu0 %v9507
    %v9509 = vpop.xlane.xlu0 %9508
    %v9510 = vsel %vm275, %v9480, -inf
    %9511 = vmax.xlane.f32.xlu0 %v9510
    %v9512 = vpop.xlane.xlu0 %9511
    %v9513 = vsel %vm275, %v9481, -inf
    %9514 = vmax.xlane.f32.xlu0 %v9513
    %v9515 = vpop.xlane.xlu0 %9514
    %v9516 = vsel %vm275, %v9482, -inf
    %9517 = vmax.xlane.f32.xlu0 %v9516
    %v9518 = vpop.xlane.xlu0 %9517
    %v9519 = vsel %vm275, %v9483, -inf
    %9520 = vmax.xlane.f32.xlu0 %v9519
    %v9521 = vpop.xlane.xlu0 %9520
    %v9522 = vsel %vm275, %v9484, -inf
    %9523 = vmax.xlane.f32.xlu0 %v9522
    %v9524 = vpop.xlane.xlu0 %9523
    %v9525 = vsel %vm275, %v9485, -inf
    %9526 = vmax.xlane.f32.xlu0 %v9525
    %v9527 = vpop.xlane.xlu0 %9526
    %v9528 = vsel %vm275, %v9486, -inf
    %9529 = vmax.xlane.f32.xlu0 %v9528
    %v9530 = vpop.xlane.xlu0 %9529
    %v9531 = vsel %vm275, %v9487, -inf
    %9532 = vmax.xlane.f32.xlu0 %v9531
    %v9533 = vpop.xlane.xlu0 %9532
    %v9534 = vsel %vm275, %v9488, -inf
    %9535 = vmax.xlane.f32.xlu0 %v9534
    %v9536 = vpop.xlane.xlu0 %9535
    %v9537 = vsub.f32 %v9473, %v9491
    %v9538 = vsub.f32 %v9474, %v9494
    %v9539 = vsub.f32 %v9475, %v9497
    %v9540 = vsub.f32 %v9476, %v9500
    %v9541 = vsub.f32 %v9477, %v9503
    %v9542 = vsub.f32 %v9478, %v9506
    %v9543 = vsub.f32 %v9479, %v9509
    %v9544 = vsub.f32 %v9480, %v9512
    %v9545 = vsub.f32 %v9481, %v9515
    %v9546 = vsub.f32 %v9482, %v9518
    %v9547 = vsub.f32 %v9483, %v9521
    %v9548 = vsub.f32 %v9484, %v9524
    %v9549 = vsub.f32 %v9485, %v9527
    %v9550 = vsub.f32 %v9486, %v9530
    %v9551 = vsub.f32 %v9487, %v9533
    %v9552 = vsub.f32 %v9488, %v9536
    %v9553 = vmul.f32 %v9537, 1.442695
    %v9554 = vpow.pop %v9553
    %v9555 = vmul.f32 %v9538, 1.442695
    %v9556 = vpow.pop %v9555
    %v9557 = vmul.f32 %v9539, 1.442695
    %v9558 = vpow.pop %v9557
    %v9559 = vmul.f32 %v9540, 1.442695
    %v9560 = vpow.pop %v9559
    %v9561 = vmul.f32 %v9541, 1.442695
    %v9562 = vpow.pop %v9561
    %v9563 = vmul.f32 %v9542, 1.442695
    %v9564 = vpow.pop %v9563
    %v9565 = vmul.f32 %v9543, 1.442695
    %v9566 = vpow.pop %v9565
    %v9567 = vmul.f32 %v9544, 1.442695
    %v9568 = vpow.pop %v9567
    %v9569 = vmul.f32 %v9545, 1.442695
    %v9570 = vpow.pop %v9569
    %v9571 = vmul.f32 %v9546, 1.442695
    %v9572 = vpow.pop %v9571
    %v9573 = vmul.f32 %v9547, 1.442695
    %v9574 = vpow.pop %v9573
    %v9575 = vmul.f32 %v9548, 1.442695
    %v9576 = vpow.pop %v9575
    %v9577 = vmul.f32 %v9549, 1.442695
    %v9578 = vpow.pop %v9577
    %v9579 = vmul.f32 %v9550, 1.442695
    %v9580 = vpow.pop %v9579
    %v9581 = vmul.f32 %v9551, 1.442695
    %v9582 = vpow.pop %v9581
    %v9583 = vmul.f32 %v9552, 1.442695
    %v9584 = vpow.pop %v9583
    %v9585 = vsel %vm275, %v9554, 0.0
    %9586 = vadd.xlane.f32.xlu0 %v9585
    %v9587 = vpop.xlane.xlu0 %9586
    %v9588 = vsel %vm275, %v9556, 0.0
    %9589 = vadd.xlane.f32.xlu0 %v9588
    %v9590 = vpop.xlane.xlu0 %9589
    %v9591 = vsel %vm275, %v9558, 0.0
    %9592 = vadd.xlane.f32.xlu0 %v9591
    %v9593 = vpop.xlane.xlu0 %9592
    %v9594 = vsel %vm275, %v9560, 0.0
    %9595 = vadd.xlane.f32.xlu0 %v9594
    %v9596 = vpop.xlane.xlu0 %9595
    %v9597 = vsel %vm275, %v9562, 0.0
    %9598 = vadd.xlane.f32.xlu0 %v9597
    %v9599 = vpop.xlane.xlu0 %9598
    %v9600 = vsel %vm275, %v9564, 0.0
    %9601 = vadd.xlane.f32.xlu0 %v9600
    %v9602 = vpop.xlane.xlu0 %9601
    %v9603 = vsel %vm275, %v9566, 0.0
    %9604 = vadd.xlane.f32.xlu0 %v9603
    %v9605 = vpop.xlane.xlu0 %9604
    %v9606 = vsel %vm275, %v9568, 0.0
    %9607 = vadd.xlane.f32.xlu0 %v9606
    %v9608 = vpop.xlane.xlu0 %9607
    %v9609 = vsel %vm275, %v9570, 0.0
    %9610 = vadd.xlane.f32.xlu0 %v9609
    %v9611 = vpop.xlane.xlu0 %9610
    %v9612 = vsel %vm275, %v9572, 0.0
    %9613 = vadd.xlane.f32.xlu0 %v9612
    %v9614 = vpop.xlane.xlu0 %9613
    %v9615 = vsel %vm275, %v9574, 0.0
    %9616 = vadd.xlane.f32.xlu0 %v9615
    %v9617 = vpop.xlane.xlu0 %9616
    %v9618 = vsel %vm275, %v9576, 0.0
    %9619 = vadd.xlane.f32.xlu0 %v9618
    %v9620 = vpop.xlane.xlu0 %9619
    %v9621 = vsel %vm275, %v9578, 0.0
    %9622 = vadd.xlane.f32.xlu0 %v9621
    %v9623 = vpop.xlane.xlu0 %9622
    %v9624 = vsel %vm275, %v9580, 0.0
    %9625 = vadd.xlane.f32.xlu0 %v9624
    %v9626 = vpop.xlane.xlu0 %9625
    %v9627 = vsel %vm275, %v9582, 0.0
    %9628 = vadd.xlane.f32.xlu0 %v9627
    %v9629 = vpop.xlane.xlu0 %9628
    %v9630 = vsel %vm275, %v9584, 0.0
    %9631 = vadd.xlane.f32.xlu0 %v9630
    %v9632 = vpop.xlane.xlu0 %9631
    %v9633 = vrcp.pop %v9587
    %v9634 = vrcp.pop %v9590
    %v9635 = vrcp.pop %v9593
    %v9636 = vrcp.pop %v9596
    %v9637 = vrcp.pop %v9599
    %v9638 = vrcp.pop %v9602
    %v9639 = vrcp.pop %v9605
    %v9640 = vrcp.pop %v9608
    %v9641 = vrcp.pop %v9611
    %v9642 = vrcp.pop %v9614
    %v9643 = vrcp.pop %v9617
    %v9644 = vrcp.pop %v9620
    %v9645 = vrcp.pop %v9623
    %v9646 = vrcp.pop %v9626
    %v9647 = vrcp.pop %v9629
    %v9648 = vrcp.pop %v9632
    %v9649 = vmul.f32 %v9554, %v9633
    %v9650 = vmul.f32 %v9556, %v9634
    %v9651 = vmul.f32 %v9558, %v9635
    %v9652 = vmul.f32 %v9560, %v9636
    %v9653 = vmul.f32 %v9562, %v9637
    %v9654 = vmul.f32 %v9564, %v9638
    %v9655 = vmul.f32 %v9566, %v9639
    %v9656 = vmul.f32 %v9568, %v9640
    %v9657 = vmul.f32 %v9570, %v9641
    %v9658 = vmul.f32 %v9572, %v9642
    %v9659 = vmul.f32 %v9574, %v9643
    %v9660 = vmul.f32 %v9576, %v9644
    %v9661 = vmul.f32 %v9578, %v9645
    %v9662 = vmul.f32 %v9580, %v9646
    %v9663 = vmul.f32 %v9582, %v9647
    %v9664 = vmul.f32 %v9584, %v9648
    %9666 = vrot.lane.b32.xlu0 %v189, 96
    %v9667 = vpop.permute.xlu0 %9666
    %v9670 = vsel %vm275, %v9649, 0
    %9672 = vmatprep.subr.mxu0 0.0
    %9673 = vmatpush1.msra.mxu0 0.0
    %9674 = vmatprep.subr.mxu0 0.0
    %9675 = vmatpush1.msra.mxu0 0.0
    %9676 = vmatprep.subr.mxu0 0.0
    %9677 = vmatpush1.msra.mxu0 0.0
    %9678 = vmatprep.subr.mxu0 0.0
    %9679 = vmatpush1.msra.mxu0 0.0
    %9680 = vmatprep.subr.mxu0 0.0
    %9681 = vmatpush1.msra.mxu0 0.0
    %9682 = vmatprep.subr.mxu0 0.0
    %9683 = vmatpush1.msra.mxu0 0.0
    %9684 = vmatprep.subr.mxu0 0.0
    %9685 = vmatpush1.msra.mxu0 0.0
    %9686 = vmatprep.subr.mxu0 0.0
    %9687 = vmatpush1.msra.mxu0 0.0
    %9688 = vmatprep.subr.mxu0 0.0
    %9689 = vmatpush1.msra.mxu0 0.0
    %9690 = vmatprep.subr.mxu0 0.0
    %9691 = vmatpush1.msra.mxu0 0.0
    %9692 = vmatprep.subr.mxu0 0.0
    %9693 = vmatpush1.msra.mxu0 0.0
    %9694 = vmatprep.subr.mxu0 0.0
    %9695 = vmatpush1.msra.mxu0 0.0
    %9696 = vmatprep.subr.mxu0 0.0
    %9697 = vmatpush1.msra.mxu0 0.0
    %9698 = vmatprep.subr.mxu0 0.0
    %9699 = vmatpush1.msra.mxu0 0.0
    %9700 = vmatprep.subr.mxu0 0.0
    %9701 = vmatpush1.msra.mxu0 0.0
    %9702 = vmatprep.subr.mxu0 0.0
    %9703 = vmatpush1.msra.mxu0 %v9667
    %9704 = vmatprep.subr.mxu0 0.0
    %9705 = vmatpush2.msra.mxu0 0.0
    %9706 = vmatprep.subr.mxu0 0.0
    %9707 = vmatpush2.msra.mxu0 0.0
    %9708 = vmatprep.subr.mxu0 0.0
    %9709 = vmatpush2.msra.mxu0 0.0
    %9710 = vmatprep.subr.mxu0 0.0
    %9711 = vmatpush2.msra.mxu0 0.0
    %9712 = vmatprep.subr.mxu0 0.0
    %9713 = vmatpush2.msra.mxu0 0.0
    %9714 = vmatprep.subr.mxu0 0.0
    %9715 = vmatpush2.msra.mxu0 0.0
    %9716 = vmatprep.subr.mxu0 0.0
    %9717 = vmatpush2.msra.mxu0 0.0
    %9718 = vmatprep.subr.mxu0 0.0
    %9719 = vmatpush2.msra.mxu0 0.0
    %9720 = vmatprep.subr.mxu0 0.0
    %9721 = vmatpush2.msra.mxu0 0.0
    %9722 = vmatprep.subr.mxu0 0.0
    %9723 = vmatpush2.msra.mxu0 0.0
    %9724 = vmatprep.subr.mxu0 0.0
    %9725 = vmatpush2.msra.mxu0 0.0
    %9726 = vmatprep.subr.mxu0 0.0
    %9727 = vmatpush2.msra.mxu0 0.0
    %9728 = vmatprep.subr.mxu0 0.0
    %9729 = vmatpush2.msra.mxu0 0.0
    %9730 = vmatprep.subr.mxu0 0.0
    %9731 = vmatpush2.msra.mxu0 0.0
    %9732 = vmatprep.subr.mxu0 0.0
    %9733 = vmatpush2.msra.mxu0 0.0
    %9734 = vmatprep.subr.mxu0 0.0
    %9735 = vmatpush2.msra.mxu0 0.0
    %9736 = vmatprep.mubr.f32.mxu0 0.0
    %9737 = vmatmul.mubr.f32.gmra.mxu0 %v9670
    %v9738 = vpop.f32.mrf.mxu0
    %v9739 = vadd.f32 0.0, %v9738
    %v9740 = vpop.f32.mrf.mxu0
    %9741 = vdwg.mxu0
    %9743 = vrot.lane.b32.xlu0 %v193, 96
    %v9744 = vpop.permute.xlu0 %9743
    %v9747 = vsel %vm275, %v9650, 0
    %9749 = vmatprep.subr.mxu0 0.0
    %9750 = vmatpush1.msra.mxu0 0.0
    %9751 = vmatprep.subr.mxu0 0.0
    %9752 = vmatpush1.msra.mxu0 0.0
    %9753 = vmatprep.subr.mxu0 0.0
    %9754 = vmatpush1.msra.mxu0 0.0
    %9755 = vmatprep.subr.mxu0 0.0
    %9756 = vmatpush1.msra.mxu0 0.0
    %9757 = vmatprep.subr.mxu0 0.0
    %9758 = vmatpush1.msra.mxu0 0.0
    %9759 = vmatprep.subr.mxu0 0.0
    %9760 = vmatpush1.msra.mxu0 0.0
    %9761 = vmatprep.subr.mxu0 0.0
    %9762 = vmatpush1.msra.mxu0 0.0
    %9763 = vmatprep.subr.mxu0 0.0
    %9764 = vmatpush1.msra.mxu0 0.0
    %9765 = vmatprep.subr.mxu0 0.0
    %9766 = vmatpush1.msra.mxu0 0.0
    %9767 = vmatprep.subr.mxu0 0.0
    %9768 = vmatpush1.msra.mxu0 0.0
    %9769 = vmatprep.subr.mxu0 0.0
    %9770 = vmatpush1.msra.mxu0 0.0
    %9771 = vmatprep.subr.mxu0 0.0
    %9772 = vmatpush1.msra.mxu0 0.0
    %9773 = vmatprep.subr.mxu0 0.0
    %9774 = vmatpush1.msra.mxu0 0.0
    %9775 = vmatprep.subr.mxu0 0.0
    %9776 = vmatpush1.msra.mxu0 0.0
    %9777 = vmatprep.subr.mxu0 0.0
    %9778 = vmatpush1.msra.mxu0 0.0
    %9779 = vmatprep.subr.mxu0 0.0
    %9780 = vmatpush1.msra.mxu0 %v9744
    %9781 = vmatprep.subr.mxu0 0.0
    %9782 = vmatpush2.msra.mxu0 0.0
    %9783 = vmatprep.subr.mxu0 0.0
    %9784 = vmatpush2.msra.mxu0 0.0
    %9785 = vmatprep.subr.mxu0 0.0
    %9786 = vmatpush2.msra.mxu0 0.0
    %9787 = vmatprep.subr.mxu0 0.0
    %9788 = vmatpush2.msra.mxu0 0.0
    %9789 = vmatprep.subr.mxu0 0.0
    %9790 = vmatpush2.msra.mxu0 0.0
    %9791 = vmatprep.subr.mxu0 0.0
    %9792 = vmatpush2.msra.mxu0 0.0
    %9793 = vmatprep.subr.mxu0 0.0
    %9794 = vmatpush2.msra.mxu0 0.0
    %9795 = vmatprep.subr.mxu0 0.0
    %9796 = vmatpush2.msra.mxu0 0.0
    %9797 = vmatprep.subr.mxu0 0.0
    %9798 = vmatpush2.msra.mxu0 0.0
    %9799 = vmatprep.subr.mxu0 0.0
    %9800 = vmatpush2.msra.mxu0 0.0
    %9801 = vmatprep.subr.mxu0 0.0
    %9802 = vmatpush2.msra.mxu0 0.0
    %9803 = vmatprep.subr.mxu0 0.0
    %9804 = vmatpush2.msra.mxu0 0.0
    %9805 = vmatprep.subr.mxu0 0.0
    %9806 = vmatpush2.msra.mxu0 0.0
    %9807 = vmatprep.subr.mxu0 0.0
    %9808 = vmatpush2.msra.mxu0 0.0
    %9809 = vmatprep.subr.mxu0 0.0
    %9810 = vmatpush2.msra.mxu0 0.0
    %9811 = vmatprep.subr.mxu0 0.0
    %9812 = vmatpush2.msra.mxu0 0.0
    %9813 = vmatprep.mubr.f32.mxu0 0.0
    %9814 = vmatmul.mubr.f32.gmra.mxu0 %v9747
    %v9815 = vpop.f32.mrf.mxu0
    %v9816 = vadd.f32 0.0, %v9815
    %v9817 = vpop.f32.mrf.mxu0
    %9818 = vdwg.mxu0
    %9820 = vrot.lane.b32.xlu0 %v199, 96
    %v9821 = vpop.permute.xlu0 %9820
    %v9824 = vsel %vm275, %v9651, 0
    %9826 = vmatprep.subr.mxu0 0.0
    %9827 = vmatpush1.msra.mxu0 0.0
    %9828 = vmatprep.subr.mxu0 0.0
    %9829 = vmatpush1.msra.mxu0 0.0
    %9830 = vmatprep.subr.mxu0 0.0
    %9831 = vmatpush1.msra.mxu0 0.0
    %9832 = vmatprep.subr.mxu0 0.0
    %9833 = vmatpush1.msra.mxu0 0.0
    %9834 = vmatprep.subr.mxu0 0.0
    %9835 = vmatpush1.msra.mxu0 0.0
    %9836 = vmatprep.subr.mxu0 0.0
    %9837 = vmatpush1.msra.mxu0 0.0
    %9838 = vmatprep.subr.mxu0 0.0
    %9839 = vmatpush1.msra.mxu0 0.0
    %9840 = vmatprep.subr.mxu0 0.0
    %9841 = vmatpush1.msra.mxu0 0.0
    %9842 = vmatprep.subr.mxu0 0.0
    %9843 = vmatpush1.msra.mxu0 0.0
    %9844 = vmatprep.subr.mxu0 0.0
    %9845 = vmatpush1.msra.mxu0 0.0
    %9846 = vmatprep.subr.mxu0 0.0
    %9847 = vmatpush1.msra.mxu0 0.0
    %9848 = vmatprep.subr.mxu0 0.0
    %9849 = vmatpush1.msra.mxu0 0.0
    %9850 = vmatprep.subr.mxu0 0.0
    %9851 = vmatpush1.msra.mxu0 0.0
    %9852 = vmatprep.subr.mxu0 0.0
    %9853 = vmatpush1.msra.mxu0 0.0
    %9854 = vmatprep.subr.mxu0 0.0
    %9855 = vmatpush1.msra.mxu0 0.0
    %9856 = vmatprep.subr.mxu0 0.0
    %9857 = vmatpush1.msra.mxu0 %v9821
    %9858 = vmatprep.subr.mxu0 0.0
    %9859 = vmatpush2.msra.mxu0 0.0
    %9860 = vmatprep.subr.mxu0 0.0
    %9861 = vmatpush2.msra.mxu0 0.0
    %9862 = vmatprep.subr.mxu0 0.0
    %9863 = vmatpush2.msra.mxu0 0.0
    %9864 = vmatprep.subr.mxu0 0.0
    %9865 = vmatpush2.msra.mxu0 0.0
    %9866 = vmatprep.subr.mxu0 0.0
    %9867 = vmatpush2.msra.mxu0 0.0
    %9868 = vmatprep.subr.mxu0 0.0
    %9869 = vmatpush2.msra.mxu0 0.0
    %9870 = vmatprep.subr.mxu0 0.0
    %9871 = vmatpush2.msra.mxu0 0.0
    %9872 = vmatprep.subr.mxu0 0.0
    %9873 = vmatpush2.msra.mxu0 0.0
    %9874 = vmatprep.subr.mxu0 0.0
    %9875 = vmatpush2.msra.mxu0 0.0
    %9876 = vmatprep.subr.mxu0 0.0
    %9877 = vmatpush2.msra.mxu0 0.0
    %9878 = vmatprep.subr.mxu0 0.0
    %9879 = vmatpush2.msra.mxu0 0.0
    %9880 = vmatprep.subr.mxu0 0.0
    %9881 = vmatpush2.msra.mxu0 0.0
    %9882 = vmatprep.subr.mxu0 0.0
    %9883 = vmatpush2.msra.mxu0 0.0
    %9884 = vmatprep.subr.mxu0 0.0
    %9885 = vmatpush2.msra.mxu0 0.0
    %9886 = vmatprep.subr.mxu0 0.0
    %9887 = vmatpush2.msra.mxu0 0.0
    %9888 = vmatprep.subr.mxu0 0.0
    %9889 = vmatpush2.msra.mxu0 0.0
    %9890 = vmatprep.mubr.f32.mxu0 0.0
    %9891 = vmatmul.mubr.f32.gmra.mxu0 %v9824
    %v9892 = vpop.f32.mrf.mxu0
    %v9893 = vadd.f32 0.0, %v9892
    %v9894 = vpop.f32.mrf.mxu0
    %9895 = vdwg.mxu0
    %9897 = vrot.lane.b32.xlu0 %v203, 96
    %v9898 = vpop.permute.xlu0 %9897
    %v9901 = vsel %vm275, %v9652, 0
    %9903 = vmatprep.subr.mxu0 0.0
    %9904 = vmatpush1.msra.mxu0 0.0
    %9905 = vmatprep.subr.mxu0 0.0
    %9906 = vmatpush1.msra.mxu0 0.0
    %9907 = vmatprep.subr.mxu0 0.0
    %9908 = vmatpush1.msra.mxu0 0.0
    %9909 = vmatprep.subr.mxu0 0.0
    %9910 = vmatpush1.msra.mxu0 0.0
    %9911 = vmatprep.subr.mxu0 0.0
    %9912 = vmatpush1.msra.mxu0 0.0
    %9913 = vmatprep.subr.mxu0 0.0
    %9914 = vmatpush1.msra.mxu0 0.0
    %9915 = vmatprep.subr.mxu0 0.0
    %9916 = vmatpush1.msra.mxu0 0.0
    %9917 = vmatprep.subr.mxu0 0.0
    %9918 = vmatpush1.msra.mxu0 0.0
    %9919 = vmatprep.subr.mxu0 0.0
    %9920 = vmatpush1.msra.mxu0 0.0
    %9921 = vmatprep.subr.mxu0 0.0
    %9922 = vmatpush1.msra.mxu0 0.0
    %9923 = vmatprep.subr.mxu0 0.0
    %9924 = vmatpush1.msra.mxu0 0.0
    %9925 = vmatprep.subr.mxu0 0.0
    %9926 = vmatpush1.msra.mxu0 0.0
    %9927 = vmatprep.subr.mxu0 0.0
    %9928 = vmatpush1.msra.mxu0 0.0
    %9929 = vmatprep.subr.mxu0 0.0
    %9930 = vmatpush1.msra.mxu0 0.0
    %9931 = vmatprep.subr.mxu0 0.0
    %9932 = vmatpush1.msra.mxu0 0.0
    %9933 = vmatprep.subr.mxu0 0.0
    %9934 = vmatpush1.msra.mxu0 %v9898
    %9935 = vmatprep.subr.mxu0 0.0
    %9936 = vmatpush2.msra.mxu0 0.0
    %9937 = vmatprep.subr.mxu0 0.0
    %9938 = vmatpush2.msra.mxu0 0.0
    %9939 = vmatprep.subr.mxu0 0.0
    %9940 = vmatpush2.msra.mxu0 0.0
    %9941 = vmatprep.subr.mxu0 0.0
    %9942 = vmatpush2.msra.mxu0 0.0
    %9943 = vmatprep.subr.mxu0 0.0
    %9944 = vmatpush2.msra.mxu0 0.0
    %9945 = vmatprep.subr.mxu0 0.0
    %9946 = vmatpush2.msra.mxu0 0.0
    %9947 = vmatprep.subr.mxu0 0.0
    %9948 = vmatpush2.msra.mxu0 0.0
    %9949 = vmatprep.subr.mxu0 0.0
    %9950 = vmatpush2.msra.mxu0 0.0
    %9951 = vmatprep.subr.mxu0 0.0
    %9952 = vmatpush2.msra.mxu0 0.0
    %9953 = vmatprep.subr.mxu0 0.0
    %9954 = vmatpush2.msra.mxu0 0.0
    %9955 = vmatprep.subr.mxu0 0.0
    %9956 = vmatpush2.msra.mxu0 0.0
    %9957 = vmatprep.subr.mxu0 0.0
    %9958 = vmatpush2.msra.mxu0 0.0
    %9959 = vmatprep.subr.mxu0 0.0
    %9960 = vmatpush2.msra.mxu0 0.0
    %9961 = vmatprep.subr.mxu0 0.0
    %9962 = vmatpush2.msra.mxu0 0.0
    %9963 = vmatprep.subr.mxu0 0.0
    %9964 = vmatpush2.msra.mxu0 0.0
    %9965 = vmatprep.subr.mxu0 0.0
    %9966 = vmatpush2.msra.mxu0 0.0
    %9967 = vmatprep.mubr.f32.mxu0 0.0
    %9968 = vmatmul.mubr.f32.gmra.mxu0 %v9901
    %v9969 = vpop.f32.mrf.mxu0
    %v9970 = vadd.f32 0.0, %v9969
    %v9971 = vpop.f32.mrf.mxu0
    %9972 = vdwg.mxu0
    %9974 = vrot.lane.b32.xlu0 %v209, 96
    %v9975 = vpop.permute.xlu0 %9974
    %v9978 = vsel %vm275, %v9653, 0
    %9980 = vmatprep.subr.mxu0 0.0
    %9981 = vmatpush1.msra.mxu0 0.0
    %9982 = vmatprep.subr.mxu0 0.0
    %9983 = vmatpush1.msra.mxu0 0.0
    %9984 = vmatprep.subr.mxu0 0.0
    %9985 = vmatpush1.msra.mxu0 0.0
    %9986 = vmatprep.subr.mxu0 0.0
    %9987 = vmatpush1.msra.mxu0 0.0
    %9988 = vmatprep.subr.mxu0 0.0
    %9989 = vmatpush1.msra.mxu0 0.0
    %9990 = vmatprep.subr.mxu0 0.0
    %9991 = vmatpush1.msra.mxu0 0.0
    %9992 = vmatprep.subr.mxu0 0.0
    %9993 = vmatpush1.msra.mxu0 0.0
    %9994 = vmatprep.subr.mxu0 0.0
    %9995 = vmatpush1.msra.mxu0 0.0
    %9996 = vmatprep.subr.mxu0 0.0
    %9997 = vmatpush1.msra.mxu0 0.0
    %9998 = vmatprep.subr.mxu0 0.0
    %9999 = vmatpush1.msra.mxu0 0.0
    %10000 = vmatprep.subr.mxu0 0.0
    %10001 = vmatpush1.msra.mxu0 0.0
    %10002 = vmatprep.subr.mxu0 0.0
    %10003 = vmatpush1.msra.mxu0 0.0
    %10004 = vmatprep.subr.mxu0 0.0
    %10005 = vmatpush1.msra.mxu0 0.0
    %10006 = vmatprep.subr.mxu0 0.0
    %10007 = vmatpush1.msra.mxu0 0.0
    %10008 = vmatprep.subr.mxu0 0.0
    %10009 = vmatpush1.msra.mxu0 0.0
    %10010 = vmatprep.subr.mxu0 0.0
    %10011 = vmatpush1.msra.mxu0 %v9975
    %10012 = vmatprep.subr.mxu0 0.0
    %10013 = vmatpush2.msra.mxu0 0.0
    %10014 = vmatprep.subr.mxu0 0.0
    %10015 = vmatpush2.msra.mxu0 0.0
    %10016 = vmatprep.subr.mxu0 0.0
    %10017 = vmatpush2.msra.mxu0 0.0
    %10018 = vmatprep.subr.mxu0 0.0
    %10019 = vmatpush2.msra.mxu0 0.0
    %10020 = vmatprep.subr.mxu0 0.0
    %10021 = vmatpush2.msra.mxu0 0.0
    %10022 = vmatprep.subr.mxu0 0.0
    %10023 = vmatpush2.msra.mxu0 0.0
    %10024 = vmatprep.subr.mxu0 0.0
    %10025 = vmatpush2.msra.mxu0 0.0
    %10026 = vmatprep.subr.mxu0 0.0
    %10027 = vmatpush2.msra.mxu0 0.0
    %10028 = vmatprep.subr.mxu0 0.0
    %10029 = vmatpush2.msra.mxu0 0.0
    %10030 = vmatprep.subr.mxu0 0.0
    %10031 = vmatpush2.msra.mxu0 0.0
    %10032 = vmatprep.subr.mxu0 0.0
    %10033 = vmatpush2.msra.mxu0 0.0
    %10034 = vmatprep.subr.mxu0 0.0
    %10035 = vmatpush2.msra.mxu0 0.0
    %10036 = vmatprep.subr.mxu0 0.0
    %10037 = vmatpush2.msra.mxu0 0.0
    %10038 = vmatprep.subr.mxu0 0.0
    %10039 = vmatpush2.msra.mxu0 0.0
    %10040 = vmatprep.subr.mxu0 0.0
    %10041 = vmatpush2.msra.mxu0 0.0
    %10042 = vmatprep.subr.mxu0 0.0
    %10043 = vmatpush2.msra.mxu0 0.0
    %10044 = vmatprep.mubr.f32.mxu0 0.0
    %10045 = vmatmul.mubr.f32.gmra.mxu0 %v9978
    %v10046 = vpop.f32.mrf.mxu0
    %v10047 = vadd.f32 0.0, %v10046
    %v10048 = vpop.f32.mrf.mxu0
    %10049 = vdwg.mxu0
    %10051 = vrot.lane.b32.xlu0 %v213, 96
    %v10052 = vpop.permute.xlu0 %10051
    %v10055 = vsel %vm275, %v9654, 0
    %10057 = vmatprep.subr.mxu0 0.0
    %10058 = vmatpush1.msra.mxu0 0.0
    %10059 = vmatprep.subr.mxu0 0.0
    %10060 = vmatpush1.msra.mxu0 0.0
    %10061 = vmatprep.subr.mxu0 0.0
    %10062 = vmatpush1.msra.mxu0 0.0
    %10063 = vmatprep.subr.mxu0 0.0
    %10064 = vmatpush1.msra.mxu0 0.0
    %10065 = vmatprep.subr.mxu0 0.0
    %10066 = vmatpush1.msra.mxu0 0.0
    %10067 = vmatprep.subr.mxu0 0.0
    %10068 = vmatpush1.msra.mxu0 0.0
    %10069 = vmatprep.subr.mxu0 0.0
    %10070 = vmatpush1.msra.mxu0 0.0
    %10071 = vmatprep.subr.mxu0 0.0
    %10072 = vmatpush1.msra.mxu0 0.0
    %10073 = vmatprep.subr.mxu0 0.0
    %10074 = vmatpush1.msra.mxu0 0.0
    %10075 = vmatprep.subr.mxu0 0.0
    %10076 = vmatpush1.msra.mxu0 0.0
    %10077 = vmatprep.subr.mxu0 0.0
    %10078 = vmatpush1.msra.mxu0 0.0
    %10079 = vmatprep.subr.mxu0 0.0
    %10080 = vmatpush1.msra.mxu0 0.0
    %10081 = vmatprep.subr.mxu0 0.0
    %10082 = vmatpush1.msra.mxu0 0.0
    %10083 = vmatprep.subr.mxu0 0.0
    %10084 = vmatpush1.msra.mxu0 0.0
    %10085 = vmatprep.subr.mxu0 0.0
    %10086 = vmatpush1.msra.mxu0 0.0
    %10087 = vmatprep.subr.mxu0 0.0
    %10088 = vmatpush1.msra.mxu0 %v10052
    %10089 = vmatprep.subr.mxu0 0.0
    %10090 = vmatpush2.msra.mxu0 0.0
    %10091 = vmatprep.subr.mxu0 0.0
    %10092 = vmatpush2.msra.mxu0 0.0
    %10093 = vmatprep.subr.mxu0 0.0
    %10094 = vmatpush2.msra.mxu0 0.0
    %10095 = vmatprep.subr.mxu0 0.0
    %10096 = vmatpush2.msra.mxu0 0.0
    %10097 = vmatprep.subr.mxu0 0.0
    %10098 = vmatpush2.msra.mxu0 0.0
    %10099 = vmatprep.subr.mxu0 0.0
    %10100 = vmatpush2.msra.mxu0 0.0
    %10101 = vmatprep.subr.mxu0 0.0
    %10102 = vmatpush2.msra.mxu0 0.0
    %10103 = vmatprep.subr.mxu0 0.0
    %10104 = vmatpush2.msra.mxu0 0.0
    %10105 = vmatprep.subr.mxu0 0.0
    %10106 = vmatpush2.msra.mxu0 0.0
    %10107 = vmatprep.subr.mxu0 0.0
    %10108 = vmatpush2.msra.mxu0 0.0
    %10109 = vmatprep.subr.mxu0 0.0
    %10110 = vmatpush2.msra.mxu0 0.0
    %10111 = vmatprep.subr.mxu0 0.0
    %10112 = vmatpush2.msra.mxu0 0.0
    %10113 = vmatprep.subr.mxu0 0.0
    %10114 = vmatpush2.msra.mxu0 0.0
    %10115 = vmatprep.subr.mxu0 0.0
    %10116 = vmatpush2.msra.mxu0 0.0
    %10117 = vmatprep.subr.mxu0 0.0
    %10118 = vmatpush2.msra.mxu0 0.0
    %10119 = vmatprep.subr.mxu0 0.0
    %10120 = vmatpush2.msra.mxu0 0.0
    %10121 = vmatprep.mubr.f32.mxu0 0.0
    %10122 = vmatmul.mubr.f32.gmra.mxu0 %v10055
    %v10123 = vpop.f32.mrf.mxu0
    %v10124 = vadd.f32 0.0, %v10123
    %v10125 = vpop.f32.mrf.mxu0
    %10126 = vdwg.mxu0
    %10128 = vrot.lane.b32.xlu0 %v219, 96
    %v10129 = vpop.permute.xlu0 %10128
    %v10132 = vsel %vm275, %v9655, 0
    %10134 = vmatprep.subr.mxu0 0.0
    %10135 = vmatpush1.msra.mxu0 0.0
    %10136 = vmatprep.subr.mxu0 0.0
    %10137 = vmatpush1.msra.mxu0 0.0
    %10138 = vmatprep.subr.mxu0 0.0
    %10139 = vmatpush1.msra.mxu0 0.0
    %10140 = vmatprep.subr.mxu0 0.0
    %10141 = vmatpush1.msra.mxu0 0.0
    %10142 = vmatprep.subr.mxu0 0.0
    %10143 = vmatpush1.msra.mxu0 0.0
    %10144 = vmatprep.subr.mxu0 0.0
    %10145 = vmatpush1.msra.mxu0 0.0
    %10146 = vmatprep.subr.mxu0 0.0
    %10147 = vmatpush1.msra.mxu0 0.0
    %10148 = vmatprep.subr.mxu0 0.0
    %10149 = vmatpush1.msra.mxu0 0.0
    %10150 = vmatprep.subr.mxu0 0.0
    %10151 = vmatpush1.msra.mxu0 0.0
    %10152 = vmatprep.subr.mxu0 0.0
    %10153 = vmatpush1.msra.mxu0 0.0
    %10154 = vmatprep.subr.mxu0 0.0
    %10155 = vmatpush1.msra.mxu0 0.0
    %10156 = vmatprep.subr.mxu0 0.0
    %10157 = vmatpush1.msra.mxu0 0.0
    %10158 = vmatprep.subr.mxu0 0.0
    %10159 = vmatpush1.msra.mxu0 0.0
    %10160 = vmatprep.subr.mxu0 0.0
    %10161 = vmatpush1.msra.mxu0 0.0
    %10162 = vmatprep.subr.mxu0 0.0
    %10163 = vmatpush1.msra.mxu0 0.0
    %10164 = vmatprep.subr.mxu0 0.0
    %10165 = vmatpush1.msra.mxu0 %v10129
    %10166 = vmatprep.subr.mxu0 0.0
    %10167 = vmatpush2.msra.mxu0 0.0
    %10168 = vmatprep.subr.mxu0 0.0
    %10169 = vmatpush2.msra.mxu0 0.0
    %10170 = vmatprep.subr.mxu0 0.0
    %10171 = vmatpush2.msra.mxu0 0.0
    %10172 = vmatprep.subr.mxu0 0.0
    %10173 = vmatpush2.msra.mxu0 0.0
    %10174 = vmatprep.subr.mxu0 0.0
    %10175 = vmatpush2.msra.mxu0 0.0
    %10176 = vmatprep.subr.mxu0 0.0
    %10177 = vmatpush2.msra.mxu0 0.0
    %10178 = vmatprep.subr.mxu0 0.0
    %10179 = vmatpush2.msra.mxu0 0.0
    %10180 = vmatprep.subr.mxu0 0.0
    %10181 = vmatpush2.msra.mxu0 0.0
    %10182 = vmatprep.subr.mxu0 0.0
    %10183 = vmatpush2.msra.mxu0 0.0
    %10184 = vmatprep.subr.mxu0 0.0
    %10185 = vmatpush2.msra.mxu0 0.0
    %10186 = vmatprep.subr.mxu0 0.0
    %10187 = vmatpush2.msra.mxu0 0.0
    %10188 = vmatprep.subr.mxu0 0.0
    %10189 = vmatpush2.msra.mxu0 0.0
    %10190 = vmatprep.subr.mxu0 0.0
    %10191 = vmatpush2.msra.mxu0 0.0
    %10192 = vmatprep.subr.mxu0 0.0
    %10193 = vmatpush2.msra.mxu0 0.0
    %10194 = vmatprep.subr.mxu0 0.0
    %10195 = vmatpush2.msra.mxu0 0.0
    %10196 = vmatprep.subr.mxu0 0.0
    %10197 = vmatpush2.msra.mxu0 0.0
    %10198 = vmatprep.mubr.f32.mxu0 0.0
    %10199 = vmatmul.mubr.f32.gmra.mxu0 %v10132
    %v10200 = vpop.f32.mrf.mxu0
    %v10201 = vadd.f32 0.0, %v10200
    %v10202 = vpop.f32.mrf.mxu0
    %10203 = vdwg.mxu0
    %10205 = vrot.lane.b32.xlu0 %v223, 96
    %v10206 = vpop.permute.xlu0 %10205
    %v10209 = vsel %vm275, %v9656, 0
    %10211 = vmatprep.subr.mxu0 0.0
    %10212 = vmatpush1.msra.mxu0 0.0
    %10213 = vmatprep.subr.mxu0 0.0
    %10214 = vmatpush1.msra.mxu0 0.0
    %10215 = vmatprep.subr.mxu0 0.0
    %10216 = vmatpush1.msra.mxu0 0.0
    %10217 = vmatprep.subr.mxu0 0.0
    %10218 = vmatpush1.msra.mxu0 0.0
    %10219 = vmatprep.subr.mxu0 0.0
    %10220 = vmatpush1.msra.mxu0 0.0
    %10221 = vmatprep.subr.mxu0 0.0
    %10222 = vmatpush1.msra.mxu0 0.0
    %10223 = vmatprep.subr.mxu0 0.0
    %10224 = vmatpush1.msra.mxu0 0.0
    %10225 = vmatprep.subr.mxu0 0.0
    %10226 = vmatpush1.msra.mxu0 0.0
    %10227 = vmatprep.subr.mxu0 0.0
    %10228 = vmatpush1.msra.mxu0 0.0
    %10229 = vmatprep.subr.mxu0 0.0
    %10230 = vmatpush1.msra.mxu0 0.0
    %10231 = vmatprep.subr.mxu0 0.0
    %10232 = vmatpush1.msra.mxu0 0.0
    %10233 = vmatprep.subr.mxu0 0.0
    %10234 = vmatpush1.msra.mxu0 0.0
    %10235 = vmatprep.subr.mxu0 0.0
    %10236 = vmatpush1.msra.mxu0 0.0
    %10237 = vmatprep.subr.mxu0 0.0
    %10238 = vmatpush1.msra.mxu0 0.0
    %10239 = vmatprep.subr.mxu0 0.0
    %10240 = vmatpush1.msra.mxu0 0.0
    %10241 = vmatprep.subr.mxu0 0.0
    %10242 = vmatpush1.msra.mxu0 %v10206
    %10243 = vmatprep.subr.mxu0 0.0
    %10244 = vmatpush2.msra.mxu0 0.0
    %10245 = vmatprep.subr.mxu0 0.0
    %10246 = vmatpush2.msra.mxu0 0.0
    %10247 = vmatprep.subr.mxu0 0.0
    %10248 = vmatpush2.msra.mxu0 0.0
    %10249 = vmatprep.subr.mxu0 0.0
    %10250 = vmatpush2.msra.mxu0 0.0
    %10251 = vmatprep.subr.mxu0 0.0
    %10252 = vmatpush2.msra.mxu0 0.0
    %10253 = vmatprep.subr.mxu0 0.0
    %10254 = vmatpush2.msra.mxu0 0.0
    %10255 = vmatprep.subr.mxu0 0.0
    %10256 = vmatpush2.msra.mxu0 0.0
    %10257 = vmatprep.subr.mxu0 0.0
    %10258 = vmatpush2.msra.mxu0 0.0
    %10259 = vmatprep.subr.mxu0 0.0
    %10260 = vmatpush2.msra.mxu0 0.0
    %10261 = vmatprep.subr.mxu0 0.0
    %10262 = vmatpush2.msra.mxu0 0.0
    %10263 = vmatprep.subr.mxu0 0.0
    %10264 = vmatpush2.msra.mxu0 0.0
    %10265 = vmatprep.subr.mxu0 0.0
    %10266 = vmatpush2.msra.mxu0 0.0
    %10267 = vmatprep.subr.mxu0 0.0
    %10268 = vmatpush2.msra.mxu0 0.0
    %10269 = vmatprep.subr.mxu0 0.0
    %10270 = vmatpush2.msra.mxu0 0.0
    %10271 = vmatprep.subr.mxu0 0.0
    %10272 = vmatpush2.msra.mxu0 0.0
    %10273 = vmatprep.subr.mxu0 0.0
    %10274 = vmatpush2.msra.mxu0 0.0
    %10275 = vmatprep.mubr.f32.mxu0 0.0
    %10276 = vmatmul.mubr.f32.gmra.mxu0 %v10209
    %v10277 = vpop.f32.mrf.mxu0
    %v10278 = vadd.f32 0.0, %v10277
    %v10279 = vpop.f32.mrf.mxu0
    %10280 = vdwg.mxu0
    %10282 = vrot.lane.b32.xlu0 %v229, 96
    %v10283 = vpop.permute.xlu0 %10282
    %v10286 = vsel %vm275, %v9657, 0
    %10288 = vmatprep.subr.mxu0 0.0
    %10289 = vmatpush1.msra.mxu0 0.0
    %10290 = vmatprep.subr.mxu0 0.0
    %10291 = vmatpush1.msra.mxu0 0.0
    %10292 = vmatprep.subr.mxu0 0.0
    %10293 = vmatpush1.msra.mxu0 0.0
    %10294 = vmatprep.subr.mxu0 0.0
    %10295 = vmatpush1.msra.mxu0 0.0
    %10296 = vmatprep.subr.mxu0 0.0
    %10297 = vmatpush1.msra.mxu0 0.0
    %10298 = vmatprep.subr.mxu0 0.0
    %10299 = vmatpush1.msra.mxu0 0.0
    %10300 = vmatprep.subr.mxu0 0.0
    %10301 = vmatpush1.msra.mxu0 0.0
    %10302 = vmatprep.subr.mxu0 0.0
    %10303 = vmatpush1.msra.mxu0 0.0
    %10304 = vmatprep.subr.mxu0 0.0
    %10305 = vmatpush1.msra.mxu0 0.0
    %10306 = vmatprep.subr.mxu0 0.0
    %10307 = vmatpush1.msra.mxu0 0.0
    %10308 = vmatprep.subr.mxu0 0.0
    %10309 = vmatpush1.msra.mxu0 0.0
    %10310 = vmatprep.subr.mxu0 0.0
    %10311 = vmatpush1.msra.mxu0 0.0
    %10312 = vmatprep.subr.mxu0 0.0
    %10313 = vmatpush1.msra.mxu0 0.0
    %10314 = vmatprep.subr.mxu0 0.0
    %10315 = vmatpush1.msra.mxu0 0.0
    %10316 = vmatprep.subr.mxu0 0.0
    %10317 = vmatpush1.msra.mxu0 0.0
    %10318 = vmatprep.subr.mxu0 0.0
    %10319 = vmatpush1.msra.mxu0 %v10283
    %10320 = vmatprep.subr.mxu0 0.0
    %10321 = vmatpush2.msra.mxu0 0.0
    %10322 = vmatprep.subr.mxu0 0.0
    %10323 = vmatpush2.msra.mxu0 0.0
    %10324 = vmatprep.subr.mxu0 0.0
    %10325 = vmatpush2.msra.mxu0 0.0
    %10326 = vmatprep.subr.mxu0 0.0
    %10327 = vmatpush2.msra.mxu0 0.0
    %10328 = vmatprep.subr.mxu0 0.0
    %10329 = vmatpush2.msra.mxu0 0.0
    %10330 = vmatprep.subr.mxu0 0.0
    %10331 = vmatpush2.msra.mxu0 0.0
    %10332 = vmatprep.subr.mxu0 0.0
    %10333 = vmatpush2.msra.mxu0 0.0
    %10334 = vmatprep.subr.mxu0 0.0
    %10335 = vmatpush2.msra.mxu0 0.0
    %10336 = vmatprep.subr.mxu0 0.0
    %10337 = vmatpush2.msra.mxu0 0.0
    %10338 = vmatprep.subr.mxu0 0.0
    %10339 = vmatpush2.msra.mxu0 0.0
    %10340 = vmatprep.subr.mxu0 0.0
    %10341 = vmatpush2.msra.mxu0 0.0
    %10342 = vmatprep.subr.mxu0 0.0
    %10343 = vmatpush2.msra.mxu0 0.0
    %10344 = vmatprep.subr.mxu0 0.0
    %10345 = vmatpush2.msra.mxu0 0.0
    %10346 = vmatprep.subr.mxu0 0.0
    %10347 = vmatpush2.msra.mxu0 0.0
    %10348 = vmatprep.subr.mxu0 0.0
    %10349 = vmatpush2.msra.mxu0 0.0
    %10350 = vmatprep.subr.mxu0 0.0
    %10351 = vmatpush2.msra.mxu0 0.0
    %10352 = vmatprep.mubr.f32.mxu0 0.0
    %10353 = vmatmul.mubr.f32.gmra.mxu0 %v10286
    %v10354 = vpop.f32.mrf.mxu0
    %v10355 = vadd.f32 0.0, %v10354
    %v10356 = vpop.f32.mrf.mxu0
    %10357 = vdwg.mxu0
    %10359 = vrot.lane.b32.xlu0 %v233, 96
    %v10360 = vpop.permute.xlu0 %10359
    %v10363 = vsel %vm275, %v9658, 0
    %10365 = vmatprep.subr.mxu0 0.0
    %10366 = vmatpush1.msra.mxu0 0.0
    %10367 = vmatprep.subr.mxu0 0.0
    %10368 = vmatpush1.msra.mxu0 0.0
    %10369 = vmatprep.subr.mxu0 0.0
    %10370 = vmatpush1.msra.mxu0 0.0
    %10371 = vmatprep.subr.mxu0 0.0
    %10372 = vmatpush1.msra.mxu0 0.0
    %10373 = vmatprep.subr.mxu0 0.0
    %10374 = vmatpush1.msra.mxu0 0.0
    %10375 = vmatprep.subr.mxu0 0.0
    %10376 = vmatpush1.msra.mxu0 0.0
    %10377 = vmatprep.subr.mxu0 0.0
    %10378 = vmatpush1.msra.mxu0 0.0
    %10379 = vmatprep.subr.mxu0 0.0
    %10380 = vmatpush1.msra.mxu0 0.0
    %10381 = vmatprep.subr.mxu0 0.0
    %10382 = vmatpush1.msra.mxu0 0.0
    %10383 = vmatprep.subr.mxu0 0.0
    %10384 = vmatpush1.msra.mxu0 0.0
    %10385 = vmatprep.subr.mxu0 0.0
    %10386 = vmatpush1.msra.mxu0 0.0
    %10387 = vmatprep.subr.mxu0 0.0
    %10388 = vmatpush1.msra.mxu0 0.0
    %10389 = vmatprep.subr.mxu0 0.0
    %10390 = vmatpush1.msra.mxu0 0.0
    %10391 = vmatprep.subr.mxu0 0.0
    %10392 = vmatpush1.msra.mxu0 0.0
    %10393 = vmatprep.subr.mxu0 0.0
    %10394 = vmatpush1.msra.mxu0 0.0
    %10395 = vmatprep.subr.mxu0 0.0
    %10396 = vmatpush1.msra.mxu0 %v10360
    %10397 = vmatprep.subr.mxu0 0.0
    %10398 = vmatpush2.msra.mxu0 0.0
    %10399 = vmatprep.subr.mxu0 0.0
    %10400 = vmatpush2.msra.mxu0 0.0
    %10401 = vmatprep.subr.mxu0 0.0
    %10402 = vmatpush2.msra.mxu0 0.0
    %10403 = vmatprep.subr.mxu0 0.0
    %10404 = vmatpush2.msra.mxu0 0.0
    %10405 = vmatprep.subr.mxu0 0.0
    %10406 = vmatpush2.msra.mxu0 0.0
    %10407 = vmatprep.subr.mxu0 0.0
    %10408 = vmatpush2.msra.mxu0 0.0
    %10409 = vmatprep.subr.mxu0 0.0
    %10410 = vmatpush2.msra.mxu0 0.0
    %10411 = vmatprep.subr.mxu0 0.0
    %10412 = vmatpush2.msra.mxu0 0.0
    %10413 = vmatprep.subr.mxu0 0.0
    %10414 = vmatpush2.msra.mxu0 0.0
    %10415 = vmatprep.subr.mxu0 0.0
    %10416 = vmatpush2.msra.mxu0 0.0
    %10417 = vmatprep.subr.mxu0 0.0
    %10418 = vmatpush2.msra.mxu0 0.0
    %10419 = vmatprep.subr.mxu0 0.0
    %10420 = vmatpush2.msra.mxu0 0.0
    %10421 = vmatprep.subr.mxu0 0.0
    %10422 = vmatpush2.msra.mxu0 0.0
    %10423 = vmatprep.subr.mxu0 0.0
    %10424 = vmatpush2.msra.mxu0 0.0
    %10425 = vmatprep.subr.mxu0 0.0
    %10426 = vmatpush2.msra.mxu0 0.0
    %10427 = vmatprep.subr.mxu0 0.0
    %10428 = vmatpush2.msra.mxu0 0.0
    %10429 = vmatprep.mubr.f32.mxu0 0.0
    %10430 = vmatmul.mubr.f32.gmra.mxu0 %v10363
    %v10431 = vpop.f32.mrf.mxu0
    %v10432 = vadd.f32 0.0, %v10431
    %v10433 = vpop.f32.mrf.mxu0
    %10434 = vdwg.mxu0
    %10436 = vrot.lane.b32.xlu0 %v239, 96
    %v10437 = vpop.permute.xlu0 %10436
    %v10440 = vsel %vm275, %v9659, 0
    %10442 = vmatprep.subr.mxu0 0.0
    %10443 = vmatpush1.msra.mxu0 0.0
    %10444 = vmatprep.subr.mxu0 0.0
    %10445 = vmatpush1.msra.mxu0 0.0
    %10446 = vmatprep.subr.mxu0 0.0
    %10447 = vmatpush1.msra.mxu0 0.0
    %10448 = vmatprep.subr.mxu0 0.0
    %10449 = vmatpush1.msra.mxu0 0.0
    %10450 = vmatprep.subr.mxu0 0.0
    %10451 = vmatpush1.msra.mxu0 0.0
    %10452 = vmatprep.subr.mxu0 0.0
    %10453 = vmatpush1.msra.mxu0 0.0
    %10454 = vmatprep.subr.mxu0 0.0
    %10455 = vmatpush1.msra.mxu0 0.0
    %10456 = vmatprep.subr.mxu0 0.0
    %10457 = vmatpush1.msra.mxu0 0.0
    %10458 = vmatprep.subr.mxu0 0.0
    %10459 = vmatpush1.msra.mxu0 0.0
    %10460 = vmatprep.subr.mxu0 0.0
    %10461 = vmatpush1.msra.mxu0 0.0
    %10462 = vmatprep.subr.mxu0 0.0
    %10463 = vmatpush1.msra.mxu0 0.0
    %10464 = vmatprep.subr.mxu0 0.0
    %10465 = vmatpush1.msra.mxu0 0.0
    %10466 = vmatprep.subr.mxu0 0.0
    %10467 = vmatpush1.msra.mxu0 0.0
    %10468 = vmatprep.subr.mxu0 0.0
    %10469 = vmatpush1.msra.mxu0 0.0
    %10470 = vmatprep.subr.mxu0 0.0
    %10471 = vmatpush1.msra.mxu0 0.0
    %10472 = vmatprep.subr.mxu0 0.0
    %10473 = vmatpush1.msra.mxu0 %v10437
    %10474 = vmatprep.subr.mxu0 0.0
    %10475 = vmatpush2.msra.mxu0 0.0
    %10476 = vmatprep.subr.mxu0 0.0
    %10477 = vmatpush2.msra.mxu0 0.0
    %10478 = vmatprep.subr.mxu0 0.0
    %10479 = vmatpush2.msra.mxu0 0.0
    %10480 = vmatprep.subr.mxu0 0.0
    %10481 = vmatpush2.msra.mxu0 0.0
    %10482 = vmatprep.subr.mxu0 0.0
    %10483 = vmatpush2.msra.mxu0 0.0
    %10484 = vmatprep.subr.mxu0 0.0
    %10485 = vmatpush2.msra.mxu0 0.0
    %10486 = vmatprep.subr.mxu0 0.0
    %10487 = vmatpush2.msra.mxu0 0.0
    %10488 = vmatprep.subr.mxu0 0.0
    %10489 = vmatpush2.msra.mxu0 0.0
    %10490 = vmatprep.subr.mxu0 0.0
    %10491 = vmatpush2.msra.mxu0 0.0
    %10492 = vmatprep.subr.mxu0 0.0
    %10493 = vmatpush2.msra.mxu0 0.0
    %10494 = vmatprep.subr.mxu0 0.0
    %10495 = vmatpush2.msra.mxu0 0.0
    %10496 = vmatprep.subr.mxu0 0.0
    %10497 = vmatpush2.msra.mxu0 0.0
    %10498 = vmatprep.subr.mxu0 0.0
    %10499 = vmatpush2.msra.mxu0 0.0
    %10500 = vmatprep.subr.mxu0 0.0
    %10501 = vmatpush2.msra.mxu0 0.0
    %10502 = vmatprep.subr.mxu0 0.0
    %10503 = vmatpush2.msra.mxu0 0.0
    %10504 = vmatprep.subr.mxu0 0.0
    %10505 = vmatpush2.msra.mxu0 0.0
    %10506 = vmatprep.mubr.f32.mxu0 0.0
    %10507 = vmatmul.mubr.f32.gmra.mxu0 %v10440
    %v10508 = vpop.f32.mrf.mxu0
    %v10509 = vadd.f32 0.0, %v10508
    %v10510 = vpop.f32.mrf.mxu0
    %10511 = vdwg.mxu0
    %10513 = vrot.lane.b32.xlu0 %v243, 96
    %v10514 = vpop.permute.xlu0 %10513
    %v10517 = vsel %vm275, %v9660, 0
    %10519 = vmatprep.subr.mxu0 0.0
    %10520 = vmatpush1.msra.mxu0 0.0
    %10521 = vmatprep.subr.mxu0 0.0
    %10522 = vmatpush1.msra.mxu0 0.0
    %10523 = vmatprep.subr.mxu0 0.0
    %10524 = vmatpush1.msra.mxu0 0.0
    %10525 = vmatprep.subr.mxu0 0.0
    %10526 = vmatpush1.msra.mxu0 0.0
    %10527 = vmatprep.subr.mxu0 0.0
    %10528 = vmatpush1.msra.mxu0 0.0
    %10529 = vmatprep.subr.mxu0 0.0
    %10530 = vmatpush1.msra.mxu0 0.0
    %10531 = vmatprep.subr.mxu0 0.0
    %10532 = vmatpush1.msra.mxu0 0.0
    %10533 = vmatprep.subr.mxu0 0.0
    %10534 = vmatpush1.msra.mxu0 0.0
    %10535 = vmatprep.subr.mxu0 0.0
    %10536 = vmatpush1.msra.mxu0 0.0
    %10537 = vmatprep.subr.mxu0 0.0
    %10538 = vmatpush1.msra.mxu0 0.0
    %10539 = vmatprep.subr.mxu0 0.0
    %10540 = vmatpush1.msra.mxu0 0.0
    %10541 = vmatprep.subr.mxu0 0.0
    %10542 = vmatpush1.msra.mxu0 0.0
    %10543 = vmatprep.subr.mxu0 0.0
    %10544 = vmatpush1.msra.mxu0 0.0
    %10545 = vmatprep.subr.mxu0 0.0
    %10546 = vmatpush1.msra.mxu0 0.0
    %10547 = vmatprep.subr.mxu0 0.0
    %10548 = vmatpush1.msra.mxu0 0.0
    %10549 = vmatprep.subr.mxu0 0.0
    %10550 = vmatpush1.msra.mxu0 %v10514
    %10551 = vmatprep.subr.mxu0 0.0
    %10552 = vmatpush2.msra.mxu0 0.0
    %10553 = vmatprep.subr.mxu0 0.0
    %10554 = vmatpush2.msra.mxu0 0.0
    %10555 = vmatprep.subr.mxu0 0.0
    %10556 = vmatpush2.msra.mxu0 0.0
    %10557 = vmatprep.subr.mxu0 0.0
    %10558 = vmatpush2.msra.mxu0 0.0
    %10559 = vmatprep.subr.mxu0 0.0
    %10560 = vmatpush2.msra.mxu0 0.0
    %10561 = vmatprep.subr.mxu0 0.0
    %10562 = vmatpush2.msra.mxu0 0.0
    %10563 = vmatprep.subr.mxu0 0.0
    %10564 = vmatpush2.msra.mxu0 0.0
    %10565 = vmatprep.subr.mxu0 0.0
    %10566 = vmatpush2.msra.mxu0 0.0
    %10567 = vmatprep.subr.mxu0 0.0
    %10568 = vmatpush2.msra.mxu0 0.0
    %10569 = vmatprep.subr.mxu0 0.0
    %10570 = vmatpush2.msra.mxu0 0.0
    %10571 = vmatprep.subr.mxu0 0.0
    %10572 = vmatpush2.msra.mxu0 0.0
    %10573 = vmatprep.subr.mxu0 0.0
    %10574 = vmatpush2.msra.mxu0 0.0
    %10575 = vmatprep.subr.mxu0 0.0
    %10576 = vmatpush2.msra.mxu0 0.0
    %10577 = vmatprep.subr.mxu0 0.0
    %10578 = vmatpush2.msra.mxu0 0.0
    %10579 = vmatprep.subr.mxu0 0.0
    %10580 = vmatpush2.msra.mxu0 0.0
    %10581 = vmatprep.subr.mxu0 0.0
    %10582 = vmatpush2.msra.mxu0 0.0
    %10583 = vmatprep.mubr.f32.mxu0 0.0
    %10584 = vmatmul.mubr.f32.gmra.mxu0 %v10517
    %v10585 = vpop.f32.mrf.mxu0
    %v10586 = vadd.f32 0.0, %v10585
    %v10587 = vpop.f32.mrf.mxu0
    %10588 = vdwg.mxu0
    %10590 = vrot.lane.b32.xlu0 %v249, 96
    %v10591 = vpop.permute.xlu0 %10590
    %v10594 = vsel %vm275, %v9661, 0
    %10596 = vmatprep.subr.mxu0 0.0
    %10597 = vmatpush1.msra.mxu0 0.0
    %10598 = vmatprep.subr.mxu0 0.0
    %10599 = vmatpush1.msra.mxu0 0.0
    %10600 = vmatprep.subr.mxu0 0.0
    %10601 = vmatpush1.msra.mxu0 0.0
    %10602 = vmatprep.subr.mxu0 0.0
    %10603 = vmatpush1.msra.mxu0 0.0
    %10604 = vmatprep.subr.mxu0 0.0
    %10605 = vmatpush1.msra.mxu0 0.0
    %10606 = vmatprep.subr.mxu0 0.0
    %10607 = vmatpush1.msra.mxu0 0.0
    %10608 = vmatprep.subr.mxu0 0.0
    %10609 = vmatpush1.msra.mxu0 0.0
    %10610 = vmatprep.subr.mxu0 0.0
    %10611 = vmatpush1.msra.mxu0 0.0
    %10612 = vmatprep.subr.mxu0 0.0
    %10613 = vmatpush1.msra.mxu0 0.0
    %10614 = vmatprep.subr.mxu0 0.0
    %10615 = vmatpush1.msra.mxu0 0.0
    %10616 = vmatprep.subr.mxu0 0.0
    %10617 = vmatpush1.msra.mxu0 0.0
    %10618 = vmatprep.subr.mxu0 0.0
    %10619 = vmatpush1.msra.mxu0 0.0
    %10620 = vmatprep.subr.mxu0 0.0
    %10621 = vmatpush1.msra.mxu0 0.0
    %10622 = vmatprep.subr.mxu0 0.0
    %10623 = vmatpush1.msra.mxu0 0.0
    %10624 = vmatprep.subr.mxu0 0.0
    %10625 = vmatpush1.msra.mxu0 0.0
    %10626 = vmatprep.subr.mxu0 0.0
    %10627 = vmatpush1.msra.mxu0 %v10591
    %10628 = vmatprep.subr.mxu0 0.0
    %10629 = vmatpush2.msra.mxu0 0.0
    %10630 = vmatprep.subr.mxu0 0.0
    %10631 = vmatpush2.msra.mxu0 0.0
    %10632 = vmatprep.subr.mxu0 0.0
    %10633 = vmatpush2.msra.mxu0 0.0
    %10634 = vmatprep.subr.mxu0 0.0
    %10635 = vmatpush2.msra.mxu0 0.0
    %10636 = vmatprep.subr.mxu0 0.0
    %10637 = vmatpush2.msra.mxu0 0.0
    %10638 = vmatprep.subr.mxu0 0.0
    %10639 = vmatpush2.msra.mxu0 0.0
    %10640 = vmatprep.subr.mxu0 0.0
    %10641 = vmatpush2.msra.mxu0 0.0
    %10642 = vmatprep.subr.mxu0 0.0
    %10643 = vmatpush2.msra.mxu0 0.0
    %10644 = vmatprep.subr.mxu0 0.0
    %10645 = vmatpush2.msra.mxu0 0.0
    %10646 = vmatprep.subr.mxu0 0.0
    %10647 = vmatpush2.msra.mxu0 0.0
    %10648 = vmatprep.subr.mxu0 0.0
    %10649 = vmatpush2.msra.mxu0 0.0
    %10650 = vmatprep.subr.mxu0 0.0
    %10651 = vmatpush2.msra.mxu0 0.0
    %10652 = vmatprep.subr.mxu0 0.0
    %10653 = vmatpush2.msra.mxu0 0.0
    %10654 = vmatprep.subr.mxu0 0.0
    %10655 = vmatpush2.msra.mxu0 0.0
    %10656 = vmatprep.subr.mxu0 0.0
    %10657 = vmatpush2.msra.mxu0 0.0
    %10658 = vmatprep.subr.mxu0 0.0
    %10659 = vmatpush2.msra.mxu0 0.0
    %10660 = vmatprep.mubr.f32.mxu0 0.0
    %10661 = vmatmul.mubr.f32.gmra.mxu0 %v10594
    %v10662 = vpop.f32.mrf.mxu0
    %v10663 = vadd.f32 0.0, %v10662
    %v10664 = vpop.f32.mrf.mxu0
    %10665 = vdwg.mxu0
    %10667 = vrot.lane.b32.xlu0 %v253, 96
    %v10668 = vpop.permute.xlu0 %10667
    %v10671 = vsel %vm275, %v9662, 0
    %10673 = vmatprep.subr.mxu0 0.0
    %10674 = vmatpush1.msra.mxu0 0.0
    %10675 = vmatprep.subr.mxu0 0.0
    %10676 = vmatpush1.msra.mxu0 0.0
    %10677 = vmatprep.subr.mxu0 0.0
    %10678 = vmatpush1.msra.mxu0 0.0
    %10679 = vmatprep.subr.mxu0 0.0
    %10680 = vmatpush1.msra.mxu0 0.0
    %10681 = vmatprep.subr.mxu0 0.0
    %10682 = vmatpush1.msra.mxu0 0.0
    %10683 = vmatprep.subr.mxu0 0.0
    %10684 = vmatpush1.msra.mxu0 0.0
    %10685 = vmatprep.subr.mxu0 0.0
    %10686 = vmatpush1.msra.mxu0 0.0
    %10687 = vmatprep.subr.mxu0 0.0
    %10688 = vmatpush1.msra.mxu0 0.0
    %10689 = vmatprep.subr.mxu0 0.0
    %10690 = vmatpush1.msra.mxu0 0.0
    %10691 = vmatprep.subr.mxu0 0.0
    %10692 = vmatpush1.msra.mxu0 0.0
    %10693 = vmatprep.subr.mxu0 0.0
    %10694 = vmatpush1.msra.mxu0 0.0
    %10695 = vmatprep.subr.mxu0 0.0
    %10696 = vmatpush1.msra.mxu0 0.0
    %10697 = vmatprep.subr.mxu0 0.0
    %10698 = vmatpush1.msra.mxu0 0.0
    %10699 = vmatprep.subr.mxu0 0.0
    %10700 = vmatpush1.msra.mxu0 0.0
    %10701 = vmatprep.subr.mxu0 0.0
    %10702 = vmatpush1.msra.mxu0 0.0
    %10703 = vmatprep.subr.mxu0 0.0
    %10704 = vmatpush1.msra.mxu0 %v10668
    %10705 = vmatprep.subr.mxu0 0.0
    %10706 = vmatpush2.msra.mxu0 0.0
    %10707 = vmatprep.subr.mxu0 0.0
    %10708 = vmatpush2.msra.mxu0 0.0
    %10709 = vmatprep.subr.mxu0 0.0
    %10710 = vmatpush2.msra.mxu0 0.0
    %10711 = vmatprep.subr.mxu0 0.0
    %10712 = vmatpush2.msra.mxu0 0.0
    %10713 = vmatprep.subr.mxu0 0.0
    %10714 = vmatpush2.msra.mxu0 0.0
    %10715 = vmatprep.subr.mxu0 0.0
    %10716 = vmatpush2.msra.mxu0 0.0
    %10717 = vmatprep.subr.mxu0 0.0
    %10718 = vmatpush2.msra.mxu0 0.0
    %10719 = vmatprep.subr.mxu0 0.0
    %10720 = vmatpush2.msra.mxu0 0.0
    %10721 = vmatprep.subr.mxu0 0.0
    %10722 = vmatpush2.msra.mxu0 0.0
    %10723 = vmatprep.subr.mxu0 0.0
    %10724 = vmatpush2.msra.mxu0 0.0
    %10725 = vmatprep.subr.mxu0 0.0
    %10726 = vmatpush2.msra.mxu0 0.0
    %10727 = vmatprep.subr.mxu0 0.0
    %10728 = vmatpush2.msra.mxu0 0.0
    %10729 = vmatprep.subr.mxu0 0.0
    %10730 = vmatpush2.msra.mxu0 0.0
    %10731 = vmatprep.subr.mxu0 0.0
    %10732 = vmatpush2.msra.mxu0 0.0
    %10733 = vmatprep.subr.mxu0 0.0
    %10734 = vmatpush2.msra.mxu0 0.0
    %10735 = vmatprep.subr.mxu0 0.0
    %10736 = vmatpush2.msra.mxu0 0.0
    %10737 = vmatprep.mubr.f32.mxu0 0.0
    %10738 = vmatmul.mubr.f32.gmra.mxu0 %v10671
    %v10739 = vpop.f32.mrf.mxu0
    %v10740 = vadd.f32 0.0, %v10739
    %v10741 = vpop.f32.mrf.mxu0
    %10742 = vdwg.mxu0
    %10744 = vrot.lane.b32.xlu0 %v259, 96
    %v10745 = vpop.permute.xlu0 %10744
    %v10748 = vsel %vm275, %v9663, 0
    %10750 = vmatprep.subr.mxu0 0.0
    %10751 = vmatpush1.msra.mxu0 0.0
    %10752 = vmatprep.subr.mxu0 0.0
    %10753 = vmatpush1.msra.mxu0 0.0
    %10754 = vmatprep.subr.mxu0 0.0
    %10755 = vmatpush1.msra.mxu0 0.0
    %10756 = vmatprep.subr.mxu0 0.0
    %10757 = vmatpush1.msra.mxu0 0.0
    %10758 = vmatprep.subr.mxu0 0.0
    %10759 = vmatpush1.msra.mxu0 0.0
    %10760 = vmatprep.subr.mxu0 0.0
    %10761 = vmatpush1.msra.mxu0 0.0
    %10762 = vmatprep.subr.mxu0 0.0
    %10763 = vmatpush1.msra.mxu0 0.0
    %10764 = vmatprep.subr.mxu0 0.0
    %10765 = vmatpush1.msra.mxu0 0.0
    %10766 = vmatprep.subr.mxu0 0.0
    %10767 = vmatpush1.msra.mxu0 0.0
    %10768 = vmatprep.subr.mxu0 0.0
    %10769 = vmatpush1.msra.mxu0 0.0
    %10770 = vmatprep.subr.mxu0 0.0
    %10771 = vmatpush1.msra.mxu0 0.0
    %10772 = vmatprep.subr.mxu0 0.0
    %10773 = vmatpush1.msra.mxu0 0.0
    %10774 = vmatprep.subr.mxu0 0.0
    %10775 = vmatpush1.msra.mxu0 0.0
    %10776 = vmatprep.subr.mxu0 0.0
    %10777 = vmatpush1.msra.mxu0 0.0
    %10778 = vmatprep.subr.mxu0 0.0
    %10779 = vmatpush1.msra.mxu0 0.0
    %10780 = vmatprep.subr.mxu0 0.0
    %10781 = vmatpush1.msra.mxu0 %v10745
    %10782 = vmatprep.subr.mxu0 0.0
    %10783 = vmatpush2.msra.mxu0 0.0
    %10784 = vmatprep.subr.mxu0 0.0
    %10785 = vmatpush2.msra.mxu0 0.0
    %10786 = vmatprep.subr.mxu0 0.0
    %10787 = vmatpush2.msra.mxu0 0.0
    %10788 = vmatprep.subr.mxu0 0.0
    %10789 = vmatpush2.msra.mxu0 0.0
    %10790 = vmatprep.subr.mxu0 0.0
    %10791 = vmatpush2.msra.mxu0 0.0
    %10792 = vmatprep.subr.mxu0 0.0
    %10793 = vmatpush2.msra.mxu0 0.0
    %10794 = vmatprep.subr.mxu0 0.0
    %10795 = vmatpush2.msra.mxu0 0.0
    %10796 = vmatprep.subr.mxu0 0.0
    %10797 = vmatpush2.msra.mxu0 0.0
    %10798 = vmatprep.subr.mxu0 0.0
    %10799 = vmatpush2.msra.mxu0 0.0
    %10800 = vmatprep.subr.mxu0 0.0
    %10801 = vmatpush2.msra.mxu0 0.0
    %10802 = vmatprep.subr.mxu0 0.0
    %10803 = vmatpush2.msra.mxu0 0.0
    %10804 = vmatprep.subr.mxu0 0.0
    %10805 = vmatpush2.msra.mxu0 0.0
    %10806 = vmatprep.subr.mxu0 0.0
    %10807 = vmatpush2.msra.mxu0 0.0
    %10808 = vmatprep.subr.mxu0 0.0
    %10809 = vmatpush2.msra.mxu0 0.0
    %10810 = vmatprep.subr.mxu0 0.0
    %10811 = vmatpush2.msra.mxu0 0.0
    %10812 = vmatprep.subr.mxu0 0.0
    %10813 = vmatpush2.msra.mxu0 0.0
    %10814 = vmatprep.mubr.f32.mxu0 0.0
    %10815 = vmatmul.mubr.f32.gmra.mxu0 %v10748
    %v10816 = vpop.f32.mrf.mxu0
    %v10817 = vadd.f32 0.0, %v10816
    %v10818 = vpop.f32.mrf.mxu0
    %10819 = vdwg.mxu0
    %10821 = vrot.lane.b32.xlu0 %v263, 96
    %v10822 = vpop.permute.xlu0 %10821
    %v10825 = vsel %vm275, %v9664, 0
    %10827 = vmatprep.subr.mxu0 0.0
    %10828 = vmatpush1.msra.mxu0 0.0
    %10829 = vmatprep.subr.mxu0 0.0
    %10830 = vmatpush1.msra.mxu0 0.0
    %10831 = vmatprep.subr.mxu0 0.0
    %10832 = vmatpush1.msra.mxu0 0.0
    %10833 = vmatprep.subr.mxu0 0.0
    %10834 = vmatpush1.msra.mxu0 0.0
    %10835 = vmatprep.subr.mxu0 0.0
    %10836 = vmatpush1.msra.mxu0 0.0
    %10837 = vmatprep.subr.mxu0 0.0
    %10838 = vmatpush1.msra.mxu0 0.0
    %10839 = vmatprep.subr.mxu0 0.0
    %10840 = vmatpush1.msra.mxu0 0.0
    %10841 = vmatprep.subr.mxu0 0.0
    %10842 = vmatpush1.msra.mxu0 0.0
    %10843 = vmatprep.subr.mxu0 0.0
    %10844 = vmatpush1.msra.mxu0 0.0
    %10845 = vmatprep.subr.mxu0 0.0
    %10846 = vmatpush1.msra.mxu0 0.0
    %10847 = vmatprep.subr.mxu0 0.0
    %10848 = vmatpush1.msra.mxu0 0.0
    %10849 = vmatprep.subr.mxu0 0.0
    %10850 = vmatpush1.msra.mxu0 0.0
    %10851 = vmatprep.subr.mxu0 0.0
    %10852 = vmatpush1.msra.mxu0 0.0
    %10853 = vmatprep.subr.mxu0 0.0
    %10854 = vmatpush1.msra.mxu0 0.0
    %10855 = vmatprep.subr.mxu0 0.0
    %10856 = vmatpush1.msra.mxu0 0.0
    %10857 = vmatprep.subr.mxu0 0.0
    %10858 = vmatpush1.msra.mxu0 %v10822
    %10859 = vmatprep.subr.mxu0 0.0
    %10860 = vmatpush2.msra.mxu0 0.0
    %10861 = vmatprep.subr.mxu0 0.0
    %10862 = vmatpush2.msra.mxu0 0.0
    %10863 = vmatprep.subr.mxu0 0.0
    %10864 = vmatpush2.msra.mxu0 0.0
    %10865 = vmatprep.subr.mxu0 0.0
    %10866 = vmatpush2.msra.mxu0 0.0
    %10867 = vmatprep.subr.mxu0 0.0
    %10868 = vmatpush2.msra.mxu0 0.0
    %10869 = vmatprep.subr.mxu0 0.0
    %10870 = vmatpush2.msra.mxu0 0.0
    %10871 = vmatprep.subr.mxu0 0.0
    %10872 = vmatpush2.msra.mxu0 0.0
    %10873 = vmatprep.subr.mxu0 0.0
    %10874 = vmatpush2.msra.mxu0 0.0
    %10875 = vmatprep.subr.mxu0 0.0
    %10876 = vmatpush2.msra.mxu0 0.0
    %10877 = vmatprep.subr.mxu0 0.0
    %10878 = vmatpush2.msra.mxu0 0.0
    %10879 = vmatprep.subr.mxu0 0.0
    %10880 = vmatpush2.msra.mxu0 0.0
    %10881 = vmatprep.subr.mxu0 0.0
    %10882 = vmatpush2.msra.mxu0 0.0
    %10883 = vmatprep.subr.mxu0 0.0
    %10884 = vmatpush2.msra.mxu0 0.0
    %10885 = vmatprep.subr.mxu0 0.0
    %10886 = vmatpush2.msra.mxu0 0.0
    %10887 = vmatprep.subr.mxu0 0.0
    %10888 = vmatpush2.msra.mxu0 0.0
    %10889 = vmatprep.subr.mxu0 0.0
    %10890 = vmatpush2.msra.mxu0 0.0
    %10891 = vmatprep.mubr.f32.mxu0 0.0
    %10892 = vmatmul.mubr.f32.gmra.mxu0 %v10825
    %v10893 = vpop.f32.mrf.mxu0
    %v10894 = vadd.f32 0.0, %v10893
    %v10895 = vpop.f32.mrf.mxu0
    %10896 = vdwg.mxu0
    %v10897 = vadd.f32 %v8209, %v9739
    %v10898 = vadd.f32 %v8210, %v9816
    %v10899 = vadd.f32 %v8211, %v9893
    %v10900 = vadd.f32 %v8212, %v9970
    %v10901 = vadd.f32 %v8213, %v10047
    %v10902 = vadd.f32 %v8214, %v10124
    %v10903 = vadd.f32 %v8215, %v10201
    %v10904 = vadd.f32 %v8216, %v10278
    %v10905 = vadd.f32 %v8217, %v10355
    %v10906 = vadd.f32 %v8218, %v10432
    %v10907 = vadd.f32 %v8219, %v10509
    %v10908 = vadd.f32 %v8220, %v10586
    %v10909 = vadd.f32 %v8221, %v10663
    %v10910 = vadd.f32 %v8222, %v10740
    %v10911 = vadd.f32 %v8223, %v10817
    %v10912 = vadd.f32 %v8224, %v10894
    %v10913 = vpack.c.bf16 %v10898, %v10897
    %v10914 = vpack.c.bf16 %v10900, %v10899
    %v10915 = vpack.c.bf16 %v10902, %v10901
    %v10916 = vpack.c.bf16 %v10904, %v10903
    %v10917 = vpack.c.bf16 %v10906, %v10905
    %v10918 = vpack.c.bf16 %v10908, %v10907
    %v10919 = vpack.c.bf16 %v10910, %v10909
    %v10920 = vpack.c.bf16 %v10912, %v10911
    %v10922 = vlaneseq
    %v10923 = vshrl.u32 %v10922, 7
    %v10924 = vsub.s32 0, %v10923
    %v10925 = vrot.slane %v38, %v10924
    %v10931 = vunpack.c.l.b16 %v34
    %v10932 = vunpack.c.l.b16 %v35
    %v10933 = vunpack.c.l.b16 %v36
    %v10934 = vunpack.c.l.b16 %v37
    %v10935 = vpack.c.b16 %v10932, %v10931
    %v10936 = vpack.c.b16 %v10934, %v10933
    %v10940 = vsel %vm127, %v10913, 0
    %v10943 = vsel %vm127, %v10914, 0
    %v10946 = vsel %vm127, %v10915, 0
    %v10949 = vsel %vm127, %v10916, 0
    %v10952 = vsel %vm127, %v10917, 0
    %v10955 = vsel %vm127, %v10918, 0
    %v10958 = vsel %vm127, %v10919, 0
    %v10961 = vsel %vm127, %v10920, 0
    %10963 = vmatprep.subr.bf16.mxu0 0
    %10964 = vmatpush1.bf16.msra.mxu0 0
    %10965 = vmatprep.subr.bf16.mxu0 0
    %10966 = vmatpush1.bf16.msra.mxu0 0
    %10967 = vmatprep.subr.bf16.mxu0 0
    %10968 = vmatpush1.bf16.msra.mxu0 0
    %10969 = vmatprep.subr.bf16.mxu0 0
    %10970 = vmatpush1.bf16.msra.mxu0 0
    %10971 = vmatprep.subr.bf16.mxu0 0
    %10972 = vmatpush1.bf16.msra.mxu0 0
    %10973 = vmatprep.subr.bf16.mxu0 0
    %10974 = vmatpush1.bf16.msra.mxu0 0
    %10975 = vmatprep.subr.bf16.mxu0 0
    %10976 = vmatpush1.bf16.msra.mxu0 %v10936
    %10977 = vmatprep.subr.bf16.mxu0 0
    %10978 = vmatpush1.bf16.msra.mxu0 %v10935
    %10979 = vmatprep.subr.bf16.mxu0 0
    %10980 = vmatpush2.bf16.msra.mxu0 0
    %10981 = vmatprep.subr.bf16.mxu0 0
    %10982 = vmatpush2.bf16.msra.mxu0 0
    %10983 = vmatprep.subr.bf16.mxu0 0
    %10984 = vmatpush2.bf16.msra.mxu0 0
    %10985 = vmatprep.subr.bf16.mxu0 0
    %10986 = vmatpush2.bf16.msra.mxu0 0
    %10987 = vmatprep.subr.bf16.mxu0 0
    %10988 = vmatpush2.bf16.msra.mxu0 0
    %10989 = vmatprep.subr.bf16.mxu0 0
    %10990 = vmatpush2.bf16.msra.mxu0 0
    %10991 = vmatprep.subr.bf16.mxu0 0
    %10992 = vmatpush2.bf16.msra.mxu0 0
    %10993 = vmatprep.subr.bf16.mxu0 0
    %10994 = vmatpush2.bf16.msra.mxu0 0
    %10995 = vmatprep.mubr.bf16.mxu0 0
    %10996 = vmatmul.mubr.bf16.gmra.mxu0 %v10940
    %v10997 = vpop.f32.mrf.mxu0
    %v10998 = vadd.f32 %v10925, %v10997
    %v10999 = vpop.f32.mrf.mxu0
    %v11000 = vpop.f32.mrf.mxu0
    %v11001 = vadd.f32 %v10925, %v11000
    %v11002 = vpop.f32.mrf.mxu0
    %11003 = vmatprep.mubr.bf16.mxu0 0
    %11004 = vmatmul.mubr.bf16.gmra.mxu0 %v10943
    %v11005 = vpop.f32.mrf.mxu0
    %v11006 = vadd.f32 %v10925, %v11005
    %v11007 = vpop.f32.mrf.mxu0
    %v11008 = vpop.f32.mrf.mxu0
    %v11009 = vadd.f32 %v10925, %v11008
    %v11010 = vpop.f32.mrf.mxu0
    %11011 = vmatprep.mubr.bf16.mxu0 0
    %11012 = vmatmul.mubr.bf16.gmra.mxu0 %v10946
    %v11013 = vpop.f32.mrf.mxu0
    %v11014 = vadd.f32 %v10925, %v11013
    %v11015 = vpop.f32.mrf.mxu0
    %v11016 = vpop.f32.mrf.mxu0
    %v11017 = vadd.f32 %v10925, %v11016
    %v11018 = vpop.f32.mrf.mxu0
    %11019 = vmatprep.mubr.bf16.mxu0 0
    %11020 = vmatmul.mubr.bf16.gmra.mxu0 %v10949
    %v11021 = vpop.f32.mrf.mxu0
    %v11022 = vadd.f32 %v10925, %v11021
    %v11023 = vpop.f32.mrf.mxu0
    %v11024 = vpop.f32.mrf.mxu0
    %v11025 = vadd.f32 %v10925, %v11024
    %v11026 = vpop.f32.mrf.mxu0
    %11027 = vmatprep.mubr.bf16.mxu0 0
    %11028 = vmatmul.mubr.bf16.gmra.mxu0 %v10952
    %v11029 = vpop.f32.mrf.mxu0
    %v11030 = vadd.f32 %v10925, %v11029
    %v11031 = vpop.f32.mrf.mxu0
    %v11032 = vpop.f32.mrf.mxu0
    %v11033 = vadd.f32 %v10925, %v11032
    %v11034 = vpop.f32.mrf.mxu0
    %11035 = vmatprep.mubr.bf16.mxu0 0
    %11036 = vmatmul.mubr.bf16.gmra.mxu0 %v10955
    %v11037 = vpop.f32.mrf.mxu0
    %v11038 = vadd.f32 %v10925, %v11037
    %v11039 = vpop.f32.mrf.mxu0
    %v11040 = vpop.f32.mrf.mxu0
    %v11041 = vadd.f32 %v10925, %v11040
    %v11042 = vpop.f32.mrf.mxu0
    %11043 = vmatprep.mubr.bf16.mxu0 0
    %11044 = vmatmul.mubr.bf16.gmra.mxu0 %v10958
    %v11045 = vpop.f32.mrf.mxu0
    %v11046 = vadd.f32 %v10925, %v11045
    %v11047 = vpop.f32.mrf.mxu0
    %v11048 = vpop.f32.mrf.mxu0
    %v11049 = vadd.f32 %v10925, %v11048
    %v11050 = vpop.f32.mrf.mxu0
    %11051 = vmatprep.mubr.bf16.mxu0 0
    %11052 = vmatmul.mubr.bf16.gmra.mxu0 %v10961
    %v11053 = vpop.f32.mrf.mxu0
    %v11054 = vadd.f32 %v10925, %v11053
    %v11055 = vpop.f32.mrf.mxu0
    %v11056 = vpop.f32.mrf.mxu0
    %v11057 = vadd.f32 %v10925, %v11056
    %v11058 = vpop.f32.mrf.mxu0
    %11059 = vdwg.mxu0
    %v11060 = vtanh.pop %v10998
    %v11061 = vtanh.pop %v11001
    %v11062 = vtanh.pop %v11006
    %v11063 = vtanh.pop %v11009
    %v11064 = vtanh.pop %v11014
    %v11065 = vtanh.pop %v11017
    %v11066 = vtanh.pop %v11022
    %v11067 = vtanh.pop %v11025
    %v11068 = vtanh.pop %v11030
    %v11069 = vtanh.pop %v11033
    %v11070 = vtanh.pop %v11038
    %v11071 = vtanh.pop %v11041
    %v11072 = vtanh.pop %v11046
    %v11073 = vtanh.pop %v11049
    %v11074 = vtanh.pop %v11054
    %v11075 = vtanh.pop %v11057
    %v11077 = vlaneseq
    %v11078 = vshrl.u32 %v11077, 7
    %v11079 = vsub.s32 0, %v11078
    %v11080 = vrot.slane %v39, %v11079
    %v11082 = vmul.f32 %v11060, %v11080
    %v11083 = vmul.f32 %v11061, %v11080
    %v11084 = vmul.f32 %v11062, %v11080
    %v11085 = vmul.f32 %v11063, %v11080
    %v11086 = vmul.f32 %v11064, %v11080
    %v11087 = vmul.f32 %v11065, %v11080
    %v11088 = vmul.f32 %v11066, %v11080
    %v11089 = vmul.f32 %v11067, %v11080
    %v11090 = vmul.f32 %v11068, %v11080
    %v11091 = vmul.f32 %v11069, %v11080
    %v11092 = vmul.f32 %v11070, %v11080
    %v11093 = vmul.f32 %v11071, %v11080
    %v11094 = vmul.f32 %v11072, %v11080
    %v11095 = vmul.f32 %v11073, %v11080
    %v11096 = vmul.f32 %v11074, %v11080
    %v11097 = vmul.f32 %v11075, %v11080
    %vm11098 = vcmask 130048
    %v11099 = vsel %vm11098, %v11082, 0.0
    %11100 = vadd.xlane.f32.xlu0 %v11099
    %v11101 = vpop.xlane.xlu0 %11100
    %v11102 = vsel %vm11098, %v11083, 0.0
    %11103 = vadd.xlane.f32.xlu0 %v11102
    %v11104 = vpop.xlane.xlu0 %11103
    %v11105 = vsel %vm11098, %v11084, 0.0
    %11106 = vadd.xlane.f32.xlu0 %v11105
    %v11107 = vpop.xlane.xlu0 %11106
    %v11108 = vsel %vm11098, %v11085, 0.0
    %11109 = vadd.xlane.f32.xlu0 %v11108
    %v11110 = vpop.xlane.xlu0 %11109
    %v11111 = vsel %vm11098, %v11086, 0.0
    %11112 = vadd.xlane.f32.xlu0 %v11111
    %v11113 = vpop.xlane.xlu0 %11112
    %v11114 = vsel %vm11098, %v11087, 0.0
    %11115 = vadd.xlane.f32.xlu0 %v11114
    %v11116 = vpop.xlane.xlu0 %11115
    %v11117 = vsel %vm11098, %v11088, 0.0
    %11118 = vadd.xlane.f32.xlu0 %v11117
    %v11119 = vpop.xlane.xlu0 %11118
    %v11120 = vsel %vm11098, %v11089, 0.0
    %11121 = vadd.xlane.f32.xlu0 %v11120
    %v11122 = vpop.xlane.xlu0 %11121
    %v11123 = vsel %vm11098, %v11090, 0.0
    %11124 = vadd.xlane.f32.xlu0 %v11123
    %v11125 = vpop.xlane.xlu0 %11124
    %v11126 = vsel %vm11098, %v11091, 0.0
    %11127 = vadd.xlane.f32.xlu0 %v11126
    %v11128 = vpop.xlane.xlu0 %11127
    %v11129 = vsel %vm11098, %v11092, 0.0
    %11130 = vadd.xlane.f32.xlu0 %v11129
    %v11131 = vpop.xlane.xlu0 %11130
    %v11132 = vsel %vm11098, %v11093, 0.0
    %11133 = vadd.xlane.f32.xlu0 %v11132
    %v11134 = vpop.xlane.xlu0 %11133
    %v11135 = vsel %vm11098, %v11094, 0.0
    %11136 = vadd.xlane.f32.xlu0 %v11135
    %v11137 = vpop.xlane.xlu0 %11136
    %v11138 = vsel %vm11098, %v11095, 0.0
    %11139 = vadd.xlane.f32.xlu0 %v11138
    %v11140 = vpop.xlane.xlu0 %11139
    %v11141 = vsel %vm11098, %v11096, 0.0
    %11142 = vadd.xlane.f32.xlu0 %v11141
    %v11143 = vpop.xlane.xlu0 %11142
    %v11144 = vsel %vm11098, %v11097, 0.0
    %11145 = vadd.xlane.f32.xlu0 %v11144
    %v11146 = vpop.xlane.xlu0 %11145
    %v11163 = vlaneseq
    %v11164 = vand.u32 %v11163, 127
    %v11165 = vlaneseq
    %v11166 = vshrl.u32 %v11165, 7
    %v11167 = vsub.s32 %v11164, %v11166
    %v11168 = vrot.slane %v11101, %v11167
    %v11169 = vlaneseq
    %v11170 = vshrl.u32 %v11169, 7
    %v11171 = vsub.s32 %v11164, %v11170
    %v11172 = vrot.slane %v11104, %v11171
    %v11173 = vlaneseq
    %v11174 = vshrl.u32 %v11173, 7
    %v11175 = vsub.s32 %v11164, %v11174
    %v11176 = vrot.slane %v11107, %v11175
    %v11177 = vlaneseq
    %v11178 = vshrl.u32 %v11177, 7
    %v11179 = vsub.s32 %v11164, %v11178
    %v11180 = vrot.slane %v11110, %v11179
    %v11181 = vlaneseq
    %v11182 = vshrl.u32 %v11181, 7
    %v11183 = vsub.s32 %v11164, %v11182
    %v11184 = vrot.slane %v11113, %v11183
    %v11185 = vlaneseq
    %v11186 = vshrl.u32 %v11185, 7
    %v11187 = vsub.s32 %v11164, %v11186
    %v11188 = vrot.slane %v11116, %v11187
    %v11189 = vlaneseq
    %v11190 = vshrl.u32 %v11189, 7
    %v11191 = vsub.s32 %v11164, %v11190
    %v11192 = vrot.slane %v11119, %v11191
    %v11193 = vlaneseq
    %v11194 = vshrl.u32 %v11193, 7
    %v11195 = vsub.s32 %v11164, %v11194
    %v11196 = vrot.slane %v11122, %v11195
    %v11197 = vlaneseq
    %v11198 = vshrl.u32 %v11197, 7
    %v11199 = vsub.s32 %v11164, %v11198
    %v11200 = vrot.slane %v11125, %v11199
    %v11201 = vlaneseq
    %v11202 = vshrl.u32 %v11201, 7
    %v11203 = vsub.s32 %v11164, %v11202
    %v11204 = vrot.slane %v11128, %v11203
    %v11205 = vlaneseq
    %v11206 = vshrl.u32 %v11205, 7
    %v11207 = vsub.s32 %v11164, %v11206
    %v11208 = vrot.slane %v11131, %v11207
    %v11209 = vlaneseq
    %v11210 = vshrl.u32 %v11209, 7
    %v11211 = vsub.s32 %v11164, %v11210
    %v11212 = vrot.slane %v11134, %v11211
    %v11213 = vlaneseq
    %v11214 = vshrl.u32 %v11213, 7
    %v11215 = vsub.s32 %v11164, %v11214
    %v11216 = vrot.slane %v11137, %v11215
    %v11217 = vlaneseq
    %v11218 = vshrl.u32 %v11217, 7
    %v11219 = vsub.s32 %v11164, %v11218
    %v11220 = vrot.slane %v11140, %v11219
    %v11221 = vlaneseq
    %v11222 = vshrl.u32 %v11221, 7
    %v11223 = vsub.s32 %v11164, %v11222
    %v11224 = vrot.slane %v11143, %v11223
    %v11225 = vlaneseq
    %v11226 = vshrl.u32 %v11225, 7
    %v11227 = vsub.s32 %v11164, %v11226
    %v11228 = vrot.slane %v11146, %v11227
    %vm11229 = vcmask 1041409
    %v11230 = vsel %vm11229, %v11172, %v11168
    %vm11231 = vcmask 1042434
    %v11232 = vsel %vm11231, %v11176, %v11230
    %vm11233 = vcmask 1043459
    %v11234 = vsel %vm11233, %v11180, %v11232
    %vm11235 = vcmask 1044484
    %v11236 = vsel %vm11235, %v11184, %v11234
    %vm11237 = vcmask 1045509
    %v11238 = vsel %vm11237, %v11188, %v11236
    %vm11239 = vcmask 1046534
    %v11240 = vsel %vm11239, %v11192, %v11238
    %vm11241 = vcmask 1047559
    %v11242 = vsel %vm11241, %v11196, %v11240
    %v11243 = vsel %vm11229, %v11204, %v11200
    %v11244 = vsel %vm11231, %v11208, %v11243
    %v11245 = vsel %vm11233, %v11212, %v11244
    %v11246 = vsel %vm11235, %v11216, %v11245
    %v11247 = vsel %vm11237, %v11220, %v11246
    %v11248 = vsel %vm11239, %v11224, %v11247
    %v11249 = vsel %vm11241, %v11228, %v11248
    %v11252 = vsel %vm275, %v11242, -inf
    %11253 = vmax.xlane.f32.xlu0 %v11252
    %v11254 = vpop.xlane.xlu0 %11253
    %v11255 = vsel %vm275, %v11249, -inf
    %11256 = vmax.xlane.f32.xlu0 %v11255
    %v11257 = vpop.xlane.xlu0 %11256
    %v11260 = vlaneseq
    %v11261 = vshrl.u32 %v11260, 7
    %v11262 = vsub.s32 0, %v11261
    %v11263 = vrot.slane %v11254, %v11262
    %v11264 = vlaneseq
    %v11265 = vshrl.u32 %v11264, 7
    %v11266 = vsub.s32 1, %v11265
    %v11267 = vrot.slane %v11254, %v11266
    %v11268 = vlaneseq
    %v11269 = vshrl.u32 %v11268, 7
    %v11270 = vsub.s32 2, %v11269
    %v11271 = vrot.slane %v11254, %v11270
    %v11272 = vlaneseq
    %v11273 = vshrl.u32 %v11272, 7
    %v11274 = vsub.s32 3, %v11273
    %v11275 = vrot.slane %v11254, %v11274
    %v11276 = vlaneseq
    %v11277 = vshrl.u32 %v11276, 7
    %v11278 = vsub.s32 4, %v11277
    %v11279 = vrot.slane %v11254, %v11278
    %v11280 = vlaneseq
    %v11281 = vshrl.u32 %v11280, 7
    %v11282 = vsub.s32 5, %v11281
    %v11283 = vrot.slane %v11254, %v11282
    %v11284 = vlaneseq
    %v11285 = vshrl.u32 %v11284, 7
    %v11286 = vsub.s32 6, %v11285
    %v11287 = vrot.slane %v11254, %v11286
    %v11288 = vlaneseq
    %v11289 = vshrl.u32 %v11288, 7
    %v11290 = vsub.s32 7, %v11289
    %v11291 = vrot.slane %v11254, %v11290
    %v11292 = vlaneseq
    %v11293 = vshrl.u32 %v11292, 7
    %v11294 = vsub.s32 0, %v11293
    %v11295 = vrot.slane %v11257, %v11294
    %v11296 = vlaneseq
    %v11297 = vshrl.u32 %v11296, 7
    %v11298 = vsub.s32 1, %v11297
    %v11299 = vrot.slane %v11257, %v11298
    %v11300 = vlaneseq
    %v11301 = vshrl.u32 %v11300, 7
    %v11302 = vsub.s32 2, %v11301
    %v11303 = vrot.slane %v11257, %v11302
    %v11304 = vlaneseq
    %v11305 = vshrl.u32 %v11304, 7
    %v11306 = vsub.s32 3, %v11305
    %v11307 = vrot.slane %v11257, %v11306
    %v11308 = vlaneseq
    %v11309 = vshrl.u32 %v11308, 7
    %v11310 = vsub.s32 4, %v11309
    %v11311 = vrot.slane %v11257, %v11310
    %v11312 = vlaneseq
    %v11313 = vshrl.u32 %v11312, 7
    %v11314 = vsub.s32 5, %v11313
    %v11315 = vrot.slane %v11257, %v11314
    %v11316 = vlaneseq
    %v11317 = vshrl.u32 %v11316, 7
    %v11318 = vsub.s32 6, %v11317
    %v11319 = vrot.slane %v11257, %v11318
    %v11320 = vlaneseq
    %v11321 = vshrl.u32 %v11320, 7
    %v11322 = vsub.s32 7, %v11321
    %v11323 = vrot.slane %v11257, %v11322
    %v11340 = vsub.f32 %v11101, %v11263
    %v11341 = vsub.f32 %v11104, %v11267
    %v11342 = vsub.f32 %v11107, %v11271
    %v11343 = vsub.f32 %v11110, %v11275
    %v11344 = vsub.f32 %v11113, %v11279
    %v11345 = vsub.f32 %v11116, %v11283
    %v11346 = vsub.f32 %v11119, %v11287
    %v11347 = vsub.f32 %v11122, %v11291
    %v11348 = vsub.f32 %v11125, %v11295
    %v11349 = vsub.f32 %v11128, %v11299
    %v11350 = vsub.f32 %v11131, %v11303
    %v11351 = vsub.f32 %v11134, %v11307
    %v11352 = vsub.f32 %v11137, %v11311
    %v11353 = vsub.f32 %v11140, %v11315
    %v11354 = vsub.f32 %v11143, %v11319
    %v11355 = vsub.f32 %v11146, %v11323
    %v11356 = vmul.f32 %v11340, 1.442695
    %v11357 = vpow.pop %v11356
    %v11358 = vmul.f32 %v11341, 1.442695
    %v11359 = vpow.pop %v11358
    %v11360 = vmul.f32 %v11342, 1.442695
    %v11361 = vpow.pop %v11360
    %v11362 = vmul.f32 %v11343, 1.442695
    %v11363 = vpow.pop %v11362
    %v11364 = vmul.f32 %v11344, 1.442695
    %v11365 = vpow.pop %v11364
    %v11366 = vmul.f32 %v11345, 1.442695
    %v11367 = vpow.pop %v11366
    %v11368 = vmul.f32 %v11346, 1.442695
    %v11369 = vpow.pop %v11368
    %v11370 = vmul.f32 %v11347, 1.442695
    %v11371 = vpow.pop %v11370
    %v11372 = vmul.f32 %v11348, 1.442695
    %v11373 = vpow.pop %v11372
    %v11374 = vmul.f32 %v11349, 1.442695
    %v11375 = vpow.pop %v11374
    %v11376 = vmul.f32 %v11350, 1.442695
    %v11377 = vpow.pop %v11376
    %v11378 = vmul.f32 %v11351, 1.442695
    %v11379 = vpow.pop %v11378
    %v11380 = vmul.f32 %v11352, 1.442695
    %v11381 = vpow.pop %v11380
    %v11382 = vmul.f32 %v11353, 1.442695
    %v11383 = vpow.pop %v11382
    %v11384 = vmul.f32 %v11354, 1.442695
    %v11385 = vpow.pop %v11384
    %v11386 = vmul.f32 %v11355, 1.442695
    %v11387 = vpow.pop %v11386
    %11404 = vset.pattern.permute.xlu0 0
    %11405 = vperm.xlu0 %11404, %v11357
    %v11406 = vpop.permute.xlu0 %11405
    %11407 = vset.pattern.permute.xlu0 0
    %11408 = vperm.xlu0 %11407, %v11359
    %v11409 = vpop.permute.xlu0 %11408
    %11410 = vset.pattern.permute.xlu0 0
    %11411 = vperm.xlu0 %11410, %v11361
    %v11412 = vpop.permute.xlu0 %11411
    %11413 = vset.pattern.permute.xlu0 0
    %11414 = vperm.xlu0 %11413, %v11363
    %v11415 = vpop.permute.xlu0 %11414
    %11416 = vset.pattern.permute.xlu0 0
    %11417 = vperm.xlu0 %11416, %v11365
    %v11418 = vpop.permute.xlu0 %11417
    %11419 = vset.pattern.permute.xlu0 0
    %11420 = vperm.xlu0 %11419, %v11367
    %v11421 = vpop.permute.xlu0 %11420
    %11422 = vset.pattern.permute.xlu0 0
    %11423 = vperm.xlu0 %11422, %v11369
    %v11424 = vpop.permute.xlu0 %11423
    %11425 = vset.pattern.permute.xlu0 0
    %11426 = vperm.xlu0 %11425, %v11371
    %v11427 = vpop.permute.xlu0 %11426
    %11428 = vset.pattern.permute.xlu0 0
    %11429 = vperm.xlu0 %11428, %v11373
    %v11430 = vpop.permute.xlu0 %11429
    %11431 = vset.pattern.permute.xlu0 0
    %11432 = vperm.xlu0 %11431, %v11375
    %v11433 = vpop.permute.xlu0 %11432
    %11434 = vset.pattern.permute.xlu0 0
    %11435 = vperm.xlu0 %11434, %v11377
    %v11436 = vpop.permute.xlu0 %11435
    %11437 = vset.pattern.permute.xlu0 0
    %11438 = vperm.xlu0 %11437, %v11379
    %v11439 = vpop.permute.xlu0 %11438
    %11440 = vset.pattern.permute.xlu0 0
    %11441 = vperm.xlu0 %11440, %v11381
    %v11442 = vpop.permute.xlu0 %11441
    %11443 = vset.pattern.permute.xlu0 0
    %11444 = vperm.xlu0 %11443, %v11383
    %v11445 = vpop.permute.xlu0 %11444
    %11446 = vset.pattern.permute.xlu0 0
    %11447 = vperm.xlu0 %11446, %v11385
    %v11448 = vpop.permute.xlu0 %11447
    %11449 = vset.pattern.permute.xlu0 0
    %11450 = vperm.xlu0 %11449, %v11387
    %v11451 = vpop.permute.xlu0 %11450
    %v11452 = vlaneseq
    %v11453 = vshrl.u32 %v11452, 7
    %v11454 = vsub.s32 %v11164, %v11453
    %v11455 = vrot.slane %v11406, %v11454
    %v11456 = vlaneseq
    %v11457 = vshrl.u32 %v11456, 7
    %v11458 = vsub.s32 %v11164, %v11457
    %v11459 = vrot.slane %v11409, %v11458
    %v11460 = vlaneseq
    %v11461 = vshrl.u32 %v11460, 7
    %v11462 = vsub.s32 %v11164, %v11461
    %v11463 = vrot.slane %v11412, %v11462
    %v11464 = vlaneseq
    %v11465 = vshrl.u32 %v11464, 7
    %v11466 = vsub.s32 %v11164, %v11465
    %v11467 = vrot.slane %v11415, %v11466
    %v11468 = vlaneseq
    %v11469 = vshrl.u32 %v11468, 7
    %v11470 = vsub.s32 %v11164, %v11469
    %v11471 = vrot.slane %v11418, %v11470
    %v11472 = vlaneseq
    %v11473 = vshrl.u32 %v11472, 7
    %v11474 = vsub.s32 %v11164, %v11473
    %v11475 = vrot.slane %v11421, %v11474
    %v11476 = vlaneseq
    %v11477 = vshrl.u32 %v11476, 7
    %v11478 = vsub.s32 %v11164, %v11477
    %v11479 = vrot.slane %v11424, %v11478
    %v11480 = vlaneseq
    %v11481 = vshrl.u32 %v11480, 7
    %v11482 = vsub.s32 %v11164, %v11481
    %v11483 = vrot.slane %v11427, %v11482
    %v11484 = vlaneseq
    %v11485 = vshrl.u32 %v11484, 7
    %v11486 = vsub.s32 %v11164, %v11485
    %v11487 = vrot.slane %v11430, %v11486
    %v11488 = vlaneseq
    %v11489 = vshrl.u32 %v11488, 7
    %v11490 = vsub.s32 %v11164, %v11489
    %v11491 = vrot.slane %v11433, %v11490
    %v11492 = vlaneseq
    %v11493 = vshrl.u32 %v11492, 7
    %v11494 = vsub.s32 %v11164, %v11493
    %v11495 = vrot.slane %v11436, %v11494
    %v11496 = vlaneseq
    %v11497 = vshrl.u32 %v11496, 7
    %v11498 = vsub.s32 %v11164, %v11497
    %v11499 = vrot.slane %v11439, %v11498
    %v11500 = vlaneseq
    %v11501 = vshrl.u32 %v11500, 7
    %v11502 = vsub.s32 %v11164, %v11501
    %v11503 = vrot.slane %v11442, %v11502
    %v11504 = vlaneseq
    %v11505 = vshrl.u32 %v11504, 7
    %v11506 = vsub.s32 %v11164, %v11505
    %v11507 = vrot.slane %v11445, %v11506
    %v11508 = vlaneseq
    %v11509 = vshrl.u32 %v11508, 7
    %v11510 = vsub.s32 %v11164, %v11509
    %v11511 = vrot.slane %v11448, %v11510
    %v11512 = vlaneseq
    %v11513 = vshrl.u32 %v11512, 7
    %v11514 = vsub.s32 %v11164, %v11513
    %v11515 = vrot.slane %v11451, %v11514
    %v11516 = vsel %vm11229, %v11459, %v11455
    %v11517 = vsel %vm11231, %v11463, %v11516
    %v11518 = vsel %vm11233, %v11467, %v11517
    %v11519 = vsel %vm11235, %v11471, %v11518
    %v11520 = vsel %vm11237, %v11475, %v11519
    %v11521 = vsel %vm11239, %v11479, %v11520
    %v11522 = vsel %vm11241, %v11483, %v11521
    %v11523 = vsel %vm11229, %v11491, %v11487
    %v11524 = vsel %vm11231, %v11495, %v11523
    %v11525 = vsel %vm11233, %v11499, %v11524
    %v11526 = vsel %vm11235, %v11503, %v11525
    %v11527 = vsel %vm11237, %v11507, %v11526
    %v11528 = vsel %vm11239, %v11511, %v11527
    %v11529 = vsel %vm11241, %v11515, %v11528
    %v11532 = vsel %vm275, %v11522, 0.0
    %11533 = vadd.xlane.f32.xlu0 %v11532
    %v11534 = vpop.xlane.xlu0 %11533
    %v11535 = vsel %vm275, %v11529, 0.0
    %11536 = vadd.xlane.f32.xlu0 %v11535
    %v11537 = vpop.xlane.xlu0 %11536
    %v11538 = vrcp.pop %v11534
    %v11539 = vrcp.pop %v11537
    %v11542 = vlaneseq
    %v11543 = vshrl.u32 %v11542, 7
    %v11544 = vsub.s32 0, %v11543
    %v11545 = vrot.slane %v11538, %v11544
    %v11546 = vlaneseq
    %v11547 = vshrl.u32 %v11546, 7
    %v11548 = vsub.s32 1, %v11547
    %v11549 = vrot.slane %v11538, %v11548
    %v11550 = vlaneseq
    %v11551 = vshrl.u32 %v11550, 7
    %v11552 = vsub.s32 2, %v11551
    %v11553 = vrot.slane %v11538, %v11552
    %v11554 = vlaneseq
    %v11555 = vshrl.u32 %v11554, 7
    %v11556 = vsub.s32 3, %v11555
    %v11557 = vrot.slane %v11538, %v11556
    %v11558 = vlaneseq
    %v11559 = vshrl.u32 %v11558, 7
    %v11560 = vsub.s32 4, %v11559
    %v11561 = vrot.slane %v11538, %v11560
    %v11562 = vlaneseq
    %v11563 = vshrl.u32 %v11562, 7
    %v11564 = vsub.s32 5, %v11563
    %v11565 = vrot.slane %v11538, %v11564
    %v11566 = vlaneseq
    %v11567 = vshrl.u32 %v11566, 7
    %v11568 = vsub.s32 6, %v11567
    %v11569 = vrot.slane %v11538, %v11568
    %v11570 = vlaneseq
    %v11571 = vshrl.u32 %v11570, 7
    %v11572 = vsub.s32 7, %v11571
    %v11573 = vrot.slane %v11538, %v11572
    %v11574 = vlaneseq
    %v11575 = vshrl.u32 %v11574, 7
    %v11576 = vsub.s32 0, %v11575
    %v11577 = vrot.slane %v11539, %v11576
    %v11578 = vlaneseq
    %v11579 = vshrl.u32 %v11578, 7
    %v11580 = vsub.s32 1, %v11579
    %v11581 = vrot.slane %v11539, %v11580
    %v11582 = vlaneseq
    %v11583 = vshrl.u32 %v11582, 7
    %v11584 = vsub.s32 2, %v11583
    %v11585 = vrot.slane %v11539, %v11584
    %v11586 = vlaneseq
    %v11587 = vshrl.u32 %v11586, 7
    %v11588 = vsub.s32 3, %v11587
    %v11589 = vrot.slane %v11539, %v11588
    %v11590 = vlaneseq
    %v11591 = vshrl.u32 %v11590, 7
    %v11592 = vsub.s32 4, %v11591
    %v11593 = vrot.slane %v11539, %v11592
    %v11594 = vlaneseq
    %v11595 = vshrl.u32 %v11594, 7
    %v11596 = vsub.s32 5, %v11595
    %v11597 = vrot.slane %v11539, %v11596
    %v11598 = vlaneseq
    %v11599 = vshrl.u32 %v11598, 7
    %v11600 = vsub.s32 6, %v11599
    %v11601 = vrot.slane %v11539, %v11600
    %v11602 = vlaneseq
    %v11603 = vshrl.u32 %v11602, 7
    %v11604 = vsub.s32 7, %v11603
    %v11605 = vrot.slane %v11539, %v11604
    %v11622 = vmul.f32 %v11357, %v11545
    %v11623 = vmul.f32 %v11359, %v11549
    %v11624 = vmul.f32 %v11361, %v11553
    %v11625 = vmul.f32 %v11363, %v11557
    %v11626 = vmul.f32 %v11365, %v11561
    %v11627 = vmul.f32 %v11367, %v11565
    %v11628 = vmul.f32 %v11369, %v11569
    %v11629 = vmul.f32 %v11371, %v11573
    %v11630 = vmul.f32 %v11373, %v11577
    %v11631 = vmul.f32 %v11375, %v11581
    %v11632 = vmul.f32 %v11377, %v11585
    %v11633 = vmul.f32 %v11379, %v11589
    %v11634 = vmul.f32 %v11381, %v11593
    %v11635 = vmul.f32 %v11383, %v11597
    %v11636 = vmul.f32 %v11385, %v11601
    %v11637 = vmul.f32 %v11387, %v11605
    %11639 = vset.pattern.permute.xlu0 0
    %11640 = vperm.xlu0 %11639, %v11622
    %v11641 = vpop.permute.xlu0 %11640
    %11644 = vset.pattern.permute.xlu0 0
    %11645 = vperm.xlu0 %11644, %v11623
    %v11646 = vpop.permute.xlu0 %11645
    %11649 = vset.pattern.permute.xlu0 0
    %11650 = vperm.xlu0 %11649, %v11624
    %v11651 = vpop.permute.xlu0 %11650
    %11654 = vset.pattern.permute.xlu0 0
    %11655 = vperm.xlu0 %11654, %v11625
    %v11656 = vpop.permute.xlu0 %11655
    %11659 = vset.pattern.permute.xlu0 0
    %11660 = vperm.xlu0 %11659, %v11626
    %v11661 = vpop.permute.xlu0 %11660
    %11664 = vset.pattern.permute.xlu0 0
    %11665 = vperm.xlu0 %11664, %v11627
    %v11666 = vpop.permute.xlu0 %11665
    %11669 = vset.pattern.permute.xlu0 0
    %11670 = vperm.xlu0 %11669, %v11628
    %v11671 = vpop.permute.xlu0 %11670
    %11674 = vset.pattern.permute.xlu0 0
    %11675 = vperm.xlu0 %11674, %v11629
    %v11676 = vpop.permute.xlu0 %11675
    %11679 = vset.pattern.permute.xlu0 0
    %11680 = vperm.xlu0 %11679, %v11630
    %v11681 = vpop.permute.xlu0 %11680
    %11684 = vset.pattern.permute.xlu0 0
    %11685 = vperm.xlu0 %11684, %v11631
    %v11686 = vpop.permute.xlu0 %11685
    %11689 = vset.pattern.permute.xlu0 0
    %11690 = vperm.xlu0 %11689, %v11632
    %v11691 = vpop.permute.xlu0 %11690
    %11694 = vset.pattern.permute.xlu0 0
    %11695 = vperm.xlu0 %11694, %v11633
    %v11696 = vpop.permute.xlu0 %11695
    %11699 = vset.pattern.permute.xlu0 0
    %11700 = vperm.xlu0 %11699, %v11634
    %v11701 = vpop.permute.xlu0 %11700
    %11704 = vset.pattern.permute.xlu0 0
    %11705 = vperm.xlu0 %11704, %v11635
    %v11706 = vpop.permute.xlu0 %11705
    %11709 = vset.pattern.permute.xlu0 0
    %11710 = vperm.xlu0 %11709, %v11636
    %v11711 = vpop.permute.xlu0 %11710
    %11714 = vset.pattern.permute.xlu0 0
    %11715 = vperm.xlu0 %11714, %v11637
    %v11716 = vpop.permute.xlu0 %11715
    %v11718 = vmul.f32 %v11641, %v10897
    %v11719 = vmul.f32 %v11646, %v10898
    %v11720 = vmul.f32 %v11651, %v10899
    %v11721 = vmul.f32 %v11656, %v10900
    %v11722 = vmul.f32 %v11661, %v10901
    %v11723 = vmul.f32 %v11666, %v10902
    %v11724 = vmul.f32 %v11671, %v10903
    %v11725 = vmul.f32 %v11676, %v10904
    %v11726 = vmul.f32 %v11681, %v10905
    %v11727 = vmul.f32 %v11686, %v10906
    %v11728 = vmul.f32 %v11691, %v10907
    %v11729 = vmul.f32 %v11696, %v10908
    %v11730 = vmul.f32 %v11701, %v10909
    %v11731 = vmul.f32 %v11706, %v10910
    %v11732 = vmul.f32 %v11711, %v10911
    %v11733 = vmul.f32 %v11716, %v10912
    %v11734 = vsel %vm127, %v11718, 0.0
    %v11735 = vrot.slane %v11734, 4
    %v11736 = vadd.f32 %v11734, %v11735
    %v11737 = vrot.slane %v11736, 2
    %v11738 = vadd.f32 %v11736, %v11737
    %v11739 = vrot.slane %v11738, 1
    %v11740 = vadd.f32 %v11738, %v11739
    %v11741 = vsel %vm127, %v11719, 0.0
    %v11742 = vrot.slane %v11741, 4
    %v11743 = vadd.f32 %v11741, %v11742
    %v11744 = vrot.slane %v11743, 2
    %v11745 = vadd.f32 %v11743, %v11744
    %v11746 = vrot.slane %v11745, 1
    %v11747 = vadd.f32 %v11745, %v11746
    %v11748 = vsel %vm127, %v11720, 0.0
    %v11749 = vrot.slane %v11748, 4
    %v11750 = vadd.f32 %v11748, %v11749
    %v11751 = vrot.slane %v11750, 2
    %v11752 = vadd.f32 %v11750, %v11751
    %v11753 = vrot.slane %v11752, 1
    %v11754 = vadd.f32 %v11752, %v11753
    %v11755 = vsel %vm127, %v11721, 0.0
    %v11756 = vrot.slane %v11755, 4
    %v11757 = vadd.f32 %v11755, %v11756
    %v11758 = vrot.slane %v11757, 2
    %v11759 = vadd.f32 %v11757, %v11758
    %v11760 = vrot.slane %v11759, 1
    %v11761 = vadd.f32 %v11759, %v11760
    %v11762 = vsel %vm127, %v11722, 0.0
    %v11763 = vrot.slane %v11762, 4
    %v11764 = vadd.f32 %v11762, %v11763
    %v11765 = vrot.slane %v11764, 2
    %v11766 = vadd.f32 %v11764, %v11765
    %v11767 = vrot.slane %v11766, 1
    %v11768 = vadd.f32 %v11766, %v11767
    %v11769 = vsel %vm127, %v11723, 0.0
    %v11770 = vrot.slane %v11769, 4
    %v11771 = vadd.f32 %v11769, %v11770
    %v11772 = vrot.slane %v11771, 2
    %v11773 = vadd.f32 %v11771, %v11772
    %v11774 = vrot.slane %v11773, 1
    %v11775 = vadd.f32 %v11773, %v11774
    %v11776 = vsel %vm127, %v11724, 0.0
    %v11777 = vrot.slane %v11776, 4
    %v11778 = vadd.f32 %v11776, %v11777
    %v11779 = vrot.slane %v11778, 2
    %v11780 = vadd.f32 %v11778, %v11779
    %v11781 = vrot.slane %v11780, 1
    %v11782 = vadd.f32 %v11780, %v11781
    %v11783 = vsel %vm127, %v11725, 0.0
    %v11784 = vrot.slane %v11783, 4
    %v11785 = vadd.f32 %v11783, %v11784
    %v11786 = vrot.slane %v11785, 2
    %v11787 = vadd.f32 %v11785, %v11786
    %v11788 = vrot.slane %v11787, 1
    %v11789 = vadd.f32 %v11787, %v11788
    %v11790 = vsel %vm127, %v11726, 0.0
    %v11791 = vrot.slane %v11790, 4
    %v11792 = vadd.f32 %v11790, %v11791
    %v11793 = vrot.slane %v11792, 2
    %v11794 = vadd.f32 %v11792, %v11793
    %v11795 = vrot.slane %v11794, 1
    %v11796 = vadd.f32 %v11794, %v11795
    %v11797 = vsel %vm127, %v11727, 0.0
    %v11798 = vrot.slane %v11797, 4
    %v11799 = vadd.f32 %v11797, %v11798
    %v11800 = vrot.slane %v11799, 2
    %v11801 = vadd.f32 %v11799, %v11800
    %v11802 = vrot.slane %v11801, 1
    %v11803 = vadd.f32 %v11801, %v11802
    %v11804 = vsel %vm127, %v11728, 0.0
    %v11805 = vrot.slane %v11804, 4
    %v11806 = vadd.f32 %v11804, %v11805
    %v11807 = vrot.slane %v11806, 2
    %v11808 = vadd.f32 %v11806, %v11807
    %v11809 = vrot.slane %v11808, 1
    %v11810 = vadd.f32 %v11808, %v11809
    %v11811 = vsel %vm127, %v11729, 0.0
    %v11812 = vrot.slane %v11811, 4
    %v11813 = vadd.f32 %v11811, %v11812
    %v11814 = vrot.slane %v11813, 2
    %v11815 = vadd.f32 %v11813, %v11814
    %v11816 = vrot.slane %v11815, 1
    %v11817 = vadd.f32 %v11815, %v11816
    %v11818 = vsel %vm127, %v11730, 0.0
    %v11819 = vrot.slane %v11818, 4
    %v11820 = vadd.f32 %v11818, %v11819
    %v11821 = vrot.slane %v11820, 2
    %v11822 = vadd.f32 %v11820, %v11821
    %v11823 = vrot.slane %v11822, 1
    %v11824 = vadd.f32 %v11822, %v11823
    %v11825 = vsel %vm127, %v11731, 0.0
    %v11826 = vrot.slane %v11825, 4
    %v11827 = vadd.f32 %v11825, %v11826
    %v11828 = vrot.slane %v11827, 2
    %v11829 = vadd.f32 %v11827, %v11828
    %v11830 = vrot.slane %v11829, 1
    %v11831 = vadd.f32 %v11829, %v11830
    %v11832 = vsel %vm127, %v11732, 0.0
    %v11833 = vrot.slane %v11832, 4
    %v11834 = vadd.f32 %v11832, %v11833
    %v11835 = vrot.slane %v11834, 2
    %v11836 = vadd.f32 %v11834, %v11835
    %v11837 = vrot.slane %v11836, 1
    %v11838 = vadd.f32 %v11836, %v11837
    %v11839 = vsel %vm127, %v11733, 0.0
    %v11840 = vrot.slane %v11839, 4
    %v11841 = vadd.f32 %v11839, %v11840
    %v11842 = vrot.slane %v11841, 2
    %v11843 = vadd.f32 %v11841, %v11842
    %v11844 = vrot.slane %v11843, 1
    %v11845 = vadd.f32 %v11843, %v11844
    %v11862 = vsel %vm11229, %v11747, %v11740
    %v11863 = vsel %vm11231, %v11754, %v11862
    %v11864 = vsel %vm11233, %v11761, %v11863
    %v11865 = vsel %vm11235, %v11768, %v11864
    %v11866 = vsel %vm11237, %v11775, %v11865
    %v11867 = vsel %vm11239, %v11782, %v11866
    %v11868 = vsel %vm11241, %v11789, %v11867
    %v11869 = vsel %vm11229, %v11803, %v11796
    %v11870 = vsel %vm11231, %v11810, %v11869
    %v11871 = vsel %vm11233, %v11817, %v11870
    %v11872 = vsel %vm11235, %v11824, %v11871
    %v11873 = vsel %vm11237, %v11831, %v11872
    %v11874 = vsel %vm11239, %v11838, %v11873
    %v11875 = vsel %vm11241, %v11845, %v11874
    %11878 = vst.msk [vmem:[#allocation2] sm:$0xff] %vm127, %v11868
    %11879 = vst.msk [vmem:[#allocation2 + $0x8] sm:$0xff] %vm127, %v11875
    // Predicated region
    $region30: #{text_encoder_forward.1} parent=1 // pred_check
      _
    $region31: #{text_encoder_forward.1} parent=1 // pred_check_branch
      %11881 = sbr.rel (0) target = $region33
    $region32: #{text_encoder_forward.1} parent=1 // pred_region
      %s11883 = ssub.s32 256, 256
      %11884 = vsyncadd [#allocation3], %s11883
      %s11885 = sshll.u32 [#allocation2], 4
      %s11886 = int_to_ptr.vmem [resolvable:$true] %s11885
      %11891 = dma.vmem_to_hbm [thread:$0]  %s11886, 256, %s7, [#allocation3], 128, 128, 8
    $region33: #{text_encoder_forward.1} parent=1 // pred_fallthru
      _
    // Predicated region
    $region34: #{text_encoder_forward.1} parent=1 // pred_check
      _
    $region35: #{text_encoder_forward.1} parent=1 // pred_check_branch
      %11893 = sbr.rel (0) target = $region37
    $region36: #{text_encoder_forward.1} parent=1 // pred_region
      %11894 = dma.done [#allocation3], 256
    $region37: #{text_encoder_forward.1} parent=1 // pred_fallthru
      _
    %11895 = vsyncpa [#allocation3], 1

</llo_original>
